<compile_context>
chip_gen: v7x
topology: tpu7x:2x2x1
jax: 0.10.0
libtpu: 0.0.40
codegen_flags: <defaults>
</compile_context>

<pallas_src>
import functools

import jax
import jax.numpy as jnp
import numpy as np
from jax.experimental import pallas as pl
from jax.experimental.pallas import tpu as pltpu

EPS = 1e-5


# --------------------------------------------------------------------------
# Helpers
# --------------------------------------------------------------------------
def _vmem_limit_bytes():
    """Explicit scoped-VMEM limit with headroom, per-generation."""
    try:
        cap = pltpu.get_tpu_info().vmem_capacity_bytes
    except Exception:
        cap = 64 * 1024 * 1024
    return int(min(cap - 16 * 1024 * 1024, 100 * 1024 * 1024))


def _pick_tile_m(m, row_bytes):
    """Row-tile size for the 1x1 stages, derived from the VMEM budget.

    row_bytes: worst-case bytes of one row of (input block + output block).
    Returns (tile_m, m_pad). If m has no suitable divisor, m is padded up and
    the padded rows are masked out of the BN statistics in-kernel.
    """
    budget = _vmem_limit_bytes() // 2                # headroom: weights/stats
    cap = budget // max(1, 2 * row_bytes)            # double-buffered in+out
    cap = min(cap, 1024, max(8, (m // 2 // 8) * 8))  # keep the grid >= 2 steps
    cap = max(8, (cap // 8) * 8)
    best = 0
    for t in range(8, cap + 1, 8):                   # exact divisor: no padding
        if m % t == 0:
            best = t
    if best >= max(8, cap // 4):
        return best, m
    tile = cap                                       # pad + mask the tail
    return tile, ((m + tile - 1) // tile) * tile


def _tile_stats(y, valid=None):
    """(1, 3, C) block of per-tile [sum, M2, count] over rows of f32 y."""
    if valid is None:
        n = float(y.shape[0])
        s = jnp.sum(y, axis=0, keepdims=True)
        dev = y - s / n
    else:
        vf = valid.astype(jnp.float32)               # (rows, 1)
        n = jnp.sum(vf)
        s = jnp.sum(y * vf, axis=0, keepdims=True)
        dev = (y - s / jnp.maximum(n, 1.0)) * vf
    m2 = jnp.sum(dev * dev, axis=0, keepdims=True)
    cnt = jnp.zeros_like(s) + n
    return jnp.concatenate([s, m2, cnt], axis=0)[None]


def _fold_bn(st, count, gamma, beta):
    """st: (T, 3, C) per-tile [sum, M2, n].  Welford merge across tiles.

    Returns per-channel (scale, bias) (1, C) f32 with bn(y) = y*scale + bias
    (batch statistics, biased variance)."""
    s, m2, n = st[:, 0, :], st[:, 1, :], st[:, 2, :]
    mean = jnp.sum(s, axis=0) / count
    mean_t = s / jnp.maximum(n, 1.0)
    m2_tot = jnp.sum(m2, axis=0) + jnp.sum(n * (mean_t - mean) ** 2, axis=0)
    var = jnp.maximum(m2_tot / count, 0.0)
    scale = gamma * jax.lax.rsqrt(var + EPS)
    bias = beta - mean * scale
    return (scale.reshape(1, -1).astype(jnp.float32),
            bias.reshape(1, -1).astype(jnp.float32))


# --------------------------------------------------------------------------
# Kernels
# --------------------------------------------------------------------------
def conv1x1_stats_kernel(x_ref, w_ref, y_ref, st_ref, *, m_valid, tile_m):
    """conv1: y = x @ w1 (bf16 MXU operands, f32 accum) + BN1 partial stats.

    x_ref: (TILE_M, Cin) bf16, w_ref: (Cin, C1) bf16,
    y_ref: (TILE_M, C1) bf16, st_ref: (1, 3, C1) f32.
    """
    y = jnp.dot(x_ref[...], w_ref[...], preferred_element_type=jnp.float32)
    y_ref[...] = y.astype(y_ref.dtype)
    valid = None
    if m_valid % tile_m != 0:        # only traced when M was padded
        row = (pl.program_id(0) * tile_m
               + jax.lax.broadcasted_iota(jnp.int32, (tile_m, 1), 0))
        valid = row < m_valid
    st_ref[...] = _tile_stats(y, valid)


def conv3x3_stats_kernel(y1_ref, s1_ref, b1_ref, w2_ref, y2_ref, st_ref,
                         xp_ref):
    """bn1(scale/bias)+relu on conv1's output, then 3x3 conv (stride 1,
    pad 1) as nine accumulating K=C matmuls, plus per-image BN2 stats.

    y1_ref: (1, H, W, C) bf16 conv1 output for one image
    s1_ref/b1_ref: (1, C) f32 folded BN1 affine
    w2_ref: (9, C, Cout) bf16 -- tap (dy, dx) at index 3*dy+dx
    y2_ref: (1, H, W, Cout) bf16, st_ref: (1, 3, Cout) f32
    xp_ref: (H+2, W+2, C) bf16 VMEM scratch (zero-pad fused in-kernel).
    """
    _, H, W, C = y1_ref.shape
    Cout = w2_ref.shape[-1]

    # Zero only the 1-pixel halo ring; the interior is fully overwritten
    # below (safe under "parallel" grid splitting, unlike a zero-once scheme).
    zrow = jnp.zeros((1, W + 2, C), xp_ref.dtype)
    xp_ref[0:1, :, :] = zrow
    xp_ref[H + 1:H + 2, :, :] = zrow
    zcol = jnp.zeros((H, 1, C), xp_ref.dtype)
    xp_ref[1:H + 1, 0:1, :] = zcol
    xp_ref[1:H + 1, W + 1:W + 2, :] = zcol

    # bn1 + relu (epilogue of conv1, fused here); VPU math stays f32.
    s1 = s1_ref[...].reshape(1, 1, C)
    b1 = b1_ref[...].reshape(1, 1, C)
    a1 = jnp.maximum(y1_ref[0].astype(jnp.float32) * s1 + b1, 0.0)
    xp_ref[1:H + 1, 1:W + 1, :] = a1.astype(xp_ref.dtype)

    # Nine accumulating taps: (H*W, C) x (C, Cout) each, shared f32 accumulator
    # (replaces the im2col concat, ~9x less VMEM and no lane-axis shuffle).
    acc = jnp.zeros((H * W, Cout), jnp.float32)
    for dy in range(3):
        for dx in range(3):
            tap = xp_ref[dy:dy + H, dx:dx + W, :].reshape(H * W, C)
            acc += jnp.dot(tap, w2_ref[3 * dy + dx],
                           preferred_element_type=jnp.float32)

    y2_ref[...] = acc.reshape(1, H, W, Cout).astype(y2_ref.dtype)
    st_ref[...] = _tile_stats(acc)


def conv1x1_apply_stats_kernel(y2_ref, s_ref, b_ref, w_ref, y3_ref, st_ref,
                               *, m_valid, tile_m):
    """bn2(scale/bias)+relu on conv2's output, then conv3 (1x1) matmul,
    plus per-tile BN3 partial stats.

    y2_ref: (TILE_M, C1) bf16, s/b: (1, C1) f32, w_ref: (C1, C3) bf16,
    y3_ref: (TILE_M, C3) f32, st_ref: (1, 3, C3) f32.
    """
    a = jnp.maximum(y2_ref[...].astype(jnp.float32) * s_ref[...] + b_ref[...],
                    0.0)
    valid = None
    if m_valid % tile_m != 0:        # only traced when M was padded
        row = (pl.program_id(0) * tile_m
               + jax.lax.broadcasted_iota(jnp.int32, (tile_m, 1), 0))
        valid = row < m_valid
        a = jnp.where(valid, a, 0.0)
    y = jnp.dot(a.astype(jnp.bfloat16), w_ref[...],
                preferred_element_type=jnp.float32)
    y3_ref[...] = y
    st_ref[...] = _tile_stats(y, valid)


# --------------------------------------------------------------------------
# Wrapper
# --------------------------------------------------------------------------
def _bottleneck_forward(x_nchw, params):
    """Bottleneck forward. x_nchw: (N, inplanes, H, W) float32."""
    N, Cin, H, W = x_nchw.shape
    C1 = params["w1"].shape[1]          # planes
    C3 = params["w3"].shape[1]          # planes * expansion
    assert C3 == Cin, "downsample=None requires inplanes == planes*expansion"
    M = N * H * W

    # Worst-case bytes per row of (input + output) block across stages 1 & 3.
    row_bytes = max(Cin * 2 + C1 * 2,        # stage 1: bf16 in, bf16 out
                    C1 * 2 + C3 * 4)         # stage 3: bf16 in, f32 out
    TILE_M, M_pad = _pick_tile_m(M, row_bytes)
    num_m = M_pad // TILE_M

    cp = pltpu.CompilerParams(dimension_semantics=("parallel",),
                              vmem_limit_bytes=_vmem_limit_bytes())

    x_nhwc = jnp.transpose(x_nchw, (0, 2, 3, 1)).astype(jnp.float32)
    x_flat = x_nhwc.reshape(M, Cin)                      # f32 residual
    x_bf = x_flat.astype(jnp.bfloat16)
    if M_pad != M:
        x_bf = jnp.pad(x_bf, ((0, M_pad - M), (0, 0)))

    w1 = params["w1"].astype(jnp.bfloat16)                     # (Cin, C1)
    w2 = params["w2"].astype(jnp.bfloat16).reshape(9, C1, C1)  # (9, C1, C1)
    w3 = params["w3"].astype(jnp.bfloat16)                     # (C1, C3)

    # ---- Stage 1: conv1 (1x1) + BN1 partial stats (tiled over rows) -------
    k1 = functools.partial(conv1x1_stats_kernel, m_valid=M, tile_m=TILE_M)
    y1, st1 = pl.pallas_call(
        k1,
        grid=(num_m,),
        in_specs=[pl.BlockSpec((TILE_M, Cin), lambda i: (i, 0)),
                  pl.BlockSpec((Cin, C1), lambda i: (0, 0))],
        out_specs=[pl.BlockSpec((TILE_M, C1), lambda i: (i, 0)),
                   pl.BlockSpec((1, 3, C1), lambda i: (i, 0, 0))],
        out_shape=(jax.ShapeDtypeStruct((M_pad, C1), jnp.bfloat16),
                   jax.ShapeDtypeStruct((num_m, 3, C1), jnp.float32)),
        compiler_params=cp,
    )(x_bf, w1)
    scale1, bias1 = _fold_bn(st1, M, params["g1"], params["b1"])

    # ---- Stage 2: bn1+relu, conv2 (3x3) + BN2 partial stats (per image) ---
    # TODO(synk): for large H*W (v7x 64 MiB VMEM), tile over output rows with
    # a 1-row halo instead of whole-image blocks.
    # TODO(synk): pipeline_mode=pl.Buffered(1) on the constant weight spec /
    # pl.Buffered(3) on the mem-bound 1x1 specs once pipeline_mode is
    # universally available.
    y1_img = y1[:M].reshape(N, H, W, C1)
    y2, st2 = pl.pallas_call(
        conv3x3_stats_kernel,
        grid=(N,),
        in_specs=[pl.BlockSpec((1, H, W, C1), lambda n: (n, 0, 0, 0)),
                  pl.BlockSpec((1, C1), lambda n: (0, 0)),
                  pl.BlockSpec((1, C1), lambda n: (0, 0)),
                  pl.BlockSpec((9, C1, C1), lambda n: (0, 0, 0))],
        out_specs=[pl.BlockSpec((1, H, W, C1), lambda n: (n, 0, 0, 0)),
                   pl.BlockSpec((1, 3, C1), lambda n: (n, 0, 0))],
        out_shape=(jax.ShapeDtypeStruct((N, H, W, C1), jnp.bfloat16),
                   jax.ShapeDtypeStruct((N, 3, C1), jnp.float32)),
        scratch_shapes=[pltpu.VMEM((H + 2, W + 2, C1), jnp.bfloat16)],
        compiler_params=cp,
    )(y1_img, scale1, bias1, w2)
    scale2, bias2 = _fold_bn(st2, M, params["g2"], params["b2"])

    # ---- Stage 3: bn2+relu, conv3 (1x1) + BN3 partial stats (tiled) -------
    y2_flat = y2.reshape(M, C1)
    if M_pad != M:
        y2_flat = jnp.pad(y2_flat, ((0, M_pad - M), (0, 0)))
    k3 = functools.partial(conv1x1_apply_stats_kernel,
                           m_valid=M, tile_m=TILE_M)
    y3, st3 = pl.pallas_call(
        k3,
        grid=(num_m,),
        in_specs=[pl.BlockSpec((TILE_M, C1), lambda i: (i, 0)),
                  pl.BlockSpec((1, C1), lambda i: (0, 0)),
                  pl.BlockSpec((1, C1), lambda i: (0, 0)),
                  pl.BlockSpec((C1, C3), lambda i: (0, 0))],
        out_specs=[pl.BlockSpec((TILE_M, C3), lambda i: (i, 0)),
                   pl.BlockSpec((1, 3, C3), lambda i: (i, 0, 0))],
        out_shape=(jax.ShapeDtypeStruct((M_pad, C3), jnp.float32),
                   jax.ShapeDtypeStruct((num_m, 3, C3), jnp.float32)),
        compiler_params=cp,
    )(y2_flat, scale2, bias2, w3)
    scale3, bias3 = _fold_bn(st3, M, params["g3"], params["b3"])

    # ---- Epilogue: bn3 + residual add + relu in plain jnp so XLA fuses it
    # with the NHWC->NCHW transpose (saves one full-tensor HBM round trip). --
    out_flat = jnp.maximum(y3[:M] * scale3 + bias3 + x_flat, 0.0)
    return jnp.transpose(out_flat.reshape(N, H, W, C3), (0, 3, 1, 2))


bottleneck_forward = jax.jit(_bottleneck_forward)


# --------------------------------------------------------------------------
# Pure-JAX reference mirroring the kernel's bf16 mixed precision
# (bf16 conv operands + bf16 storage of y1/y2, f32 accumulation and BN math).
# --------------------------------------------------------------------------
def ref_forward(x_nchw, p):
    f32, bf16 = jnp.float32, jnp.bfloat16
    x = jnp.transpose(x_nchw, (0, 2, 3, 1)).astype(f32)
    dn = ("NHWC", "HWIO", "NHWC")

    def conv(a, w):
        return jax.lax.conv_general_dilated(
            a.astype(bf16), w.astype(bf16), (1, 1), "SAME",
            dimension_numbers=dn, preferred_element_type=f32)

    def bn(y_stats, y_apply, g, b):
        m = jnp.mean(y_stats, axis=(0, 1, 2), keepdims=True)
        v = jnp.mean((y_stats - m) ** 2, axis=(0, 1, 2), keepdims=True)
        return ((y_apply - m) * g.reshape(1, 1, 1, -1) * jax.lax.rsqrt(v + EPS)
                + b.reshape(1, 1, 1, -1))

    identity = x
    w1 = p["w1"].reshape(1, 1, *p["w1"].shape)
    w3 = p["w3"].reshape(1, 1, *p["w3"].shape)

    y1 = conv(x, w1)
    y1r = y1.astype(bf16).astype(f32)            # kernel stores y1 as bf16
    a1 = jax.nn.relu(bn(y1, y1r, p["g1"], p["b1"]))

    y2 = conv(a1, p["w2"])
    y2r = y2.astype(bf16).astype(f32)            # kernel stores y2 as bf16
    a2 = jax.nn.relu(bn(y2, y2r, p["g2"], p["b2"]))

    y3 = conv(a2, w3)
    out = jax.nn.relu(bn(y3, y3, p["g3"], p["b3"]) + identity)
    return jnp.transpose(out, (0, 3, 1, 2))


# --------------------------------------------------------------------------
# Main
# --------------------------------------------------------------------------
if __name__ == "__main__":
    key = jax.random.PRNGKey(0)
    # ResNet-50 layer1 non-downsample block config (inplanes=256, planes=64):
    # real channel widths so the wide tensors are 128-lane aligned, but small
    # batch/spatial extents to stay a quick self-test.
    planes = 64
    inplanes = planes * 4            # expansion = 4, downsample=None
    N, H, W = 2, 16, 16

    k = jax.random.split(key, 4)
    params = {
        # conv weights stored channels-last: (Cin, Cout) for 1x1,
        # (3, 3, Cin, Cout) for 3x3
        "w1": 0.1 * jax.random.normal(k[0], (inplanes, planes), jnp.float32),
        "w2": 0.1 * jax.random.normal(k[1], (3, 3, planes, planes), jnp.float32),
        "w3": 0.1 * jax.random.normal(k[2], (planes, planes * 4), jnp.float32),
        # fresh nn.BatchNorm2d: weight=1, bias=0
        "g1": jnp.ones((planes,), jnp.float32),
        "b1": jnp.zeros((planes,), jnp.float32),
        "g2": jnp.ones((planes,), jnp.float32),
        "b2": jnp.zeros((planes,), jnp.float32),
        "g3": jnp.ones((planes * 4,), jnp.float32),
        "b3": jnp.zeros((planes * 4,), jnp.float32),
    }

    x = jax.random.normal(k[3], (N, inplanes, H, W), jnp.float32)

    out = jax.block_until_ready(bottleneck_forward(x, params))
    ref = jax.block_until_ready(ref_forward(x, params))

    assert out.shape == (N, inplanes, H, W)
    # bf16 MXU operands + bf16 intermediate storage => ~1e-3 scale deviations;
    # tolerance sized accordingly (structural bugs show up at >1e-1).
    np.testing.assert_allclose(np.asarray(out), np.asarray(ref),
                               rtol=1e-2, atol=1e-2)
    print("KERNEL_OK")
</pallas_src>

<mosaic_0001>
module attributes {stable_mosaic.version = 11 : i64} {
  func.func @conv1x1_stats_kernel(%arg0: i32, %arg1: memref<256x256xbf16, #tpu.memory_space<vmem>>, %arg2: memref<256x64xbf16, #tpu.memory_space<vmem>>, %arg3: memref<256x64xbf16, #tpu.memory_space<vmem>>, %arg4: memref<1x3x64xf32, #tpu.memory_space<vmem>>) attributes {dimension_semantics = [#tpu.dimension_semantics<parallel>], iteration_bounds = array<i64: 2>, scalar_prefetch = 0 : i64, scratch_operands = 0 : i64, tpu.core_type = #tpu.core_type<tc>, window_params = [{transform_indices = @transform_0, window_bounds = array<i64: 256, 256>}, {pipeline_mode = #tpu.pipeline_mode<synchronous>, transform_indices = @transform_1, window_bounds = array<i64: 256, 64>}, {transform_indices = @transform_2, window_bounds = array<i64: 256, 64>}, {transform_indices = @transform_3, window_bounds = array<i64: 1, 3, 64>}]} {
    %c0 = arith.constant 0 : index
    %c0_0 = arith.constant 0 : index
    %0 = vector.load %arg1[%c0, %c0_0] : memref<256x256xbf16, #tpu.memory_space<vmem>>, vector<256x256xbf16>
    %c0_1 = arith.constant 0 : index
    %c0_2 = arith.constant 0 : index
    %1 = vector.load %arg2[%c0_1, %c0_2] : memref<256x64xbf16, #tpu.memory_space<vmem>>, vector<256x64xbf16>
    %cst = arith.constant dense<0.000000e+00> : vector<256x64xf32>
    %2 = tpu.matmul %0, %1, %cst {dimension_numbers = #tpu.dot_dimension_numbers<[1], [0], [0], [1], [0, 0, 1, 1], [], []>} : vector<256x256xbf16>, vector<256x64xbf16>, vector<256x64xf32> -> vector<256x64xf32>
    %3 = arith.truncf %2 : vector<256x64xf32> to vector<256x64xbf16>
    %c0_3 = arith.constant 0 : index
    %c0_4 = arith.constant 0 : index
    %4 = vector.load %arg3[%c0_3, %c0_4] : memref<256x64xbf16, #tpu.memory_space<vmem>>, vector<256x64xbf16>
    tpu.vector_store %arg3[%c0_3, %c0_4], %3 {strides = array<i32>} : memref<256x64xbf16, #tpu.memory_space<vmem>>, vector<256x64xbf16>,
    %cst_5 = arith.constant dense<0.000000e+00> : vector<64xf32>
    %5 = vector.multi_reduction <add>, %2, %cst_5 [0] : vector<256x64xf32> to vector<64xf32>
    %6 = vector.shape_cast %5 : vector<64xf32> to vector<1x64xf32>
    %cst_6 = arith.constant 2.560000e+02 : f32
    %7 = vector.broadcast %cst_6 : f32 to vector<1x64xf32>
    %8 = arith.divf %6, %7 : vector<1x64xf32>
    %9 = vector.broadcast %8 : vector<1x64xf32> to vector<256x64xf32>
    %10 = arith.subf %2, %9 : vector<256x64xf32>
    %11 = arith.mulf %10, %10 : vector<256x64xf32>
    %cst_7 = arith.constant dense<0.000000e+00> : vector<64xf32>
    %12 = vector.multi_reduction <add>, %11, %cst_7 [0] : vector<256x64xf32> to vector<64xf32>
    %13 = vector.shape_cast %12 : vector<64xf32> to vector<1x64xf32>
    %cst_8 = arith.constant 0.000000e+00 : f32
    %14 = vector.broadcast %cst_8 : f32 to vector<1x64xf32>
    %cst_9 = arith.constant 2.560000e+02 : f32
    %15 = vector.broadcast %cst_9 : f32 to vector<1x64xf32>
    %16 = arith.addf %14, %15 : vector<1x64xf32>
    %17 = tpu.concatenate %6, %13, %16 in 0 : vector<1x64xf32>, vector<1x64xf32>, vector<1x64xf32> -> vector<3x64xf32>
    %18 = vector.shape_cast %17 : vector<3x64xf32> to vector<1x3x64xf32>
    %c0_10 = arith.constant 0 : index
    %c0_11 = arith.constant 0 : index
    %c0_12 = arith.constant 0 : index
    %19 = vector.load %arg4[%c0_10, %c0_11, %c0_12] : memref<1x3x64xf32, #tpu.memory_space<vmem>>, vector<1x3x64xf32>
    tpu.vector_store %arg4[%c0_10, %c0_11, %c0_12], %18 {strides = array<i32>} : memref<1x3x64xf32, #tpu.memory_space<vmem>>, vector<1x3x64xf32>,
    return
  }
  func.func @transform_0(%arg0: i32) -> (i32, i32) {
    %c0_i32 = arith.constant 0 : i32
    %c0_i32_0 = arith.constant 0 : i32
    return %arg0, %c0_i32 : i32, i32
  }
  func.func @transform_1(%arg0: i32) -> (i32, i32) {
    %c0_i32 = arith.constant 0 : i32
    %c0_i32_0 = arith.constant 0 : i32
    %c0_i32_1 = arith.constant 0 : i32
    return %c0_i32, %c0_i32_0 : i32, i32
  }
  func.func @transform_2(%arg0: i32) -> (i32, i32) {
    %c0_i32 = arith.constant 0 : i32
    %c0_i32_0 = arith.constant 0 : i32
    return %arg0, %c0_i32 : i32, i32
  }
  func.func @transform_3(%arg0: i32) -> (i32, i32, i32) {
    %c0_i32 = arith.constant 0 : i32
    %c0_i32_0 = arith.constant 0 : i32
    %c0_i32_1 = arith.constant 0 : i32
    return %arg0, %c0_i32, %c0_i32_0 : i32, i32, i32
  }
}

module attributes {stable_mosaic.version = 11 : i64} {
  func.func @conv1x1_apply_stats_kernel(%arg0: i32, %arg1: memref<256x64xbf16, #tpu.memory_space<vmem>>, %arg2: memref<1x64xf32, #tpu.memory_space<vmem>>, %arg3: memref<1x64xf32, #tpu.memory_space<vmem>>, %arg4: memref<64x256xbf16, #tpu.memory_space<vmem>>, %arg5: memref<256x256xf32, #tpu.memory_space<vmem>>, %arg6: memref<1x3x256xf32, #tpu.memory_space<vmem>>) attributes {dimension_semantics = [#tpu.dimension_semantics<parallel>], iteration_bounds = array<i64: 2>, scalar_prefetch = 0 : i64, scratch_operands = 0 : i64, tpu.core_type = #tpu.core_type<tc>, window_params = [{transform_indices = @transform_0, window_bounds = array<i64: 256, 64>}, {pipeline_mode = #tpu.pipeline_mode<synchronous>, transform_indices = @transform_1, window_bounds = array<i64: 1, 64>}, {pipeline_mode = #tpu.pipeline_mode<synchronous>, transform_indices = @transform_2, window_bounds = array<i64: 1, 64>}, {pipeline_mode = #tpu.pipeline_mode<synchronous>, transform_indices = @transform_3, window_bounds = array<i64: 64, 256>}, {transform_indices = @transform_4, window_bounds = array<i64: 256, 256>}, {transform_indices = @transform_5, window_bounds = array<i64: 1, 3, 256>}]} {
    %c0 = arith.constant 0 : index
    %c0_0 = arith.constant 0 : index
    %0 = vector.load %arg1[%c0, %c0_0] : memref<256x64xbf16, #tpu.memory_space<vmem>>, vector<256x64xbf16>
    %1 = arith.extf %0 : vector<256x64xbf16> to vector<256x64xf32>
    %c0_1 = arith.constant 0 : index
    %c0_2 = arith.constant 0 : index
    %2 = vector.load %arg2[%c0_1, %c0_2] : memref<1x64xf32, #tpu.memory_space<vmem>>, vector<1x64xf32>
    %3 = vector.broadcast %2 : vector<1x64xf32> to vector<256x64xf32>
    %4 = arith.mulf %1, %3 : vector<256x64xf32>
    %c0_3 = arith.constant 0 : index
    %c0_4 = arith.constant 0 : index
    %5 = vector.load %arg3[%c0_3, %c0_4] : memref<1x64xf32, #tpu.memory_space<vmem>>, vector<1x64xf32>
    %6 = vector.broadcast %5 : vector<1x64xf32> to vector<256x64xf32>
    %7 = arith.addf %4, %6 : vector<256x64xf32>
    %cst = arith.constant 0.000000e+00 : f32
    %8 = vector.broadcast %cst : f32 to vector<256x64xf32>
    %9 = arith.maximumf %7, %8 : vector<256x64xf32>
    %10 = arith.truncf %9 : vector<256x64xf32> to vector<256x64xbf16>
    %c0_5 = arith.constant 0 : index
    %c0_6 = arith.constant 0 : index
    %11 = vector.load %arg4[%c0_5, %c0_6] : memref<64x256xbf16, #tpu.memory_space<vmem>>, vector<64x256xbf16>
    %cst_7 = arith.constant dense<0.000000e+00> : vector<256x256xf32>
    %12 = tpu.matmul %10, %11, %cst_7 {dimension_numbers = #tpu.dot_dimension_numbers<[1], [0], [0], [1], [0, 0, 1, 1], [], []>} : vector<256x64xbf16>, vector<64x256xbf16>, vector<256x256xf32> -> vector<256x256xf32>
    %c0_8 = arith.constant 0 : index
    %c0_9 = arith.constant 0 : index
    %13 = vector.load %arg5[%c0_8, %c0_9] : memref<256x256xf32, #tpu.memory_space<vmem>>, vector<256x256xf32>
    tpu.vector_store %arg5[%c0_8, %c0_9], %12 {strides = array<i32>} : memref<256x256xf32, #tpu.memory_space<vmem>>, vector<256x256xf32>,
    %cst_10 = arith.constant dense<0.000000e+00> : vector<256xf32>
    %14 = vector.multi_reduction <add>, %12, %cst_10 [0] : vector<256x256xf32> to vector<256xf32>
    %15 = vector.shape_cast %14 : vector<256xf32> to vector<1x256xf32>
    %cst_11 = arith.constant 2.560000e+02 : f32
    %16 = vector.broadcast %cst_11 : f32 to vector<1x256xf32>
    %17 = arith.divf %15, %16 : vector<1x256xf32>
    %18 = vector.broadcast %17 : vector<1x256xf32> to vector<256x256xf32>
    %19 = arith.subf %12, %18 : vector<256x256xf32>
    %20 = arith.mulf %19, %19 : vector<256x256xf32>
    %cst_12 = arith.constant dense<0.000000e+00> : vector<256xf32>
    %21 = vector.multi_reduction <add>, %20, %cst_12 [0] : vector<256x256xf32> to vector<256xf32>
    %22 = vector.shape_cast %21 : vector<256xf32> to vector<1x256xf32>
    %cst_13 = arith.constant 0.000000e+00 : f32
    %23 = vector.broadcast %cst_13 : f32 to vector<1x256xf32>
    %cst_14 = arith.constant 2.560000e+02 : f32
    %24 = vector.broadcast %cst_14 : f32 to vector<1x256xf32>
    %25 = arith.addf %23, %24 : vector<1x256xf32>
    %26 = tpu.concatenate %15, %22, %25 in 0 : vector<1x256xf32>, vector<1x256xf32>, vector<1x256xf32> -> vector<3x256xf32>
    %27 = vector.shape_cast %26 : vector<3x256xf32> to vector<1x3x256xf32>
    %c0_15 = arith.constant 0 : index
    %c0_16 = arith.constant 0 : index
    %c0_17 = arith.constant 0 : index
    %28 = vector.load %arg6[%c0_15, %c0_16, %c0_17] : memref<1x3x256xf32, #tpu.memory_space<vmem>>, vector<1x3x256xf32>
    tpu.vector_store %arg6[%c0_15, %c0_16, %c0_17], %27 {strides = array<i32>} : memref<1x3x256xf32, #tpu.memory_space<vmem>>, vector<1x3x256xf32>,
    return
  }
  func.func @transform_0(%arg0: i32) -> (i32, i32) {
    %c0_i32 = arith.constant 0 : i32
    %c0_i32_0 = arith.constant 0 : i32
    return %arg0, %c0_i32 : i32, i32
  }
  func.func @transform_1(%arg0: i32) -> (i32, i32) {
    %c0_i32 = arith.constant 0 : i32
    %c0_i32_0 = arith.constant 0 : i32
    %c0_i32_1 = arith.constant 0 : i32
    return %c0_i32, %c0_i32_0 : i32, i32
  }
  func.func @transform_2(%arg0: i32) -> (i32, i32) {
    %c0_i32 = arith.constant 0 : i32
    %c0_i32_0 = arith.constant 0 : i32
    %c0_i32_1 = arith.constant 0 : i32
    return %c0_i32, %c0_i32_0 : i32, i32
  }
  func.func @transform_3(%arg0: i32) -> (i32, i32) {
    %c0_i32 = arith.constant 0 : i32
    %c0_i32_0 = arith.constant 0 : i32
    %c0_i32_1 = arith.constant 0 : i32
    return %c0_i32, %c0_i32_0 : i32, i32
  }
  func.func @transform_4(%arg0: i32) -> (i32, i32) {
    %c0_i32 = arith.constant 0 : i32
    %c0_i32_0 = arith.constant 0 : i32
    return %arg0, %c0_i32 : i32, i32
  }
  func.func @transform_5(%arg0: i32) -> (i32, i32, i32) {
    %c0_i32 = arith.constant 0 : i32
    %c0_i32_0 = arith.constant 0 : i32
    %c0_i32_1 = arith.constant 0 : i32
    return %arg0, %c0_i32, %c0_i32_0 : i32, i32, i32
  }
}

module attributes {stable_mosaic.version = 11 : i64} {
  func.func @conv3x3_stats_kernel(%arg0: i32, %arg1: memref<1x16x16x64xbf16, #tpu.memory_space<vmem>>, %arg2: memref<1x64xf32, #tpu.memory_space<vmem>>, %arg3: memref<1x64xf32, #tpu.memory_space<vmem>>, %arg4: memref<9x64x64xbf16, #tpu.memory_space<vmem>>, %arg5: memref<1x16x16x64xbf16, #tpu.memory_space<vmem>>, %arg6: memref<1x3x64xf32, #tpu.memory_space<vmem>>, %arg7: memref<18x18x64xbf16, #tpu.memory_space<vmem>>) attributes {dimension_semantics = [#tpu.dimension_semantics<parallel>], iteration_bounds = array<i64: 2>, scalar_prefetch = 0 : i64, scratch_operands = 1 : i64, tpu.core_type = #tpu.core_type<tc>, window_params = [{transform_indices = @transform_0, window_bounds = array<i64: 1, 16, 16, 64>}, {pipeline_mode = #tpu.pipeline_mode<synchronous>, transform_indices = @transform_1, window_bounds = array<i64: 1, 64>}, {pipeline_mode = #tpu.pipeline_mode<synchronous>, transform_indices = @transform_2, window_bounds = array<i64: 1, 64>}, {pipeline_mode = #tpu.pipeline_mode<synchronous>, transform_indices = @transform_3, window_bounds = array<i64: 9, 64, 64>}, {transform_indices = @transform_4, window_bounds = array<i64: 1, 16, 16, 64>}, {transform_indices = @transform_5, window_bounds = array<i64: 1, 3, 64>}]} {
    %cst = arith.constant 0.000000e+00 : bf16
    %0 = vector.broadcast %cst : bf16 to vector<1x18x64xbf16>
    %c0 = arith.constant 0 : index
    %c0_0 = arith.constant 0 : index
    %c0_1 = arith.constant 0 : index
    %1 = vector.load %arg7[%c0, %c0_0, %c0_1] : memref<18x18x64xbf16, #tpu.memory_space<vmem>>, vector<1x18x64xbf16>
    tpu.vector_store %arg7[%c0, %c0_0, %c0_1], %0 {strides = array<i32>} : memref<18x18x64xbf16, #tpu.memory_space<vmem>>, vector<1x18x64xbf16>,
    %c17 = arith.constant 17 : index
    %c0_2 = arith.constant 0 : index
    %c0_3 = arith.constant 0 : index
    %2 = vector.load %arg7[%c17, %c0_2, %c0_3] : memref<18x18x64xbf16, #tpu.memory_space<vmem>>, vector<1x18x64xbf16>
    tpu.vector_store %arg7[%c17, %c0_2, %c0_3], %0 {strides = array<i32>} : memref<18x18x64xbf16, #tpu.memory_space<vmem>>, vector<1x18x64xbf16>,
    %cst_4 = arith.constant 0.000000e+00 : bf16
    %3 = vector.broadcast %cst_4 : bf16 to vector<16x1x64xbf16>
    %c1 = arith.constant 1 : index
    %c0_5 = arith.constant 0 : index
    %c0_6 = arith.constant 0 : index
    %4 = vector.load %arg7[%c1, %c0_5, %c0_6] : memref<18x18x64xbf16, #tpu.memory_space<vmem>>, vector<16x1x64xbf16>
    tpu.vector_store %arg7[%c1, %c0_5, %c0_6], %3 {strides = array<i32>} : memref<18x18x64xbf16, #tpu.memory_space<vmem>>, vector<16x1x64xbf16>,
    %c1_7 = arith.constant 1 : index
    %c17_8 = arith.constant 17 : index
    %c0_9 = arith.constant 0 : index
    %5 = vector.load %arg7[%c1_7, %c17_8, %c0_9] : memref<18x18x64xbf16, #tpu.memory_space<vmem>>, vector<16x1x64xbf16>
    tpu.vector_store %arg7[%c1_7, %c17_8, %c0_9], %3 {strides = array<i32>} : memref<18x18x64xbf16, #tpu.memory_space<vmem>>, vector<16x1x64xbf16>,
    %c0_10 = arith.constant 0 : index
    %c0_11 = arith.constant 0 : index
    %6 = vector.load %arg2[%c0_10, %c0_11] : memref<1x64xf32, #tpu.memory_space<vmem>>, vector<1x64xf32>
    %7 = vector.shape_cast %6 : vector<1x64xf32> to vector<1x1x64xf32>
    %c0_12 = arith.constant 0 : index
    %c0_13 = arith.constant 0 : index
    %8 = vector.load %arg3[%c0_12, %c0_13] : memref<1x64xf32, #tpu.memory_space<vmem>>, vector<1x64xf32>
    %9 = vector.shape_cast %8 : vector<1x64xf32> to vector<1x1x64xf32>
    %c0_14 = arith.constant 0 : index
    %c0_15 = arith.constant 0 : index
    %c0_16 = arith.constant 0 : index
    %c0_17 = arith.constant 0 : index
    %10 = vector.load %arg1[%c0_14, %c0_15, %c0_16, %c0_17] : memref<1x16x16x64xbf16, #tpu.memory_space<vmem>>, vector<1x16x16x64xbf16>
    %11 = vector.shape_cast %10 : vector<1x16x16x64xbf16> to vector<16x16x64xbf16>
    %12 = arith.extf %11 : vector<16x16x64xbf16> to vector<16x16x64xf32>
    %13 = vector.broadcast %7 : vector<1x1x64xf32> to vector<16x16x64xf32>
    %14 = arith.mulf %12, %13 : vector<16x16x64xf32>
    %15 = vector.broadcast %9 : vector<1x1x64xf32> to vector<16x16x64xf32>
    %16 = arith.addf %14, %15 : vector<16x16x64xf32>
    %cst_18 = arith.constant 0.000000e+00 : f32
    %17 = vector.broadcast %cst_18 : f32 to vector<16x16x64xf32>
    %18 = arith.maximumf %16, %17 : vector<16x16x64xf32>
    %19 = arith.truncf %18 : vector<16x16x64xf32> to vector<16x16x64xbf16>
    %c1_19 = arith.constant 1 : index
    %c1_20 = arith.constant 1 : index
    %c0_21 = arith.constant 0 : index
    %20 = vector.load %arg7[%c1_19, %c1_20, %c0_21] : memref<18x18x64xbf16, #tpu.memory_space<vmem>>, vector<16x16x64xbf16>
    tpu.vector_store %arg7[%c1_19, %c1_20, %c0_21], %19 {strides = array<i32>} : memref<18x18x64xbf16, #tpu.memory_space<vmem>>, vector<16x16x64xbf16>,
    %cst_22 = arith.constant 0.000000e+00 : f32
    %21 = vector.broadcast %cst_22 : f32 to vector<256x64xf32>
    %c0_23 = arith.constant 0 : index
    %c0_24 = arith.constant 0 : index
    %c0_25 = arith.constant 0 : index
    %22 = vector.load %arg7[%c0_23, %c0_24, %c0_25] : memref<18x18x64xbf16, #tpu.memory_space<vmem>>, vector<16x16x64xbf16>
    %23 = vector.shape_cast %22 : vector<16x16x64xbf16> to vector<256x64xbf16>
    %c0_26 = arith.constant 0 : index
    %c0_27 = arith.constant 0 : index
    %c0_28 = arith.constant 0 : index
    %24 = vector.load %arg4[%c0_26, %c0_27, %c0_28] : memref<9x64x64xbf16, #tpu.memory_space<vmem>>, vector<1x64x64xbf16>
    %25 = vector.shape_cast %24 : vector<1x64x64xbf16> to vector<64x64xbf16>
    %cst_29 = arith.constant dense<0.000000e+00> : vector<256x64xf32>
    %26 = tpu.matmul %23, %25, %cst_29 {dimension_numbers = #tpu.dot_dimension_numbers<[1], [0], [0], [1], [0, 0, 1, 1], [], []>} : vector<256x64xbf16>, vector<64x64xbf16>, vector<256x64xf32> -> vector<256x64xf32>
    %27 = arith.addf %21, %26 : vector<256x64xf32>
    %c0_30 = arith.constant 0 : index
    %c1_31 = arith.constant 1 : index
    %c0_32 = arith.constant 0 : index
    %28 = vector.load %arg7[%c0_30, %c1_31, %c0_32] : memref<18x18x64xbf16, #tpu.memory_space<vmem>>, vector<16x16x64xbf16>
    %29 = vector.shape_cast %28 : vector<16x16x64xbf16> to vector<256x64xbf16>
    %c1_33 = arith.constant 1 : index
    %c0_34 = arith.constant 0 : index
    %c0_35 = arith.constant 0 : index
    %30 = vector.load %arg4[%c1_33, %c0_34, %c0_35] : memref<9x64x64xbf16, #tpu.memory_space<vmem>>, vector<1x64x64xbf16>
    %31 = vector.shape_cast %30 : vector<1x64x64xbf16> to vector<64x64xbf16>
    %cst_36 = arith.constant dense<0.000000e+00> : vector<256x64xf32>
    %32 = tpu.matmul %29, %31, %cst_36 {dimension_numbers = #tpu.dot_dimension_numbers<[1], [0], [0], [1], [0, 0, 1, 1], [], []>} : vector<256x64xbf16>, vector<64x64xbf16>, vector<256x64xf32> -> vector<256x64xf32>
    %33 = arith.addf %27, %32 : vector<256x64xf32>
    %c0_37 = arith.constant 0 : index
    %c2 = arith.constant 2 : index
    %c0_38 = arith.constant 0 : index
    %34 = vector.load %arg7[%c0_37, %c2, %c0_38] : memref<18x18x64xbf16, #tpu.memory_space<vmem>>, vector<16x16x64xbf16>
    %35 = vector.shape_cast %34 : vector<16x16x64xbf16> to vector<256x64xbf16>
    %c2_39 = arith.constant 2 : index
    %c0_40 = arith.constant 0 : index
    %c0_41 = arith.constant 0 : index
    %36 = vector.load %arg4[%c2_39, %c0_40, %c0_41] : memref<9x64x64xbf16, #tpu.memory_space<vmem>>, vector<1x64x64xbf16>
    %37 = vector.shape_cast %36 : vector<1x64x64xbf16> to vector<64x64xbf16>
    %cst_42 = arith.constant dense<0.000000e+00> : vector<256x64xf32>
    %38 = tpu.matmul %35, %37, %cst_42 {dimension_numbers = #tpu.dot_dimension_numbers<[1], [0], [0], [1], [0, 0, 1, 1], [], []>} : vector<256x64xbf16>, vector<64x64xbf16>, vector<256x64xf32> -> vector<256x64xf32>
    %39 = arith.addf %33, %38 : vector<256x64xf32>
    %c1_43 = arith.constant 1 : index
    %c0_44 = arith.constant 0 : index
    %c0_45 = arith.constant 0 : index
    %40 = vector.load %arg7[%c1_43, %c0_44, %c0_45] : memref<18x18x64xbf16, #tpu.memory_space<vmem>>, vector<16x16x64xbf16>
    %41 = vector.shape_cast %40 : vector<16x16x64xbf16> to vector<256x64xbf16>
    %c3 = arith.constant 3 : index
    %c0_46 = arith.constant 0 : index
    %c0_47 = arith.constant 0 : index
    %42 = vector.load %arg4[%c3, %c0_46, %c0_47] : memref<9x64x64xbf16, #tpu.memory_space<vmem>>, vector<1x64x64xbf16>
    %43 = vector.shape_cast %42 : vector<1x64x64xbf16> to vector<64x64xbf16>
    %cst_48 = arith.constant dense<0.000000e+00> : vector<256x64xf32>
    %44 = tpu.matmul %41, %43, %cst_48 {dimension_numbers = #tpu.dot_dimension_numbers<[1], [0], [0], [1], [0, 0, 1, 1], [], []>} : vector<256x64xbf16>, vector<64x64xbf16>, vector<256x64xf32> -> vector<256x64xf32>
    %45 = arith.addf %39, %44 : vector<256x64xf32>
    %c1_49 = arith.constant 1 : index
    %c1_50 = arith.constant 1 : index
    %c0_51 = arith.constant 0 : index
    %46 = vector.load %arg7[%c1_49, %c1_50, %c0_51] : memref<18x18x64xbf16, #tpu.memory_space<vmem>>, vector<16x16x64xbf16>
    %47 = vector.shape_cast %46 : vector<16x16x64xbf16> to vector<256x64xbf16>
    %c4 = arith.constant 4 : index
    %c0_52 = arith.constant 0 : index
    %c0_53 = arith.constant 0 : index
    %48 = vector.load %arg4[%c4, %c0_52, %c0_53] : memref<9x64x64xbf16, #tpu.memory_space<vmem>>, vector<1x64x64xbf16>
    %49 = vector.shape_cast %48 : vector<1x64x64xbf16> to vector<64x64xbf16>
    %cst_54 = arith.constant dense<0.000000e+00> : vector<256x64xf32>
    %50 = tpu.matmul %47, %49, %cst_54 {dimension_numbers = #tpu.dot_dimension_numbers<[1], [0], [0], [1], [0, 0, 1, 1], [], []>} : vector<256x64xbf16>, vector<64x64xbf16>, vector<256x64xf32> -> vector<256x64xf32>
    %51 = arith.addf %45, %50 : vector<256x64xf32>
    %c1_55 = arith.constant 1 : index
    %c2_56 = arith.constant 2 : index
    %c0_57 = arith.constant 0 : index
    %52 = vector.load %arg7[%c1_55, %c2_56, %c0_57] : memref<18x18x64xbf16, #tpu.memory_space<vmem>>, vector<16x16x64xbf16>
    %53 = vector.shape_cast %52 : vector<16x16x64xbf16> to vector<256x64xbf16>
    %c5 = arith.constant 5 : index
    %c0_58 = arith.constant 0 : index
    %c0_59 = arith.constant 0 : index
    %54 = vector.load %arg4[%c5, %c0_58, %c0_59] : memref<9x64x64xbf16, #tpu.memory_space<vmem>>, vector<1x64x64xbf16>
    %55 = vector.shape_cast %54 : vector<1x64x64xbf16> to vector<64x64xbf16>
    %cst_60 = arith.constant dense<0.000000e+00> : vector<256x64xf32>
    %56 = tpu.matmul %53, %55, %cst_60 {dimension_numbers = #tpu.dot_dimension_numbers<[1], [0], [0], [1], [0, 0, 1, 1], [], []>} : vector<256x64xbf16>, vector<64x64xbf16>, vector<256x64xf32> -> vector<256x64xf32>
    %57 = arith.addf %51, %56 : vector<256x64xf32>
    %c2_61 = arith.constant 2 : index
    %c0_62 = arith.constant 0 : index
    %c0_63 = arith.constant 0 : index
    %58 = vector.load %arg7[%c2_61, %c0_62, %c0_63] : memref<18x18x64xbf16, #tpu.memory_space<vmem>>, vector<16x16x64xbf16>
    %59 = vector.shape_cast %58 : vector<16x16x64xbf16> to vector<256x64xbf16>
    %c6 = arith.constant 6 : index
    %c0_64 = arith.constant 0 : index
    %c0_65 = arith.constant 0 : index
    %60 = vector.load %arg4[%c6, %c0_64, %c0_65] : memref<9x64x64xbf16, #tpu.memory_space<vmem>>, vector<1x64x64xbf16>
    %61 = vector.shape_cast %60 : vector<1x64x64xbf16> to vector<64x64xbf16>
    %cst_66 = arith.constant dense<0.000000e+00> : vector<256x64xf32>
    %62 = tpu.matmul %59, %61, %cst_66 {dimension_numbers = #tpu.dot_dimension_numbers<[1], [0], [0], [1], [0, 0, 1, 1], [], []>} : vector<256x64xbf16>, vector<64x64xbf16>, vector<256x64xf32> -> vector<256x64xf32>
    %63 = arith.addf %57, %62 : vector<256x64xf32>
    %c2_67 = arith.constant 2 : index
    %c1_68 = arith.constant 1 : index
    %c0_69 = arith.constant 0 : index
    %64 = vector.load %arg7[%c2_67, %c1_68, %c0_69] : memref<18x18x64xbf16, #tpu.memory_space<vmem>>, vector<16x16x64xbf16>
    %65 = vector.shape_cast %64 : vector<16x16x64xbf16> to vector<256x64xbf16>
    %c7 = arith.constant 7 : index
    %c0_70 = arith.constant 0 : index
    %c0_71 = arith.constant 0 : index
    %66 = vector.load %arg4[%c7, %c0_70, %c0_71] : memref<9x64x64xbf16, #tpu.memory_space<vmem>>, vector<1x64x64xbf16>
    %67 = vector.shape_cast %66 : vector<1x64x64xbf16> to vector<64x64xbf16>
    %cst_72 = arith.constant dense<0.000000e+00> : vector<256x64xf32>
    %68 = tpu.matmul %65, %67, %cst_72 {dimension_numbers = #tpu.dot_dimension_numbers<[1], [0], [0], [1], [0, 0, 1, 1], [], []>} : vector<256x64xbf16>, vector<64x64xbf16>, vector<256x64xf32> -> vector<256x64xf32>
    %69 = arith.addf %63, %68 : vector<256x64xf32>
    %c2_73 = arith.constant 2 : index
    %c2_74 = arith.constant 2 : index
    %c0_75 = arith.constant 0 : index
    %70 = vector.load %arg7[%c2_73, %c2_74, %c0_75] : memref<18x18x64xbf16, #tpu.memory_space<vmem>>, vector<16x16x64xbf16>
    %71 = vector.shape_cast %70 : vector<16x16x64xbf16> to vector<256x64xbf16>
    %c8 = arith.constant 8 : index
    %c0_76 = arith.constant 0 : index
    %c0_77 = arith.constant 0 : index
    %72 = vector.load %arg4[%c8, %c0_76, %c0_77] : memref<9x64x64xbf16, #tpu.memory_space<vmem>>, vector<1x64x64xbf16>
    %73 = vector.shape_cast %72 : vector<1x64x64xbf16> to vector<64x64xbf16>
    %cst_78 = arith.constant dense<0.000000e+00> : vector<256x64xf32>
    %74 = tpu.matmul %71, %73, %cst_78 {dimension_numbers = #tpu.dot_dimension_numbers<[1], [0], [0], [1], [0, 0, 1, 1], [], []>} : vector<256x64xbf16>, vector<64x64xbf16>, vector<256x64xf32> -> vector<256x64xf32>
    %75 = arith.addf %69, %74 : vector<256x64xf32>
    %76 = vector.shape_cast %75 : vector<256x64xf32> to vector<1x16x16x64xf32>
    %77 = arith.truncf %76 : vector<1x16x16x64xf32> to vector<1x16x16x64xbf16>
    %c0_79 = arith.constant 0 : index
    %c0_80 = arith.constant 0 : index
    %c0_81 = arith.constant 0 : index
    %c0_82 = arith.constant 0 : index
    %78 = vector.load %arg5[%c0_79, %c0_80, %c0_81, %c0_82] : memref<1x16x16x64xbf16, #tpu.memory_space<vmem>>, vector<1x16x16x64xbf16>
    tpu.vector_store %arg5[%c0_79, %c0_80, %c0_81, %c0_82], %77 {strides = array<i32>} : memref<1x16x16x64xbf16, #tpu.memory_space<vmem>>, vector<1x16x16x64xbf16>,
    %cst_83 = arith.constant dense<0.000000e+00> : vector<64xf32>
    %79 = vector.multi_reduction <add>, %75, %cst_83 [0] : vector<256x64xf32> to vector<64xf32>
    %80 = vector.shape_cast %79 : vector<64xf32> to vector<1x64xf32>
    %cst_84 = arith.constant 2.560000e+02 : f32
    %81 = vector.broadcast %cst_84 : f32 to vector<1x64xf32>
    %82 = arith.divf %80, %81 : vector<1x64xf32>
    %83 = vector.broadcast %82 : vector<1x64xf32> to vector<256x64xf32>
    %84 = arith.subf %75, %83 : vector<256x64xf32>
    %85 = arith.mulf %84, %84 : vector<256x64xf32>
    %cst_85 = arith.constant dense<0.000000e+00> : vector<64xf32>
    %86 = vector.multi_reduction <add>, %85, %cst_85 [0] : vector<256x64xf32> to vector<64xf32>
    %87 = vector.shape_cast %86 : vector<64xf32> to vector<1x64xf32>
    %cst_86 = arith.constant 0.000000e+00 : f32
    %88 = vector.broadcast %cst_86 : f32 to vector<1x64xf32>
    %cst_87 = arith.constant 2.560000e+02 : f32
    %89 = vector.broadcast %cst_87 : f32 to vector<1x64xf32>
    %90 = arith.addf %88, %89 : vector<1x64xf32>
    %91 = tpu.concatenate %80, %87, %90 in 0 : vector<1x64xf32>, vector<1x64xf32>, vector<1x64xf32> -> vector<3x64xf32>
    %92 = vector.shape_cast %91 : vector<3x64xf32> to vector<1x3x64xf32>
    %c0_88 = arith.constant 0 : index
    %c0_89 = arith.constant 0 : index
    %c0_90 = arith.constant 0 : index
    %93 = vector.load %arg6[%c0_88, %c0_89, %c0_90] : memref<1x3x64xf32, #tpu.memory_space<vmem>>, vector<1x3x64xf32>
    tpu.vector_store %arg6[%c0_88, %c0_89, %c0_90], %92 {strides = array<i32>} : memref<1x3x64xf32, #tpu.memory_space<vmem>>, vector<1x3x64xf32>,
    return
  }
  func.func @transform_0(%arg0: i32) -> (i32, i32, i32, i32) {
    %c0_i32 = arith.constant 0 : i32
    %c0_i32_0 = arith.constant 0 : i32
    %c0_i32_1 = arith.constant 0 : i32
    %c0_i32_2 = arith.constant 0 : i32
    return %arg0, %c0_i32, %c0_i32_0, %c0_i32_1 : i32, i32, i32, i32
  }
  func.func @transform_1(%arg0: i32) -> (i32, i32) {
    %c0_i32 = arith.constant 0 : i32
    %c0_i32_0 = arith.constant 0 : i32
    %c0_i32_1 = arith.constant 0 : i32
    return %c0_i32, %c0_i32_0 : i32, i32
  }
  func.func @transform_2(%arg0: i32) -> (i32, i32) {
    %c0_i32 = arith.constant 0 : i32
    %c0_i32_0 = arith.constant 0 : i32
    %c0_i32_1 = arith.constant 0 : i32
    return %c0_i32, %c0_i32_0 : i32, i32
  }
  func.func @transform_3(%arg0: i32) -> (i32, i32, i32) {
    %c0_i32 = arith.constant 0 : i32
    %c0_i32_0 = arith.constant 0 : i32
    %c0_i32_1 = arith.constant 0 : i32
    %c0_i32_2 = arith.constant 0 : i32
    return %c0_i32, %c0_i32_0, %c0_i32_1 : i32, i32, i32
  }
  func.func @transform_4(%arg0: i32) -> (i32, i32, i32, i32) {
    %c0_i32 = arith.constant 0 : i32
    %c0_i32_0 = arith.constant 0 : i32
    %c0_i32_1 = arith.constant 0 : i32
    %c0_i32_2 = arith.constant 0 : i32
    return %arg0, %c0_i32, %c0_i32_0, %c0_i32_1 : i32, i32, i32, i32
  }
  func.func @transform_5(%arg0: i32) -> (i32, i32, i32) {
    %c0_i32 = arith.constant 0 : i32
    %c0_i32_0 = arith.constant 0 : i32
    %c0_i32_1 = arith.constant 0 : i32
    return %arg0, %c0_i32, %c0_i32_0 : i32, i32, i32
  }
}

</mosaic_0001>

<llo_original>
// kernel: _bottleneck_forward.5
$region0: #{_bottleneck_forward.5}
  #allocation0 [shape = 'u32[]', space=smem, size = 0x4, offset = 0x4, fixed_abs, tag = 'smem constant byte address 0x4 - core index']
  #allocation1 [shape = 'u32[144,128]{1,0:T(1,128)}', space=vmem, size = 0x12000, scoped, tag = 'internal scratch']
  %s0 = inlined_call_operand.vmem [shape: bf16[512,64], index: 0, kind: input, shape index: {}]
  %s1 = inlined_call_operand.vmem [shape: f32[1,64], index: 1, kind: input, shape index: {}]
  %s2 = inlined_call_operand.vmem [shape: f32[1,64], index: 2, kind: input, shape index: {}]
  %s3 = inlined_call_operand.vmem [shape: bf16[64,256], index: 3, kind: input, shape index: {}]
  %s4 = inlined_call_operand.vmem [shape: f32[512,256], index: 4, kind: output, shape index: {0}]
  %s5 = inlined_call_operand.vmem [shape: f32[2,3,256], index: 5, kind: output, shape index: {1}]
  %6 = xla_tuple %s4, %s5
  %s7 = sld [smem:[#allocation0]]
  $region57: #{_bottleneck_forward.5} parent=0
    _
  %s9 = ssub.s32 1, %s7
  %s10 = scalar_select 0, %s9, %s7
  loop: start=0, step=1, limit=4
  $region2: #{_bottleneck_forward.5} parent=0 // loop_pre_header
    _
  $region3: #{_bottleneck_forward.5} parent=0 // loop_header
    %s12 = sphi 0, %s16
    %p13 = scmp.ge.s32.totalorder %s12, 4
    %s22 = sphi 0, %s24
    %s25 = sphi 0, %s22
    %s26 = sphi 0, %s25
    %s42 = sphi 0, %s26
    %s46 = sphi 0, %s46
    %s48 = sphi 0, %s46
    %s49 = sphi 0, %s48
    %s63 = sphi 0, %s49
    %s67 = sphi 0, %s67
    %s69 = sphi 0, %s67
    %s70 = sphi 0, %s69
    %s84 = sphi 0, %s70
    %s88 = sphi 0, %s88
    %s90 = sphi 0, %s88
    %s91 = sphi 0, %s90
    %s105 = sphi 0, %s91
    %s111 = sphi 0, %s113
    %s114 = sphi 0, %s111
    %s115 = sphi 0, %s114
    %s131 = sphi 0, %s115
    %s137 = sphi 0, %s139
    %s140 = sphi 0, %s137
    %s141 = sphi 0, %s140
    %s157 = sphi 0, %s141
  $region4: #{_bottleneck_forward.5} parent=0 // loop_header_branch
    %15 = sbr.rel (%p13) target = $region8
  $region5: #{_bottleneck_forward.5} parent=0 // loop_body
    %s17 = ssub.s32 %s12, 1
    %s18 = ssub.s32 %s12, 2
    %s19 = sadd.s32 %s12, 1
    %s20 = ssub.s32 %s12, %s19
    %p21 = scmp.eq.s32.totalorder %s20, 0
    %s23 = sadd.s32 %s22, 1
    %s24 = scalar_select %p21, %s22, %s23
    %p27 = pneg %p21
    %p28 = scmp.eq.s32.totalorder %s12, 1
    %p29 = por %p27, %p28
    %p30 = scmp.ne.s32.totalorder %s22, %s25
    %p31 = scmp.eq.s32.totalorder %s12, 0
    %p32 = por %p30, %p31
    %p33 = scmp.ne.s32.totalorder %s22, %s25
    %p34 = scmp.eq.s32.totalorder %s17, 1
    %p35 = por %p33, %p34
    %p36 = scmp.ne.s32.totalorder %s25, %s26
    %p37 = scmp.eq.s32.totalorder %s17, 0
    %p38 = por %p36, %p37
    %p39 = scmp.ne.s32.totalorder %s25, %s26
    %p40 = scmp.eq.s32.totalorder %s18, 1
    %p41 = por %p39, %p40
    %p43 = scmp.ne.s32.totalorder %s26, %s42
    %p44 = scmp.eq.s32.totalorder %s18, 0
    %p45 = por %p43, %p44
    %s47 = sadd.s32 %s46, 1
    %p50 = scmp.eq.s32.totalorder %s12, 1
    %p51 = scmp.ne.s32.totalorder %s46, %s48
    %p52 = scmp.eq.s32.totalorder %s12, 0
    %p53 = por %p51, %p52
    %p54 = scmp.ne.s32.totalorder %s46, %s48
    %p55 = scmp.eq.s32.totalorder %s17, 1
    %p56 = por %p54, %p55
    %p57 = scmp.ne.s32.totalorder %s48, %s49
    %p58 = scmp.eq.s32.totalorder %s17, 0
    %p59 = por %p57, %p58
    %p60 = scmp.ne.s32.totalorder %s48, %s49
    %p61 = scmp.eq.s32.totalorder %s18, 1
    %p62 = por %p60, %p61
    %p64 = scmp.ne.s32.totalorder %s49, %s63
    %p65 = scmp.eq.s32.totalorder %s18, 0
    %p66 = por %p64, %p65
    %s68 = sadd.s32 %s67, 1
    %p71 = scmp.eq.s32.totalorder %s12, 1
    %p72 = scmp.ne.s32.totalorder %s67, %s69
    %p73 = scmp.eq.s32.totalorder %s12, 0
    %p74 = por %p72, %p73
    %p75 = scmp.ne.s32.totalorder %s67, %s69
    %p76 = scmp.eq.s32.totalorder %s17, 1
    %p77 = por %p75, %p76
    %p78 = scmp.ne.s32.totalorder %s69, %s70
    %p79 = scmp.eq.s32.totalorder %s17, 0
    %p80 = por %p78, %p79
    %p81 = scmp.ne.s32.totalorder %s69, %s70
    %p82 = scmp.eq.s32.totalorder %s18, 1
    %p83 = por %p81, %p82
    %p85 = scmp.ne.s32.totalorder %s70, %s84
    %p86 = scmp.eq.s32.totalorder %s18, 0
    %p87 = por %p85, %p86
    %s89 = sadd.s32 %s88, 1
    %p92 = scmp.eq.s32.totalorder %s12, 1
    %p93 = scmp.ne.s32.totalorder %s88, %s90
    %p94 = scmp.eq.s32.totalorder %s12, 0
    %p95 = por %p93, %p94
    %p96 = scmp.ne.s32.totalorder %s88, %s90
    %p97 = scmp.eq.s32.totalorder %s17, 1
    %p98 = por %p96, %p97
    %p99 = scmp.ne.s32.totalorder %s90, %s91
    %p100 = scmp.eq.s32.totalorder %s17, 0
    %p101 = por %p99, %p100
    %p102 = scmp.ne.s32.totalorder %s90, %s91
    %p103 = scmp.eq.s32.totalorder %s18, 1
    %p104 = por %p102, %p103
    %p106 = scmp.ne.s32.totalorder %s91, %s105
    %p107 = scmp.eq.s32.totalorder %s18, 0
    %p108 = por %p106, %p107
    %s109 = ssub.s32 %s12, %s19
    %p110 = scmp.eq.s32.totalorder %s109, 0
    %s112 = sadd.s32 %s111, 1
    %s113 = scalar_select %p110, %s111, %s112
    %p116 = pneg %p110
    %p117 = scmp.eq.s32.totalorder %s12, 1
    %p118 = por %p116, %p117
    %p119 = scmp.ne.s32.totalorder %s111, %s114
    %p120 = scmp.eq.s32.totalorder %s12, 0
    %p121 = por %p119, %p120
    %p122 = scmp.ne.s32.totalorder %s111, %s114
    %p123 = scmp.eq.s32.totalorder %s17, 1
    %p124 = por %p122, %p123
    %p125 = scmp.ne.s32.totalorder %s114, %s115
    %p126 = scmp.eq.s32.totalorder %s17, 0
    %p127 = por %p125, %p126
    %p128 = scmp.ne.s32.totalorder %s114, %s115
    %p129 = scmp.eq.s32.totalorder %s18, 1
    %p130 = por %p128, %p129
    %p132 = scmp.ne.s32.totalorder %s115, %s131
    %p133 = scmp.eq.s32.totalorder %s18, 0
    %p134 = por %p132, %p133
    %s135 = ssub.s32 %s12, %s19
    %p136 = scmp.eq.s32.totalorder %s135, 0
    %s138 = sadd.s32 %s137, 1
    %s139 = scalar_select %p136, %s137, %s138
    %p142 = pneg %p136
    %p143 = scmp.eq.s32.totalorder %s12, 1
    %p144 = por %p142, %p143
    %p145 = scmp.ne.s32.totalorder %s137, %s140
    %p146 = scmp.eq.s32.totalorder %s12, 0
    %p147 = por %p145, %p146
    %p148 = scmp.ne.s32.totalorder %s137, %s140
    %p149 = scmp.eq.s32.totalorder %s17, 1
    %p150 = por %p148, %p149
    %p151 = scmp.ne.s32.totalorder %s140, %s141
    %p152 = scmp.eq.s32.totalorder %s17, 0
    %p153 = por %p151, %p152
    %p154 = scmp.ne.s32.totalorder %s140, %s141
    %p155 = scmp.eq.s32.totalorder %s18, 1
    %p156 = por %p154, %p155
    %p158 = scmp.ne.s32.totalorder %s141, %s157
    %p159 = scmp.eq.s32.totalorder %s18, 0
    %p160 = por %p158, %p159
    %p161 = scmp.le.s32.totalorder 1, %s12
    %p162 = scmp.lt.s32.totalorder %s12, 3
    %p163 = pnand %p161, %p162
    %p164 = pneg %p163
    // Predicated region
    $region9: #{_bottleneck_forward.5} parent=5 // pred_check
      _
    $region10: #{_bottleneck_forward.5} parent=5 // pred_check_branch
      %166 = sbr.rel (%p163) target = $region12
    $region11: #{_bottleneck_forward.5} parent=5 // pred_region
      %s167 = ssub.s32 %s12, 1
      // Predicated region
      $region13: #{_bottleneck_forward.5} parent=11 // pred_check
        %p168 = pneg %p59
      $region14: #{_bottleneck_forward.5} parent=11 // pred_check_branch
        %170 = sbr.rel (%p168) target = $region16
      $region15: #{_bottleneck_forward.5} parent=11 // pred_region
        _
      $region16: #{_bottleneck_forward.5} parent=11 // pred_fallthru
        _
      // Predicated region
      $region17: #{_bottleneck_forward.5} parent=11 // pred_check
        %p171 = pneg %p80
      $region18: #{_bottleneck_forward.5} parent=11 // pred_check_branch
        %173 = sbr.rel (%p171) target = $region20
      $region19: #{_bottleneck_forward.5} parent=11 // pred_region
        _
      $region20: #{_bottleneck_forward.5} parent=11 // pred_fallthru
        _
      // Predicated region
      $region21: #{_bottleneck_forward.5} parent=11 // pred_check
        %p174 = pneg %p101
      $region22: #{_bottleneck_forward.5} parent=11 // pred_check_branch
        %176 = sbr.rel (%p174) target = $region24
      $region23: #{_bottleneck_forward.5} parent=11 // pred_region
        _
      $region24: #{_bottleneck_forward.5} parent=11 // pred_fallthru
        _
    $region12: #{_bottleneck_forward.5} parent=5 // pred_fallthru
      _
    %p177 = scmp.lt.s32.totalorder %s12, 2
    // Predicated region
    $region25: #{_bottleneck_forward.5} parent=5 // pred_check
      %p178 = pneg %p177
    $region26: #{_bottleneck_forward.5} parent=5 // pred_check_branch
      %180 = sbr.rel (%p178) target = $region28
    $region27: #{_bottleneck_forward.5} parent=5 // pred_region
      // Predicated region
      $region29: #{_bottleneck_forward.5} parent=27 // pred_check
        %p181 = pneg %p32
      $region30: #{_bottleneck_forward.5} parent=27 // pred_check_branch
        %183 = sbr.rel (%p181) target = $region32
      $region31: #{_bottleneck_forward.5} parent=27 // pred_region
        %s184 = smul.u32 32, %s12
        %p185 = scmp.lt.s32.totalorder %s184, 63
        %s186 = scalar_select %p185, %s184, 63
        %s187 = smul.addr %s186, 4
        %s188 = scalar_lea.vmem %s0, %s187
        %s189 = smul.u32 32, %s12
      $region32: #{_bottleneck_forward.5} parent=27 // pred_fallthru
        _
    $region28: #{_bottleneck_forward.5} parent=5 // pred_fallthru
      _
    %p190 = scmp.le.s32.totalorder 1, %s12
    %p191 = scmp.lt.s32.totalorder %s12, 3
    %p192 = pnand %p190, %p191
    %p193 = pneg %p192
    // Predicated region
    $region33: #{_bottleneck_forward.5} parent=5 // pred_check
      _
    $region34: #{_bottleneck_forward.5} parent=5 // pred_check_branch
      %195 = sbr.rel (%p192) target = $region36
    $region35: #{_bottleneck_forward.5} parent=5 // pred_region
      %s196 = ssub.s32 %s12, 1
      %s197 = smul.u32 32, %s17
      %p198 = scmp.lt.s32.totalorder %s197, 63
      %s199 = scalar_select %p198, %s197, 63
      %s200 = smul.addr %s199, 4
      %s201 = scalar_lea.vmem %s0, %s200
      %p202 = pneg %p38
      %p203 = pneg %p35
      %p204 = pneg %p59
      %p205 = pneg %p56
      %p206 = pneg %p80
      %p207 = pneg %p77
      %p208 = pneg %p101
      %p209 = pneg %p98
      %p210 = pneg %p127
      %p211 = pneg %p124
      %s212 = smul.u32 32, %s17
      %p213 = scmp.lt.s32.totalorder %s212, 63
      %s214 = scalar_select %p213, %s212, 63
      %s215 = smul.addr %s214, 2
      %s216 = smul.addr %s215, 8
      %s217 = scalar_lea.vmem %s4, %s216
      %p218 = pneg %p153
      %p219 = pneg %p150
      %p220 = scmp.lt.s32.totalorder %s17, 1
      %s221 = scalar_select %p220, %s17, 1
      %s222 = smul.addr %s221, 2
      %s223 = smul.addr %s222, 4
      %s224 = scalar_lea.vmem %s5, %s223
      %s225 = smul.u32 32, %s17
      %p226 = scmp.lt.s32.totalorder %s225, 63
      %s227 = scalar_select %p226, %s225, 63
      %s228 = smul.addr %s227, 4
      %s229 = scalar_lea.vmem %s0, %s228
      %s230 = smul.u32 32, %s17
      %s231 = smul.u32 32, %s17
      %p232 = scmp.lt.s32.totalorder %s231, 63
      %s233 = scalar_select %p232, %s231, 63
      %s234 = smul.addr %s233, 2
      %s235 = smul.addr %s234, 8
      %s236 = scalar_lea.vmem %s4, %s235
      %s237 = smul.u32 32, %s17
      %p238 = scmp.lt.s32.totalorder %s17, 1
      %s239 = scalar_select %p238, %s17, 1
      %s240 = smul.addr %s239, 2
      %s241 = smul.addr %s240, 4
      %s242 = scalar_lea.vmem %s5, %s241
      %v244 = vld [vmem:[%s229] sm:$0xf]
      %v245 = vld [vmem:[%s229 + $0x4] sm:$0xf]
      %v246 = vld [vmem:[%s229 + $0x8] sm:$0xf]
      %v247 = vld [vmem:[%s229 + $0xc] sm:$0xf]
      %v248 = vld [vmem:[%s229 + $0x10] sm:$0xf]
      %v249 = vld [vmem:[%s229 + $0x14] sm:$0xf]
      %v250 = vld [vmem:[%s229 + $0x18] sm:$0xf]
      %v251 = vld [vmem:[%s229 + $0x1c] sm:$0xf]
      %v252 = vld [vmem:[%s229 + $0x20] sm:$0xf]
      %v253 = vld [vmem:[%s229 + $0x24] sm:$0xf]
      %v254 = vld [vmem:[%s229 + $0x28] sm:$0xf]
      %v255 = vld [vmem:[%s229 + $0x2c] sm:$0xf]
      %v256 = vld [vmem:[%s229 + $0x30] sm:$0xf]
      %v257 = vld [vmem:[%s229 + $0x34] sm:$0xf]
      %v258 = vld [vmem:[%s229 + $0x38] sm:$0xf]
      %v259 = vld [vmem:[%s229 + $0x3c] sm:$0xf]
      %v260 = vld [vmem:[%s229 + $0x40] sm:$0xf]
      %v261 = vld [vmem:[%s229 + $0x44] sm:$0xf]
      %v262 = vld [vmem:[%s229 + $0x48] sm:$0xf]
      %v263 = vld [vmem:[%s229 + $0x4c] sm:$0xf]
      %v264 = vld [vmem:[%s229 + $0x50] sm:$0xf]
      %v265 = vld [vmem:[%s229 + $0x54] sm:$0xf]
      %v266 = vld [vmem:[%s229 + $0x58] sm:$0xf]
      %v267 = vld [vmem:[%s229 + $0x5c] sm:$0xf]
      %v268 = vld [vmem:[%s229 + $0x60] sm:$0xf]
      %v269 = vld [vmem:[%s229 + $0x64] sm:$0xf]
      %v270 = vld [vmem:[%s229 + $0x68] sm:$0xf]
      %v271 = vld [vmem:[%s229 + $0x6c] sm:$0xf]
      %v272 = vld [vmem:[%s229 + $0x70] sm:$0xf]
      %v273 = vld [vmem:[%s229 + $0x74] sm:$0xf]
      %v274 = vld [vmem:[%s229 + $0x78] sm:$0xf]
      %v275 = vld [vmem:[%s229 + $0x7c] sm:$0xf]
      %v276 = vunpack.c.l.bf16 %v244
      %v277 = vunpack.c.l.bf16 %v245
      %v278 = vunpack.c.l.bf16 %v246
      %v279 = vunpack.c.l.bf16 %v247
      %v280 = vunpack.c.l.bf16 %v248
      %v281 = vunpack.c.l.bf16 %v249
      %v282 = vunpack.c.l.bf16 %v250
      %v283 = vunpack.c.l.bf16 %v251
      %v284 = vunpack.c.l.bf16 %v252
      %v285 = vunpack.c.l.bf16 %v253
      %v286 = vunpack.c.l.bf16 %v254
      %v287 = vunpack.c.l.bf16 %v255
      %v288 = vunpack.c.l.bf16 %v256
      %v289 = vunpack.c.l.bf16 %v257
      %v290 = vunpack.c.l.bf16 %v258
      %v291 = vunpack.c.l.bf16 %v259
      %v292 = vunpack.c.l.bf16 %v260
      %v293 = vunpack.c.l.bf16 %v261
      %v294 = vunpack.c.l.bf16 %v262
      %v295 = vunpack.c.l.bf16 %v263
      %v296 = vunpack.c.l.bf16 %v264
      %v297 = vunpack.c.l.bf16 %v265
      %v298 = vunpack.c.l.bf16 %v266
      %v299 = vunpack.c.l.bf16 %v267
      %v300 = vunpack.c.l.bf16 %v268
      %v301 = vunpack.c.l.bf16 %v269
      %v302 = vunpack.c.l.bf16 %v270
      %v303 = vunpack.c.l.bf16 %v271
      %v304 = vunpack.c.l.bf16 %v272
      %v305 = vunpack.c.l.bf16 %v273
      %v306 = vunpack.c.l.bf16 %v274
      %v307 = vunpack.c.l.bf16 %v275
      %v308 = vld [vmem:[%s1] sm:$0x1]
      %v310 = vlaneseq
      %v311 = vshrl.u32 %v310, 7
      %v312 = vsub.s32 0, %v311
      %v313 = vrot.slane %v308, %v312
      %v315 = vmul.f32 %v276, %v313
      %v316 = vmul.f32 %v277, %v313
      %v317 = vmul.f32 %v278, %v313
      %v318 = vmul.f32 %v279, %v313
      %v319 = vmul.f32 %v280, %v313
      %v320 = vmul.f32 %v281, %v313
      %v321 = vmul.f32 %v282, %v313
      %v322 = vmul.f32 %v283, %v313
      %v323 = vmul.f32 %v284, %v313
      %v324 = vmul.f32 %v285, %v313
      %v325 = vmul.f32 %v286, %v313
      %v326 = vmul.f32 %v287, %v313
      %v327 = vmul.f32 %v288, %v313
      %v328 = vmul.f32 %v289, %v313
      %v329 = vmul.f32 %v290, %v313
      %v330 = vmul.f32 %v291, %v313
      %v331 = vmul.f32 %v292, %v313
      %v332 = vmul.f32 %v293, %v313
      %v333 = vmul.f32 %v294, %v313
      %v334 = vmul.f32 %v295, %v313
      %v335 = vmul.f32 %v296, %v313
      %v336 = vmul.f32 %v297, %v313
      %v337 = vmul.f32 %v298, %v313
      %v338 = vmul.f32 %v299, %v313
      %v339 = vmul.f32 %v300, %v313
      %v340 = vmul.f32 %v301, %v313
      %v341 = vmul.f32 %v302, %v313
      %v342 = vmul.f32 %v303, %v313
      %v343 = vmul.f32 %v304, %v313
      %v344 = vmul.f32 %v305, %v313
      %v345 = vmul.f32 %v306, %v313
      %v346 = vmul.f32 %v307, %v313
      %v347 = vld [vmem:[%s2] sm:$0x1]
      %v349 = vlaneseq
      %v350 = vshrl.u32 %v349, 7
      %v351 = vsub.s32 0, %v350
      %v352 = vrot.slane %v347, %v351
      %v354 = vadd.f32 %v315, %v352
      %v355 = vadd.f32 %v316, %v352
      %v356 = vadd.f32 %v317, %v352
      %v357 = vadd.f32 %v318, %v352
      %v358 = vadd.f32 %v319, %v352
      %v359 = vadd.f32 %v320, %v352
      %v360 = vadd.f32 %v321, %v352
      %v361 = vadd.f32 %v322, %v352
      %v362 = vadd.f32 %v323, %v352
      %v363 = vadd.f32 %v324, %v352
      %v364 = vadd.f32 %v325, %v352
      %v365 = vadd.f32 %v326, %v352
      %v366 = vadd.f32 %v327, %v352
      %v367 = vadd.f32 %v328, %v352
      %v368 = vadd.f32 %v329, %v352
      %v369 = vadd.f32 %v330, %v352
      %v370 = vadd.f32 %v331, %v352
      %v371 = vadd.f32 %v332, %v352
      %v372 = vadd.f32 %v333, %v352
      %v373 = vadd.f32 %v334, %v352
      %v374 = vadd.f32 %v335, %v352
      %v375 = vadd.f32 %v336, %v352
      %v376 = vadd.f32 %v337, %v352
      %v377 = vadd.f32 %v338, %v352
      %v378 = vadd.f32 %v339, %v352
      %v379 = vadd.f32 %v340, %v352
      %v380 = vadd.f32 %v341, %v352
      %v381 = vadd.f32 %v342, %v352
      %v382 = vadd.f32 %v343, %v352
      %v383 = vadd.f32 %v344, %v352
      %v384 = vadd.f32 %v345, %v352
      %v385 = vadd.f32 %v346, %v352
      %v386 = vmax.f32 %v354, 0.0
      %v387 = vmax.f32 %v355, 0.0
      %v388 = vmax.f32 %v356, 0.0
      %v389 = vmax.f32 %v357, 0.0
      %v390 = vmax.f32 %v358, 0.0
      %v391 = vmax.f32 %v359, 0.0
      %v392 = vmax.f32 %v360, 0.0
      %v393 = vmax.f32 %v361, 0.0
      %v394 = vmax.f32 %v362, 0.0
      %v395 = vmax.f32 %v363, 0.0
      %v396 = vmax.f32 %v364, 0.0
      %v397 = vmax.f32 %v365, 0.0
      %v398 = vmax.f32 %v366, 0.0
      %v399 = vmax.f32 %v367, 0.0
      %v400 = vmax.f32 %v368, 0.0
      %v401 = vmax.f32 %v369, 0.0
      %v402 = vmax.f32 %v370, 0.0
      %v403 = vmax.f32 %v371, 0.0
      %v404 = vmax.f32 %v372, 0.0
      %v405 = vmax.f32 %v373, 0.0
      %v406 = vmax.f32 %v374, 0.0
      %v407 = vmax.f32 %v375, 0.0
      %v408 = vmax.f32 %v376, 0.0
      %v409 = vmax.f32 %v377, 0.0
      %v410 = vmax.f32 %v378, 0.0
      %v411 = vmax.f32 %v379, 0.0
      %v412 = vmax.f32 %v380, 0.0
      %v413 = vmax.f32 %v381, 0.0
      %v414 = vmax.f32 %v382, 0.0
      %v415 = vmax.f32 %v383, 0.0
      %v416 = vmax.f32 %v384, 0.0
      %v417 = vmax.f32 %v385, 0.0
      %v418 = vpack.c.bf16 %v387, %v386
      %v419 = vpack.c.bf16 %v389, %v388
      %v420 = vpack.c.bf16 %v391, %v390
      %v421 = vpack.c.bf16 %v393, %v392
      %v422 = vpack.c.bf16 %v395, %v394
      %v423 = vpack.c.bf16 %v397, %v396
      %v424 = vpack.c.bf16 %v399, %v398
      %v425 = vpack.c.bf16 %v401, %v400
      %v426 = vpack.c.bf16 %v403, %v402
      %v427 = vpack.c.bf16 %v405, %v404
      %v428 = vpack.c.bf16 %v407, %v406
      %v429 = vpack.c.bf16 %v409, %v408
      %v430 = vpack.c.bf16 %v411, %v410
      %v431 = vpack.c.bf16 %v413, %v412
      %v432 = vpack.c.bf16 %v415, %v414
      %v433 = vpack.c.bf16 %v417, %v416
      %v434 = vld [vmem:[%s3] sm:$0xff]
      %v435 = vld [vmem:[%s3 + $0x8] sm:$0xff]
      %v436 = vld [vmem:[%s3 + $0x10] sm:$0xff]
      %v437 = vld [vmem:[%s3 + $0x18] sm:$0xff]
      %v438 = vld [vmem:[%s3 + $0x20] sm:$0xff]
      %v439 = vld [vmem:[%s3 + $0x28] sm:$0xff]
      %v440 = vld [vmem:[%s3 + $0x30] sm:$0xff]
      %v441 = vld [vmem:[%s3 + $0x38] sm:$0xff]
      %v450 = vunpack.c.l.b16 %v434
      %v451 = vunpack.c.h.b16 %v434
      %v452 = vunpack.c.l.b16 %v435
      %v453 = vunpack.c.h.b16 %v435
      %v454 = vunpack.c.l.b16 %v436
      %v455 = vunpack.c.h.b16 %v436
      %v456 = vunpack.c.l.b16 %v437
      %v457 = vunpack.c.h.b16 %v437
      %v458 = vunpack.c.l.b16 %v438
      %v459 = vunpack.c.h.b16 %v438
      %v460 = vunpack.c.l.b16 %v439
      %v461 = vunpack.c.h.b16 %v439
      %v462 = vunpack.c.l.b16 %v440
      %v463 = vunpack.c.h.b16 %v440
      %v464 = vunpack.c.l.b16 %v441
      %v465 = vunpack.c.h.b16 %v441
      %v466 = vpack.c.b16 %v452, %v450
      %v467 = vpack.c.b16 %v453, %v451
      %v468 = vpack.c.b16 %v456, %v454
      %v469 = vpack.c.b16 %v457, %v455
      %v470 = vpack.c.b16 %v460, %v458
      %v471 = vpack.c.b16 %v461, %v459
      %v472 = vpack.c.b16 %v464, %v462
      %v473 = vpack.c.b16 %v465, %v463
      %vm482 = vcmask 523264
      %v484 = vsel %vm482, %v418, 0
      %v487 = vsel %vm482, %v419, 0
      %v490 = vsel %vm482, %v420, 0
      %v493 = vsel %vm482, %v421, 0
      %v496 = vsel %vm482, %v422, 0
      %v499 = vsel %vm482, %v423, 0
      %v502 = vsel %vm482, %v424, 0
      %v505 = vsel %vm482, %v425, 0
      %v508 = vsel %vm482, %v426, 0
      %v511 = vsel %vm482, %v427, 0
      %v514 = vsel %vm482, %v428, 0
      %v517 = vsel %vm482, %v429, 0
      %v520 = vsel %vm482, %v430, 0
      %v523 = vsel %vm482, %v431, 0
      %v526 = vsel %vm482, %v432, 0
      %v529 = vsel %vm482, %v433, 0
      %531 = vmatprep.subr.bf16.mxu0 %v467
      %532 = vmatpush1.bf16.msra.mxu0 %v466
      %533 = vmatprep.subr.bf16.mxu0 %v469
      %534 = vmatpush1.bf16.msra.mxu0 %v468
      %535 = vmatprep.subr.bf16.mxu0 %v471
      %536 = vmatpush1.bf16.msra.mxu0 %v470
      %537 = vmatprep.subr.bf16.mxu0 %v473
      %538 = vmatpush1.bf16.msra.mxu0 %v472
      %539 = vmatprep.subr.bf16.mxu0 0
      %540 = vmatpush1.bf16.msra.mxu0 0
      %541 = vmatprep.subr.bf16.mxu0 0
      %542 = vmatpush1.bf16.msra.mxu0 0
      %543 = vmatprep.subr.bf16.mxu0 0
      %544 = vmatpush1.bf16.msra.mxu0 0
      %545 = vmatprep.subr.bf16.mxu0 0
      %546 = vmatpush1.bf16.msra.mxu0 0
      %547 = vmatprep.subr.bf16.mxu0 0
      %548 = vmatpush1.bf16.msra.mxu0 0
      %549 = vmatprep.subr.bf16.mxu0 0
      %550 = vmatpush1.bf16.msra.mxu0 0
      %551 = vmatprep.subr.bf16.mxu0 0
      %552 = vmatpush1.bf16.msra.mxu0 0
      %553 = vmatprep.subr.bf16.mxu0 0
      %554 = vmatpush1.bf16.msra.mxu0 0
      %555 = vmatprep.subr.bf16.mxu0 0
      %556 = vmatpush1.bf16.msra.mxu0 0
      %557 = vmatprep.subr.bf16.mxu0 0
      %558 = vmatpush1.bf16.msra.mxu0 0
      %559 = vmatprep.subr.bf16.mxu0 0
      %560 = vmatpush1.bf16.msra.mxu0 0
      %561 = vmatprep.subr.bf16.mxu0 0
      %562 = vmatpush1.bf16.msra.mxu0 0
      %563 = vmatprep.mubr.bf16.mxu0 0
      %564 = vmatmul.mubr.bf16.gmra.mrb[0].mxu0 %v484
      %v565 = vpop.f32.mrb[0].mxu0
      %v566 = vadd.f32 0.0, %v565
      %v567 = vpop.f32.mrb[0].mxu0
      %v568 = vadd.f32 0.0, %v567
      %v569 = vpop.f32.mrb[0].mxu0
      %v570 = vadd.f32 0.0, %v569
      %v571 = vpop.f32.mrb[0].mxu0
      %v572 = vadd.f32 0.0, %v571
      %573 = vmatprep.mubr.bf16.mxu0 0
      %574 = vmatmul.mubr.bf16.gmra.mrb[0].mxu0 %v487
      %v575 = vpop.f32.mrb[0].mxu0
      %v576 = vadd.f32 0.0, %v575
      %v577 = vpop.f32.mrb[0].mxu0
      %v578 = vadd.f32 0.0, %v577
      %v579 = vpop.f32.mrb[0].mxu0
      %v580 = vadd.f32 0.0, %v579
      %v581 = vpop.f32.mrb[0].mxu0
      %v582 = vadd.f32 0.0, %v581
      %583 = vmatprep.mubr.bf16.mxu0 0
      %584 = vmatmul.mubr.bf16.gmra.mrb[0].mxu0 %v490
      %v585 = vpop.f32.mrb[0].mxu0
      %v586 = vadd.f32 0.0, %v585
      %v587 = vpop.f32.mrb[0].mxu0
      %v588 = vadd.f32 0.0, %v587
      %v589 = vpop.f32.mrb[0].mxu0
      %v590 = vadd.f32 0.0, %v589
      %v591 = vpop.f32.mrb[0].mxu0
      %v592 = vadd.f32 0.0, %v591
      %593 = vmatprep.mubr.bf16.mxu0 0
      %594 = vmatmul.mubr.bf16.gmra.mrb[0].mxu0 %v493
      %v595 = vpop.f32.mrb[0].mxu0
      %v596 = vadd.f32 0.0, %v595
      %v597 = vpop.f32.mrb[0].mxu0
      %v598 = vadd.f32 0.0, %v597
      %v599 = vpop.f32.mrb[0].mxu0
      %v600 = vadd.f32 0.0, %v599
      %v601 = vpop.f32.mrb[0].mxu0
      %v602 = vadd.f32 0.0, %v601
      %603 = vmatprep.mubr.bf16.mxu0 0
      %604 = vmatmul.mubr.bf16.gmra.mrb[0].mxu0 %v496
      %v605 = vpop.f32.mrb[0].mxu0
      %v606 = vadd.f32 0.0, %v605
      %v607 = vpop.f32.mrb[0].mxu0
      %v608 = vadd.f32 0.0, %v607
      %v609 = vpop.f32.mrb[0].mxu0
      %v610 = vadd.f32 0.0, %v609
      %v611 = vpop.f32.mrb[0].mxu0
      %v612 = vadd.f32 0.0, %v611
      %613 = vmatprep.mubr.bf16.mxu0 0
      %614 = vmatmul.mubr.bf16.gmra.mrb[0].mxu0 %v499
      %v615 = vpop.f32.mrb[0].mxu0
      %v616 = vadd.f32 0.0, %v615
      %v617 = vpop.f32.mrb[0].mxu0
      %v618 = vadd.f32 0.0, %v617
      %v619 = vpop.f32.mrb[0].mxu0
      %v620 = vadd.f32 0.0, %v619
      %v621 = vpop.f32.mrb[0].mxu0
      %v622 = vadd.f32 0.0, %v621
      %623 = vmatprep.mubr.bf16.mxu0 0
      %624 = vmatmul.mubr.bf16.gmra.mrb[0].mxu0 %v502
      %v625 = vpop.f32.mrb[0].mxu0
      %v626 = vadd.f32 0.0, %v625
      %v627 = vpop.f32.mrb[0].mxu0
      %v628 = vadd.f32 0.0, %v627
      %v629 = vpop.f32.mrb[0].mxu0
      %v630 = vadd.f32 0.0, %v629
      %v631 = vpop.f32.mrb[0].mxu0
      %v632 = vadd.f32 0.0, %v631
      %633 = vmatprep.mubr.bf16.mxu0 0
      %634 = vmatmul.mubr.bf16.gmra.mrb[0].mxu0 %v505
      %v635 = vpop.f32.mrb[0].mxu0
      %v636 = vadd.f32 0.0, %v635
      %v637 = vpop.f32.mrb[0].mxu0
      %v638 = vadd.f32 0.0, %v637
      %v639 = vpop.f32.mrb[0].mxu0
      %v640 = vadd.f32 0.0, %v639
      %v641 = vpop.f32.mrb[0].mxu0
      %v642 = vadd.f32 0.0, %v641
      %643 = vmatprep.mubr.bf16.mxu0 0
      %644 = vmatmul.mubr.bf16.gmra.mrb[0].mxu0 %v508
      %v645 = vpop.f32.mrb[0].mxu0
      %v646 = vadd.f32 0.0, %v645
      %v647 = vpop.f32.mrb[0].mxu0
      %v648 = vadd.f32 0.0, %v647
      %v649 = vpop.f32.mrb[0].mxu0
      %v650 = vadd.f32 0.0, %v649
      %v651 = vpop.f32.mrb[0].mxu0
      %v652 = vadd.f32 0.0, %v651
      %653 = vmatprep.mubr.bf16.mxu0 0
      %654 = vmatmul.mubr.bf16.gmra.mrb[0].mxu0 %v511
      %v655 = vpop.f32.mrb[0].mxu0
      %v656 = vadd.f32 0.0, %v655
      %v657 = vpop.f32.mrb[0].mxu0
      %v658 = vadd.f32 0.0, %v657
      %v659 = vpop.f32.mrb[0].mxu0
      %v660 = vadd.f32 0.0, %v659
      %v661 = vpop.f32.mrb[0].mxu0
      %v662 = vadd.f32 0.0, %v661
      %663 = vmatprep.mubr.bf16.mxu0 0
      %664 = vmatmul.mubr.bf16.gmra.mrb[0].mxu0 %v514
      %v665 = vpop.f32.mrb[0].mxu0
      %v666 = vadd.f32 0.0, %v665
      %v667 = vpop.f32.mrb[0].mxu0
      %v668 = vadd.f32 0.0, %v667
      %v669 = vpop.f32.mrb[0].mxu0
      %v670 = vadd.f32 0.0, %v669
      %v671 = vpop.f32.mrb[0].mxu0
      %v672 = vadd.f32 0.0, %v671
      %673 = vmatprep.mubr.bf16.mxu0 0
      %674 = vmatmul.mubr.bf16.gmra.mrb[0].mxu0 %v517
      %v675 = vpop.f32.mrb[0].mxu0
      %v676 = vadd.f32 0.0, %v675
      %v677 = vpop.f32.mrb[0].mxu0
      %v678 = vadd.f32 0.0, %v677
      %v679 = vpop.f32.mrb[0].mxu0
      %v680 = vadd.f32 0.0, %v679
      %v681 = vpop.f32.mrb[0].mxu0
      %v682 = vadd.f32 0.0, %v681
      %683 = vmatprep.mubr.bf16.mxu0 0
      %684 = vmatmul.mubr.bf16.gmra.mrb[0].mxu0 %v520
      %v685 = vpop.f32.mrb[0].mxu0
      %v686 = vadd.f32 0.0, %v685
      %v687 = vpop.f32.mrb[0].mxu0
      %v688 = vadd.f32 0.0, %v687
      %v689 = vpop.f32.mrb[0].mxu0
      %v690 = vadd.f32 0.0, %v689
      %v691 = vpop.f32.mrb[0].mxu0
      %v692 = vadd.f32 0.0, %v691
      %693 = vmatprep.mubr.bf16.mxu0 0
      %694 = vmatmul.mubr.bf16.gmra.mrb[0].mxu0 %v523
      %v695 = vpop.f32.mrb[0].mxu0
      %v696 = vadd.f32 0.0, %v695
      %v697 = vpop.f32.mrb[0].mxu0
      %v698 = vadd.f32 0.0, %v697
      %v699 = vpop.f32.mrb[0].mxu0
      %v700 = vadd.f32 0.0, %v699
      %v701 = vpop.f32.mrb[0].mxu0
      %v702 = vadd.f32 0.0, %v701
      %703 = vmatprep.mubr.bf16.mxu0 0
      %704 = vmatmul.mubr.bf16.gmra.mrb[0].mxu0 %v526
      %v705 = vpop.f32.mrb[0].mxu0
      %v706 = vadd.f32 0.0, %v705
      %v707 = vpop.f32.mrb[0].mxu0
      %v708 = vadd.f32 0.0, %v707
      %v709 = vpop.f32.mrb[0].mxu0
      %v710 = vadd.f32 0.0, %v709
      %v711 = vpop.f32.mrb[0].mxu0
      %v712 = vadd.f32 0.0, %v711
      %713 = vmatprep.mubr.bf16.mxu0 0
      %714 = vmatmul.mubr.bf16.gmra.mrb[0].mxu0 %v529
      %v715 = vpop.f32.mrb[0].mxu0
      %v716 = vadd.f32 0.0, %v715
      %v717 = vpop.f32.mrb[0].mxu0
      %v718 = vadd.f32 0.0, %v717
      %v719 = vpop.f32.mrb[0].mxu0
      %v720 = vadd.f32 0.0, %v719
      %v721 = vpop.f32.mrb[0].mxu0
      %v722 = vadd.f32 0.0, %v721
      %723 = vdwg.mxu0
      %724 = vst [vmem:[%s236] sm:$0xff] %v566
      %725 = vst [vmem:[%s236 + $0x8] sm:$0xff] %v568
      %726 = vst [vmem:[%s236 + $0x10] sm:$0xff] %v570
      %727 = vst [vmem:[%s236 + $0x18] sm:$0xff] %v572
      %728 = vst [vmem:[%s236 + $0x20] sm:$0xff] %v576
      %729 = vst [vmem:[%s236 + $0x28] sm:$0xff] %v578
      %730 = vst [vmem:[%s236 + $0x30] sm:$0xff] %v580
      %731 = vst [vmem:[%s236 + $0x38] sm:$0xff] %v582
      %732 = vst [vmem:[%s236 + $0x40] sm:$0xff] %v586
      %733 = vst [vmem:[%s236 + $0x48] sm:$0xff] %v588
      %734 = vst [vmem:[%s236 + $0x50] sm:$0xff] %v590
      %735 = vst [vmem:[%s236 + $0x58] sm:$0xff] %v592
      %736 = vst [vmem:[%s236 + $0x60] sm:$0xff] %v596
      %737 = vst [vmem:[%s236 + $0x68] sm:$0xff] %v598
      %738 = vst [vmem:[%s236 + $0x70] sm:$0xff] %v600
      %739 = vst [vmem:[%s236 + $0x78] sm:$0xff] %v602
      %740 = vst [vmem:[%s236 + $0x80] sm:$0xff] %v606
      %741 = vst [vmem:[%s236 + $0x88] sm:$0xff] %v608
      %742 = vst [vmem:[%s236 + $0x90] sm:$0xff] %v610
      %743 = vst [vmem:[%s236 + $0x98] sm:$0xff] %v612
      %744 = vst [vmem:[%s236 + $0xa0] sm:$0xff] %v616
      %745 = vst [vmem:[%s236 + $0xa8] sm:$0xff] %v618
      %746 = vst [vmem:[%s236 + $0xb0] sm:$0xff] %v620
      %747 = vst [vmem:[%s236 + $0xb8] sm:$0xff] %v622
      %748 = vst [vmem:[%s236 + $0xc0] sm:$0xff] %v626
      %749 = vst [vmem:[%s236 + $0xc8] sm:$0xff] %v628
      %750 = vst [vmem:[%s236 + $0xd0] sm:$0xff] %v630
      %751 = vst [vmem:[%s236 + $0xd8] sm:$0xff] %v632
      %752 = vst [vmem:[%s236 + $0xe0] sm:$0xff] %v636
      %753 = vst [vmem:[%s236 + $0xe8] sm:$0xff] %v638
      %754 = vst [vmem:[%s236 + $0xf0] sm:$0xff] %v640
      %755 = vst [vmem:[%s236 + $0xf8] sm:$0xff] %v642
      %756 = vst [vmem:[%s236 + $0x100] sm:$0xff] %v646
      %757 = vst [vmem:[%s236 + $0x108] sm:$0xff] %v648
      %758 = vst [vmem:[%s236 + $0x110] sm:$0xff] %v650
      %759 = vst [vmem:[%s236 + $0x118] sm:$0xff] %v652
      %760 = vst [vmem:[%s236 + $0x120] sm:$0xff] %v656
      %761 = vst [vmem:[%s236 + $0x128] sm:$0xff] %v658
      %762 = vst [vmem:[%s236 + $0x130] sm:$0xff] %v660
      %763 = vst [vmem:[%s236 + $0x138] sm:$0xff] %v662
      %764 = vst [vmem:[%s236 + $0x140] sm:$0xff] %v666
      %765 = vst [vmem:[%s236 + $0x148] sm:$0xff] %v668
      %766 = vst [vmem:[%s236 + $0x150] sm:$0xff] %v670
      %767 = vst [vmem:[%s236 + $0x158] sm:$0xff] %v672
      %768 = vst [vmem:[%s236 + $0x160] sm:$0xff] %v676
      %769 = vst [vmem:[%s236 + $0x168] sm:$0xff] %v678
      %770 = vst [vmem:[%s236 + $0x170] sm:$0xff] %v680
      %771 = vst [vmem:[%s236 + $0x178] sm:$0xff] %v682
      %772 = vst [vmem:[%s236 + $0x180] sm:$0xff] %v686
      %773 = vst [vmem:[%s236 + $0x188] sm:$0xff] %v688
      %774 = vst [vmem:[%s236 + $0x190] sm:$0xff] %v690
      %775 = vst [vmem:[%s236 + $0x198] sm:$0xff] %v692
      %776 = vst [vmem:[%s236 + $0x1a0] sm:$0xff] %v696
      %777 = vst [vmem:[%s236 + $0x1a8] sm:$0xff] %v698
      %778 = vst [vmem:[%s236 + $0x1b0] sm:$0xff] %v700
      %779 = vst [vmem:[%s236 + $0x1b8] sm:$0xff] %v702
      %780 = vst [vmem:[%s236 + $0x1c0] sm:$0xff] %v706
      %781 = vst [vmem:[%s236 + $0x1c8] sm:$0xff] %v708
      %782 = vst [vmem:[%s236 + $0x1d0] sm:$0xff] %v710
      %783 = vst [vmem:[%s236 + $0x1d8] sm:$0xff] %v712
      %784 = vst [vmem:[%s236 + $0x1e0] sm:$0xff] %v716
      %785 = vst [vmem:[%s236 + $0x1e8] sm:$0xff] %v718
      %786 = vst [vmem:[%s236 + $0x1f0] sm:$0xff] %v720
      %787 = vst [vmem:[%s236 + $0x1f8] sm:$0xff] %v722
      %v788 = vadd.f32 %v566, %v570
      %v789 = vadd.f32 %v788, %v576
      %v790 = vadd.f32 %v789, %v580
      %v791 = vadd.f32 %v790, %v586
      %v792 = vadd.f32 %v791, %v590
      %v793 = vadd.f32 %v792, %v596
      %v794 = vadd.f32 %v793, %v600
      %v795 = vadd.f32 %v794, %v606
      %v796 = vadd.f32 %v795, %v610
      %v797 = vadd.f32 %v796, %v616
      %v798 = vadd.f32 %v797, %v620
      %v799 = vadd.f32 %v798, %v626
      %v800 = vadd.f32 %v799, %v630
      %v801 = vadd.f32 %v800, %v636
      %v802 = vadd.f32 %v801, %v640
      %v803 = vadd.f32 %v802, %v646
      %v804 = vadd.f32 %v803, %v650
      %v805 = vadd.f32 %v804, %v656
      %v806 = vadd.f32 %v805, %v660
      %v807 = vadd.f32 %v806, %v666
      %v808 = vadd.f32 %v807, %v670
      %v809 = vadd.f32 %v808, %v676
      %v810 = vadd.f32 %v809, %v680
      %v811 = vadd.f32 %v810, %v686
      %v812 = vadd.f32 %v811, %v690
      %v813 = vadd.f32 %v812, %v696
      %v814 = vadd.f32 %v813, %v700
      %v815 = vadd.f32 %v814, %v706
      %v816 = vadd.f32 %v815, %v710
      %v817 = vadd.f32 %v816, %v716
      %v818 = vadd.f32 %v817, %v720
      %v819 = vrot.slane %v818, 4
      %v820 = vadd.f32 %v818, %v819
      %v821 = vrot.slane %v820, 2
      %v822 = vadd.f32 %v820, %v821
      %v823 = vrot.slane %v822, 1
      %v824 = vadd.f32 %v822, %v823
      %v825 = vadd.f32 %v568, %v572
      %v826 = vadd.f32 %v825, %v578
      %v827 = vadd.f32 %v826, %v582
      %v828 = vadd.f32 %v827, %v588
      %v829 = vadd.f32 %v828, %v592
      %v830 = vadd.f32 %v829, %v598
      %v831 = vadd.f32 %v830, %v602
      %v832 = vadd.f32 %v831, %v608
      %v833 = vadd.f32 %v832, %v612
      %v834 = vadd.f32 %v833, %v618
      %v835 = vadd.f32 %v834, %v622
      %v836 = vadd.f32 %v835, %v628
      %v837 = vadd.f32 %v836, %v632
      %v838 = vadd.f32 %v837, %v638
      %v839 = vadd.f32 %v838, %v642
      %v840 = vadd.f32 %v839, %v648
      %v841 = vadd.f32 %v840, %v652
      %v842 = vadd.f32 %v841, %v658
      %v843 = vadd.f32 %v842, %v662
      %v844 = vadd.f32 %v843, %v668
      %v845 = vadd.f32 %v844, %v672
      %v846 = vadd.f32 %v845, %v678
      %v847 = vadd.f32 %v846, %v682
      %v848 = vadd.f32 %v847, %v688
      %v849 = vadd.f32 %v848, %v692
      %v850 = vadd.f32 %v849, %v698
      %v851 = vadd.f32 %v850, %v702
      %v852 = vadd.f32 %v851, %v708
      %v853 = vadd.f32 %v852, %v712
      %v854 = vadd.f32 %v853, %v718
      %v855 = vadd.f32 %v854, %v722
      %v856 = vrot.slane %v855, 4
      %v857 = vadd.f32 %v855, %v856
      %v858 = vrot.slane %v857, 2
      %v859 = vadd.f32 %v857, %v858
      %v860 = vrot.slane %v859, 1
      %v861 = vadd.f32 %v859, %v860
      %v862 = vrcp.pop 256.0
      %v863 = vmul.f32 %v824, %v862
      %v864 = vmul.f32 %v861, %v862
      %v865 = vsub.f32 %v566, %v863
      %v866 = vsub.f32 %v568, %v864
      %v867 = vsub.f32 %v570, %v863
      %v868 = vsub.f32 %v572, %v864
      %v869 = vsub.f32 %v576, %v863
      %v870 = vsub.f32 %v578, %v864
      %v871 = vsub.f32 %v580, %v863
      %v872 = vsub.f32 %v582, %v864
      %v873 = vsub.f32 %v586, %v863
      %v874 = vsub.f32 %v588, %v864
      %v875 = vsub.f32 %v590, %v863
      %v876 = vsub.f32 %v592, %v864
      %v877 = vsub.f32 %v596, %v863
      %v878 = vsub.f32 %v598, %v864
      %v879 = vsub.f32 %v600, %v863
      %v880 = vsub.f32 %v602, %v864
      %v881 = vsub.f32 %v606, %v863
      %v882 = vsub.f32 %v608, %v864
      %v883 = vsub.f32 %v610, %v863
      %v884 = vsub.f32 %v612, %v864
      %v885 = vsub.f32 %v616, %v863
      %v886 = vsub.f32 %v618, %v864
      %v887 = vsub.f32 %v620, %v863
      %v888 = vsub.f32 %v622, %v864
      %v889 = vsub.f32 %v626, %v863
      %v890 = vsub.f32 %v628, %v864
      %v891 = vsub.f32 %v630, %v863
      %v892 = vsub.f32 %v632, %v864
      %v893 = vsub.f32 %v636, %v863
      %v894 = vsub.f32 %v638, %v864
      %v895 = vsub.f32 %v640, %v863
      %v896 = vsub.f32 %v642, %v864
      %v897 = vsub.f32 %v646, %v863
      %v898 = vsub.f32 %v648, %v864
      %v899 = vsub.f32 %v650, %v863
      %v900 = vsub.f32 %v652, %v864
      %v901 = vsub.f32 %v656, %v863
      %v902 = vsub.f32 %v658, %v864
      %v903 = vsub.f32 %v660, %v863
      %v904 = vsub.f32 %v662, %v864
      %v905 = vsub.f32 %v666, %v863
      %v906 = vsub.f32 %v668, %v864
      %v907 = vsub.f32 %v670, %v863
      %v908 = vsub.f32 %v672, %v864
      %v909 = vsub.f32 %v676, %v863
      %v910 = vsub.f32 %v678, %v864
      %v911 = vsub.f32 %v680, %v863
      %v912 = vsub.f32 %v682, %v864
      %v913 = vsub.f32 %v686, %v863
      %v914 = vsub.f32 %v688, %v864
      %v915 = vsub.f32 %v690, %v863
      %v916 = vsub.f32 %v692, %v864
      %v917 = vsub.f32 %v696, %v863
      %v918 = vsub.f32 %v698, %v864
      %v919 = vsub.f32 %v700, %v863
      %v920 = vsub.f32 %v702, %v864
      %v921 = vsub.f32 %v706, %v863
      %v922 = vsub.f32 %v708, %v864
      %v923 = vsub.f32 %v710, %v863
      %v924 = vsub.f32 %v712, %v864
      %v925 = vsub.f32 %v716, %v863
      %v926 = vsub.f32 %v718, %v864
      %v927 = vsub.f32 %v720, %v863
      %v928 = vsub.f32 %v722, %v864
      %v929 = vmul.f32 %v865, %v865
      %v930 = vmul.f32 %v866, %v866
      %v931 = vmul.f32 %v867, %v867
      %v932 = vmul.f32 %v868, %v868
      %v933 = vmul.f32 %v869, %v869
      %v934 = vmul.f32 %v870, %v870
      %v935 = vmul.f32 %v871, %v871
      %v936 = vmul.f32 %v872, %v872
      %v937 = vmul.f32 %v873, %v873
      %v938 = vmul.f32 %v874, %v874
      %v939 = vmul.f32 %v875, %v875
      %v940 = vmul.f32 %v876, %v876
      %v941 = vmul.f32 %v877, %v877
      %v942 = vmul.f32 %v878, %v878
      %v943 = vmul.f32 %v879, %v879
      %v944 = vmul.f32 %v880, %v880
      %v945 = vmul.f32 %v881, %v881
      %v946 = vmul.f32 %v882, %v882
      %v947 = vmul.f32 %v883, %v883
      %v948 = vmul.f32 %v884, %v884
      %v949 = vmul.f32 %v885, %v885
      %v950 = vmul.f32 %v886, %v886
      %v951 = vmul.f32 %v887, %v887
      %v952 = vmul.f32 %v888, %v888
      %v953 = vmul.f32 %v889, %v889
      %v954 = vmul.f32 %v890, %v890
      %v955 = vmul.f32 %v891, %v891
      %v956 = vmul.f32 %v892, %v892
      %v957 = vmul.f32 %v893, %v893
      %v958 = vmul.f32 %v894, %v894
      %v959 = vmul.f32 %v895, %v895
      %v960 = vmul.f32 %v896, %v896
      %v961 = vmul.f32 %v897, %v897
      %v962 = vmul.f32 %v898, %v898
      %v963 = vmul.f32 %v899, %v899
      %v964 = vmul.f32 %v900, %v900
      %v965 = vmul.f32 %v901, %v901
      %v966 = vmul.f32 %v902, %v902
      %v967 = vmul.f32 %v903, %v903
      %v968 = vmul.f32 %v904, %v904
      %v969 = vmul.f32 %v905, %v905
      %v970 = vmul.f32 %v906, %v906
      %v971 = vmul.f32 %v907, %v907
      %v972 = vmul.f32 %v908, %v908
      %v973 = vmul.f32 %v909, %v909
      %v974 = vmul.f32 %v910, %v910
      %v975 = vmul.f32 %v911, %v911
      %v976 = vmul.f32 %v912, %v912
      %v977 = vmul.f32 %v913, %v913
      %v978 = vmul.f32 %v914, %v914
      %v979 = vmul.f32 %v915, %v915
      %v980 = vmul.f32 %v916, %v916
      %v981 = vmul.f32 %v917, %v917
      %v982 = vmul.f32 %v918, %v918
      %v983 = vmul.f32 %v919, %v919
      %v984 = vmul.f32 %v920, %v920
      %v985 = vmul.f32 %v921, %v921
      %v986 = vmul.f32 %v922, %v922
      %v987 = vmul.f32 %v923, %v923
      %v988 = vmul.f32 %v924, %v924
      %v989 = vmul.f32 %v925, %v925
      %v990 = vmul.f32 %v926, %v926
      %v991 = vmul.f32 %v927, %v927
      %v992 = vmul.f32 %v928, %v928
      %v993 = vadd.f32 %v929, %v931
      %v994 = vadd.f32 %v993, %v933
      %v995 = vadd.f32 %v994, %v935
      %v996 = vadd.f32 %v995, %v937
      %v997 = vadd.f32 %v996, %v939
      %v998 = vadd.f32 %v997, %v941
      %v999 = vadd.f32 %v998, %v943
      %v1000 = vadd.f32 %v999, %v945
      %v1001 = vadd.f32 %v1000, %v947
      %v1002 = vadd.f32 %v1001, %v949
      %v1003 = vadd.f32 %v1002, %v951
      %v1004 = vadd.f32 %v1003, %v953
      %v1005 = vadd.f32 %v1004, %v955
      %v1006 = vadd.f32 %v1005, %v957
      %v1007 = vadd.f32 %v1006, %v959
      %v1008 = vadd.f32 %v1007, %v961
      %v1009 = vadd.f32 %v1008, %v963
      %v1010 = vadd.f32 %v1009, %v965
      %v1011 = vadd.f32 %v1010, %v967
      %v1012 = vadd.f32 %v1011, %v969
      %v1013 = vadd.f32 %v1012, %v971
      %v1014 = vadd.f32 %v1013, %v973
      %v1015 = vadd.f32 %v1014, %v975
      %v1016 = vadd.f32 %v1015, %v977
      %v1017 = vadd.f32 %v1016, %v979
      %v1018 = vadd.f32 %v1017, %v981
      %v1019 = vadd.f32 %v1018, %v983
      %v1020 = vadd.f32 %v1019, %v985
      %v1021 = vadd.f32 %v1020, %v987
      %v1022 = vadd.f32 %v1021, %v989
      %v1023 = vadd.f32 %v1022, %v991
      %v1024 = vrot.slane %v1023, 4
      %v1025 = vadd.f32 %v1023, %v1024
      %v1026 = vrot.slane %v1025, 2
      %v1027 = vadd.f32 %v1025, %v1026
      %v1028 = vrot.slane %v1027, 1
      %v1029 = vadd.f32 %v1027, %v1028
      %v1030 = vadd.f32 %v930, %v932
      %v1031 = vadd.f32 %v1030, %v934
      %v1032 = vadd.f32 %v1031, %v936
      %v1033 = vadd.f32 %v1032, %v938
      %v1034 = vadd.f32 %v1033, %v940
      %v1035 = vadd.f32 %v1034, %v942
      %v1036 = vadd.f32 %v1035, %v944
      %v1037 = vadd.f32 %v1036, %v946
      %v1038 = vadd.f32 %v1037, %v948
      %v1039 = vadd.f32 %v1038, %v950
      %v1040 = vadd.f32 %v1039, %v952
      %v1041 = vadd.f32 %v1040, %v954
      %v1042 = vadd.f32 %v1041, %v956
      %v1043 = vadd.f32 %v1042, %v958
      %v1044 = vadd.f32 %v1043, %v960
      %v1045 = vadd.f32 %v1044, %v962
      %v1046 = vadd.f32 %v1045, %v964
      %v1047 = vadd.f32 %v1046, %v966
      %v1048 = vadd.f32 %v1047, %v968
      %v1049 = vadd.f32 %v1048, %v970
      %v1050 = vadd.f32 %v1049, %v972
      %v1051 = vadd.f32 %v1050, %v974
      %v1052 = vadd.f32 %v1051, %v976
      %v1053 = vadd.f32 %v1052, %v978
      %v1054 = vadd.f32 %v1053, %v980
      %v1055 = vadd.f32 %v1054, %v982
      %v1056 = vadd.f32 %v1055, %v984
      %v1057 = vadd.f32 %v1056, %v986
      %v1058 = vadd.f32 %v1057, %v988
      %v1059 = vadd.f32 %v1058, %v990
      %v1060 = vadd.f32 %v1059, %v992
      %v1061 = vrot.slane %v1060, 4
      %v1062 = vadd.f32 %v1060, %v1061
      %v1063 = vrot.slane %v1062, 2
      %v1064 = vadd.f32 %v1062, %v1063
      %v1065 = vrot.slane %v1064, 1
      %v1066 = vadd.f32 %v1064, %v1065
      %vm1067 = vcmask 1040384
      %v1068 = vsel %vm1067, %v824, %v1029
      %v1069 = vsel %vm1067, %v861, %v1066
      %vm1070 = vcmask 1041408
      %v1071 = vsel %vm1070, %v1068, 256.0
      %v1072 = vsel %vm1070, %v1069, 256.0
      %v1075 = vcombine.low %v1071, %v1072
      %1077 = vst [vmem:[%s242] sm:$0x77] %v1075
      %s1078 = smul.u32 32, %s17
      %p1079 = scmp.lt.s32.totalorder %s1078, 63
      %s1080 = scalar_select %p1079, %s1078, 63
      %s1081 = smul.addr %s1080, 2
      %s1082 = smul.addr %s1081, 8
      %s1083 = scalar_lea.vmem %s4, %s1082
      %p1084 = scmp.lt.s32.totalorder %s17, 1
      %s1085 = scalar_select %p1084, %s17, 1
      %s1086 = smul.addr %s1085, 2
      %s1087 = smul.addr %s1086, 4
      %s1088 = scalar_lea.vmem %s5, %s1087
      // Predicated region
      $region37: #{_bottleneck_forward.5} parent=35 // pred_check
        %p1089 = pneg %p124
      $region38: #{_bottleneck_forward.5} parent=35 // pred_check_branch
        %1091 = sbr.rel (%p1089) target = $region40
      $region39: #{_bottleneck_forward.5} parent=35 // pred_region
        %s1092 = smul.u32 32, %s17
      $region40: #{_bottleneck_forward.5} parent=35 // pred_fallthru
        _
      // Predicated region
      $region41: #{_bottleneck_forward.5} parent=35 // pred_check
        %p1093 = pneg %p150
      $region42: #{_bottleneck_forward.5} parent=35 // pred_check_branch
        %1095 = sbr.rel (%p1093) target = $region44
      $region43: #{_bottleneck_forward.5} parent=35 // pred_region
        _
      $region44: #{_bottleneck_forward.5} parent=35 // pred_fallthru
        _
    $region36: #{_bottleneck_forward.5} parent=5 // pred_fallthru
      _
    %p1096 = scmp.le.s32.totalorder 2, %s12
    // Predicated region
    $region45: #{_bottleneck_forward.5} parent=5 // pred_check
      %p1097 = pneg %p1096
    $region46: #{_bottleneck_forward.5} parent=5 // pred_check_branch
      %1099 = sbr.rel (%p1097) target = $region48
    $region47: #{_bottleneck_forward.5} parent=5 // pred_region
      %s1100 = ssub.s32 %s12, 2
      // Predicated region
      $region49: #{_bottleneck_forward.5} parent=47 // pred_check
        %p1101 = pneg %p130
      $region50: #{_bottleneck_forward.5} parent=47 // pred_check_branch
        %1103 = sbr.rel (%p1101) target = $region52
      $region51: #{_bottleneck_forward.5} parent=47 // pred_region
        %s1104 = smul.u32 32, %s18
        %p1105 = scmp.lt.s32.totalorder %s1104, 63
        %s1106 = scalar_select %p1105, %s1104, 63
        %s1107 = smul.addr %s1106, 2
        %s1108 = smul.addr %s1107, 8
        %s1109 = scalar_lea.vmem %s4, %s1108
      $region52: #{_bottleneck_forward.5} parent=47 // pred_fallthru
        _
      // Predicated region
      $region53: #{_bottleneck_forward.5} parent=47 // pred_check
        %p1110 = pneg %p156
      $region54: #{_bottleneck_forward.5} parent=47 // pred_check_branch
        %1112 = sbr.rel (%p1110) target = $region56
      $region55: #{_bottleneck_forward.5} parent=47 // pred_region
        %p1113 = scmp.lt.s32.totalorder %s18, 1
        %s1114 = scalar_select %p1113, %s18, 1
        %s1115 = smul.addr %s1114, 2
        %s1116 = smul.addr %s1115, 4
        %s1117 = scalar_lea.vmem %s5, %s1116
      $region56: #{_bottleneck_forward.5} parent=47 // pred_fallthru
        _
    $region48: #{_bottleneck_forward.5} parent=5 // pred_fallthru
      _
  $region6: #{_bottleneck_forward.5} parent=0 // loop_footer
    %s16 = sadd.s32 1, %s12
  $region7: #{_bottleneck_forward.5} parent=0 // loop_footer_branch
    %11 = sbr.rel target = $region3
  $region8: #{_bottleneck_forward.5} parent=0 // loop_exit
    _

// kernel: _bottleneck_forward.3
$region0: #{_bottleneck_forward.3}
  #allocation0 [shape = 'u32[]', space=smem, size = 0x4, offset = 0x4, fixed_abs, tag = 'smem constant byte address 0x4 - core index']
  #allocation1 [shape = 'u32[144,128]{1,0:T(1,128)}', space=vmem, size = 0x12000, scoped, tag = 'internal scratch']
  %s0 = inlined_call_operand.vmem [shape: bf16[512,256], index: 0, kind: input, shape index: {}]
  %s1 = inlined_call_operand.vmem [shape: bf16[256,64], index: 1, kind: input, shape index: {}]
  %s2 = inlined_call_operand.vmem [shape: bf16[512,64], index: 2, kind: output, shape index: {0}]
  %s3 = inlined_call_operand.vmem [shape: f32[2,3,64], index: 3, kind: output, shape index: {1}]
  %4 = xla_tuple %s2, %s3
  %s5 = sld [smem:[#allocation0]]
  $region49: #{_bottleneck_forward.3} parent=0
    _
  %s7 = ssub.s32 1, %s5
  %s8 = scalar_select 0, %s7, %s5
  loop: start=0, step=1, limit=4
  $region2: #{_bottleneck_forward.3} parent=0 // loop_pre_header
    _
  $region3: #{_bottleneck_forward.3} parent=0 // loop_header
    %s10 = sphi 0, %s14
    %p11 = scmp.ge.s32.totalorder %s10, 4
    %s20 = sphi 0, %s22
    %s23 = sphi 0, %s20
    %s24 = sphi 0, %s23
    %s40 = sphi 0, %s24
    %s44 = sphi 0, %s44
    %s46 = sphi 0, %s44
    %s47 = sphi 0, %s46
    %s61 = sphi 0, %s47
    %s67 = sphi 0, %s69
    %s70 = sphi 0, %s67
    %s71 = sphi 0, %s70
    %s87 = sphi 0, %s71
    %s93 = sphi 0, %s95
    %s96 = sphi 0, %s93
    %s97 = sphi 0, %s96
    %s113 = sphi 0, %s97
  $region4: #{_bottleneck_forward.3} parent=0 // loop_header_branch
    %13 = sbr.rel (%p11) target = $region8
  $region5: #{_bottleneck_forward.3} parent=0 // loop_body
    %s15 = ssub.s32 %s10, 1
    %s16 = ssub.s32 %s10, 2
    %s17 = sadd.s32 %s10, 1
    %s18 = ssub.s32 %s10, %s17
    %p19 = scmp.eq.s32.totalorder %s18, 0
    %s21 = sadd.s32 %s20, 1
    %s22 = scalar_select %p19, %s20, %s21
    %p25 = pneg %p19
    %p26 = scmp.eq.s32.totalorder %s10, 1
    %p27 = por %p25, %p26
    %p28 = scmp.ne.s32.totalorder %s20, %s23
    %p29 = scmp.eq.s32.totalorder %s10, 0
    %p30 = por %p28, %p29
    %p31 = scmp.ne.s32.totalorder %s20, %s23
    %p32 = scmp.eq.s32.totalorder %s15, 1
    %p33 = por %p31, %p32
    %p34 = scmp.ne.s32.totalorder %s23, %s24
    %p35 = scmp.eq.s32.totalorder %s15, 0
    %p36 = por %p34, %p35
    %p37 = scmp.ne.s32.totalorder %s23, %s24
    %p38 = scmp.eq.s32.totalorder %s16, 1
    %p39 = por %p37, %p38
    %p41 = scmp.ne.s32.totalorder %s24, %s40
    %p42 = scmp.eq.s32.totalorder %s16, 0
    %p43 = por %p41, %p42
    %s45 = sadd.s32 %s44, 1
    %p48 = scmp.eq.s32.totalorder %s10, 1
    %p49 = scmp.ne.s32.totalorder %s44, %s46
    %p50 = scmp.eq.s32.totalorder %s10, 0
    %p51 = por %p49, %p50
    %p52 = scmp.ne.s32.totalorder %s44, %s46
    %p53 = scmp.eq.s32.totalorder %s15, 1
    %p54 = por %p52, %p53
    %p55 = scmp.ne.s32.totalorder %s46, %s47
    %p56 = scmp.eq.s32.totalorder %s15, 0
    %p57 = por %p55, %p56
    %p58 = scmp.ne.s32.totalorder %s46, %s47
    %p59 = scmp.eq.s32.totalorder %s16, 1
    %p60 = por %p58, %p59
    %p62 = scmp.ne.s32.totalorder %s47, %s61
    %p63 = scmp.eq.s32.totalorder %s16, 0
    %p64 = por %p62, %p63
    %s65 = ssub.s32 %s10, %s17
    %p66 = scmp.eq.s32.totalorder %s65, 0
    %s68 = sadd.s32 %s67, 1
    %s69 = scalar_select %p66, %s67, %s68
    %p72 = pneg %p66
    %p73 = scmp.eq.s32.totalorder %s10, 1
    %p74 = por %p72, %p73
    %p75 = scmp.ne.s32.totalorder %s67, %s70
    %p76 = scmp.eq.s32.totalorder %s10, 0
    %p77 = por %p75, %p76
    %p78 = scmp.ne.s32.totalorder %s67, %s70
    %p79 = scmp.eq.s32.totalorder %s15, 1
    %p80 = por %p78, %p79
    %p81 = scmp.ne.s32.totalorder %s70, %s71
    %p82 = scmp.eq.s32.totalorder %s15, 0
    %p83 = por %p81, %p82
    %p84 = scmp.ne.s32.totalorder %s70, %s71
    %p85 = scmp.eq.s32.totalorder %s16, 1
    %p86 = por %p84, %p85
    %p88 = scmp.ne.s32.totalorder %s71, %s87
    %p89 = scmp.eq.s32.totalorder %s16, 0
    %p90 = por %p88, %p89
    %s91 = ssub.s32 %s10, %s17
    %p92 = scmp.eq.s32.totalorder %s91, 0
    %s94 = sadd.s32 %s93, 1
    %s95 = scalar_select %p92, %s93, %s94
    %p98 = pneg %p92
    %p99 = scmp.eq.s32.totalorder %s10, 1
    %p100 = por %p98, %p99
    %p101 = scmp.ne.s32.totalorder %s93, %s96
    %p102 = scmp.eq.s32.totalorder %s10, 0
    %p103 = por %p101, %p102
    %p104 = scmp.ne.s32.totalorder %s93, %s96
    %p105 = scmp.eq.s32.totalorder %s15, 1
    %p106 = por %p104, %p105
    %p107 = scmp.ne.s32.totalorder %s96, %s97
    %p108 = scmp.eq.s32.totalorder %s15, 0
    %p109 = por %p107, %p108
    %p110 = scmp.ne.s32.totalorder %s96, %s97
    %p111 = scmp.eq.s32.totalorder %s16, 1
    %p112 = por %p110, %p111
    %p114 = scmp.ne.s32.totalorder %s97, %s113
    %p115 = scmp.eq.s32.totalorder %s16, 0
    %p116 = por %p114, %p115
    %p117 = scmp.le.s32.totalorder 1, %s10
    %p118 = scmp.lt.s32.totalorder %s10, 3
    %p119 = pnand %p117, %p118
    %p120 = pneg %p119
    // Predicated region
    $region9: #{_bottleneck_forward.3} parent=5 // pred_check
      _
    $region10: #{_bottleneck_forward.3} parent=5 // pred_check_branch
      %122 = sbr.rel (%p119) target = $region12
    $region11: #{_bottleneck_forward.3} parent=5 // pred_region
      %s123 = ssub.s32 %s10, 1
      // Predicated region
      $region13: #{_bottleneck_forward.3} parent=11 // pred_check
        %p124 = pneg %p57
      $region14: #{_bottleneck_forward.3} parent=11 // pred_check_branch
        %126 = sbr.rel (%p124) target = $region16
      $region15: #{_bottleneck_forward.3} parent=11 // pred_region
        _
      $region16: #{_bottleneck_forward.3} parent=11 // pred_fallthru
        _
    $region12: #{_bottleneck_forward.3} parent=5 // pred_fallthru
      _
    %p127 = scmp.lt.s32.totalorder %s10, 2
    // Predicated region
    $region17: #{_bottleneck_forward.3} parent=5 // pred_check
      %p128 = pneg %p127
    $region18: #{_bottleneck_forward.3} parent=5 // pred_check_branch
      %130 = sbr.rel (%p128) target = $region20
    $region19: #{_bottleneck_forward.3} parent=5 // pred_region
      // Predicated region
      $region21: #{_bottleneck_forward.3} parent=19 // pred_check
        %p131 = pneg %p30
      $region22: #{_bottleneck_forward.3} parent=19 // pred_check_branch
        %133 = sbr.rel (%p131) target = $region24
      $region23: #{_bottleneck_forward.3} parent=19 // pred_region
        %s134 = smul.u32 32, %s10
        %p135 = scmp.lt.s32.totalorder %s134, 63
        %s136 = scalar_select %p135, %s134, 63
        %s137 = smul.addr %s136, 2
        %s138 = smul.addr %s137, 4
        %s139 = scalar_lea.vmem %s0, %s138
        %s140 = smul.u32 32, %s10
      $region24: #{_bottleneck_forward.3} parent=19 // pred_fallthru
        _
    $region20: #{_bottleneck_forward.3} parent=5 // pred_fallthru
      _
    %p141 = scmp.le.s32.totalorder 1, %s10
    %p142 = scmp.lt.s32.totalorder %s10, 3
    %p143 = pnand %p141, %p142
    %p144 = pneg %p143
    // Predicated region
    $region25: #{_bottleneck_forward.3} parent=5 // pred_check
      _
    $region26: #{_bottleneck_forward.3} parent=5 // pred_check_branch
      %146 = sbr.rel (%p143) target = $region28
    $region27: #{_bottleneck_forward.3} parent=5 // pred_region
      %s147 = ssub.s32 %s10, 1
      %s148 = smul.u32 32, %s15
      %p149 = scmp.lt.s32.totalorder %s148, 63
      %s150 = scalar_select %p149, %s148, 63
      %s151 = smul.addr %s150, 2
      %s152 = smul.addr %s151, 4
      %s153 = scalar_lea.vmem %s0, %s152
      %p154 = pneg %p36
      %p155 = pneg %p33
      %p156 = pneg %p57
      %p157 = pneg %p54
      %p158 = pneg %p83
      %p159 = pneg %p80
      %s160 = smul.u32 32, %s15
      %p161 = scmp.lt.s32.totalorder %s160, 63
      %s162 = scalar_select %p161, %s160, 63
      %s163 = smul.addr %s162, 4
      %s164 = scalar_lea.vmem %s2, %s163
      %p165 = pneg %p109
      %p166 = pneg %p106
      %p167 = scmp.lt.s32.totalorder %s15, 1
      %s168 = scalar_select %p167, %s15, 1
      %s169 = smul.addr %s168, 4
      %s170 = scalar_lea.vmem %s3, %s169
      %s171 = smul.u32 32, %s15
      %p172 = scmp.lt.s32.totalorder %s171, 63
      %s173 = scalar_select %p172, %s171, 63
      %s174 = smul.addr %s173, 2
      %s175 = smul.addr %s174, 4
      %s176 = scalar_lea.vmem %s0, %s175
      %s177 = smul.u32 32, %s15
      %s178 = smul.u32 32, %s15
      %p179 = scmp.lt.s32.totalorder %s178, 63
      %s180 = scalar_select %p179, %s178, 63
      %s181 = smul.addr %s180, 4
      %s182 = scalar_lea.vmem %s2, %s181
      %s183 = smul.u32 32, %s15
      %p184 = scmp.lt.s32.totalorder %s15, 1
      %s185 = scalar_select %p184, %s15, 1
      %s186 = smul.addr %s185, 4
      %s187 = scalar_lea.vmem %s3, %s186
      %v189 = vld [vmem:[%s176] sm:$0xff]
      %v190 = vld [vmem:[%s176 + $0x8] sm:$0xff]
      %v191 = vld [vmem:[%s176 + $0x10] sm:$0xff]
      %v192 = vld [vmem:[%s176 + $0x18] sm:$0xff]
      %v193 = vld [vmem:[%s176 + $0x20] sm:$0xff]
      %v194 = vld [vmem:[%s176 + $0x28] sm:$0xff]
      %v195 = vld [vmem:[%s176 + $0x30] sm:$0xff]
      %v196 = vld [vmem:[%s176 + $0x38] sm:$0xff]
      %v197 = vld [vmem:[%s176 + $0x40] sm:$0xff]
      %v198 = vld [vmem:[%s176 + $0x48] sm:$0xff]
      %v199 = vld [vmem:[%s176 + $0x50] sm:$0xff]
      %v200 = vld [vmem:[%s176 + $0x58] sm:$0xff]
      %v201 = vld [vmem:[%s176 + $0x60] sm:$0xff]
      %v202 = vld [vmem:[%s176 + $0x68] sm:$0xff]
      %v203 = vld [vmem:[%s176 + $0x70] sm:$0xff]
      %v204 = vld [vmem:[%s176 + $0x78] sm:$0xff]
      %v205 = vld [vmem:[%s176 + $0x80] sm:$0xff]
      %v206 = vld [vmem:[%s176 + $0x88] sm:$0xff]
      %v207 = vld [vmem:[%s176 + $0x90] sm:$0xff]
      %v208 = vld [vmem:[%s176 + $0x98] sm:$0xff]
      %v209 = vld [vmem:[%s176 + $0xa0] sm:$0xff]
      %v210 = vld [vmem:[%s176 + $0xa8] sm:$0xff]
      %v211 = vld [vmem:[%s176 + $0xb0] sm:$0xff]
      %v212 = vld [vmem:[%s176 + $0xb8] sm:$0xff]
      %v213 = vld [vmem:[%s176 + $0xc0] sm:$0xff]
      %v214 = vld [vmem:[%s176 + $0xc8] sm:$0xff]
      %v215 = vld [vmem:[%s176 + $0xd0] sm:$0xff]
      %v216 = vld [vmem:[%s176 + $0xd8] sm:$0xff]
      %v217 = vld [vmem:[%s176 + $0xe0] sm:$0xff]
      %v218 = vld [vmem:[%s176 + $0xe8] sm:$0xff]
      %v219 = vld [vmem:[%s176 + $0xf0] sm:$0xff]
      %v220 = vld [vmem:[%s176 + $0xf8] sm:$0xff]
      %v221 = vld [vmem:[%s1] sm:$0xf]
      %v222 = vld [vmem:[%s1 + $0x4] sm:$0xf]
      %v223 = vld [vmem:[%s1 + $0x8] sm:$0xf]
      %v224 = vld [vmem:[%s1 + $0xc] sm:$0xf]
      %v225 = vld [vmem:[%s1 + $0x10] sm:$0xf]
      %v226 = vld [vmem:[%s1 + $0x14] sm:$0xf]
      %v227 = vld [vmem:[%s1 + $0x18] sm:$0xf]
      %v228 = vld [vmem:[%s1 + $0x1c] sm:$0xf]
      %v229 = vld [vmem:[%s1 + $0x20] sm:$0xf]
      %v230 = vld [vmem:[%s1 + $0x24] sm:$0xf]
      %v231 = vld [vmem:[%s1 + $0x28] sm:$0xf]
      %v232 = vld [vmem:[%s1 + $0x2c] sm:$0xf]
      %v233 = vld [vmem:[%s1 + $0x30] sm:$0xf]
      %v234 = vld [vmem:[%s1 + $0x34] sm:$0xf]
      %v235 = vld [vmem:[%s1 + $0x38] sm:$0xf]
      %v236 = vld [vmem:[%s1 + $0x3c] sm:$0xf]
      %v237 = vld [vmem:[%s1 + $0x40] sm:$0xf]
      %v238 = vld [vmem:[%s1 + $0x44] sm:$0xf]
      %v239 = vld [vmem:[%s1 + $0x48] sm:$0xf]
      %v240 = vld [vmem:[%s1 + $0x4c] sm:$0xf]
      %v241 = vld [vmem:[%s1 + $0x50] sm:$0xf]
      %v242 = vld [vmem:[%s1 + $0x54] sm:$0xf]
      %v243 = vld [vmem:[%s1 + $0x58] sm:$0xf]
      %v244 = vld [vmem:[%s1 + $0x5c] sm:$0xf]
      %v245 = vld [vmem:[%s1 + $0x60] sm:$0xf]
      %v246 = vld [vmem:[%s1 + $0x64] sm:$0xf]
      %v247 = vld [vmem:[%s1 + $0x68] sm:$0xf]
      %v248 = vld [vmem:[%s1 + $0x6c] sm:$0xf]
      %v249 = vld [vmem:[%s1 + $0x70] sm:$0xf]
      %v250 = vld [vmem:[%s1 + $0x74] sm:$0xf]
      %v251 = vld [vmem:[%s1 + $0x78] sm:$0xf]
      %v252 = vld [vmem:[%s1 + $0x7c] sm:$0xf]
      %v285 = vunpack.c.l.b16 %v189
      %v286 = vunpack.c.h.b16 %v189
      %v287 = vunpack.c.l.b16 %v190
      %v288 = vunpack.c.h.b16 %v190
      %v289 = vunpack.c.l.b16 %v191
      %v290 = vunpack.c.h.b16 %v191
      %v291 = vunpack.c.l.b16 %v192
      %v292 = vunpack.c.h.b16 %v192
      %v293 = vunpack.c.l.b16 %v193
      %v294 = vunpack.c.h.b16 %v193
      %v295 = vunpack.c.l.b16 %v194
      %v296 = vunpack.c.h.b16 %v194
      %v297 = vunpack.c.l.b16 %v195
      %v298 = vunpack.c.h.b16 %v195
      %v299 = vunpack.c.l.b16 %v196
      %v300 = vunpack.c.h.b16 %v196
      %v301 = vunpack.c.l.b16 %v197
      %v302 = vunpack.c.h.b16 %v197
      %v303 = vunpack.c.l.b16 %v198
      %v304 = vunpack.c.h.b16 %v198
      %v305 = vunpack.c.l.b16 %v199
      %v306 = vunpack.c.h.b16 %v199
      %v307 = vunpack.c.l.b16 %v200
      %v308 = vunpack.c.h.b16 %v200
      %v309 = vunpack.c.l.b16 %v201
      %v310 = vunpack.c.h.b16 %v201
      %v311 = vunpack.c.l.b16 %v202
      %v312 = vunpack.c.h.b16 %v202
      %v313 = vunpack.c.l.b16 %v203
      %v314 = vunpack.c.h.b16 %v203
      %v315 = vunpack.c.l.b16 %v204
      %v316 = vunpack.c.h.b16 %v204
      %v317 = vunpack.c.l.b16 %v205
      %v318 = vunpack.c.h.b16 %v205
      %v319 = vunpack.c.l.b16 %v206
      %v320 = vunpack.c.h.b16 %v206
      %v321 = vunpack.c.l.b16 %v207
      %v322 = vunpack.c.h.b16 %v207
      %v323 = vunpack.c.l.b16 %v208
      %v324 = vunpack.c.h.b16 %v208
      %v325 = vunpack.c.l.b16 %v209
      %v326 = vunpack.c.h.b16 %v209
      %v327 = vunpack.c.l.b16 %v210
      %v328 = vunpack.c.h.b16 %v210
      %v329 = vunpack.c.l.b16 %v211
      %v330 = vunpack.c.h.b16 %v211
      %v331 = vunpack.c.l.b16 %v212
      %v332 = vunpack.c.h.b16 %v212
      %v333 = vunpack.c.l.b16 %v213
      %v334 = vunpack.c.h.b16 %v213
      %v335 = vunpack.c.l.b16 %v214
      %v336 = vunpack.c.h.b16 %v214
      %v337 = vunpack.c.l.b16 %v215
      %v338 = vunpack.c.h.b16 %v215
      %v339 = vunpack.c.l.b16 %v216
      %v340 = vunpack.c.h.b16 %v216
      %v341 = vunpack.c.l.b16 %v217
      %v342 = vunpack.c.h.b16 %v217
      %v343 = vunpack.c.l.b16 %v218
      %v344 = vunpack.c.h.b16 %v218
      %v345 = vunpack.c.l.b16 %v219
      %v346 = vunpack.c.h.b16 %v219
      %v347 = vunpack.c.l.b16 %v220
      %v348 = vunpack.c.h.b16 %v220
      %v349 = vpack.c.b16 %v287, %v285
      %v350 = vpack.c.b16 %v288, %v286
      %v351 = vpack.c.b16 %v291, %v289
      %v352 = vpack.c.b16 %v292, %v290
      %v353 = vpack.c.b16 %v295, %v293
      %v354 = vpack.c.b16 %v296, %v294
      %v355 = vpack.c.b16 %v299, %v297
      %v356 = vpack.c.b16 %v300, %v298
      %v357 = vpack.c.b16 %v303, %v301
      %v358 = vpack.c.b16 %v304, %v302
      %v359 = vpack.c.b16 %v307, %v305
      %v360 = vpack.c.b16 %v308, %v306
      %v361 = vpack.c.b16 %v311, %v309
      %v362 = vpack.c.b16 %v312, %v310
      %v363 = vpack.c.b16 %v315, %v313
      %v364 = vpack.c.b16 %v316, %v314
      %v365 = vpack.c.b16 %v319, %v317
      %v366 = vpack.c.b16 %v320, %v318
      %v367 = vpack.c.b16 %v323, %v321
      %v368 = vpack.c.b16 %v324, %v322
      %v369 = vpack.c.b16 %v327, %v325
      %v370 = vpack.c.b16 %v328, %v326
      %v371 = vpack.c.b16 %v331, %v329
      %v372 = vpack.c.b16 %v332, %v330
      %v373 = vpack.c.b16 %v335, %v333
      %v374 = vpack.c.b16 %v336, %v334
      %v375 = vpack.c.b16 %v339, %v337
      %v376 = vpack.c.b16 %v340, %v338
      %v377 = vpack.c.b16 %v343, %v341
      %v378 = vpack.c.b16 %v344, %v342
      %v379 = vpack.c.b16 %v347, %v345
      %v380 = vpack.c.b16 %v348, %v346
      %v445 = vunpack.c.l.b16 %v221
      %v446 = vunpack.c.l.b16 %v222
      %v447 = vunpack.c.l.b16 %v223
      %v448 = vunpack.c.l.b16 %v224
      %v449 = vunpack.c.l.b16 %v225
      %v450 = vunpack.c.l.b16 %v226
      %v451 = vunpack.c.l.b16 %v227
      %v452 = vunpack.c.l.b16 %v228
      %v453 = vunpack.c.l.b16 %v229
      %v454 = vunpack.c.l.b16 %v230
      %v455 = vunpack.c.l.b16 %v231
      %v456 = vunpack.c.l.b16 %v232
      %v457 = vunpack.c.l.b16 %v233
      %v458 = vunpack.c.l.b16 %v234
      %v459 = vunpack.c.l.b16 %v235
      %v460 = vunpack.c.l.b16 %v236
      %v461 = vunpack.c.l.b16 %v237
      %v462 = vunpack.c.l.b16 %v238
      %v463 = vunpack.c.l.b16 %v239
      %v464 = vunpack.c.l.b16 %v240
      %v465 = vunpack.c.l.b16 %v241
      %v466 = vunpack.c.l.b16 %v242
      %v467 = vunpack.c.l.b16 %v243
      %v468 = vunpack.c.l.b16 %v244
      %v469 = vunpack.c.l.b16 %v245
      %v470 = vunpack.c.l.b16 %v246
      %v471 = vunpack.c.l.b16 %v247
      %v472 = vunpack.c.l.b16 %v248
      %v473 = vunpack.c.l.b16 %v249
      %v474 = vunpack.c.l.b16 %v250
      %v475 = vunpack.c.l.b16 %v251
      %v476 = vunpack.c.l.b16 %v252
      %v477 = vpack.c.b16 %v446, %v445
      %v478 = vpack.c.b16 %v448, %v447
      %v479 = vpack.c.b16 %v450, %v449
      %v480 = vpack.c.b16 %v452, %v451
      %v481 = vpack.c.b16 %v454, %v453
      %v482 = vpack.c.b16 %v456, %v455
      %v483 = vpack.c.b16 %v458, %v457
      %v484 = vpack.c.b16 %v460, %v459
      %v485 = vpack.c.b16 %v462, %v461
      %v486 = vpack.c.b16 %v464, %v463
      %v487 = vpack.c.b16 %v466, %v465
      %v488 = vpack.c.b16 %v468, %v467
      %v489 = vpack.c.b16 %v470, %v469
      %v490 = vpack.c.b16 %v472, %v471
      %v491 = vpack.c.b16 %v474, %v473
      %v492 = vpack.c.b16 %v476, %v475
      %509 = vmatprep.subr.bf16.mxu0 0
      %510 = vmatpush1.bf16.msra.mxu0 %v477
      %511 = vmatprep.subr.bf16.mxu0 0
      %512 = vmatpush1.bf16.msra.mxu0 %v478
      %513 = vmatprep.subr.bf16.mxu0 0
      %514 = vmatpush1.bf16.msra.mxu0 %v479
      %515 = vmatprep.subr.bf16.mxu0 0
      %516 = vmatpush1.bf16.msra.mxu0 %v480
      %517 = vmatprep.subr.bf16.mxu0 0
      %518 = vmatpush1.bf16.msra.mxu0 %v481
      %519 = vmatprep.subr.bf16.mxu0 0
      %520 = vmatpush1.bf16.msra.mxu0 %v482
      %521 = vmatprep.subr.bf16.mxu0 0
      %522 = vmatpush1.bf16.msra.mxu0 %v483
      %523 = vmatprep.subr.bf16.mxu0 0
      %524 = vmatpush1.bf16.msra.mxu0 %v484
      %525 = vmatprep.subr.bf16.mxu0 0
      %526 = vmatpush1.bf16.msra.mxu0 %v485
      %527 = vmatprep.subr.bf16.mxu0 0
      %528 = vmatpush1.bf16.msra.mxu0 %v486
      %529 = vmatprep.subr.bf16.mxu0 0
      %530 = vmatpush1.bf16.msra.mxu0 %v487
      %531 = vmatprep.subr.bf16.mxu0 0
      %532 = vmatpush1.bf16.msra.mxu0 %v488
      %533 = vmatprep.subr.bf16.mxu0 0
      %534 = vmatpush1.bf16.msra.mxu0 %v489
      %535 = vmatprep.subr.bf16.mxu0 0
      %536 = vmatpush1.bf16.msra.mxu0 %v490
      %537 = vmatprep.subr.bf16.mxu0 0
      %538 = vmatpush1.bf16.msra.mxu0 %v491
      %539 = vmatprep.subr.bf16.mxu0 0
      %540 = vmatpush1.bf16.msra.mxu0 %v492
      %541 = vmatprep.mubr.bf16.mxu0 %v350
      %542 = vmatmul.mubr.bf16.gmra.mrb[0].mxu0 %v349
      %v543 = vpop.f32.mrb[0].mxu0
      %v544 = vadd.f32 0.0, %v543
      %v545 = vpop.f32.mrb[0].mxu0
      %v546 = vpop.f32.mrb[0].mxu0
      %v547 = vadd.f32 0.0, %v546
      %v548 = vpop.f32.mrb[0].mxu0
      %549 = vmatprep.mubr.bf16.mxu0 %v352
      %550 = vmatmul.mubr.bf16.gmra.mrb[0].mxu0 %v351
      %v551 = vpop.f32.mrb[0].mxu0
      %v552 = vadd.f32 0.0, %v551
      %v553 = vpop.f32.mrb[0].mxu0
      %v554 = vpop.f32.mrb[0].mxu0
      %v555 = vadd.f32 0.0, %v554
      %v556 = vpop.f32.mrb[0].mxu0
      %557 = vmatprep.mubr.bf16.mxu0 %v354
      %558 = vmatmul.mubr.bf16.gmra.mrb[0].mxu0 %v353
      %v559 = vpop.f32.mrb[0].mxu0
      %v560 = vadd.f32 0.0, %v559
      %v561 = vpop.f32.mrb[0].mxu0
      %v562 = vpop.f32.mrb[0].mxu0
      %v563 = vadd.f32 0.0, %v562
      %v564 = vpop.f32.mrb[0].mxu0
      %565 = vmatprep.mubr.bf16.mxu0 %v356
      %566 = vmatmul.mubr.bf16.gmra.mrb[0].mxu0 %v355
      %v567 = vpop.f32.mrb[0].mxu0
      %v568 = vadd.f32 0.0, %v567
      %v569 = vpop.f32.mrb[0].mxu0
      %v570 = vpop.f32.mrb[0].mxu0
      %v571 = vadd.f32 0.0, %v570
      %v572 = vpop.f32.mrb[0].mxu0
      %573 = vmatprep.mubr.bf16.mxu0 %v358
      %574 = vmatmul.mubr.bf16.gmra.mrb[0].mxu0 %v357
      %v575 = vpop.f32.mrb[0].mxu0
      %v576 = vadd.f32 0.0, %v575
      %v577 = vpop.f32.mrb[0].mxu0
      %v578 = vpop.f32.mrb[0].mxu0
      %v579 = vadd.f32 0.0, %v578
      %v580 = vpop.f32.mrb[0].mxu0
      %581 = vmatprep.mubr.bf16.mxu0 %v360
      %582 = vmatmul.mubr.bf16.gmra.mrb[0].mxu0 %v359
      %v583 = vpop.f32.mrb[0].mxu0
      %v584 = vadd.f32 0.0, %v583
      %v585 = vpop.f32.mrb[0].mxu0
      %v586 = vpop.f32.mrb[0].mxu0
      %v587 = vadd.f32 0.0, %v586
      %v588 = vpop.f32.mrb[0].mxu0
      %589 = vmatprep.mubr.bf16.mxu0 %v362
      %590 = vmatmul.mubr.bf16.gmra.mrb[0].mxu0 %v361
      %v591 = vpop.f32.mrb[0].mxu0
      %v592 = vadd.f32 0.0, %v591
      %v593 = vpop.f32.mrb[0].mxu0
      %v594 = vpop.f32.mrb[0].mxu0
      %v595 = vadd.f32 0.0, %v594
      %v596 = vpop.f32.mrb[0].mxu0
      %597 = vmatprep.mubr.bf16.mxu0 %v364
      %598 = vmatmul.mubr.bf16.gmra.mrb[0].mxu0 %v363
      %v599 = vpop.f32.mrb[0].mxu0
      %v600 = vadd.f32 0.0, %v599
      %v601 = vpop.f32.mrb[0].mxu0
      %v602 = vpop.f32.mrb[0].mxu0
      %v603 = vadd.f32 0.0, %v602
      %v604 = vpop.f32.mrb[0].mxu0
      %605 = vmatprep.mubr.bf16.mxu0 %v366
      %606 = vmatmul.mubr.bf16.gmra.mrb[0].mxu0 %v365
      %v607 = vpop.f32.mrb[0].mxu0
      %v608 = vadd.f32 0.0, %v607
      %v609 = vpop.f32.mrb[0].mxu0
      %v610 = vpop.f32.mrb[0].mxu0
      %v611 = vadd.f32 0.0, %v610
      %v612 = vpop.f32.mrb[0].mxu0
      %613 = vmatprep.mubr.bf16.mxu0 %v368
      %614 = vmatmul.mubr.bf16.gmra.mrb[0].mxu0 %v367
      %v615 = vpop.f32.mrb[0].mxu0
      %v616 = vadd.f32 0.0, %v615
      %v617 = vpop.f32.mrb[0].mxu0
      %v618 = vpop.f32.mrb[0].mxu0
      %v619 = vadd.f32 0.0, %v618
      %v620 = vpop.f32.mrb[0].mxu0
      %621 = vmatprep.mubr.bf16.mxu0 %v370
      %622 = vmatmul.mubr.bf16.gmra.mrb[0].mxu0 %v369
      %v623 = vpop.f32.mrb[0].mxu0
      %v624 = vadd.f32 0.0, %v623
      %v625 = vpop.f32.mrb[0].mxu0
      %v626 = vpop.f32.mrb[0].mxu0
      %v627 = vadd.f32 0.0, %v626
      %v628 = vpop.f32.mrb[0].mxu0
      %629 = vmatprep.mubr.bf16.mxu0 %v372
      %630 = vmatmul.mubr.bf16.gmra.mrb[0].mxu0 %v371
      %v631 = vpop.f32.mrb[0].mxu0
      %v632 = vadd.f32 0.0, %v631
      %v633 = vpop.f32.mrb[0].mxu0
      %v634 = vpop.f32.mrb[0].mxu0
      %v635 = vadd.f32 0.0, %v634
      %v636 = vpop.f32.mrb[0].mxu0
      %637 = vmatprep.mubr.bf16.mxu0 %v374
      %638 = vmatmul.mubr.bf16.gmra.mrb[0].mxu0 %v373
      %v639 = vpop.f32.mrb[0].mxu0
      %v640 = vadd.f32 0.0, %v639
      %v641 = vpop.f32.mrb[0].mxu0
      %v642 = vpop.f32.mrb[0].mxu0
      %v643 = vadd.f32 0.0, %v642
      %v644 = vpop.f32.mrb[0].mxu0
      %645 = vmatprep.mubr.bf16.mxu0 %v376
      %646 = vmatmul.mubr.bf16.gmra.mrb[0].mxu0 %v375
      %v647 = vpop.f32.mrb[0].mxu0
      %v648 = vadd.f32 0.0, %v647
      %v649 = vpop.f32.mrb[0].mxu0
      %v650 = vpop.f32.mrb[0].mxu0
      %v651 = vadd.f32 0.0, %v650
      %v652 = vpop.f32.mrb[0].mxu0
      %653 = vmatprep.mubr.bf16.mxu0 %v378
      %654 = vmatmul.mubr.bf16.gmra.mrb[0].mxu0 %v377
      %v655 = vpop.f32.mrb[0].mxu0
      %v656 = vadd.f32 0.0, %v655
      %v657 = vpop.f32.mrb[0].mxu0
      %v658 = vpop.f32.mrb[0].mxu0
      %v659 = vadd.f32 0.0, %v658
      %v660 = vpop.f32.mrb[0].mxu0
      %661 = vmatprep.mubr.bf16.mxu0 %v380
      %662 = vmatmul.mubr.bf16.gmra.mrb[0].mxu0 %v379
      %v663 = vpop.f32.mrb[0].mxu0
      %v664 = vadd.f32 0.0, %v663
      %v665 = vpop.f32.mrb[0].mxu0
      %v666 = vpop.f32.mrb[0].mxu0
      %v667 = vadd.f32 0.0, %v666
      %v668 = vpop.f32.mrb[0].mxu0
      %669 = vdwg.mxu0
      %v670 = vpack.c.bf16 %v547, %v544
      %v671 = vpack.c.bf16 %v555, %v552
      %v672 = vpack.c.bf16 %v563, %v560
      %v673 = vpack.c.bf16 %v571, %v568
      %v674 = vpack.c.bf16 %v579, %v576
      %v675 = vpack.c.bf16 %v587, %v584
      %v676 = vpack.c.bf16 %v595, %v592
      %v677 = vpack.c.bf16 %v603, %v600
      %v678 = vpack.c.bf16 %v611, %v608
      %v679 = vpack.c.bf16 %v619, %v616
      %v680 = vpack.c.bf16 %v627, %v624
      %v681 = vpack.c.bf16 %v635, %v632
      %v682 = vpack.c.bf16 %v643, %v640
      %v683 = vpack.c.bf16 %v651, %v648
      %v684 = vpack.c.bf16 %v659, %v656
      %v685 = vpack.c.bf16 %v667, %v664
      %v702 = vunpack.c.l.b16 %v670
      %v703 = vunpack.c.h.b16 %v670
      %v704 = vunpack.c.l.b16 %v671
      %v705 = vunpack.c.h.b16 %v671
      %v706 = vunpack.c.l.b16 %v672
      %v707 = vunpack.c.h.b16 %v672
      %v708 = vunpack.c.l.b16 %v673
      %v709 = vunpack.c.h.b16 %v673
      %v710 = vunpack.c.l.b16 %v674
      %v711 = vunpack.c.h.b16 %v674
      %v712 = vunpack.c.l.b16 %v675
      %v713 = vunpack.c.h.b16 %v675
      %v714 = vunpack.c.l.b16 %v676
      %v715 = vunpack.c.h.b16 %v676
      %v716 = vunpack.c.l.b16 %v677
      %v717 = vunpack.c.h.b16 %v677
      %v718 = vunpack.c.l.b16 %v678
      %v719 = vunpack.c.h.b16 %v678
      %v720 = vunpack.c.l.b16 %v679
      %v721 = vunpack.c.h.b16 %v679
      %v722 = vunpack.c.l.b16 %v680
      %v723 = vunpack.c.h.b16 %v680
      %v724 = vunpack.c.l.b16 %v681
      %v725 = vunpack.c.h.b16 %v681
      %v726 = vunpack.c.l.b16 %v682
      %v727 = vunpack.c.h.b16 %v682
      %v728 = vunpack.c.l.b16 %v683
      %v729 = vunpack.c.h.b16 %v683
      %v730 = vunpack.c.l.b16 %v684
      %v731 = vunpack.c.h.b16 %v684
      %v732 = vunpack.c.l.b16 %v685
      %v733 = vunpack.c.h.b16 %v685
      %v734 = vpack.c.b16 %v702, %v702
      %v735 = vpack.c.b16 %v703, %v703
      %v736 = vpack.c.b16 %v704, %v704
      %v737 = vpack.c.b16 %v705, %v705
      %v738 = vpack.c.b16 %v706, %v706
      %v739 = vpack.c.b16 %v707, %v707
      %v740 = vpack.c.b16 %v708, %v708
      %v741 = vpack.c.b16 %v709, %v709
      %v742 = vpack.c.b16 %v710, %v710
      %v743 = vpack.c.b16 %v711, %v711
      %v744 = vpack.c.b16 %v712, %v712
      %v745 = vpack.c.b16 %v713, %v713
      %v746 = vpack.c.b16 %v714, %v714
      %v747 = vpack.c.b16 %v715, %v715
      %v748 = vpack.c.b16 %v716, %v716
      %v749 = vpack.c.b16 %v717, %v717
      %v750 = vpack.c.b16 %v718, %v718
      %v751 = vpack.c.b16 %v719, %v719
      %v752 = vpack.c.b16 %v720, %v720
      %v753 = vpack.c.b16 %v721, %v721
      %v754 = vpack.c.b16 %v722, %v722
      %v755 = vpack.c.b16 %v723, %v723
      %v756 = vpack.c.b16 %v724, %v724
      %v757 = vpack.c.b16 %v725, %v725
      %v758 = vpack.c.b16 %v726, %v726
      %v759 = vpack.c.b16 %v727, %v727
      %v760 = vpack.c.b16 %v728, %v728
      %v761 = vpack.c.b16 %v729, %v729
      %v762 = vpack.c.b16 %v730, %v730
      %v763 = vpack.c.b16 %v731, %v731
      %v764 = vpack.c.b16 %v732, %v732
      %v765 = vpack.c.b16 %v733, %v733
      %vm798 = vcmask 519168
      %799 = vst.msk [vmem:[%s182] sm:$0xf] %vm798, %v734
      %800 = vst.msk [vmem:[%s182 + $0x4] sm:$0xf] %vm798, %v735
      %801 = vst.msk [vmem:[%s182 + $0x8] sm:$0xf] %vm798, %v736
      %802 = vst.msk [vmem:[%s182 + $0xc] sm:$0xf] %vm798, %v737
      %803 = vst.msk [vmem:[%s182 + $0x10] sm:$0xf] %vm798, %v738
      %804 = vst.msk [vmem:[%s182 + $0x14] sm:$0xf] %vm798, %v739
      %805 = vst.msk [vmem:[%s182 + $0x18] sm:$0xf] %vm798, %v740
      %806 = vst.msk [vmem:[%s182 + $0x1c] sm:$0xf] %vm798, %v741
      %807 = vst.msk [vmem:[%s182 + $0x20] sm:$0xf] %vm798, %v742
      %808 = vst.msk [vmem:[%s182 + $0x24] sm:$0xf] %vm798, %v743
      %809 = vst.msk [vmem:[%s182 + $0x28] sm:$0xf] %vm798, %v744
      %810 = vst.msk [vmem:[%s182 + $0x2c] sm:$0xf] %vm798, %v745
      %811 = vst.msk [vmem:[%s182 + $0x30] sm:$0xf] %vm798, %v746
      %812 = vst.msk [vmem:[%s182 + $0x34] sm:$0xf] %vm798, %v747
      %813 = vst.msk [vmem:[%s182 + $0x38] sm:$0xf] %vm798, %v748
      %814 = vst.msk [vmem:[%s182 + $0x3c] sm:$0xf] %vm798, %v749
      %815 = vst.msk [vmem:[%s182 + $0x40] sm:$0xf] %vm798, %v750
      %816 = vst.msk [vmem:[%s182 + $0x44] sm:$0xf] %vm798, %v751
      %817 = vst.msk [vmem:[%s182 + $0x48] sm:$0xf] %vm798, %v752
      %818 = vst.msk [vmem:[%s182 + $0x4c] sm:$0xf] %vm798, %v753
      %819 = vst.msk [vmem:[%s182 + $0x50] sm:$0xf] %vm798, %v754
      %820 = vst.msk [vmem:[%s182 + $0x54] sm:$0xf] %vm798, %v755
      %821 = vst.msk [vmem:[%s182 + $0x58] sm:$0xf] %vm798, %v756
      %822 = vst.msk [vmem:[%s182 + $0x5c] sm:$0xf] %vm798, %v757
      %823 = vst.msk [vmem:[%s182 + $0x60] sm:$0xf] %vm798, %v758
      %824 = vst.msk [vmem:[%s182 + $0x64] sm:$0xf] %vm798, %v759
      %825 = vst.msk [vmem:[%s182 + $0x68] sm:$0xf] %vm798, %v760
      %826 = vst.msk [vmem:[%s182 + $0x6c] sm:$0xf] %vm798, %v761
      %827 = vst.msk [vmem:[%s182 + $0x70] sm:$0xf] %vm798, %v762
      %828 = vst.msk [vmem:[%s182 + $0x74] sm:$0xf] %vm798, %v763
      %829 = vst.msk [vmem:[%s182 + $0x78] sm:$0xf] %vm798, %v764
      %830 = vst.msk [vmem:[%s182 + $0x7c] sm:$0xf] %vm798, %v765
      %vm831 = vcmask 523264
      %v832 = vsel %vm831, %v544, 0.0
      %v833 = vsel %vm831, %v547, 0.0
      %v834 = vadd.f32 %v832, %v833
      %v835 = vsel %vm831, %v552, 0.0
      %v836 = vadd.f32 %v834, %v835
      %v837 = vsel %vm831, %v555, 0.0
      %v838 = vadd.f32 %v836, %v837
      %v839 = vsel %vm831, %v560, 0.0
      %v840 = vadd.f32 %v838, %v839
      %v841 = vsel %vm831, %v563, 0.0
      %v842 = vadd.f32 %v840, %v841
      %v843 = vsel %vm831, %v568, 0.0
      %v844 = vadd.f32 %v842, %v843
      %v845 = vsel %vm831, %v571, 0.0
      %v846 = vadd.f32 %v844, %v845
      %v847 = vsel %vm831, %v576, 0.0
      %v848 = vadd.f32 %v846, %v847
      %v849 = vsel %vm831, %v579, 0.0
      %v850 = vadd.f32 %v848, %v849
      %v851 = vsel %vm831, %v584, 0.0
      %v852 = vadd.f32 %v850, %v851
      %v853 = vsel %vm831, %v587, 0.0
      %v854 = vadd.f32 %v852, %v853
      %v855 = vsel %vm831, %v592, 0.0
      %v856 = vadd.f32 %v854, %v855
      %v857 = vsel %vm831, %v595, 0.0
      %v858 = vadd.f32 %v856, %v857
      %v859 = vsel %vm831, %v600, 0.0
      %v860 = vadd.f32 %v858, %v859
      %v861 = vsel %vm831, %v603, 0.0
      %v862 = vadd.f32 %v860, %v861
      %v863 = vsel %vm831, %v608, 0.0
      %v864 = vadd.f32 %v862, %v863
      %v865 = vsel %vm831, %v611, 0.0
      %v866 = vadd.f32 %v864, %v865
      %v867 = vsel %vm831, %v616, 0.0
      %v868 = vadd.f32 %v866, %v867
      %v869 = vsel %vm831, %v619, 0.0
      %v870 = vadd.f32 %v868, %v869
      %v871 = vsel %vm831, %v624, 0.0
      %v872 = vadd.f32 %v870, %v871
      %v873 = vsel %vm831, %v627, 0.0
      %v874 = vadd.f32 %v872, %v873
      %v875 = vsel %vm831, %v632, 0.0
      %v876 = vadd.f32 %v874, %v875
      %v877 = vsel %vm831, %v635, 0.0
      %v878 = vadd.f32 %v876, %v877
      %v879 = vsel %vm831, %v640, 0.0
      %v880 = vadd.f32 %v878, %v879
      %v881 = vsel %vm831, %v643, 0.0
      %v882 = vadd.f32 %v880, %v881
      %v883 = vsel %vm831, %v648, 0.0
      %v884 = vadd.f32 %v882, %v883
      %v885 = vsel %vm831, %v651, 0.0
      %v886 = vadd.f32 %v884, %v885
      %v887 = vsel %vm831, %v656, 0.0
      %v888 = vadd.f32 %v886, %v887
      %v889 = vsel %vm831, %v659, 0.0
      %v890 = vadd.f32 %v888, %v889
      %v891 = vsel %vm831, %v664, 0.0
      %v892 = vadd.f32 %v890, %v891
      %v893 = vsel %vm831, %v667, 0.0
      %v894 = vadd.f32 %v892, %v893
      %v895 = vrot.slane %v894, 4
      %v896 = vadd.f32 %v894, %v895
      %v897 = vrot.slane %v896, 2
      %v898 = vadd.f32 %v896, %v897
      %v899 = vrot.slane %v898, 1
      %v900 = vadd.f32 %v898, %v899
      %v901 = vrcp.pop 256.0
      %v902 = vmul.f32 %v900, %v901
      %v903 = vsub.f32 %v544, %v902
      %v904 = vsub.f32 %v547, %v902
      %v905 = vsub.f32 %v552, %v902
      %v906 = vsub.f32 %v555, %v902
      %v907 = vsub.f32 %v560, %v902
      %v908 = vsub.f32 %v563, %v902
      %v909 = vsub.f32 %v568, %v902
      %v910 = vsub.f32 %v571, %v902
      %v911 = vsub.f32 %v576, %v902
      %v912 = vsub.f32 %v579, %v902
      %v913 = vsub.f32 %v584, %v902
      %v914 = vsub.f32 %v587, %v902
      %v915 = vsub.f32 %v592, %v902
      %v916 = vsub.f32 %v595, %v902
      %v917 = vsub.f32 %v600, %v902
      %v918 = vsub.f32 %v603, %v902
      %v919 = vsub.f32 %v608, %v902
      %v920 = vsub.f32 %v611, %v902
      %v921 = vsub.f32 %v616, %v902
      %v922 = vsub.f32 %v619, %v902
      %v923 = vsub.f32 %v624, %v902
      %v924 = vsub.f32 %v627, %v902
      %v925 = vsub.f32 %v632, %v902
      %v926 = vsub.f32 %v635, %v902
      %v927 = vsub.f32 %v640, %v902
      %v928 = vsub.f32 %v643, %v902
      %v929 = vsub.f32 %v648, %v902
      %v930 = vsub.f32 %v651, %v902
      %v931 = vsub.f32 %v656, %v902
      %v932 = vsub.f32 %v659, %v902
      %v933 = vsub.f32 %v664, %v902
      %v934 = vsub.f32 %v667, %v902
      %v935 = vmul.f32 %v903, %v903
      %v936 = vmul.f32 %v904, %v904
      %v937 = vmul.f32 %v905, %v905
      %v938 = vmul.f32 %v906, %v906
      %v939 = vmul.f32 %v907, %v907
      %v940 = vmul.f32 %v908, %v908
      %v941 = vmul.f32 %v909, %v909
      %v942 = vmul.f32 %v910, %v910
      %v943 = vmul.f32 %v911, %v911
      %v944 = vmul.f32 %v912, %v912
      %v945 = vmul.f32 %v913, %v913
      %v946 = vmul.f32 %v914, %v914
      %v947 = vmul.f32 %v915, %v915
      %v948 = vmul.f32 %v916, %v916
      %v949 = vmul.f32 %v917, %v917
      %v950 = vmul.f32 %v918, %v918
      %v951 = vmul.f32 %v919, %v919
      %v952 = vmul.f32 %v920, %v920
      %v953 = vmul.f32 %v921, %v921
      %v954 = vmul.f32 %v922, %v922
      %v955 = vmul.f32 %v923, %v923
      %v956 = vmul.f32 %v924, %v924
      %v957 = vmul.f32 %v925, %v925
      %v958 = vmul.f32 %v926, %v926
      %v959 = vmul.f32 %v927, %v927
      %v960 = vmul.f32 %v928, %v928
      %v961 = vmul.f32 %v929, %v929
      %v962 = vmul.f32 %v930, %v930
      %v963 = vmul.f32 %v931, %v931
      %v964 = vmul.f32 %v932, %v932
      %v965 = vmul.f32 %v933, %v933
      %v966 = vmul.f32 %v934, %v934
      %v967 = vsel %vm831, %v935, 0.0
      %v968 = vsel %vm831, %v936, 0.0
      %v969 = vadd.f32 %v967, %v968
      %v970 = vsel %vm831, %v937, 0.0
      %v971 = vadd.f32 %v969, %v970
      %v972 = vsel %vm831, %v938, 0.0
      %v973 = vadd.f32 %v971, %v972
      %v974 = vsel %vm831, %v939, 0.0
      %v975 = vadd.f32 %v973, %v974
      %v976 = vsel %vm831, %v940, 0.0
      %v977 = vadd.f32 %v975, %v976
      %v978 = vsel %vm831, %v941, 0.0
      %v979 = vadd.f32 %v977, %v978
      %v980 = vsel %vm831, %v942, 0.0
      %v981 = vadd.f32 %v979, %v980
      %v982 = vsel %vm831, %v943, 0.0
      %v983 = vadd.f32 %v981, %v982
      %v984 = vsel %vm831, %v944, 0.0
      %v985 = vadd.f32 %v983, %v984
      %v986 = vsel %vm831, %v945, 0.0
      %v987 = vadd.f32 %v985, %v986
      %v988 = vsel %vm831, %v946, 0.0
      %v989 = vadd.f32 %v987, %v988
      %v990 = vsel %vm831, %v947, 0.0
      %v991 = vadd.f32 %v989, %v990
      %v992 = vsel %vm831, %v948, 0.0
      %v993 = vadd.f32 %v991, %v992
      %v994 = vsel %vm831, %v949, 0.0
      %v995 = vadd.f32 %v993, %v994
      %v996 = vsel %vm831, %v950, 0.0
      %v997 = vadd.f32 %v995, %v996
      %v998 = vsel %vm831, %v951, 0.0
      %v999 = vadd.f32 %v997, %v998
      %v1000 = vsel %vm831, %v952, 0.0
      %v1001 = vadd.f32 %v999, %v1000
      %v1002 = vsel %vm831, %v953, 0.0
      %v1003 = vadd.f32 %v1001, %v1002
      %v1004 = vsel %vm831, %v954, 0.0
      %v1005 = vadd.f32 %v1003, %v1004
      %v1006 = vsel %vm831, %v955, 0.0
      %v1007 = vadd.f32 %v1005, %v1006
      %v1008 = vsel %vm831, %v956, 0.0
      %v1009 = vadd.f32 %v1007, %v1008
      %v1010 = vsel %vm831, %v957, 0.0
      %v1011 = vadd.f32 %v1009, %v1010
      %v1012 = vsel %vm831, %v958, 0.0
      %v1013 = vadd.f32 %v1011, %v1012
      %v1014 = vsel %vm831, %v959, 0.0
      %v1015 = vadd.f32 %v1013, %v1014
      %v1016 = vsel %vm831, %v960, 0.0
      %v1017 = vadd.f32 %v1015, %v1016
      %v1018 = vsel %vm831, %v961, 0.0
      %v1019 = vadd.f32 %v1017, %v1018
      %v1020 = vsel %vm831, %v962, 0.0
      %v1021 = vadd.f32 %v1019, %v1020
      %v1022 = vsel %vm831, %v963, 0.0
      %v1023 = vadd.f32 %v1021, %v1022
      %v1024 = vsel %vm831, %v964, 0.0
      %v1025 = vadd.f32 %v1023, %v1024
      %v1026 = vsel %vm831, %v965, 0.0
      %v1027 = vadd.f32 %v1025, %v1026
      %v1028 = vsel %vm831, %v966, 0.0
      %v1029 = vadd.f32 %v1027, %v1028
      %v1030 = vrot.slane %v1029, 4
      %v1031 = vadd.f32 %v1029, %v1030
      %v1032 = vrot.slane %v1031, 2
      %v1033 = vadd.f32 %v1031, %v1032
      %v1034 = vrot.slane %v1033, 1
      %v1035 = vadd.f32 %v1033, %v1034
      %vm1036 = vcmask 1040384
      %v1037 = vsel %vm1036, %v900, %v1035
      %vm1038 = vcmask 1041408
      %v1039 = vsel %vm1038, %v1037, 256.0
      %vm1040 = vcmask 518144
      %1041 = vst.msk [vmem:[%s187] sm:$0x7] %vm1040, %v1039
      %s1042 = smul.u32 32, %s15
      %p1043 = scmp.lt.s32.totalorder %s1042, 63
      %s1044 = scalar_select %p1043, %s1042, 63
      %s1045 = smul.addr %s1044, 4
      %s1046 = scalar_lea.vmem %s2, %s1045
      %p1047 = scmp.lt.s32.totalorder %s15, 1
      %s1048 = scalar_select %p1047, %s15, 1
      %s1049 = smul.addr %s1048, 4
      %s1050 = scalar_lea.vmem %s3, %s1049
      // Predicated region
      $region29: #{_bottleneck_forward.3} parent=27 // pred_check
        %p1051 = pneg %p80
      $region30: #{_bottleneck_forward.3} parent=27 // pred_check_branch
        %1053 = sbr.rel (%p1051) target = $region32
      $region31: #{_bottleneck_forward.3} parent=27 // pred_region
        %s1054 = smul.u32 32, %s15
      $region32: #{_bottleneck_forward.3} parent=27 // pred_fallthru
        _
      // Predicated region
      $region33: #{_bottleneck_forward.3} parent=27 // pred_check
        %p1055 = pneg %p106
      $region34: #{_bottleneck_forward.3} parent=27 // pred_check_branch
        %1057 = sbr.rel (%p1055) target = $region36
      $region35: #{_bottleneck_forward.3} parent=27 // pred_region
        _
      $region36: #{_bottleneck_forward.3} parent=27 // pred_fallthru
        _
    $region28: #{_bottleneck_forward.3} parent=5 // pred_fallthru
      _
    %p1058 = scmp.le.s32.totalorder 2, %s10
    // Predicated region
    $region37: #{_bottleneck_forward.3} parent=5 // pred_check
      %p1059 = pneg %p1058
    $region38: #{_bottleneck_forward.3} parent=5 // pred_check_branch
      %1061 = sbr.rel (%p1059) target = $region40
    $region39: #{_bottleneck_forward.3} parent=5 // pred_region
      %s1062 = ssub.s32 %s10, 2
      // Predicated region
      $region41: #{_bottleneck_forward.3} parent=39 // pred_check
        %p1063 = pneg %p86
      $region42: #{_bottleneck_forward.3} parent=39 // pred_check_branch
        %1065 = sbr.rel (%p1063) target = $region44
      $region43: #{_bottleneck_forward.3} parent=39 // pred_region
        %s1066 = smul.u32 32, %s16
        %p1067 = scmp.lt.s32.totalorder %s1066, 63
        %s1068 = scalar_select %p1067, %s1066, 63
        %s1069 = smul.addr %s1068, 4
        %s1070 = scalar_lea.vmem %s2, %s1069
      $region44: #{_bottleneck_forward.3} parent=39 // pred_fallthru
        _
      // Predicated region
      $region45: #{_bottleneck_forward.3} parent=39 // pred_check
        %p1071 = pneg %p112
      $region46: #{_bottleneck_forward.3} parent=39 // pred_check_branch
        %1073 = sbr.rel (%p1071) target = $region48
      $region47: #{_bottleneck_forward.3} parent=39 // pred_region
        %p1074 = scmp.lt.s32.totalorder %s16, 1
        %s1075 = scalar_select %p1074, %s16, 1
        %s1076 = smul.addr %s1075, 4
        %s1077 = scalar_lea.vmem %s3, %s1076
      $region48: #{_bottleneck_forward.3} parent=39 // pred_fallthru
        _
    $region40: #{_bottleneck_forward.3} parent=5 // pred_fallthru
      _
  $region6: #{_bottleneck_forward.3} parent=0 // loop_footer
    %s14 = sadd.s32 1, %s10
  $region7: #{_bottleneck_forward.3} parent=0 // loop_footer_branch
    %9 = sbr.rel target = $region3
  $region8: #{_bottleneck_forward.3} parent=0 // loop_exit
    _

// kernel: _bottleneck_forward.4
$region0: #{_bottleneck_forward.4}
  #allocation0 [shape = 'u32[]', space=smem, size = 0x4, offset = 0x4, fixed_abs, tag = 'smem constant byte address 0x4 - core index']
  #allocation1 [shape = 'u32[144,128]{1,0:T(1,128)}', space=vmem, size = 0x12000, scoped, tag = 'internal scratch']
  #allocation2 [shape = 'bf16[18,18,64]{2,1,0:T(8,128)(2,1)}', space=vmem, size = 0x1b000, scoped, tag = 'scratch operand']
  %s0 = inlined_call_operand.vmem [shape: bf16[2,16,16,64], index: 0, kind: input, shape index: {}]
  %s1 = inlined_call_operand.vmem [shape: f32[1,64], index: 1, kind: input, shape index: {}]
  %s2 = inlined_call_operand.vmem [shape: f32[1,64], index: 2, kind: input, shape index: {}]
  %s3 = inlined_call_operand.vmem [shape: bf16[9,64,64], index: 3, kind: input, shape index: {}]
  %s4 = inlined_call_operand.vmem [shape: bf16[2,16,16,64], index: 4, kind: output, shape index: {0}]
  %s5 = inlined_call_operand.vmem [shape: f32[2,3,64], index: 5, kind: output, shape index: {1}]
  %6 = xla_tuple %s4, %s5
  %s7 = sld [smem:[#allocation0]]
  $region57: #{_bottleneck_forward.4} parent=0
    _
  %s9 = ssub.s32 1, %s7
  %s10 = scalar_select 0, %s9, %s7
  loop: start=0, step=1, limit=4
  $region2: #{_bottleneck_forward.4} parent=0 // loop_pre_header
    _
  $region3: #{_bottleneck_forward.4} parent=0 // loop_header
    %s12 = sphi 0, %s16
    %p13 = scmp.ge.s32.totalorder %s12, 4
    %s22 = sphi 0, %s24
    %s25 = sphi 0, %s22
    %s26 = sphi 0, %s25
    %s42 = sphi 0, %s26
    %s46 = sphi 0, %s46
    %s48 = sphi 0, %s46
    %s49 = sphi 0, %s48
    %s63 = sphi 0, %s49
    %s67 = sphi 0, %s67
    %s69 = sphi 0, %s67
    %s70 = sphi 0, %s69
    %s84 = sphi 0, %s70
    %s88 = sphi 0, %s88
    %s90 = sphi 0, %s88
    %s91 = sphi 0, %s90
    %s105 = sphi 0, %s91
    %s111 = sphi 0, %s113
    %s114 = sphi 0, %s111
    %s115 = sphi 0, %s114
    %s131 = sphi 0, %s115
    %s137 = sphi 0, %s139
    %s140 = sphi 0, %s137
    %s141 = sphi 0, %s140
    %s157 = sphi 0, %s141
  $region4: #{_bottleneck_forward.4} parent=0 // loop_header_branch
    %15 = sbr.rel (%p13) target = $region8
  $region5: #{_bottleneck_forward.4} parent=0 // loop_body
    %s17 = ssub.s32 %s12, 1
    %s18 = ssub.s32 %s12, 2
    %s19 = sadd.s32 %s12, 1
    %s20 = ssub.s32 %s12, %s19
    %p21 = scmp.eq.s32.totalorder %s20, 0
    %s23 = sadd.s32 %s22, 1
    %s24 = scalar_select %p21, %s22, %s23
    %p27 = pneg %p21
    %p28 = scmp.eq.s32.totalorder %s12, 1
    %p29 = por %p27, %p28
    %p30 = scmp.ne.s32.totalorder %s22, %s25
    %p31 = scmp.eq.s32.totalorder %s12, 0
    %p32 = por %p30, %p31
    %p33 = scmp.ne.s32.totalorder %s22, %s25
    %p34 = scmp.eq.s32.totalorder %s17, 1
    %p35 = por %p33, %p34
    %p36 = scmp.ne.s32.totalorder %s25, %s26
    %p37 = scmp.eq.s32.totalorder %s17, 0
    %p38 = por %p36, %p37
    %p39 = scmp.ne.s32.totalorder %s25, %s26
    %p40 = scmp.eq.s32.totalorder %s18, 1
    %p41 = por %p39, %p40
    %p43 = scmp.ne.s32.totalorder %s26, %s42
    %p44 = scmp.eq.s32.totalorder %s18, 0
    %p45 = por %p43, %p44
    %s47 = sadd.s32 %s46, 1
    %p50 = scmp.eq.s32.totalorder %s12, 1
    %p51 = scmp.ne.s32.totalorder %s46, %s48
    %p52 = scmp.eq.s32.totalorder %s12, 0
    %p53 = por %p51, %p52
    %p54 = scmp.ne.s32.totalorder %s46, %s48
    %p55 = scmp.eq.s32.totalorder %s17, 1
    %p56 = por %p54, %p55
    %p57 = scmp.ne.s32.totalorder %s48, %s49
    %p58 = scmp.eq.s32.totalorder %s17, 0
    %p59 = por %p57, %p58
    %p60 = scmp.ne.s32.totalorder %s48, %s49
    %p61 = scmp.eq.s32.totalorder %s18, 1
    %p62 = por %p60, %p61
    %p64 = scmp.ne.s32.totalorder %s49, %s63
    %p65 = scmp.eq.s32.totalorder %s18, 0
    %p66 = por %p64, %p65
    %s68 = sadd.s32 %s67, 1
    %p71 = scmp.eq.s32.totalorder %s12, 1
    %p72 = scmp.ne.s32.totalorder %s67, %s69
    %p73 = scmp.eq.s32.totalorder %s12, 0
    %p74 = por %p72, %p73
    %p75 = scmp.ne.s32.totalorder %s67, %s69
    %p76 = scmp.eq.s32.totalorder %s17, 1
    %p77 = por %p75, %p76
    %p78 = scmp.ne.s32.totalorder %s69, %s70
    %p79 = scmp.eq.s32.totalorder %s17, 0
    %p80 = por %p78, %p79
    %p81 = scmp.ne.s32.totalorder %s69, %s70
    %p82 = scmp.eq.s32.totalorder %s18, 1
    %p83 = por %p81, %p82
    %p85 = scmp.ne.s32.totalorder %s70, %s84
    %p86 = scmp.eq.s32.totalorder %s18, 0
    %p87 = por %p85, %p86
    %s89 = sadd.s32 %s88, 1
    %p92 = scmp.eq.s32.totalorder %s12, 1
    %p93 = scmp.ne.s32.totalorder %s88, %s90
    %p94 = scmp.eq.s32.totalorder %s12, 0
    %p95 = por %p93, %p94
    %p96 = scmp.ne.s32.totalorder %s88, %s90
    %p97 = scmp.eq.s32.totalorder %s17, 1
    %p98 = por %p96, %p97
    %p99 = scmp.ne.s32.totalorder %s90, %s91
    %p100 = scmp.eq.s32.totalorder %s17, 0
    %p101 = por %p99, %p100
    %p102 = scmp.ne.s32.totalorder %s90, %s91
    %p103 = scmp.eq.s32.totalorder %s18, 1
    %p104 = por %p102, %p103
    %p106 = scmp.ne.s32.totalorder %s91, %s105
    %p107 = scmp.eq.s32.totalorder %s18, 0
    %p108 = por %p106, %p107
    %s109 = ssub.s32 %s12, %s19
    %p110 = scmp.eq.s32.totalorder %s109, 0
    %s112 = sadd.s32 %s111, 1
    %s113 = scalar_select %p110, %s111, %s112
    %p116 = pneg %p110
    %p117 = scmp.eq.s32.totalorder %s12, 1
    %p118 = por %p116, %p117
    %p119 = scmp.ne.s32.totalorder %s111, %s114
    %p120 = scmp.eq.s32.totalorder %s12, 0
    %p121 = por %p119, %p120
    %p122 = scmp.ne.s32.totalorder %s111, %s114
    %p123 = scmp.eq.s32.totalorder %s17, 1
    %p124 = por %p122, %p123
    %p125 = scmp.ne.s32.totalorder %s114, %s115
    %p126 = scmp.eq.s32.totalorder %s17, 0
    %p127 = por %p125, %p126
    %p128 = scmp.ne.s32.totalorder %s114, %s115
    %p129 = scmp.eq.s32.totalorder %s18, 1
    %p130 = por %p128, %p129
    %p132 = scmp.ne.s32.totalorder %s115, %s131
    %p133 = scmp.eq.s32.totalorder %s18, 0
    %p134 = por %p132, %p133
    %s135 = ssub.s32 %s12, %s19
    %p136 = scmp.eq.s32.totalorder %s135, 0
    %s138 = sadd.s32 %s137, 1
    %s139 = scalar_select %p136, %s137, %s138
    %p142 = pneg %p136
    %p143 = scmp.eq.s32.totalorder %s12, 1
    %p144 = por %p142, %p143
    %p145 = scmp.ne.s32.totalorder %s137, %s140
    %p146 = scmp.eq.s32.totalorder %s12, 0
    %p147 = por %p145, %p146
    %p148 = scmp.ne.s32.totalorder %s137, %s140
    %p149 = scmp.eq.s32.totalorder %s17, 1
    %p150 = por %p148, %p149
    %p151 = scmp.ne.s32.totalorder %s140, %s141
    %p152 = scmp.eq.s32.totalorder %s17, 0
    %p153 = por %p151, %p152
    %p154 = scmp.ne.s32.totalorder %s140, %s141
    %p155 = scmp.eq.s32.totalorder %s18, 1
    %p156 = por %p154, %p155
    %p158 = scmp.ne.s32.totalorder %s141, %s157
    %p159 = scmp.eq.s32.totalorder %s18, 0
    %p160 = por %p158, %p159
    %p161 = scmp.le.s32.totalorder 1, %s12
    %p162 = scmp.lt.s32.totalorder %s12, 3
    %p163 = pnand %p161, %p162
    %p164 = pneg %p163
    // Predicated region
    $region9: #{_bottleneck_forward.4} parent=5 // pred_check
      _
    $region10: #{_bottleneck_forward.4} parent=5 // pred_check_branch
      %166 = sbr.rel (%p163) target = $region12
    $region11: #{_bottleneck_forward.4} parent=5 // pred_region
      %s167 = ssub.s32 %s12, 1
      // Predicated region
      $region13: #{_bottleneck_forward.4} parent=11 // pred_check
        %p168 = pneg %p59
      $region14: #{_bottleneck_forward.4} parent=11 // pred_check_branch
        %170 = sbr.rel (%p168) target = $region16
      $region15: #{_bottleneck_forward.4} parent=11 // pred_region
        _
      $region16: #{_bottleneck_forward.4} parent=11 // pred_fallthru
        _
      // Predicated region
      $region17: #{_bottleneck_forward.4} parent=11 // pred_check
        %p171 = pneg %p80
      $region18: #{_bottleneck_forward.4} parent=11 // pred_check_branch
        %173 = sbr.rel (%p171) target = $region20
      $region19: #{_bottleneck_forward.4} parent=11 // pred_region
        _
      $region20: #{_bottleneck_forward.4} parent=11 // pred_fallthru
        _
      // Predicated region
      $region21: #{_bottleneck_forward.4} parent=11 // pred_check
        %p174 = pneg %p101
      $region22: #{_bottleneck_forward.4} parent=11 // pred_check_branch
        %176 = sbr.rel (%p174) target = $region24
      $region23: #{_bottleneck_forward.4} parent=11 // pred_region
        _
      $region24: #{_bottleneck_forward.4} parent=11 // pred_fallthru
        _
    $region12: #{_bottleneck_forward.4} parent=5 // pred_fallthru
      _
    %p177 = scmp.lt.s32.totalorder %s12, 2
    // Predicated region
    $region25: #{_bottleneck_forward.4} parent=5 // pred_check
      %p178 = pneg %p177
    $region26: #{_bottleneck_forward.4} parent=5 // pred_check_branch
      %180 = sbr.rel (%p178) target = $region28
    $region27: #{_bottleneck_forward.4} parent=5 // pred_region
      // Predicated region
      $region29: #{_bottleneck_forward.4} parent=27 // pred_check
        %p181 = pneg %p32
      $region30: #{_bottleneck_forward.4} parent=27 // pred_check_branch
        %183 = sbr.rel (%p181) target = $region32
      $region31: #{_bottleneck_forward.4} parent=27 // pred_region
        %p184 = scmp.lt.s32.totalorder %s12, 1
        %s185 = scalar_select %p184, %s12, 1
        %s186 = smul.addr %s185, 32
        %s187 = smul.addr %s186, 4
        %s188 = scalar_lea.vmem %s0, %s187
      $region32: #{_bottleneck_forward.4} parent=27 // pred_fallthru
        _
    $region28: #{_bottleneck_forward.4} parent=5 // pred_fallthru
      _
    %p189 = scmp.le.s32.totalorder 1, %s12
    %p190 = scmp.lt.s32.totalorder %s12, 3
    %p191 = pnand %p189, %p190
    %p192 = pneg %p191
    // Predicated region
    $region33: #{_bottleneck_forward.4} parent=5 // pred_check
      _
    $region34: #{_bottleneck_forward.4} parent=5 // pred_check_branch
      %194 = sbr.rel (%p191) target = $region36
    $region35: #{_bottleneck_forward.4} parent=5 // pred_region
      %s195 = ssub.s32 %s12, 1
      %p196 = scmp.lt.s32.totalorder %s17, 1
      %s197 = scalar_select %p196, %s17, 1
      %s198 = smul.addr %s197, 32
      %s199 = smul.addr %s198, 4
      %s200 = scalar_lea.vmem %s0, %s199
      %p201 = pneg %p38
      %p202 = pneg %p35
      %p203 = pneg %p59
      %p204 = pneg %p56
      %p205 = pneg %p80
      %p206 = pneg %p77
      %p207 = pneg %p101
      %p208 = pneg %p98
      %p209 = pneg %p127
      %p210 = pneg %p124
      %p211 = scmp.lt.s32.totalorder %s17, 1
      %s212 = scalar_select %p211, %s17, 1
      %s213 = smul.addr %s212, 32
      %s214 = smul.addr %s213, 4
      %s215 = scalar_lea.vmem %s4, %s214
      %p216 = pneg %p153
      %p217 = pneg %p150
      %p218 = scmp.lt.s32.totalorder %s17, 1
      %s219 = scalar_select %p218, %s17, 1
      %s220 = smul.addr %s219, 4
      %s221 = scalar_lea.vmem %s5, %s220
      %p222 = scmp.lt.s32.totalorder %s17, 1
      %s223 = scalar_select %p222, %s17, 1
      %s224 = smul.addr %s223, 32
      %s225 = smul.addr %s224, 4
      %s226 = scalar_lea.vmem %s0, %s225
      %p227 = scmp.lt.s32.totalorder %s17, 1
      %s228 = scalar_select %p227, %s17, 1
      %s229 = smul.addr %s228, 32
      %s230 = smul.addr %s229, 4
      %s231 = scalar_lea.vmem %s4, %s230
      %p232 = scmp.lt.s32.totalorder %s17, 1
      %s233 = scalar_select %p232, %s17, 1
      %s234 = smul.addr %s233, 4
      %s235 = scalar_lea.vmem %s5, %s234
      %vm237 = vcmask 519168
      %238 = vst.msk [vmem:[#allocation2] sm:$0xf] %vm237, 0
      %239 = vst.msk [vmem:[#allocation2 + $0x4] sm:$0xf] %vm237, 0
      %vm240 = vcmask 516096
      %241 = vst.msk [vmem:[#allocation2 + $0x8] sm:$0x1] %vm240, 0
      %s242 = scalar_lea.vmem [#allocation2], 204
      %243 = vst.msk [vmem:[%s242] sm:$0xf] %vm237, 0
      %244 = vst.msk [vmem:[%s242 + $0x4] sm:$0xf] %vm237, 0
      %245 = vst.msk [vmem:[%s242 + $0x8] sm:$0x1] %vm240, 0
      %s246 = scalar_lea.vmem [#allocation2], 12
      %vm247 = vcmask 516096
      %vm248 = vsmask.f32 256
      %vm249 = vmand %vm247, %vm248
      %v250 = vld [vmem:[%s246] sm:$0x1]
      %v251 = vsel %vm249, 0, %v250
      %252 = vst [vmem:[%s246] sm:$0x1] %v251
      %v253 = vld [vmem:[%s246 + $0xc] sm:$0x1]
      %v254 = vsel %vm249, 0, %v253
      %255 = vst [vmem:[%s246 + $0xc] sm:$0x1] %v254
      %v256 = vld [vmem:[%s246 + $0x18] sm:$0x1]
      %v257 = vsel %vm249, 0, %v256
      %258 = vst [vmem:[%s246 + $0x18] sm:$0x1] %v257
      %v259 = vld [vmem:[%s246 + $0x24] sm:$0x1]
      %v260 = vsel %vm249, 0, %v259
      %261 = vst [vmem:[%s246 + $0x24] sm:$0x1] %v260
      %v262 = vld [vmem:[%s246 + $0x30] sm:$0x1]
      %v263 = vsel %vm249, 0, %v262
      %264 = vst [vmem:[%s246 + $0x30] sm:$0x1] %v263
      %v265 = vld [vmem:[%s246 + $0x3c] sm:$0x1]
      %v266 = vsel %vm249, 0, %v265
      %267 = vst [vmem:[%s246 + $0x3c] sm:$0x1] %v266
      %v268 = vld [vmem:[%s246 + $0x48] sm:$0x1]
      %v269 = vsel %vm249, 0, %v268
      %270 = vst [vmem:[%s246 + $0x48] sm:$0x1] %v269
      %v271 = vld [vmem:[%s246 + $0x54] sm:$0x1]
      %v272 = vsel %vm249, 0, %v271
      %273 = vst [vmem:[%s246 + $0x54] sm:$0x1] %v272
      %v274 = vld [vmem:[%s246 + $0x60] sm:$0x1]
      %v275 = vsel %vm249, 0, %v274
      %276 = vst [vmem:[%s246 + $0x60] sm:$0x1] %v275
      %v277 = vld [vmem:[%s246 + $0x6c] sm:$0x1]
      %v278 = vsel %vm249, 0, %v277
      %279 = vst [vmem:[%s246 + $0x6c] sm:$0x1] %v278
      %v280 = vld [vmem:[%s246 + $0x78] sm:$0x1]
      %v281 = vsel %vm249, 0, %v280
      %282 = vst [vmem:[%s246 + $0x78] sm:$0x1] %v281
      %v283 = vld [vmem:[%s246 + $0x84] sm:$0x1]
      %v284 = vsel %vm249, 0, %v283
      %285 = vst [vmem:[%s246 + $0x84] sm:$0x1] %v284
      %v286 = vld [vmem:[%s246 + $0x90] sm:$0x1]
      %v287 = vsel %vm249, 0, %v286
      %288 = vst [vmem:[%s246 + $0x90] sm:$0x1] %v287
      %v289 = vld [vmem:[%s246 + $0x9c] sm:$0x1]
      %v290 = vsel %vm249, 0, %v289
      %291 = vst [vmem:[%s246 + $0x9c] sm:$0x1] %v290
      %v292 = vld [vmem:[%s246 + $0xa8] sm:$0x1]
      %v293 = vsel %vm249, 0, %v292
      %294 = vst [vmem:[%s246 + $0xa8] sm:$0x1] %v293
      %v295 = vld [vmem:[%s246 + $0xb4] sm:$0x1]
      %v296 = vsel %vm249, 0, %v295
      %297 = vst [vmem:[%s246 + $0xb4] sm:$0x1] %v296
      %vm298 = vsmask.f32 7938
      %vm299 = vmand %vm247, %vm298
      %v300 = vld [vmem:[%s246 + $0x8] sm:$0x1]
      %v301 = vsel %vm299, 0, %v300
      %302 = vst [vmem:[%s246 + $0x8] sm:$0x1] %v301
      %v303 = vld [vmem:[%s246 + $0x14] sm:$0x1]
      %v304 = vsel %vm299, 0, %v303
      %305 = vst [vmem:[%s246 + $0x14] sm:$0x1] %v304
      %v306 = vld [vmem:[%s246 + $0x20] sm:$0x1]
      %v307 = vsel %vm299, 0, %v306
      %308 = vst [vmem:[%s246 + $0x20] sm:$0x1] %v307
      %v309 = vld [vmem:[%s246 + $0x2c] sm:$0x1]
      %v310 = vsel %vm299, 0, %v309
      %311 = vst [vmem:[%s246 + $0x2c] sm:$0x1] %v310
      %v312 = vld [vmem:[%s246 + $0x38] sm:$0x1]
      %v313 = vsel %vm299, 0, %v312
      %314 = vst [vmem:[%s246 + $0x38] sm:$0x1] %v313
      %v315 = vld [vmem:[%s246 + $0x44] sm:$0x1]
      %v316 = vsel %vm299, 0, %v315
      %317 = vst [vmem:[%s246 + $0x44] sm:$0x1] %v316
      %v318 = vld [vmem:[%s246 + $0x50] sm:$0x1]
      %v319 = vsel %vm299, 0, %v318
      %320 = vst [vmem:[%s246 + $0x50] sm:$0x1] %v319
      %v321 = vld [vmem:[%s246 + $0x5c] sm:$0x1]
      %v322 = vsel %vm299, 0, %v321
      %323 = vst [vmem:[%s246 + $0x5c] sm:$0x1] %v322
      %v324 = vld [vmem:[%s246 + $0x68] sm:$0x1]
      %v325 = vsel %vm299, 0, %v324
      %326 = vst [vmem:[%s246 + $0x68] sm:$0x1] %v325
      %v327 = vld [vmem:[%s246 + $0x74] sm:$0x1]
      %v328 = vsel %vm299, 0, %v327
      %329 = vst [vmem:[%s246 + $0x74] sm:$0x1] %v328
      %v330 = vld [vmem:[%s246 + $0x80] sm:$0x1]
      %v331 = vsel %vm299, 0, %v330
      %332 = vst [vmem:[%s246 + $0x80] sm:$0x1] %v331
      %v333 = vld [vmem:[%s246 + $0x8c] sm:$0x1]
      %v334 = vsel %vm299, 0, %v333
      %335 = vst [vmem:[%s246 + $0x8c] sm:$0x1] %v334
      %v336 = vld [vmem:[%s246 + $0x98] sm:$0x1]
      %v337 = vsel %vm299, 0, %v336
      %338 = vst [vmem:[%s246 + $0x98] sm:$0x1] %v337
      %v339 = vld [vmem:[%s246 + $0xa4] sm:$0x1]
      %v340 = vsel %vm299, 0, %v339
      %341 = vst [vmem:[%s246 + $0xa4] sm:$0x1] %v340
      %v342 = vld [vmem:[%s246 + $0xb0] sm:$0x1]
      %v343 = vsel %vm299, 0, %v342
      %344 = vst [vmem:[%s246 + $0xb0] sm:$0x1] %v343
      %v345 = vld [vmem:[%s246 + $0xbc] sm:$0x1]
      %v346 = vsel %vm299, 0, %v345
      %347 = vst [vmem:[%s246 + $0xbc] sm:$0x1] %v346
      %v348 = vld [vmem:[%s1] sm:$0x1]
      %v349 = vld [vmem:[%s2] sm:$0x1]
      %v350 = vld [vmem:[%s226] sm:$0xf]
      %v351 = vld [vmem:[%s226 + $0x4] sm:$0xf]
      %v352 = vld [vmem:[%s226 + $0x8] sm:$0xf]
      %v353 = vld [vmem:[%s226 + $0xc] sm:$0xf]
      %v354 = vld [vmem:[%s226 + $0x10] sm:$0xf]
      %v355 = vld [vmem:[%s226 + $0x14] sm:$0xf]
      %v356 = vld [vmem:[%s226 + $0x18] sm:$0xf]
      %v357 = vld [vmem:[%s226 + $0x1c] sm:$0xf]
      %v358 = vld [vmem:[%s226 + $0x20] sm:$0xf]
      %v359 = vld [vmem:[%s226 + $0x24] sm:$0xf]
      %v360 = vld [vmem:[%s226 + $0x28] sm:$0xf]
      %v361 = vld [vmem:[%s226 + $0x2c] sm:$0xf]
      %v362 = vld [vmem:[%s226 + $0x30] sm:$0xf]
      %v363 = vld [vmem:[%s226 + $0x34] sm:$0xf]
      %v364 = vld [vmem:[%s226 + $0x38] sm:$0xf]
      %v365 = vld [vmem:[%s226 + $0x3c] sm:$0xf]
      %v366 = vld [vmem:[%s226 + $0x40] sm:$0xf]
      %v367 = vld [vmem:[%s226 + $0x44] sm:$0xf]
      %v368 = vld [vmem:[%s226 + $0x48] sm:$0xf]
      %v369 = vld [vmem:[%s226 + $0x4c] sm:$0xf]
      %v370 = vld [vmem:[%s226 + $0x50] sm:$0xf]
      %v371 = vld [vmem:[%s226 + $0x54] sm:$0xf]
      %v372 = vld [vmem:[%s226 + $0x58] sm:$0xf]
      %v373 = vld [vmem:[%s226 + $0x5c] sm:$0xf]
      %v374 = vld [vmem:[%s226 + $0x60] sm:$0xf]
      %v375 = vld [vmem:[%s226 + $0x64] sm:$0xf]
      %v376 = vld [vmem:[%s226 + $0x68] sm:$0xf]
      %v377 = vld [vmem:[%s226 + $0x6c] sm:$0xf]
      %v378 = vld [vmem:[%s226 + $0x70] sm:$0xf]
      %v379 = vld [vmem:[%s226 + $0x74] sm:$0xf]
      %v380 = vld [vmem:[%s226 + $0x78] sm:$0xf]
      %v381 = vld [vmem:[%s226 + $0x7c] sm:$0xf]
      %v382 = vunpack.c.l.bf16 %v350
      %v383 = vunpack.c.l.bf16 %v351
      %v384 = vunpack.c.l.bf16 %v352
      %v385 = vunpack.c.l.bf16 %v353
      %v386 = vunpack.c.l.bf16 %v354
      %v387 = vunpack.c.l.bf16 %v355
      %v388 = vunpack.c.l.bf16 %v356
      %v389 = vunpack.c.l.bf16 %v357
      %v390 = vunpack.c.l.bf16 %v358
      %v391 = vunpack.c.l.bf16 %v359
      %v392 = vunpack.c.l.bf16 %v360
      %v393 = vunpack.c.l.bf16 %v361
      %v394 = vunpack.c.l.bf16 %v362
      %v395 = vunpack.c.l.bf16 %v363
      %v396 = vunpack.c.l.bf16 %v364
      %v397 = vunpack.c.l.bf16 %v365
      %v398 = vunpack.c.l.bf16 %v366
      %v399 = vunpack.c.l.bf16 %v367
      %v400 = vunpack.c.l.bf16 %v368
      %v401 = vunpack.c.l.bf16 %v369
      %v402 = vunpack.c.l.bf16 %v370
      %v403 = vunpack.c.l.bf16 %v371
      %v404 = vunpack.c.l.bf16 %v372
      %v405 = vunpack.c.l.bf16 %v373
      %v406 = vunpack.c.l.bf16 %v374
      %v407 = vunpack.c.l.bf16 %v375
      %v408 = vunpack.c.l.bf16 %v376
      %v409 = vunpack.c.l.bf16 %v377
      %v410 = vunpack.c.l.bf16 %v378
      %v411 = vunpack.c.l.bf16 %v379
      %v412 = vunpack.c.l.bf16 %v380
      %v413 = vunpack.c.l.bf16 %v381
      %v415 = vlaneseq
      %v416 = vshrl.u32 %v415, 7
      %v417 = vsub.s32 0, %v416
      %v418 = vrot.slane %v348, %v417
      %v420 = vmul.f32 %v382, %v418
      %v421 = vmul.f32 %v383, %v418
      %v422 = vmul.f32 %v384, %v418
      %v423 = vmul.f32 %v385, %v418
      %v424 = vmul.f32 %v386, %v418
      %v425 = vmul.f32 %v387, %v418
      %v426 = vmul.f32 %v388, %v418
      %v427 = vmul.f32 %v389, %v418
      %v428 = vmul.f32 %v390, %v418
      %v429 = vmul.f32 %v391, %v418
      %v430 = vmul.f32 %v392, %v418
      %v431 = vmul.f32 %v393, %v418
      %v432 = vmul.f32 %v394, %v418
      %v433 = vmul.f32 %v395, %v418
      %v434 = vmul.f32 %v396, %v418
      %v435 = vmul.f32 %v397, %v418
      %v436 = vmul.f32 %v398, %v418
      %v437 = vmul.f32 %v399, %v418
      %v438 = vmul.f32 %v400, %v418
      %v439 = vmul.f32 %v401, %v418
      %v440 = vmul.f32 %v402, %v418
      %v441 = vmul.f32 %v403, %v418
      %v442 = vmul.f32 %v404, %v418
      %v443 = vmul.f32 %v405, %v418
      %v444 = vmul.f32 %v406, %v418
      %v445 = vmul.f32 %v407, %v418
      %v446 = vmul.f32 %v408, %v418
      %v447 = vmul.f32 %v409, %v418
      %v448 = vmul.f32 %v410, %v418
      %v449 = vmul.f32 %v411, %v418
      %v450 = vmul.f32 %v412, %v418
      %v451 = vmul.f32 %v413, %v418
      %v453 = vlaneseq
      %v454 = vshrl.u32 %v453, 7
      %v455 = vsub.s32 0, %v454
      %v456 = vrot.slane %v349, %v455
      %v458 = vadd.f32 %v420, %v456
      %v459 = vadd.f32 %v421, %v456
      %v460 = vadd.f32 %v422, %v456
      %v461 = vadd.f32 %v423, %v456
      %v462 = vadd.f32 %v424, %v456
      %v463 = vadd.f32 %v425, %v456
      %v464 = vadd.f32 %v426, %v456
      %v465 = vadd.f32 %v427, %v456
      %v466 = vadd.f32 %v428, %v456
      %v467 = vadd.f32 %v429, %v456
      %v468 = vadd.f32 %v430, %v456
      %v469 = vadd.f32 %v431, %v456
      %v470 = vadd.f32 %v432, %v456
      %v471 = vadd.f32 %v433, %v456
      %v472 = vadd.f32 %v434, %v456
      %v473 = vadd.f32 %v435, %v456
      %v474 = vadd.f32 %v436, %v456
      %v475 = vadd.f32 %v437, %v456
      %v476 = vadd.f32 %v438, %v456
      %v477 = vadd.f32 %v439, %v456
      %v478 = vadd.f32 %v440, %v456
      %v479 = vadd.f32 %v441, %v456
      %v480 = vadd.f32 %v442, %v456
      %v481 = vadd.f32 %v443, %v456
      %v482 = vadd.f32 %v444, %v456
      %v483 = vadd.f32 %v445, %v456
      %v484 = vadd.f32 %v446, %v456
      %v485 = vadd.f32 %v447, %v456
      %v486 = vadd.f32 %v448, %v456
      %v487 = vadd.f32 %v449, %v456
      %v488 = vadd.f32 %v450, %v456
      %v489 = vadd.f32 %v451, %v456
      %v490 = vmax.f32 %v458, 0.0
      %v491 = vmax.f32 %v459, 0.0
      %v492 = vmax.f32 %v460, 0.0
      %v493 = vmax.f32 %v461, 0.0
      %v494 = vmax.f32 %v462, 0.0
      %v495 = vmax.f32 %v463, 0.0
      %v496 = vmax.f32 %v464, 0.0
      %v497 = vmax.f32 %v465, 0.0
      %v498 = vmax.f32 %v466, 0.0
      %v499 = vmax.f32 %v467, 0.0
      %v500 = vmax.f32 %v468, 0.0
      %v501 = vmax.f32 %v469, 0.0
      %v502 = vmax.f32 %v470, 0.0
      %v503 = vmax.f32 %v471, 0.0
      %v504 = vmax.f32 %v472, 0.0
      %v505 = vmax.f32 %v473, 0.0
      %v506 = vmax.f32 %v474, 0.0
      %v507 = vmax.f32 %v475, 0.0
      %v508 = vmax.f32 %v476, 0.0
      %v509 = vmax.f32 %v477, 0.0
      %v510 = vmax.f32 %v478, 0.0
      %v511 = vmax.f32 %v479, 0.0
      %v512 = vmax.f32 %v480, 0.0
      %v513 = vmax.f32 %v481, 0.0
      %v514 = vmax.f32 %v482, 0.0
      %v515 = vmax.f32 %v483, 0.0
      %v516 = vmax.f32 %v484, 0.0
      %v517 = vmax.f32 %v485, 0.0
      %v518 = vmax.f32 %v486, 0.0
      %v519 = vmax.f32 %v487, 0.0
      %v520 = vmax.f32 %v488, 0.0
      %v521 = vmax.f32 %v489, 0.0
      %v522 = vpack.c.bf16 %v491, %v490
      %v523 = vpack.c.bf16 %v493, %v492
      %v524 = vpack.c.bf16 %v495, %v494
      %v525 = vpack.c.bf16 %v497, %v496
      %v526 = vpack.c.bf16 %v499, %v498
      %v527 = vpack.c.bf16 %v501, %v500
      %v528 = vpack.c.bf16 %v503, %v502
      %v529 = vpack.c.bf16 %v505, %v504
      %v530 = vpack.c.bf16 %v507, %v506
      %v531 = vpack.c.bf16 %v509, %v508
      %v532 = vpack.c.bf16 %v511, %v510
      %v533 = vpack.c.bf16 %v513, %v512
      %v534 = vpack.c.bf16 %v515, %v514
      %v535 = vpack.c.bf16 %v517, %v516
      %v536 = vpack.c.bf16 %v519, %v518
      %v537 = vpack.c.bf16 %v521, %v520
      %v554 = vunpack.c.l.b16 %v522
      %v555 = vunpack.c.h.b16 %v522
      %v556 = vunpack.c.l.b16 %v523
      %v557 = vunpack.c.h.b16 %v523
      %v558 = vunpack.c.l.b16 %v524
      %v559 = vunpack.c.h.b16 %v524
      %v560 = vunpack.c.l.b16 %v525
      %v561 = vunpack.c.h.b16 %v525
      %v562 = vunpack.c.l.b16 %v526
      %v563 = vunpack.c.h.b16 %v526
      %v564 = vunpack.c.l.b16 %v527
      %v565 = vunpack.c.h.b16 %v527
      %v566 = vunpack.c.l.b16 %v528
      %v567 = vunpack.c.h.b16 %v528
      %v568 = vunpack.c.l.b16 %v529
      %v569 = vunpack.c.h.b16 %v529
      %v570 = vunpack.c.l.b16 %v530
      %v571 = vunpack.c.h.b16 %v530
      %v572 = vunpack.c.l.b16 %v531
      %v573 = vunpack.c.h.b16 %v531
      %v574 = vunpack.c.l.b16 %v532
      %v575 = vunpack.c.h.b16 %v532
      %v576 = vunpack.c.l.b16 %v533
      %v577 = vunpack.c.h.b16 %v533
      %v578 = vunpack.c.l.b16 %v534
      %v579 = vunpack.c.h.b16 %v534
      %v580 = vunpack.c.l.b16 %v535
      %v581 = vunpack.c.h.b16 %v535
      %v582 = vunpack.c.l.b16 %v536
      %v583 = vunpack.c.h.b16 %v536
      %v584 = vunpack.c.l.b16 %v537
      %v585 = vunpack.c.h.b16 %v537
      %v586 = vpack.c.b16 %v554, %v554
      %v587 = vpack.c.b16 %v555, %v555
      %v588 = vpack.c.b16 %v556, %v556
      %v589 = vpack.c.b16 %v557, %v557
      %v590 = vpack.c.b16 %v558, %v558
      %v591 = vpack.c.b16 %v559, %v559
      %v592 = vpack.c.b16 %v560, %v560
      %v593 = vpack.c.b16 %v561, %v561
      %v594 = vpack.c.b16 %v562, %v562
      %v595 = vpack.c.b16 %v563, %v563
      %v596 = vpack.c.b16 %v564, %v564
      %v597 = vpack.c.b16 %v565, %v565
      %v598 = vpack.c.b16 %v566, %v566
      %v599 = vpack.c.b16 %v567, %v567
      %v600 = vpack.c.b16 %v568, %v568
      %v601 = vpack.c.b16 %v569, %v569
      %v602 = vpack.c.b16 %v570, %v570
      %v603 = vpack.c.b16 %v571, %v571
      %v604 = vpack.c.b16 %v572, %v572
      %v605 = vpack.c.b16 %v573, %v573
      %v606 = vpack.c.b16 %v574, %v574
      %v607 = vpack.c.b16 %v575, %v575
      %v608 = vpack.c.b16 %v576, %v576
      %v609 = vpack.c.b16 %v577, %v577
      %v610 = vpack.c.b16 %v578, %v578
      %v611 = vpack.c.b16 %v579, %v579
      %v612 = vpack.c.b16 %v580, %v580
      %v613 = vpack.c.b16 %v581, %v581
      %v614 = vpack.c.b16 %v582, %v582
      %v615 = vpack.c.b16 %v583, %v583
      %v616 = vpack.c.b16 %v584, %v584
      %v617 = vpack.c.b16 %v585, %v585
      %vm618 = vsmask.f32 4368
      %vm619 = vmor %vm248, %vm618
      %v621 = vshrl.u32 %v586, 16
      %v623 = vrot.slane %v621, 7
      %v624 = vshll.u32 %v586, 16
      %v626 = vor.u32 %v623, %v624
      %v627 = vrot.slane %v623, 4
      %v629 = vshrl.u32 %v587, 16
      %v631 = vrot.slane %v629, 7
      %v632 = vshll.u32 %v587, 16
      %v634 = vor.u32 %v631, %v632
      %v635 = vsel %vm619, %v627, %v634
      %v636 = vrot.slane %v631, 4
      %v638 = vshrl.u32 %v588, 16
      %v640 = vrot.slane %v638, 7
      %v641 = vshll.u32 %v588, 16
      %v643 = vor.u32 %v640, %v641
      %v644 = vrot.slane %v640, 4
      %v646 = vshrl.u32 %v589, 16
      %v648 = vrot.slane %v646, 7
      %v649 = vshll.u32 %v589, 16
      %v651 = vor.u32 %v648, %v649
      %v652 = vsel %vm619, %v644, %v651
      %v653 = vrot.slane %v648, 4
      %v655 = vshrl.u32 %v590, 16
      %v657 = vrot.slane %v655, 7
      %v658 = vshll.u32 %v590, 16
      %v660 = vor.u32 %v657, %v658
      %v661 = vrot.slane %v657, 4
      %v663 = vshrl.u32 %v591, 16
      %v665 = vrot.slane %v663, 7
      %v666 = vshll.u32 %v591, 16
      %v668 = vor.u32 %v665, %v666
      %v669 = vsel %vm619, %v661, %v668
      %v670 = vrot.slane %v665, 4
      %v672 = vshrl.u32 %v592, 16
      %v674 = vrot.slane %v672, 7
      %v675 = vshll.u32 %v592, 16
      %v677 = vor.u32 %v674, %v675
      %v678 = vrot.slane %v674, 4
      %v680 = vshrl.u32 %v593, 16
      %v682 = vrot.slane %v680, 7
      %v683 = vshll.u32 %v593, 16
      %v685 = vor.u32 %v682, %v683
      %v686 = vsel %vm619, %v678, %v685
      %v687 = vrot.slane %v682, 4
      %v689 = vshrl.u32 %v594, 16
      %v691 = vrot.slane %v689, 7
      %v692 = vshll.u32 %v594, 16
      %v694 = vor.u32 %v691, %v692
      %v695 = vrot.slane %v691, 4
      %v697 = vshrl.u32 %v595, 16
      %v699 = vrot.slane %v697, 7
      %v700 = vshll.u32 %v595, 16
      %v702 = vor.u32 %v699, %v700
      %v703 = vsel %vm619, %v695, %v702
      %v704 = vrot.slane %v699, 4
      %v706 = vshrl.u32 %v596, 16
      %v708 = vrot.slane %v706, 7
      %v709 = vshll.u32 %v596, 16
      %v711 = vor.u32 %v708, %v709
      %v712 = vrot.slane %v708, 4
      %v714 = vshrl.u32 %v597, 16
      %v716 = vrot.slane %v714, 7
      %v717 = vshll.u32 %v597, 16
      %v719 = vor.u32 %v716, %v717
      %v720 = vsel %vm619, %v712, %v719
      %v721 = vrot.slane %v716, 4
      %v723 = vshrl.u32 %v598, 16
      %v725 = vrot.slane %v723, 7
      %v726 = vshll.u32 %v598, 16
      %v728 = vor.u32 %v725, %v726
      %v729 = vrot.slane %v725, 4
      %v731 = vshrl.u32 %v599, 16
      %v733 = vrot.slane %v731, 7
      %v734 = vshll.u32 %v599, 16
      %v736 = vor.u32 %v733, %v734
      %v737 = vsel %vm619, %v729, %v736
      %v738 = vrot.slane %v733, 4
      %v740 = vshrl.u32 %v600, 16
      %v742 = vrot.slane %v740, 7
      %v743 = vshll.u32 %v600, 16
      %v745 = vor.u32 %v742, %v743
      %v746 = vrot.slane %v742, 4
      %v748 = vshrl.u32 %v601, 16
      %v750 = vrot.slane %v748, 7
      %v751 = vshll.u32 %v601, 16
      %v753 = vor.u32 %v750, %v751
      %v754 = vsel %vm619, %v746, %v753
      %v755 = vrot.slane %v750, 4
      %v757 = vshrl.u32 %v602, 16
      %v759 = vrot.slane %v757, 7
      %v760 = vshll.u32 %v602, 16
      %v762 = vor.u32 %v759, %v760
      %v763 = vrot.slane %v759, 4
      %v765 = vshrl.u32 %v603, 16
      %v767 = vrot.slane %v765, 7
      %v768 = vshll.u32 %v603, 16
      %v770 = vor.u32 %v767, %v768
      %v771 = vsel %vm619, %v763, %v770
      %v772 = vrot.slane %v767, 4
      %v774 = vshrl.u32 %v604, 16
      %v776 = vrot.slane %v774, 7
      %v777 = vshll.u32 %v604, 16
      %v779 = vor.u32 %v776, %v777
      %v780 = vrot.slane %v776, 4
      %v782 = vshrl.u32 %v605, 16
      %v784 = vrot.slane %v782, 7
      %v785 = vshll.u32 %v605, 16
      %v787 = vor.u32 %v784, %v785
      %v788 = vsel %vm619, %v780, %v787
      %v789 = vrot.slane %v784, 4
      %v791 = vshrl.u32 %v606, 16
      %v793 = vrot.slane %v791, 7
      %v794 = vshll.u32 %v606, 16
      %v796 = vor.u32 %v793, %v794
      %v797 = vrot.slane %v793, 4
      %v799 = vshrl.u32 %v607, 16
      %v801 = vrot.slane %v799, 7
      %v802 = vshll.u32 %v607, 16
      %v804 = vor.u32 %v801, %v802
      %v805 = vsel %vm619, %v797, %v804
      %v806 = vrot.slane %v801, 4
      %v808 = vshrl.u32 %v608, 16
      %v810 = vrot.slane %v808, 7
      %v811 = vshll.u32 %v608, 16
      %v813 = vor.u32 %v810, %v811
      %v814 = vrot.slane %v810, 4
      %v816 = vshrl.u32 %v609, 16
      %v818 = vrot.slane %v816, 7
      %v819 = vshll.u32 %v609, 16
      %v821 = vor.u32 %v818, %v819
      %v822 = vsel %vm619, %v814, %v821
      %v823 = vrot.slane %v818, 4
      %v825 = vshrl.u32 %v610, 16
      %v827 = vrot.slane %v825, 7
      %v828 = vshll.u32 %v610, 16
      %v830 = vor.u32 %v827, %v828
      %v831 = vrot.slane %v827, 4
      %v833 = vshrl.u32 %v611, 16
      %v835 = vrot.slane %v833, 7
      %v836 = vshll.u32 %v611, 16
      %v838 = vor.u32 %v835, %v836
      %v839 = vsel %vm619, %v831, %v838
      %v840 = vrot.slane %v835, 4
      %v842 = vshrl.u32 %v612, 16
      %v844 = vrot.slane %v842, 7
      %v845 = vshll.u32 %v612, 16
      %v847 = vor.u32 %v844, %v845
      %v848 = vrot.slane %v844, 4
      %v850 = vshrl.u32 %v613, 16
      %v852 = vrot.slane %v850, 7
      %v853 = vshll.u32 %v613, 16
      %v855 = vor.u32 %v852, %v853
      %v856 = vsel %vm619, %v848, %v855
      %v857 = vrot.slane %v852, 4
      %v859 = vshrl.u32 %v614, 16
      %v861 = vrot.slane %v859, 7
      %v862 = vshll.u32 %v614, 16
      %v864 = vor.u32 %v861, %v862
      %v865 = vrot.slane %v861, 4
      %v867 = vshrl.u32 %v615, 16
      %v869 = vrot.slane %v867, 7
      %v870 = vshll.u32 %v615, 16
      %v872 = vor.u32 %v869, %v870
      %v873 = vsel %vm619, %v865, %v872
      %v874 = vrot.slane %v869, 4
      %v876 = vshrl.u32 %v616, 16
      %v878 = vrot.slane %v876, 7
      %v879 = vshll.u32 %v616, 16
      %v881 = vor.u32 %v878, %v879
      %v882 = vrot.slane %v878, 4
      %v884 = vshrl.u32 %v617, 16
      %v886 = vrot.slane %v884, 7
      %v887 = vshll.u32 %v617, 16
      %v889 = vor.u32 %v886, %v887
      %v890 = vsel %vm619, %v882, %v889
      %v891 = vrot.slane %v886, 4
      %vm940 = vcmask 519168
      %vm941 = vmand %vm940, %vm298
      %v942 = vld [vmem:[%s246] sm:$0xf]
      %v943 = vsel %vm941, %v626, %v942
      %944 = vst [vmem:[%s246] sm:$0xf] %v943
      %945 = vst.msk [vmem:[%s246 + $0x4] sm:$0xf] %vm237, %v635
      %v946 = vld [vmem:[%s246 + $0x8] sm:$0x1]
      %v947 = vsel %vm249, %v636, %v946
      %948 = vst [vmem:[%s246 + $0x8] sm:$0x1] %v947
      %v949 = vld [vmem:[%s246 + $0xc] sm:$0xf]
      %v950 = vsel %vm941, %v643, %v949
      %951 = vst [vmem:[%s246 + $0xc] sm:$0xf] %v950
      %952 = vst.msk [vmem:[%s246 + $0x10] sm:$0xf] %vm237, %v652
      %v953 = vld [vmem:[%s246 + $0x14] sm:$0x1]
      %v954 = vsel %vm249, %v653, %v953
      %955 = vst [vmem:[%s246 + $0x14] sm:$0x1] %v954
      %v956 = vld [vmem:[%s246 + $0x18] sm:$0xf]
      %v957 = vsel %vm941, %v660, %v956
      %958 = vst [vmem:[%s246 + $0x18] sm:$0xf] %v957
      %959 = vst.msk [vmem:[%s246 + $0x1c] sm:$0xf] %vm237, %v669
      %v960 = vld [vmem:[%s246 + $0x20] sm:$0x1]
      %v961 = vsel %vm249, %v670, %v960
      %962 = vst [vmem:[%s246 + $0x20] sm:$0x1] %v961
      %v963 = vld [vmem:[%s246 + $0x24] sm:$0xf]
      %v964 = vsel %vm941, %v677, %v963
      %965 = vst [vmem:[%s246 + $0x24] sm:$0xf] %v964
      %966 = vst.msk [vmem:[%s246 + $0x28] sm:$0xf] %vm237, %v686
      %v967 = vld [vmem:[%s246 + $0x2c] sm:$0x1]
      %v968 = vsel %vm249, %v687, %v967
      %969 = vst [vmem:[%s246 + $0x2c] sm:$0x1] %v968
      %v970 = vld [vmem:[%s246 + $0x30] sm:$0xf]
      %v971 = vsel %vm941, %v694, %v970
      %972 = vst [vmem:[%s246 + $0x30] sm:$0xf] %v971
      %973 = vst.msk [vmem:[%s246 + $0x34] sm:$0xf] %vm237, %v703
      %v974 = vld [vmem:[%s246 + $0x38] sm:$0x1]
      %v975 = vsel %vm249, %v704, %v974
      %976 = vst [vmem:[%s246 + $0x38] sm:$0x1] %v975
      %v977 = vld [vmem:[%s246 + $0x3c] sm:$0xf]
      %v978 = vsel %vm941, %v711, %v977
      %979 = vst [vmem:[%s246 + $0x3c] sm:$0xf] %v978
      %980 = vst.msk [vmem:[%s246 + $0x40] sm:$0xf] %vm237, %v720
      %v981 = vld [vmem:[%s246 + $0x44] sm:$0x1]
      %v982 = vsel %vm249, %v721, %v981
      %983 = vst [vmem:[%s246 + $0x44] sm:$0x1] %v982
      %v984 = vld [vmem:[%s246 + $0x48] sm:$0xf]
      %v985 = vsel %vm941, %v728, %v984
      %986 = vst [vmem:[%s246 + $0x48] sm:$0xf] %v985
      %987 = vst.msk [vmem:[%s246 + $0x4c] sm:$0xf] %vm237, %v737
      %v988 = vld [vmem:[%s246 + $0x50] sm:$0x1]
      %v989 = vsel %vm249, %v738, %v988
      %990 = vst [vmem:[%s246 + $0x50] sm:$0x1] %v989
      %v991 = vld [vmem:[%s246 + $0x54] sm:$0xf]
      %v992 = vsel %vm941, %v745, %v991
      %993 = vst [vmem:[%s246 + $0x54] sm:$0xf] %v992
      %994 = vst.msk [vmem:[%s246 + $0x58] sm:$0xf] %vm237, %v754
      %v995 = vld [vmem:[%s246 + $0x5c] sm:$0x1]
      %v996 = vsel %vm249, %v755, %v995
      %997 = vst [vmem:[%s246 + $0x5c] sm:$0x1] %v996
      %v998 = vld [vmem:[%s246 + $0x60] sm:$0xf]
      %v999 = vsel %vm941, %v762, %v998
      %1000 = vst [vmem:[%s246 + $0x60] sm:$0xf] %v999
      %1001 = vst.msk [vmem:[%s246 + $0x64] sm:$0xf] %vm237, %v771
      %v1002 = vld [vmem:[%s246 + $0x68] sm:$0x1]
      %v1003 = vsel %vm249, %v772, %v1002
      %1004 = vst [vmem:[%s246 + $0x68] sm:$0x1] %v1003
      %v1005 = vld [vmem:[%s246 + $0x6c] sm:$0xf]
      %v1006 = vsel %vm941, %v779, %v1005
      %1007 = vst [vmem:[%s246 + $0x6c] sm:$0xf] %v1006
      %1008 = vst.msk [vmem:[%s246 + $0x70] sm:$0xf] %vm237, %v788
      %v1009 = vld [vmem:[%s246 + $0x74] sm:$0x1]
      %v1010 = vsel %vm249, %v789, %v1009
      %1011 = vst [vmem:[%s246 + $0x74] sm:$0x1] %v1010
      %v1012 = vld [vmem:[%s246 + $0x78] sm:$0xf]
      %v1013 = vsel %vm941, %v796, %v1012
      %1014 = vst [vmem:[%s246 + $0x78] sm:$0xf] %v1013
      %1015 = vst.msk [vmem:[%s246 + $0x7c] sm:$0xf] %vm237, %v805
      %v1016 = vld [vmem:[%s246 + $0x80] sm:$0x1]
      %v1017 = vsel %vm249, %v806, %v1016
      %1018 = vst [vmem:[%s246 + $0x80] sm:$0x1] %v1017
      %v1019 = vld [vmem:[%s246 + $0x84] sm:$0xf]
      %v1020 = vsel %vm941, %v813, %v1019
      %1021 = vst [vmem:[%s246 + $0x84] sm:$0xf] %v1020
      %1022 = vst.msk [vmem:[%s246 + $0x88] sm:$0xf] %vm237, %v822
      %v1023 = vld [vmem:[%s246 + $0x8c] sm:$0x1]
      %v1024 = vsel %vm249, %v823, %v1023
      %1025 = vst [vmem:[%s246 + $0x8c] sm:$0x1] %v1024
      %v1026 = vld [vmem:[%s246 + $0x90] sm:$0xf]
      %v1027 = vsel %vm941, %v830, %v1026
      %1028 = vst [vmem:[%s246 + $0x90] sm:$0xf] %v1027
      %1029 = vst.msk [vmem:[%s246 + $0x94] sm:$0xf] %vm237, %v839
      %v1030 = vld [vmem:[%s246 + $0x98] sm:$0x1]
      %v1031 = vsel %vm249, %v840, %v1030
      %1032 = vst [vmem:[%s246 + $0x98] sm:$0x1] %v1031
      %v1033 = vld [vmem:[%s246 + $0x9c] sm:$0xf]
      %v1034 = vsel %vm941, %v847, %v1033
      %1035 = vst [vmem:[%s246 + $0x9c] sm:$0xf] %v1034
      %1036 = vst.msk [vmem:[%s246 + $0xa0] sm:$0xf] %vm237, %v856
      %v1037 = vld [vmem:[%s246 + $0xa4] sm:$0x1]
      %v1038 = vsel %vm249, %v857, %v1037
      %1039 = vst [vmem:[%s246 + $0xa4] sm:$0x1] %v1038
      %v1040 = vld [vmem:[%s246 + $0xa8] sm:$0xf]
      %v1041 = vsel %vm941, %v864, %v1040
      %1042 = vst [vmem:[%s246 + $0xa8] sm:$0xf] %v1041
      %1043 = vst.msk [vmem:[%s246 + $0xac] sm:$0xf] %vm237, %v873
      %v1044 = vld [vmem:[%s246 + $0xb0] sm:$0x1]
      %v1045 = vsel %vm249, %v874, %v1044
      %1046 = vst [vmem:[%s246 + $0xb0] sm:$0x1] %v1045
      %v1047 = vld [vmem:[%s246 + $0xb4] sm:$0xf]
      %v1048 = vsel %vm941, %v881, %v1047
      %1049 = vst [vmem:[%s246 + $0xb4] sm:$0xf] %v1048
      %1050 = vst.msk [vmem:[%s246 + $0xb8] sm:$0xf] %vm237, %v890
      %v1051 = vld [vmem:[%s246 + $0xbc] sm:$0x1]
      %v1052 = vsel %vm249, %v891, %v1051
      %1053 = vst [vmem:[%s246 + $0xbc] sm:$0x1] %v1052
      %v1054 = vld [vmem:[#allocation2] sm:$0xf]
      %v1055 = vld [vmem:[#allocation2 + $0x4] sm:$0xf]
      %v1056 = vld [vmem:[#allocation2 + $0xc] sm:$0xf]
      %v1057 = vld [vmem:[#allocation2 + $0x10] sm:$0xf]
      %v1058 = vld [vmem:[#allocation2 + $0x18] sm:$0xf]
      %v1059 = vld [vmem:[#allocation2 + $0x1c] sm:$0xf]
      %v1060 = vld [vmem:[#allocation2 + $0x24] sm:$0xf]
      %v1061 = vld [vmem:[#allocation2 + $0x28] sm:$0xf]
      %v1062 = vld [vmem:[#allocation2 + $0x30] sm:$0xf]
      %v1063 = vld [vmem:[#allocation2 + $0x34] sm:$0xf]
      %v1064 = vld [vmem:[#allocation2 + $0x3c] sm:$0xf]
      %v1065 = vld [vmem:[#allocation2 + $0x40] sm:$0xf]
      %v1066 = vld [vmem:[#allocation2 + $0x48] sm:$0xf]
      %v1067 = vld [vmem:[#allocation2 + $0x4c] sm:$0xf]
      %v1068 = vld [vmem:[#allocation2 + $0x54] sm:$0xf]
      %v1069 = vld [vmem:[#allocation2 + $0x58] sm:$0xf]
      %v1070 = vld [vmem:[#allocation2 + $0x60] sm:$0xf]
      %v1071 = vld [vmem:[#allocation2 + $0x64] sm:$0xf]
      %v1072 = vld [vmem:[#allocation2 + $0x6c] sm:$0xf]
      %v1073 = vld [vmem:[#allocation2 + $0x70] sm:$0xf]
      %v1074 = vld [vmem:[#allocation2 + $0x78] sm:$0xf]
      %v1075 = vld [vmem:[#allocation2 + $0x7c] sm:$0xf]
      %v1076 = vld [vmem:[#allocation2 + $0x84] sm:$0xf]
      %v1077 = vld [vmem:[#allocation2 + $0x88] sm:$0xf]
      %v1078 = vld [vmem:[#allocation2 + $0x90] sm:$0xf]
      %v1079 = vld [vmem:[#allocation2 + $0x94] sm:$0xf]
      %v1080 = vld [vmem:[#allocation2 + $0x9c] sm:$0xf]
      %v1081 = vld [vmem:[#allocation2 + $0xa0] sm:$0xf]
      %v1082 = vld [vmem:[#allocation2 + $0xa8] sm:$0xf]
      %v1083 = vld [vmem:[#allocation2 + $0xac] sm:$0xf]
      %v1084 = vld [vmem:[#allocation2 + $0xb4] sm:$0xf]
      %v1085 = vld [vmem:[#allocation2 + $0xb8] sm:$0xf]
      %v1086 = vld [vmem:[%s3] sm:$0xf]
      %v1087 = vld [vmem:[%s3 + $0x4] sm:$0xf]
      %v1088 = vld [vmem:[%s3 + $0x8] sm:$0xf]
      %v1089 = vld [vmem:[%s3 + $0xc] sm:$0xf]
      %v1090 = vld [vmem:[%s3 + $0x10] sm:$0xf]
      %v1091 = vld [vmem:[%s3 + $0x14] sm:$0xf]
      %v1092 = vld [vmem:[%s3 + $0x18] sm:$0xf]
      %v1093 = vld [vmem:[%s3 + $0x1c] sm:$0xf]
      %v1094 = vld [vmem:[#allocation2 + $0x8] sm:$0x1]
      %v1095 = vld [vmem:[#allocation2 + $0x14] sm:$0x1]
      %v1096 = vld [vmem:[#allocation2 + $0x20] sm:$0x1]
      %v1097 = vld [vmem:[#allocation2 + $0x2c] sm:$0x1]
      %v1098 = vld [vmem:[#allocation2 + $0x38] sm:$0x1]
      %v1099 = vld [vmem:[#allocation2 + $0x44] sm:$0x1]
      %v1100 = vld [vmem:[#allocation2 + $0x50] sm:$0x1]
      %v1101 = vld [vmem:[#allocation2 + $0x5c] sm:$0x1]
      %v1102 = vld [vmem:[#allocation2 + $0x68] sm:$0x1]
      %v1103 = vld [vmem:[#allocation2 + $0x74] sm:$0x1]
      %v1104 = vld [vmem:[#allocation2 + $0x80] sm:$0x1]
      %v1105 = vld [vmem:[#allocation2 + $0x8c] sm:$0x1]
      %v1106 = vld [vmem:[#allocation2 + $0x98] sm:$0x1]
      %v1107 = vld [vmem:[#allocation2 + $0xa4] sm:$0x1]
      %v1108 = vld [vmem:[#allocation2 + $0xb0] sm:$0x1]
      %v1109 = vld [vmem:[#allocation2 + $0xbc] sm:$0x1]
      %vm1110 = vsmask.f32 3328
      %vm1111 = vsmask.f32 7440
      %vm1112 = vmor %vm1110, %vm1111
      %v1114 = vshrl.u32 %v1054, 16
      %v1116 = vrot.slane %v1114, 4
      %v1117 = vshll.u32 %v1054, 16
      %v1119 = vrot.slane %v1117, 5
      %v1120 = vor.u32 %v1116, %v1119
      %v1121 = vrot.slane %v1120, 4
      %v1123 = vshll.u32 %v1055, 16
      %v1125 = vrot.slane %v1123, 5
      %v1126 = vsel %vm1112, %v1121, %v1125
      %v1127 = vshrl.u32 %v1055, 16
      %v1129 = vrot.slane %v1127, 4
      %v1130 = vor.u32 %v1129, %v1125
      %v1131 = vrot.slane %v1130, 4
      %v1133 = vshll.u32 %v1094, 16
      %v1135 = vrot.slane %v1133, 5
      %v1136 = vsel %vm1112, %v1131, %v1135
      %v1138 = vshrl.u32 %v1056, 16
      %v1140 = vrot.slane %v1138, 4
      %v1141 = vshll.u32 %v1056, 16
      %v1143 = vrot.slane %v1141, 5
      %v1144 = vor.u32 %v1140, %v1143
      %v1145 = vrot.slane %v1144, 4
      %v1147 = vshll.u32 %v1057, 16
      %v1149 = vrot.slane %v1147, 5
      %v1150 = vsel %vm1112, %v1145, %v1149
      %v1151 = vshrl.u32 %v1057, 16
      %v1153 = vrot.slane %v1151, 4
      %v1154 = vor.u32 %v1153, %v1149
      %v1155 = vrot.slane %v1154, 4
      %v1157 = vshll.u32 %v1095, 16
      %v1159 = vrot.slane %v1157, 5
      %v1160 = vsel %vm1112, %v1155, %v1159
      %v1162 = vshrl.u32 %v1058, 16
      %v1164 = vrot.slane %v1162, 4
      %v1165 = vshll.u32 %v1058, 16
      %v1167 = vrot.slane %v1165, 5
      %v1168 = vor.u32 %v1164, %v1167
      %v1169 = vrot.slane %v1168, 4
      %v1171 = vshll.u32 %v1059, 16
      %v1173 = vrot.slane %v1171, 5
      %v1174 = vsel %vm1112, %v1169, %v1173
      %v1175 = vshrl.u32 %v1059, 16
      %v1177 = vrot.slane %v1175, 4
      %v1178 = vor.u32 %v1177, %v1173
      %v1179 = vrot.slane %v1178, 4
      %v1181 = vshll.u32 %v1096, 16
      %v1183 = vrot.slane %v1181, 5
      %v1184 = vsel %vm1112, %v1179, %v1183
      %v1186 = vshrl.u32 %v1060, 16
      %v1188 = vrot.slane %v1186, 4
      %v1189 = vshll.u32 %v1060, 16
      %v1191 = vrot.slane %v1189, 5
      %v1192 = vor.u32 %v1188, %v1191
      %v1193 = vrot.slane %v1192, 4
      %v1195 = vshll.u32 %v1061, 16
      %v1197 = vrot.slane %v1195, 5
      %v1198 = vsel %vm1112, %v1193, %v1197
      %v1199 = vshrl.u32 %v1061, 16
      %v1201 = vrot.slane %v1199, 4
      %v1202 = vor.u32 %v1201, %v1197
      %v1203 = vrot.slane %v1202, 4
      %v1205 = vshll.u32 %v1097, 16
      %v1207 = vrot.slane %v1205, 5
      %v1208 = vsel %vm1112, %v1203, %v1207
      %v1210 = vshrl.u32 %v1062, 16
      %v1212 = vrot.slane %v1210, 4
      %v1213 = vshll.u32 %v1062, 16
      %v1215 = vrot.slane %v1213, 5
      %v1216 = vor.u32 %v1212, %v1215
      %v1217 = vrot.slane %v1216, 4
      %v1219 = vshll.u32 %v1063, 16
      %v1221 = vrot.slane %v1219, 5
      %v1222 = vsel %vm1112, %v1217, %v1221
      %v1223 = vshrl.u32 %v1063, 16
      %v1225 = vrot.slane %v1223, 4
      %v1226 = vor.u32 %v1225, %v1221
      %v1227 = vrot.slane %v1226, 4
      %v1229 = vshll.u32 %v1098, 16
      %v1231 = vrot.slane %v1229, 5
      %v1232 = vsel %vm1112, %v1227, %v1231
      %v1234 = vshrl.u32 %v1064, 16
      %v1236 = vrot.slane %v1234, 4
      %v1237 = vshll.u32 %v1064, 16
      %v1239 = vrot.slane %v1237, 5
      %v1240 = vor.u32 %v1236, %v1239
      %v1241 = vrot.slane %v1240, 4
      %v1243 = vshll.u32 %v1065, 16
      %v1245 = vrot.slane %v1243, 5
      %v1246 = vsel %vm1112, %v1241, %v1245
      %v1247 = vshrl.u32 %v1065, 16
      %v1249 = vrot.slane %v1247, 4
      %v1250 = vor.u32 %v1249, %v1245
      %v1251 = vrot.slane %v1250, 4
      %v1253 = vshll.u32 %v1099, 16
      %v1255 = vrot.slane %v1253, 5
      %v1256 = vsel %vm1112, %v1251, %v1255
      %v1258 = vshrl.u32 %v1066, 16
      %v1260 = vrot.slane %v1258, 4
      %v1261 = vshll.u32 %v1066, 16
      %v1263 = vrot.slane %v1261, 5
      %v1264 = vor.u32 %v1260, %v1263
      %v1265 = vrot.slane %v1264, 4
      %v1267 = vshll.u32 %v1067, 16
      %v1269 = vrot.slane %v1267, 5
      %v1270 = vsel %vm1112, %v1265, %v1269
      %v1271 = vshrl.u32 %v1067, 16
      %v1273 = vrot.slane %v1271, 4
      %v1274 = vor.u32 %v1273, %v1269
      %v1275 = vrot.slane %v1274, 4
      %v1277 = vshll.u32 %v1100, 16
      %v1279 = vrot.slane %v1277, 5
      %v1280 = vsel %vm1112, %v1275, %v1279
      %v1282 = vshrl.u32 %v1068, 16
      %v1284 = vrot.slane %v1282, 4
      %v1285 = vshll.u32 %v1068, 16
      %v1287 = vrot.slane %v1285, 5
      %v1288 = vor.u32 %v1284, %v1287
      %v1289 = vrot.slane %v1288, 4
      %v1291 = vshll.u32 %v1069, 16
      %v1293 = vrot.slane %v1291, 5
      %v1294 = vsel %vm1112, %v1289, %v1293
      %v1295 = vshrl.u32 %v1069, 16
      %v1297 = vrot.slane %v1295, 4
      %v1298 = vor.u32 %v1297, %v1293
      %v1299 = vrot.slane %v1298, 4
      %v1301 = vshll.u32 %v1101, 16
      %v1303 = vrot.slane %v1301, 5
      %v1304 = vsel %vm1112, %v1299, %v1303
      %v1306 = vshrl.u32 %v1070, 16
      %v1308 = vrot.slane %v1306, 4
      %v1309 = vshll.u32 %v1070, 16
      %v1311 = vrot.slane %v1309, 5
      %v1312 = vor.u32 %v1308, %v1311
      %v1313 = vrot.slane %v1312, 4
      %v1315 = vshll.u32 %v1071, 16
      %v1317 = vrot.slane %v1315, 5
      %v1318 = vsel %vm1112, %v1313, %v1317
      %v1319 = vshrl.u32 %v1071, 16
      %v1321 = vrot.slane %v1319, 4
      %v1322 = vor.u32 %v1321, %v1317
      %v1323 = vrot.slane %v1322, 4
      %v1325 = vshll.u32 %v1102, 16
      %v1327 = vrot.slane %v1325, 5
      %v1328 = vsel %vm1112, %v1323, %v1327
      %v1330 = vshrl.u32 %v1072, 16
      %v1332 = vrot.slane %v1330, 4
      %v1333 = vshll.u32 %v1072, 16
      %v1335 = vrot.slane %v1333, 5
      %v1336 = vor.u32 %v1332, %v1335
      %v1337 = vrot.slane %v1336, 4
      %v1339 = vshll.u32 %v1073, 16
      %v1341 = vrot.slane %v1339, 5
      %v1342 = vsel %vm1112, %v1337, %v1341
      %v1343 = vshrl.u32 %v1073, 16
      %v1345 = vrot.slane %v1343, 4
      %v1346 = vor.u32 %v1345, %v1341
      %v1347 = vrot.slane %v1346, 4
      %v1349 = vshll.u32 %v1103, 16
      %v1351 = vrot.slane %v1349, 5
      %v1352 = vsel %vm1112, %v1347, %v1351
      %v1354 = vshrl.u32 %v1074, 16
      %v1356 = vrot.slane %v1354, 4
      %v1357 = vshll.u32 %v1074, 16
      %v1359 = vrot.slane %v1357, 5
      %v1360 = vor.u32 %v1356, %v1359
      %v1361 = vrot.slane %v1360, 4
      %v1363 = vshll.u32 %v1075, 16
      %v1365 = vrot.slane %v1363, 5
      %v1366 = vsel %vm1112, %v1361, %v1365
      %v1367 = vshrl.u32 %v1075, 16
      %v1369 = vrot.slane %v1367, 4
      %v1370 = vor.u32 %v1369, %v1365
      %v1371 = vrot.slane %v1370, 4
      %v1373 = vshll.u32 %v1104, 16
      %v1375 = vrot.slane %v1373, 5
      %v1376 = vsel %vm1112, %v1371, %v1375
      %v1378 = vshrl.u32 %v1076, 16
      %v1380 = vrot.slane %v1378, 4
      %v1381 = vshll.u32 %v1076, 16
      %v1383 = vrot.slane %v1381, 5
      %v1384 = vor.u32 %v1380, %v1383
      %v1385 = vrot.slane %v1384, 4
      %v1387 = vshll.u32 %v1077, 16
      %v1389 = vrot.slane %v1387, 5
      %v1390 = vsel %vm1112, %v1385, %v1389
      %v1391 = vshrl.u32 %v1077, 16
      %v1393 = vrot.slane %v1391, 4
      %v1394 = vor.u32 %v1393, %v1389
      %v1395 = vrot.slane %v1394, 4
      %v1397 = vshll.u32 %v1105, 16
      %v1399 = vrot.slane %v1397, 5
      %v1400 = vsel %vm1112, %v1395, %v1399
      %v1402 = vshrl.u32 %v1078, 16
      %v1404 = vrot.slane %v1402, 4
      %v1405 = vshll.u32 %v1078, 16
      %v1407 = vrot.slane %v1405, 5
      %v1408 = vor.u32 %v1404, %v1407
      %v1409 = vrot.slane %v1408, 4
      %v1411 = vshll.u32 %v1079, 16
      %v1413 = vrot.slane %v1411, 5
      %v1414 = vsel %vm1112, %v1409, %v1413
      %v1415 = vshrl.u32 %v1079, 16
      %v1417 = vrot.slane %v1415, 4
      %v1418 = vor.u32 %v1417, %v1413
      %v1419 = vrot.slane %v1418, 4
      %v1421 = vshll.u32 %v1106, 16
      %v1423 = vrot.slane %v1421, 5
      %v1424 = vsel %vm1112, %v1419, %v1423
      %v1426 = vshrl.u32 %v1080, 16
      %v1428 = vrot.slane %v1426, 4
      %v1429 = vshll.u32 %v1080, 16
      %v1431 = vrot.slane %v1429, 5
      %v1432 = vor.u32 %v1428, %v1431
      %v1433 = vrot.slane %v1432, 4
      %v1435 = vshll.u32 %v1081, 16
      %v1437 = vrot.slane %v1435, 5
      %v1438 = vsel %vm1112, %v1433, %v1437
      %v1439 = vshrl.u32 %v1081, 16
      %v1441 = vrot.slane %v1439, 4
      %v1442 = vor.u32 %v1441, %v1437
      %v1443 = vrot.slane %v1442, 4
      %v1445 = vshll.u32 %v1107, 16
      %v1447 = vrot.slane %v1445, 5
      %v1448 = vsel %vm1112, %v1443, %v1447
      %v1450 = vshrl.u32 %v1082, 16
      %v1452 = vrot.slane %v1450, 4
      %v1453 = vshll.u32 %v1082, 16
      %v1455 = vrot.slane %v1453, 5
      %v1456 = vor.u32 %v1452, %v1455
      %v1457 = vrot.slane %v1456, 4
      %v1459 = vshll.u32 %v1083, 16
      %v1461 = vrot.slane %v1459, 5
      %v1462 = vsel %vm1112, %v1457, %v1461
      %v1463 = vshrl.u32 %v1083, 16
      %v1465 = vrot.slane %v1463, 4
      %v1466 = vor.u32 %v1465, %v1461
      %v1467 = vrot.slane %v1466, 4
      %v1469 = vshll.u32 %v1108, 16
      %v1471 = vrot.slane %v1469, 5
      %v1472 = vsel %vm1112, %v1467, %v1471
      %v1474 = vshrl.u32 %v1084, 16
      %v1476 = vrot.slane %v1474, 4
      %v1477 = vshll.u32 %v1084, 16
      %v1479 = vrot.slane %v1477, 5
      %v1480 = vor.u32 %v1476, %v1479
      %v1481 = vrot.slane %v1480, 4
      %v1483 = vshll.u32 %v1085, 16
      %v1485 = vrot.slane %v1483, 5
      %v1486 = vsel %vm1112, %v1481, %v1485
      %v1487 = vshrl.u32 %v1085, 16
      %v1489 = vrot.slane %v1487, 4
      %v1490 = vor.u32 %v1489, %v1485
      %v1491 = vrot.slane %v1490, 4
      %v1493 = vshll.u32 %v1109, 16
      %v1495 = vrot.slane %v1493, 5
      %v1496 = vsel %vm1112, %v1491, %v1495
      %s1497 = scalar_lea.vmem %s3, 32
      %v1498 = vld [vmem:[%s1497] sm:$0xf]
      %v1499 = vld [vmem:[%s1497 + $0x4] sm:$0xf]
      %v1500 = vld [vmem:[%s1497 + $0x8] sm:$0xf]
      %v1501 = vld [vmem:[%s1497 + $0xc] sm:$0xf]
      %v1502 = vld [vmem:[%s1497 + $0x10] sm:$0xf]
      %v1503 = vld [vmem:[%s1497 + $0x14] sm:$0xf]
      %v1504 = vld [vmem:[%s1497 + $0x18] sm:$0xf]
      %v1505 = vld [vmem:[%s1497 + $0x1c] sm:$0xf]
      %v1506 = vunpack.c.l.b16 %v1126
      %v1507 = vunpack.c.l.b16 %v1136
      %v1508 = vunpack.c.l.b16 %v1150
      %v1509 = vunpack.c.l.b16 %v1160
      %v1510 = vunpack.c.l.b16 %v1174
      %v1511 = vunpack.c.l.b16 %v1184
      %v1512 = vunpack.c.l.b16 %v1198
      %v1513 = vunpack.c.l.b16 %v1208
      %v1514 = vunpack.c.l.b16 %v1222
      %v1515 = vunpack.c.l.b16 %v1232
      %v1516 = vunpack.c.l.b16 %v1246
      %v1517 = vunpack.c.l.b16 %v1256
      %v1518 = vunpack.c.l.b16 %v1270
      %v1519 = vunpack.c.l.b16 %v1280
      %v1520 = vunpack.c.l.b16 %v1294
      %v1521 = vunpack.c.l.b16 %v1304
      %v1522 = vunpack.c.l.b16 %v1318
      %v1523 = vunpack.c.l.b16 %v1328
      %v1524 = vunpack.c.l.b16 %v1342
      %v1525 = vunpack.c.l.b16 %v1352
      %v1526 = vunpack.c.l.b16 %v1366
      %v1527 = vunpack.c.l.b16 %v1376
      %v1528 = vunpack.c.l.b16 %v1390
      %v1529 = vunpack.c.l.b16 %v1400
      %v1530 = vunpack.c.l.b16 %v1414
      %v1531 = vunpack.c.l.b16 %v1424
      %v1532 = vunpack.c.l.b16 %v1438
      %v1533 = vunpack.c.l.b16 %v1448
      %v1534 = vunpack.c.l.b16 %v1462
      %v1535 = vunpack.c.l.b16 %v1472
      %v1536 = vunpack.c.l.b16 %v1486
      %v1537 = vunpack.c.l.b16 %v1496
      %v1538 = vpack.c.b16 %v1507, %v1506
      %v1539 = vpack.c.b16 %v1509, %v1508
      %v1540 = vpack.c.b16 %v1511, %v1510
      %v1541 = vpack.c.b16 %v1513, %v1512
      %v1542 = vpack.c.b16 %v1515, %v1514
      %v1543 = vpack.c.b16 %v1517, %v1516
      %v1544 = vpack.c.b16 %v1519, %v1518
      %v1545 = vpack.c.b16 %v1521, %v1520
      %v1546 = vpack.c.b16 %v1523, %v1522
      %v1547 = vpack.c.b16 %v1525, %v1524
      %v1548 = vpack.c.b16 %v1527, %v1526
      %v1549 = vpack.c.b16 %v1529, %v1528
      %v1550 = vpack.c.b16 %v1531, %v1530
      %v1551 = vpack.c.b16 %v1533, %v1532
      %v1552 = vpack.c.b16 %v1535, %v1534
      %v1553 = vpack.c.b16 %v1537, %v1536
      %v1562 = vunpack.c.l.b16 %v1498
      %v1563 = vunpack.c.l.b16 %v1499
      %v1564 = vunpack.c.l.b16 %v1500
      %v1565 = vunpack.c.l.b16 %v1501
      %v1566 = vunpack.c.l.b16 %v1502
      %v1567 = vunpack.c.l.b16 %v1503
      %v1568 = vunpack.c.l.b16 %v1504
      %v1569 = vunpack.c.l.b16 %v1505
      %v1570 = vpack.c.b16 %v1563, %v1562
      %v1571 = vpack.c.b16 %v1565, %v1564
      %v1572 = vpack.c.b16 %v1567, %v1566
      %v1573 = vpack.c.b16 %v1569, %v1568
      %vm1578 = vcmask 523264
      %v1580 = vsel %vm1578, %v1538, 0
      %v1583 = vsel %vm1578, %v1539, 0
      %v1586 = vsel %vm1578, %v1540, 0
      %v1589 = vsel %vm1578, %v1541, 0
      %v1592 = vsel %vm1578, %v1542, 0
      %v1595 = vsel %vm1578, %v1543, 0
      %v1598 = vsel %vm1578, %v1544, 0
      %v1601 = vsel %vm1578, %v1545, 0
      %v1604 = vsel %vm1578, %v1546, 0
      %v1607 = vsel %vm1578, %v1547, 0
      %v1610 = vsel %vm1578, %v1548, 0
      %v1613 = vsel %vm1578, %v1549, 0
      %v1616 = vsel %vm1578, %v1550, 0
      %v1619 = vsel %vm1578, %v1551, 0
      %v1622 = vsel %vm1578, %v1552, 0
      %v1625 = vsel %vm1578, %v1553, 0
      %1627 = vmatprep.subr.bf16.mxu0 0
      %1628 = vmatpush1.bf16.msra.mxu0 %v1570
      %1629 = vmatprep.subr.bf16.mxu0 0
      %1630 = vmatpush1.bf16.msra.mxu0 %v1571
      %1631 = vmatprep.subr.bf16.mxu0 0
      %1632 = vmatpush1.bf16.msra.mxu0 %v1572
      %1633 = vmatprep.subr.bf16.mxu0 0
      %1634 = vmatpush1.bf16.msra.mxu0 %v1573
      %1635 = vmatprep.subr.bf16.mxu0 0
      %1636 = vmatpush1.bf16.msra.mxu0 0
      %1637 = vmatprep.subr.bf16.mxu0 0
      %1638 = vmatpush1.bf16.msra.mxu0 0
      %1639 = vmatprep.subr.bf16.mxu0 0
      %1640 = vmatpush1.bf16.msra.mxu0 0
      %1641 = vmatprep.subr.bf16.mxu0 0
      %1642 = vmatpush1.bf16.msra.mxu0 0
      %1643 = vmatprep.subr.bf16.mxu0 0
      %1644 = vmatpush1.bf16.msra.mxu0 0
      %1645 = vmatprep.subr.bf16.mxu0 0
      %1646 = vmatpush1.bf16.msra.mxu0 0
      %1647 = vmatprep.subr.bf16.mxu0 0
      %1648 = vmatpush1.bf16.msra.mxu0 0
      %1649 = vmatprep.subr.bf16.mxu0 0
      %1650 = vmatpush1.bf16.msra.mxu0 0
      %1651 = vmatprep.subr.bf16.mxu0 0
      %1652 = vmatpush1.bf16.msra.mxu0 0
      %1653 = vmatprep.subr.bf16.mxu0 0
      %1654 = vmatpush1.bf16.msra.mxu0 0
      %1655 = vmatprep.subr.bf16.mxu0 0
      %1656 = vmatpush1.bf16.msra.mxu0 0
      %1657 = vmatprep.subr.bf16.mxu0 0
      %1658 = vmatpush1.bf16.msra.mxu0 0
      %1659 = vmatprep.mubr.bf16.mxu0 0
      %1660 = vmatmul.mubr.bf16.gmra.mrb[0].mxu0 %v1580
      %v1661 = vpop.f32.mrb[0].mxu0
      %v1662 = vadd.f32 0.0, %v1661
      %v1663 = vpop.f32.mrb[0].mxu0
      %v1664 = vpop.f32.mrb[0].mxu0
      %v1665 = vadd.f32 0.0, %v1664
      %v1666 = vpop.f32.mrb[0].mxu0
      %1667 = vmatprep.mubr.bf16.mxu0 0
      %1668 = vmatmul.mubr.bf16.gmra.mrb[0].mxu0 %v1583
      %v1669 = vpop.f32.mrb[0].mxu0
      %v1670 = vadd.f32 0.0, %v1669
      %v1671 = vpop.f32.mrb[0].mxu0
      %v1672 = vpop.f32.mrb[0].mxu0
      %v1673 = vadd.f32 0.0, %v1672
      %v1674 = vpop.f32.mrb[0].mxu0
      %1675 = vmatprep.mubr.bf16.mxu0 0
      %1676 = vmatmul.mubr.bf16.gmra.mrb[0].mxu0 %v1586
      %v1677 = vpop.f32.mrb[0].mxu0
      %v1678 = vadd.f32 0.0, %v1677
      %v1679 = vpop.f32.mrb[0].mxu0
      %v1680 = vpop.f32.mrb[0].mxu0
      %v1681 = vadd.f32 0.0, %v1680
      %v1682 = vpop.f32.mrb[0].mxu0
      %1683 = vmatprep.mubr.bf16.mxu0 0
      %1684 = vmatmul.mubr.bf16.gmra.mrb[0].mxu0 %v1589
      %v1685 = vpop.f32.mrb[0].mxu0
      %v1686 = vadd.f32 0.0, %v1685
      %v1687 = vpop.f32.mrb[0].mxu0
      %v1688 = vpop.f32.mrb[0].mxu0
      %v1689 = vadd.f32 0.0, %v1688
      %v1690 = vpop.f32.mrb[0].mxu0
      %1691 = vmatprep.mubr.bf16.mxu0 0
      %1692 = vmatmul.mubr.bf16.gmra.mrb[0].mxu0 %v1592
      %v1693 = vpop.f32.mrb[0].mxu0
      %v1694 = vadd.f32 0.0, %v1693
      %v1695 = vpop.f32.mrb[0].mxu0
      %v1696 = vpop.f32.mrb[0].mxu0
      %v1697 = vadd.f32 0.0, %v1696
      %v1698 = vpop.f32.mrb[0].mxu0
      %1699 = vmatprep.mubr.bf16.mxu0 0
      %1700 = vmatmul.mubr.bf16.gmra.mrb[0].mxu0 %v1595
      %v1701 = vpop.f32.mrb[0].mxu0
      %v1702 = vadd.f32 0.0, %v1701
      %v1703 = vpop.f32.mrb[0].mxu0
      %v1704 = vpop.f32.mrb[0].mxu0
      %v1705 = vadd.f32 0.0, %v1704
      %v1706 = vpop.f32.mrb[0].mxu0
      %1707 = vmatprep.mubr.bf16.mxu0 0
      %1708 = vmatmul.mubr.bf16.gmra.mrb[0].mxu0 %v1598
      %v1709 = vpop.f32.mrb[0].mxu0
      %v1710 = vadd.f32 0.0, %v1709
      %v1711 = vpop.f32.mrb[0].mxu0
      %v1712 = vpop.f32.mrb[0].mxu0
      %v1713 = vadd.f32 0.0, %v1712
      %v1714 = vpop.f32.mrb[0].mxu0
      %1715 = vmatprep.mubr.bf16.mxu0 0
      %1716 = vmatmul.mubr.bf16.gmra.mrb[0].mxu0 %v1601
      %v1717 = vpop.f32.mrb[0].mxu0
      %v1718 = vadd.f32 0.0, %v1717
      %v1719 = vpop.f32.mrb[0].mxu0
      %v1720 = vpop.f32.mrb[0].mxu0
      %v1721 = vadd.f32 0.0, %v1720
      %v1722 = vpop.f32.mrb[0].mxu0
      %1723 = vmatprep.mubr.bf16.mxu0 0
      %1724 = vmatmul.mubr.bf16.gmra.mrb[0].mxu0 %v1604
      %v1725 = vpop.f32.mrb[0].mxu0
      %v1726 = vadd.f32 0.0, %v1725
      %v1727 = vpop.f32.mrb[0].mxu0
      %v1728 = vpop.f32.mrb[0].mxu0
      %v1729 = vadd.f32 0.0, %v1728
      %v1730 = vpop.f32.mrb[0].mxu0
      %1731 = vmatprep.mubr.bf16.mxu0 0
      %1732 = vmatmul.mubr.bf16.gmra.mrb[0].mxu0 %v1607
      %v1733 = vpop.f32.mrb[0].mxu0
      %v1734 = vadd.f32 0.0, %v1733
      %v1735 = vpop.f32.mrb[0].mxu0
      %v1736 = vpop.f32.mrb[0].mxu0
      %v1737 = vadd.f32 0.0, %v1736
      %v1738 = vpop.f32.mrb[0].mxu0
      %1739 = vmatprep.mubr.bf16.mxu0 0
      %1740 = vmatmul.mubr.bf16.gmra.mrb[0].mxu0 %v1610
      %v1741 = vpop.f32.mrb[0].mxu0
      %v1742 = vadd.f32 0.0, %v1741
      %v1743 = vpop.f32.mrb[0].mxu0
      %v1744 = vpop.f32.mrb[0].mxu0
      %v1745 = vadd.f32 0.0, %v1744
      %v1746 = vpop.f32.mrb[0].mxu0
      %1747 = vmatprep.mubr.bf16.mxu0 0
      %1748 = vmatmul.mubr.bf16.gmra.mrb[0].mxu0 %v1613
      %v1749 = vpop.f32.mrb[0].mxu0
      %v1750 = vadd.f32 0.0, %v1749
      %v1751 = vpop.f32.mrb[0].mxu0
      %v1752 = vpop.f32.mrb[0].mxu0
      %v1753 = vadd.f32 0.0, %v1752
      %v1754 = vpop.f32.mrb[0].mxu0
      %1755 = vmatprep.mubr.bf16.mxu0 0
      %1756 = vmatmul.mubr.bf16.gmra.mrb[0].mxu0 %v1616
      %v1757 = vpop.f32.mrb[0].mxu0
      %v1758 = vadd.f32 0.0, %v1757
      %v1759 = vpop.f32.mrb[0].mxu0
      %v1760 = vpop.f32.mrb[0].mxu0
      %v1761 = vadd.f32 0.0, %v1760
      %v1762 = vpop.f32.mrb[0].mxu0
      %1763 = vmatprep.mubr.bf16.mxu0 0
      %1764 = vmatmul.mubr.bf16.gmra.mrb[0].mxu0 %v1619
      %v1765 = vpop.f32.mrb[0].mxu0
      %v1766 = vadd.f32 0.0, %v1765
      %v1767 = vpop.f32.mrb[0].mxu0
      %v1768 = vpop.f32.mrb[0].mxu0
      %v1769 = vadd.f32 0.0, %v1768
      %v1770 = vpop.f32.mrb[0].mxu0
      %1771 = vmatprep.mubr.bf16.mxu0 0
      %1772 = vmatmul.mubr.bf16.gmra.mrb[0].mxu0 %v1622
      %v1773 = vpop.f32.mrb[0].mxu0
      %v1774 = vadd.f32 0.0, %v1773
      %v1775 = vpop.f32.mrb[0].mxu0
      %v1776 = vpop.f32.mrb[0].mxu0
      %v1777 = vadd.f32 0.0, %v1776
      %v1778 = vpop.f32.mrb[0].mxu0
      %1779 = vmatprep.mubr.bf16.mxu0 0
      %1780 = vmatmul.mubr.bf16.gmra.mrb[0].mxu0 %v1625
      %v1781 = vpop.f32.mrb[0].mxu0
      %v1782 = vadd.f32 0.0, %v1781
      %v1783 = vpop.f32.mrb[0].mxu0
      %v1784 = vpop.f32.mrb[0].mxu0
      %v1785 = vadd.f32 0.0, %v1784
      %v1786 = vpop.f32.mrb[0].mxu0
      %1787 = vdwg.mxu0
      %v1820 = vunpack.c.l.b16 %v1054
      %v1821 = vunpack.c.l.b16 %v1055
      %v1822 = vunpack.c.l.b16 %v1056
      %v1823 = vunpack.c.l.b16 %v1057
      %v1824 = vunpack.c.l.b16 %v1058
      %v1825 = vunpack.c.l.b16 %v1059
      %v1826 = vunpack.c.l.b16 %v1060
      %v1827 = vunpack.c.l.b16 %v1061
      %v1828 = vunpack.c.l.b16 %v1062
      %v1829 = vunpack.c.l.b16 %v1063
      %v1830 = vunpack.c.l.b16 %v1064
      %v1831 = vunpack.c.l.b16 %v1065
      %v1832 = vunpack.c.l.b16 %v1066
      %v1833 = vunpack.c.l.b16 %v1067
      %v1834 = vunpack.c.l.b16 %v1068
      %v1835 = vunpack.c.l.b16 %v1069
      %v1836 = vunpack.c.l.b16 %v1070
      %v1837 = vunpack.c.l.b16 %v1071
      %v1838 = vunpack.c.l.b16 %v1072
      %v1839 = vunpack.c.l.b16 %v1073
      %v1840 = vunpack.c.l.b16 %v1074
      %v1841 = vunpack.c.l.b16 %v1075
      %v1842 = vunpack.c.l.b16 %v1076
      %v1843 = vunpack.c.l.b16 %v1077
      %v1844 = vunpack.c.l.b16 %v1078
      %v1845 = vunpack.c.l.b16 %v1079
      %v1846 = vunpack.c.l.b16 %v1080
      %v1847 = vunpack.c.l.b16 %v1081
      %v1848 = vunpack.c.l.b16 %v1082
      %v1849 = vunpack.c.l.b16 %v1083
      %v1850 = vunpack.c.l.b16 %v1084
      %v1851 = vunpack.c.l.b16 %v1085
      %v1852 = vpack.c.b16 %v1821, %v1820
      %v1853 = vpack.c.b16 %v1823, %v1822
      %v1854 = vpack.c.b16 %v1825, %v1824
      %v1855 = vpack.c.b16 %v1827, %v1826
      %v1856 = vpack.c.b16 %v1829, %v1828
      %v1857 = vpack.c.b16 %v1831, %v1830
      %v1858 = vpack.c.b16 %v1833, %v1832
      %v1859 = vpack.c.b16 %v1835, %v1834
      %v1860 = vpack.c.b16 %v1837, %v1836
      %v1861 = vpack.c.b16 %v1839, %v1838
      %v1862 = vpack.c.b16 %v1841, %v1840
      %v1863 = vpack.c.b16 %v1843, %v1842
      %v1864 = vpack.c.b16 %v1845, %v1844
      %v1865 = vpack.c.b16 %v1847, %v1846
      %v1866 = vpack.c.b16 %v1849, %v1848
      %v1867 = vpack.c.b16 %v1851, %v1850
      %v1876 = vunpack.c.l.b16 %v1086
      %v1877 = vunpack.c.l.b16 %v1087
      %v1878 = vunpack.c.l.b16 %v1088
      %v1879 = vunpack.c.l.b16 %v1089
      %v1880 = vunpack.c.l.b16 %v1090
      %v1881 = vunpack.c.l.b16 %v1091
      %v1882 = vunpack.c.l.b16 %v1092
      %v1883 = vunpack.c.l.b16 %v1093
      %v1884 = vpack.c.b16 %v1877, %v1876
      %v1885 = vpack.c.b16 %v1879, %v1878
      %v1886 = vpack.c.b16 %v1881, %v1880
      %v1887 = vpack.c.b16 %v1883, %v1882
      %v1893 = vsel %vm1578, %v1852, 0
      %v1896 = vsel %vm1578, %v1853, 0
      %v1899 = vsel %vm1578, %v1854, 0
      %v1902 = vsel %vm1578, %v1855, 0
      %v1905 = vsel %vm1578, %v1856, 0
      %v1908 = vsel %vm1578, %v1857, 0
      %v1911 = vsel %vm1578, %v1858, 0
      %v1914 = vsel %vm1578, %v1859, 0
      %v1917 = vsel %vm1578, %v1860, 0
      %v1920 = vsel %vm1578, %v1861, 0
      %v1923 = vsel %vm1578, %v1862, 0
      %v1926 = vsel %vm1578, %v1863, 0
      %v1929 = vsel %vm1578, %v1864, 0
      %v1932 = vsel %vm1578, %v1865, 0
      %v1935 = vsel %vm1578, %v1866, 0
      %v1938 = vsel %vm1578, %v1867, 0
      %1940 = vmatprep.subr.bf16.mxu0 0
      %1941 = vmatpush1.bf16.msra.mxu0 %v1884
      %1942 = vmatprep.subr.bf16.mxu0 0
      %1943 = vmatpush1.bf16.msra.mxu0 %v1885
      %1944 = vmatprep.subr.bf16.mxu0 0
      %1945 = vmatpush1.bf16.msra.mxu0 %v1886
      %1946 = vmatprep.subr.bf16.mxu0 0
      %1947 = vmatpush1.bf16.msra.mxu0 %v1887
      %1948 = vmatprep.subr.bf16.mxu0 0
      %1949 = vmatpush1.bf16.msra.mxu0 0
      %1950 = vmatprep.subr.bf16.mxu0 0
      %1951 = vmatpush1.bf16.msra.mxu0 0
      %1952 = vmatprep.subr.bf16.mxu0 0
      %1953 = vmatpush1.bf16.msra.mxu0 0
      %1954 = vmatprep.subr.bf16.mxu0 0
      %1955 = vmatpush1.bf16.msra.mxu0 0
      %1956 = vmatprep.subr.bf16.mxu0 0
      %1957 = vmatpush1.bf16.msra.mxu0 0
      %1958 = vmatprep.subr.bf16.mxu0 0
      %1959 = vmatpush1.bf16.msra.mxu0 0
      %1960 = vmatprep.subr.bf16.mxu0 0
      %1961 = vmatpush1.bf16.msra.mxu0 0
      %1962 = vmatprep.subr.bf16.mxu0 0
      %1963 = vmatpush1.bf16.msra.mxu0 0
      %1964 = vmatprep.subr.bf16.mxu0 0
      %1965 = vmatpush1.bf16.msra.mxu0 0
      %1966 = vmatprep.subr.bf16.mxu0 0
      %1967 = vmatpush1.bf16.msra.mxu0 0
      %1968 = vmatprep.subr.bf16.mxu0 0
      %1969 = vmatpush1.bf16.msra.mxu0 0
      %1970 = vmatprep.subr.bf16.mxu0 0
      %1971 = vmatpush1.bf16.msra.mxu0 0
      %1972 = vmatprep.mubr.bf16.mxu0 0
      %1973 = vmatmul.mubr.bf16.gmra.mrb[0].mxu0 %v1893
      %v1974 = vpop.f32.mrb[0].mxu0
      %v1975 = vadd.f32 %v1662, %v1974
      %v1976 = vpop.f32.mrb[0].mxu0
      %v1977 = vpop.f32.mrb[0].mxu0
      %v1978 = vadd.f32 %v1665, %v1977
      %v1979 = vpop.f32.mrb[0].mxu0
      %1980 = vmatprep.mubr.bf16.mxu0 0
      %1981 = vmatmul.mubr.bf16.gmra.mrb[0].mxu0 %v1896
      %v1982 = vpop.f32.mrb[0].mxu0
      %v1983 = vadd.f32 %v1670, %v1982
      %v1984 = vpop.f32.mrb[0].mxu0
      %v1985 = vpop.f32.mrb[0].mxu0
      %v1986 = vadd.f32 %v1673, %v1985
      %v1987 = vpop.f32.mrb[0].mxu0
      %1988 = vmatprep.mubr.bf16.mxu0 0
      %1989 = vmatmul.mubr.bf16.gmra.mrb[0].mxu0 %v1899
      %v1990 = vpop.f32.mrb[0].mxu0
      %v1991 = vadd.f32 %v1678, %v1990
      %v1992 = vpop.f32.mrb[0].mxu0
      %v1993 = vpop.f32.mrb[0].mxu0
      %v1994 = vadd.f32 %v1681, %v1993
      %v1995 = vpop.f32.mrb[0].mxu0
      %1996 = vmatprep.mubr.bf16.mxu0 0
      %1997 = vmatmul.mubr.bf16.gmra.mrb[0].mxu0 %v1902
      %v1998 = vpop.f32.mrb[0].mxu0
      %v1999 = vadd.f32 %v1686, %v1998
      %v2000 = vpop.f32.mrb[0].mxu0
      %v2001 = vpop.f32.mrb[0].mxu0
      %v2002 = vadd.f32 %v1689, %v2001
      %v2003 = vpop.f32.mrb[0].mxu0
      %2004 = vmatprep.mubr.bf16.mxu0 0
      %2005 = vmatmul.mubr.bf16.gmra.mrb[0].mxu0 %v1905
      %v2006 = vpop.f32.mrb[0].mxu0
      %v2007 = vadd.f32 %v1694, %v2006
      %v2008 = vpop.f32.mrb[0].mxu0
      %v2009 = vpop.f32.mrb[0].mxu0
      %v2010 = vadd.f32 %v1697, %v2009
      %v2011 = vpop.f32.mrb[0].mxu0
      %2012 = vmatprep.mubr.bf16.mxu0 0
      %2013 = vmatmul.mubr.bf16.gmra.mrb[0].mxu0 %v1908
      %v2014 = vpop.f32.mrb[0].mxu0
      %v2015 = vadd.f32 %v1702, %v2014
      %v2016 = vpop.f32.mrb[0].mxu0
      %v2017 = vpop.f32.mrb[0].mxu0
      %v2018 = vadd.f32 %v1705, %v2017
      %v2019 = vpop.f32.mrb[0].mxu0
      %2020 = vmatprep.mubr.bf16.mxu0 0
      %2021 = vmatmul.mubr.bf16.gmra.mrb[0].mxu0 %v1911
      %v2022 = vpop.f32.mrb[0].mxu0
      %v2023 = vadd.f32 %v1710, %v2022
      %v2024 = vpop.f32.mrb[0].mxu0
      %v2025 = vpop.f32.mrb[0].mxu0
      %v2026 = vadd.f32 %v1713, %v2025
      %v2027 = vpop.f32.mrb[0].mxu0
      %2028 = vmatprep.mubr.bf16.mxu0 0
      %2029 = vmatmul.mubr.bf16.gmra.mrb[0].mxu0 %v1914
      %v2030 = vpop.f32.mrb[0].mxu0
      %v2031 = vadd.f32 %v1718, %v2030
      %v2032 = vpop.f32.mrb[0].mxu0
      %v2033 = vpop.f32.mrb[0].mxu0
      %v2034 = vadd.f32 %v1721, %v2033
      %v2035 = vpop.f32.mrb[0].mxu0
      %2036 = vmatprep.mubr.bf16.mxu0 0
      %2037 = vmatmul.mubr.bf16.gmra.mrb[0].mxu0 %v1917
      %v2038 = vpop.f32.mrb[0].mxu0
      %v2039 = vadd.f32 %v1726, %v2038
      %v2040 = vpop.f32.mrb[0].mxu0
      %v2041 = vpop.f32.mrb[0].mxu0
      %v2042 = vadd.f32 %v1729, %v2041
      %v2043 = vpop.f32.mrb[0].mxu0
      %2044 = vmatprep.mubr.bf16.mxu0 0
      %2045 = vmatmul.mubr.bf16.gmra.mrb[0].mxu0 %v1920
      %v2046 = vpop.f32.mrb[0].mxu0
      %v2047 = vadd.f32 %v1734, %v2046
      %v2048 = vpop.f32.mrb[0].mxu0
      %v2049 = vpop.f32.mrb[0].mxu0
      %v2050 = vadd.f32 %v1737, %v2049
      %v2051 = vpop.f32.mrb[0].mxu0
      %2052 = vmatprep.mubr.bf16.mxu0 0
      %2053 = vmatmul.mubr.bf16.gmra.mrb[0].mxu0 %v1923
      %v2054 = vpop.f32.mrb[0].mxu0
      %v2055 = vadd.f32 %v1742, %v2054
      %v2056 = vpop.f32.mrb[0].mxu0
      %v2057 = vpop.f32.mrb[0].mxu0
      %v2058 = vadd.f32 %v1745, %v2057
      %v2059 = vpop.f32.mrb[0].mxu0
      %2060 = vmatprep.mubr.bf16.mxu0 0
      %2061 = vmatmul.mubr.bf16.gmra.mrb[0].mxu0 %v1926
      %v2062 = vpop.f32.mrb[0].mxu0
      %v2063 = vadd.f32 %v1750, %v2062
      %v2064 = vpop.f32.mrb[0].mxu0
      %v2065 = vpop.f32.mrb[0].mxu0
      %v2066 = vadd.f32 %v1753, %v2065
      %v2067 = vpop.f32.mrb[0].mxu0
      %2068 = vmatprep.mubr.bf16.mxu0 0
      %2069 = vmatmul.mubr.bf16.gmra.mrb[0].mxu0 %v1929
      %v2070 = vpop.f32.mrb[0].mxu0
      %v2071 = vadd.f32 %v1758, %v2070
      %v2072 = vpop.f32.mrb[0].mxu0
      %v2073 = vpop.f32.mrb[0].mxu0
      %v2074 = vadd.f32 %v1761, %v2073
      %v2075 = vpop.f32.mrb[0].mxu0
      %2076 = vmatprep.mubr.bf16.mxu0 0
      %2077 = vmatmul.mubr.bf16.gmra.mrb[0].mxu0 %v1932
      %v2078 = vpop.f32.mrb[0].mxu0
      %v2079 = vadd.f32 %v1766, %v2078
      %v2080 = vpop.f32.mrb[0].mxu0
      %v2081 = vpop.f32.mrb[0].mxu0
      %v2082 = vadd.f32 %v1769, %v2081
      %v2083 = vpop.f32.mrb[0].mxu0
      %2084 = vmatprep.mubr.bf16.mxu0 0
      %2085 = vmatmul.mubr.bf16.gmra.mrb[0].mxu0 %v1935
      %v2086 = vpop.f32.mrb[0].mxu0
      %v2087 = vadd.f32 %v1774, %v2086
      %v2088 = vpop.f32.mrb[0].mxu0
      %v2089 = vpop.f32.mrb[0].mxu0
      %v2090 = vadd.f32 %v1777, %v2089
      %v2091 = vpop.f32.mrb[0].mxu0
      %2092 = vmatprep.mubr.bf16.mxu0 0
      %2093 = vmatmul.mubr.bf16.gmra.mrb[0].mxu0 %v1938
      %v2094 = vpop.f32.mrb[0].mxu0
      %v2095 = vadd.f32 %v1782, %v2094
      %v2096 = vpop.f32.mrb[0].mxu0
      %v2097 = vpop.f32.mrb[0].mxu0
      %v2098 = vadd.f32 %v1785, %v2097
      %v2099 = vpop.f32.mrb[0].mxu0
      %2100 = vdwg.mxu0
      %v2101 = vld [vmem:[#allocation2] sm:$0xe]
      %v2102 = vld [vmem:[#allocation2 + $0xc] sm:$0xe]
      %v2103 = vld [vmem:[#allocation2 + $0x18] sm:$0xe]
      %v2104 = vld [vmem:[#allocation2 + $0x24] sm:$0xe]
      %v2105 = vld [vmem:[#allocation2 + $0x30] sm:$0xe]
      %v2106 = vld [vmem:[#allocation2 + $0x3c] sm:$0xe]
      %v2107 = vld [vmem:[#allocation2 + $0x48] sm:$0xe]
      %v2108 = vld [vmem:[#allocation2 + $0x54] sm:$0xe]
      %v2109 = vld [vmem:[#allocation2 + $0x60] sm:$0xe]
      %v2110 = vld [vmem:[#allocation2 + $0x6c] sm:$0xe]
      %v2111 = vld [vmem:[#allocation2 + $0x78] sm:$0xe]
      %v2112 = vld [vmem:[#allocation2 + $0x84] sm:$0xe]
      %v2113 = vld [vmem:[#allocation2 + $0x90] sm:$0xe]
      %v2114 = vld [vmem:[#allocation2 + $0x9c] sm:$0xe]
      %v2115 = vld [vmem:[#allocation2 + $0xa8] sm:$0xe]
      %v2116 = vld [vmem:[#allocation2 + $0xb4] sm:$0xe]
      %vm2149 = vcmask 1042432
      %vm2150 = vcmask 1046532
      %vm2151 = vmor %vm2149, %vm2150
      %v2152 = vrot.slane %v2101, 5
      %v2153 = vrot.slane %v2152, 4
      %v2154 = vrot.slane %v1055, 5
      %v2155 = vsel %vm2151, %v2153, %v2154
      %v2156 = vrot.slane %v2154, 4
      %v2157 = vrot.slane %v1094, 5
      %v2158 = vsel %vm2151, %v2156, %v2157
      %v2159 = vrot.slane %v2102, 5
      %v2160 = vrot.slane %v2159, 4
      %v2161 = vrot.slane %v1057, 5
      %v2162 = vsel %vm2151, %v2160, %v2161
      %v2163 = vrot.slane %v2161, 4
      %v2164 = vrot.slane %v1095, 5
      %v2165 = vsel %vm2151, %v2163, %v2164
      %v2166 = vrot.slane %v2103, 5
      %v2167 = vrot.slane %v2166, 4
      %v2168 = vrot.slane %v1059, 5
      %v2169 = vsel %vm2151, %v2167, %v2168
      %v2170 = vrot.slane %v2168, 4
      %v2171 = vrot.slane %v1096, 5
      %v2172 = vsel %vm2151, %v2170, %v2171
      %v2173 = vrot.slane %v2104, 5
      %v2174 = vrot.slane %v2173, 4
      %v2175 = vrot.slane %v1061, 5
      %v2176 = vsel %vm2151, %v2174, %v2175
      %v2177 = vrot.slane %v2175, 4
      %v2178 = vrot.slane %v1097, 5
      %v2179 = vsel %vm2151, %v2177, %v2178
      %v2180 = vrot.slane %v2105, 5
      %v2181 = vrot.slane %v2180, 4
      %v2182 = vrot.slane %v1063, 5
      %v2183 = vsel %vm2151, %v2181, %v2182
      %v2184 = vrot.slane %v2182, 4
      %v2185 = vrot.slane %v1098, 5
      %v2186 = vsel %vm2151, %v2184, %v2185
      %v2187 = vrot.slane %v2106, 5
      %v2188 = vrot.slane %v2187, 4
      %v2189 = vrot.slane %v1065, 5
      %v2190 = vsel %vm2151, %v2188, %v2189
      %v2191 = vrot.slane %v2189, 4
      %v2192 = vrot.slane %v1099, 5
      %v2193 = vsel %vm2151, %v2191, %v2192
      %v2194 = vrot.slane %v2107, 5
      %v2195 = vrot.slane %v2194, 4
      %v2196 = vrot.slane %v1067, 5
      %v2197 = vsel %vm2151, %v2195, %v2196
      %v2198 = vrot.slane %v2196, 4
      %v2199 = vrot.slane %v1100, 5
      %v2200 = vsel %vm2151, %v2198, %v2199
      %v2201 = vrot.slane %v2108, 5
      %v2202 = vrot.slane %v2201, 4
      %v2203 = vrot.slane %v1069, 5
      %v2204 = vsel %vm2151, %v2202, %v2203
      %v2205 = vrot.slane %v2203, 4
      %v2206 = vrot.slane %v1101, 5
      %v2207 = vsel %vm2151, %v2205, %v2206
      %v2208 = vrot.slane %v2109, 5
      %v2209 = vrot.slane %v2208, 4
      %v2210 = vrot.slane %v1071, 5
      %v2211 = vsel %vm2151, %v2209, %v2210
      %v2212 = vrot.slane %v2210, 4
      %v2213 = vrot.slane %v1102, 5
      %v2214 = vsel %vm2151, %v2212, %v2213
      %v2215 = vrot.slane %v2110, 5
      %v2216 = vrot.slane %v2215, 4
      %v2217 = vrot.slane %v1073, 5
      %v2218 = vsel %vm2151, %v2216, %v2217
      %v2219 = vrot.slane %v2217, 4
      %v2220 = vrot.slane %v1103, 5
      %v2221 = vsel %vm2151, %v2219, %v2220
      %v2222 = vrot.slane %v2111, 5
      %v2223 = vrot.slane %v2222, 4
      %v2224 = vrot.slane %v1075, 5
      %v2225 = vsel %vm2151, %v2223, %v2224
      %v2226 = vrot.slane %v2224, 4
      %v2227 = vrot.slane %v1104, 5
      %v2228 = vsel %vm2151, %v2226, %v2227
      %v2229 = vrot.slane %v2112, 5
      %v2230 = vrot.slane %v2229, 4
      %v2231 = vrot.slane %v1077, 5
      %v2232 = vsel %vm2151, %v2230, %v2231
      %v2233 = vrot.slane %v2231, 4
      %v2234 = vrot.slane %v1105, 5
      %v2235 = vsel %vm2151, %v2233, %v2234
      %v2236 = vrot.slane %v2113, 5
      %v2237 = vrot.slane %v2236, 4
      %v2238 = vrot.slane %v1079, 5
      %v2239 = vsel %vm2151, %v2237, %v2238
      %v2240 = vrot.slane %v2238, 4
      %v2241 = vrot.slane %v1106, 5
      %v2242 = vsel %vm2151, %v2240, %v2241
      %v2243 = vrot.slane %v2114, 5
      %v2244 = vrot.slane %v2243, 4
      %v2245 = vrot.slane %v1081, 5
      %v2246 = vsel %vm2151, %v2244, %v2245
      %v2247 = vrot.slane %v2245, 4
      %v2248 = vrot.slane %v1107, 5
      %v2249 = vsel %vm2151, %v2247, %v2248
      %v2250 = vrot.slane %v2115, 5
      %v2251 = vrot.slane %v2250, 4
      %v2252 = vrot.slane %v1083, 5
      %v2253 = vsel %vm2151, %v2251, %v2252
      %v2254 = vrot.slane %v2252, 4
      %v2255 = vrot.slane %v1108, 5
      %v2256 = vsel %vm2151, %v2254, %v2255
      %v2257 = vrot.slane %v2116, 5
      %v2258 = vrot.slane %v2257, 4
      %v2259 = vrot.slane %v1085, 5
      %v2260 = vsel %vm2151, %v2258, %v2259
      %v2261 = vrot.slane %v2259, 4
      %v2262 = vrot.slane %v1109, 5
      %v2263 = vsel %vm2151, %v2261, %v2262
      %s2264 = scalar_lea.vmem %s3, 64
      %v2265 = vld [vmem:[%s2264] sm:$0xf]
      %v2266 = vld [vmem:[%s2264 + $0x4] sm:$0xf]
      %v2267 = vld [vmem:[%s2264 + $0x8] sm:$0xf]
      %v2268 = vld [vmem:[%s2264 + $0xc] sm:$0xf]
      %v2269 = vld [vmem:[%s2264 + $0x10] sm:$0xf]
      %v2270 = vld [vmem:[%s2264 + $0x14] sm:$0xf]
      %v2271 = vld [vmem:[%s2264 + $0x18] sm:$0xf]
      %v2272 = vld [vmem:[%s2264 + $0x1c] sm:$0xf]
      %v2273 = vunpack.c.l.b16 %v2155
      %v2274 = vunpack.c.l.b16 %v2158
      %v2275 = vunpack.c.l.b16 %v2162
      %v2276 = vunpack.c.l.b16 %v2165
      %v2277 = vunpack.c.l.b16 %v2169
      %v2278 = vunpack.c.l.b16 %v2172
      %v2279 = vunpack.c.l.b16 %v2176
      %v2280 = vunpack.c.l.b16 %v2179
      %v2281 = vunpack.c.l.b16 %v2183
      %v2282 = vunpack.c.l.b16 %v2186
      %v2283 = vunpack.c.l.b16 %v2190
      %v2284 = vunpack.c.l.b16 %v2193
      %v2285 = vunpack.c.l.b16 %v2197
      %v2286 = vunpack.c.l.b16 %v2200
      %v2287 = vunpack.c.l.b16 %v2204
      %v2288 = vunpack.c.l.b16 %v2207
      %v2289 = vunpack.c.l.b16 %v2211
      %v2290 = vunpack.c.l.b16 %v2214
      %v2291 = vunpack.c.l.b16 %v2218
      %v2292 = vunpack.c.l.b16 %v2221
      %v2293 = vunpack.c.l.b16 %v2225
      %v2294 = vunpack.c.l.b16 %v2228
      %v2295 = vunpack.c.l.b16 %v2232
      %v2296 = vunpack.c.l.b16 %v2235
      %v2297 = vunpack.c.l.b16 %v2239
      %v2298 = vunpack.c.l.b16 %v2242
      %v2299 = vunpack.c.l.b16 %v2246
      %v2300 = vunpack.c.l.b16 %v2249
      %v2301 = vunpack.c.l.b16 %v2253
      %v2302 = vunpack.c.l.b16 %v2256
      %v2303 = vunpack.c.l.b16 %v2260
      %v2304 = vunpack.c.l.b16 %v2263
      %v2305 = vpack.c.b16 %v2274, %v2273
      %v2306 = vpack.c.b16 %v2276, %v2275
      %v2307 = vpack.c.b16 %v2278, %v2277
      %v2308 = vpack.c.b16 %v2280, %v2279
      %v2309 = vpack.c.b16 %v2282, %v2281
      %v2310 = vpack.c.b16 %v2284, %v2283
      %v2311 = vpack.c.b16 %v2286, %v2285
      %v2312 = vpack.c.b16 %v2288, %v2287
      %v2313 = vpack.c.b16 %v2290, %v2289
      %v2314 = vpack.c.b16 %v2292, %v2291
      %v2315 = vpack.c.b16 %v2294, %v2293
      %v2316 = vpack.c.b16 %v2296, %v2295
      %v2317 = vpack.c.b16 %v2298, %v2297
      %v2318 = vpack.c.b16 %v2300, %v2299
      %v2319 = vpack.c.b16 %v2302, %v2301
      %v2320 = vpack.c.b16 %v2304, %v2303
      %v2329 = vunpack.c.l.b16 %v2265
      %v2330 = vunpack.c.l.b16 %v2266
      %v2331 = vunpack.c.l.b16 %v2267
      %v2332 = vunpack.c.l.b16 %v2268
      %v2333 = vunpack.c.l.b16 %v2269
      %v2334 = vunpack.c.l.b16 %v2270
      %v2335 = vunpack.c.l.b16 %v2271
      %v2336 = vunpack.c.l.b16 %v2272
      %v2337 = vpack.c.b16 %v2330, %v2329
      %v2338 = vpack.c.b16 %v2332, %v2331
      %v2339 = vpack.c.b16 %v2334, %v2333
      %v2340 = vpack.c.b16 %v2336, %v2335
      %v2346 = vsel %vm1578, %v2305, 0
      %v2349 = vsel %vm1578, %v2306, 0
      %v2352 = vsel %vm1578, %v2307, 0
      %v2355 = vsel %vm1578, %v2308, 0
      %v2358 = vsel %vm1578, %v2309, 0
      %v2361 = vsel %vm1578, %v2310, 0
      %v2364 = vsel %vm1578, %v2311, 0
      %v2367 = vsel %vm1578, %v2312, 0
      %v2370 = vsel %vm1578, %v2313, 0
      %v2373 = vsel %vm1578, %v2314, 0
      %v2376 = vsel %vm1578, %v2315, 0
      %v2379 = vsel %vm1578, %v2316, 0
      %v2382 = vsel %vm1578, %v2317, 0
      %v2385 = vsel %vm1578, %v2318, 0
      %v2388 = vsel %vm1578, %v2319, 0
      %v2391 = vsel %vm1578, %v2320, 0
      %2393 = vmatprep.subr.bf16.mxu0 0
      %2394 = vmatpush1.bf16.msra.mxu0 %v2337
      %2395 = vmatprep.subr.bf16.mxu0 0
      %2396 = vmatpush1.bf16.msra.mxu0 %v2338
      %2397 = vmatprep.subr.bf16.mxu0 0
      %2398 = vmatpush1.bf16.msra.mxu0 %v2339
      %2399 = vmatprep.subr.bf16.mxu0 0
      %2400 = vmatpush1.bf16.msra.mxu0 %v2340
      %2401 = vmatprep.subr.bf16.mxu0 0
      %2402 = vmatpush1.bf16.msra.mxu0 0
      %2403 = vmatprep.subr.bf16.mxu0 0
      %2404 = vmatpush1.bf16.msra.mxu0 0
      %2405 = vmatprep.subr.bf16.mxu0 0
      %2406 = vmatpush1.bf16.msra.mxu0 0
      %2407 = vmatprep.subr.bf16.mxu0 0
      %2408 = vmatpush1.bf16.msra.mxu0 0
      %2409 = vmatprep.subr.bf16.mxu0 0
      %2410 = vmatpush1.bf16.msra.mxu0 0
      %2411 = vmatprep.subr.bf16.mxu0 0
      %2412 = vmatpush1.bf16.msra.mxu0 0
      %2413 = vmatprep.subr.bf16.mxu0 0
      %2414 = vmatpush1.bf16.msra.mxu0 0
      %2415 = vmatprep.subr.bf16.mxu0 0
      %2416 = vmatpush1.bf16.msra.mxu0 0
      %2417 = vmatprep.subr.bf16.mxu0 0
      %2418 = vmatpush1.bf16.msra.mxu0 0
      %2419 = vmatprep.subr.bf16.mxu0 0
      %2420 = vmatpush1.bf16.msra.mxu0 0
      %2421 = vmatprep.subr.bf16.mxu0 0
      %2422 = vmatpush1.bf16.msra.mxu0 0
      %2423 = vmatprep.subr.bf16.mxu0 0
      %2424 = vmatpush1.bf16.msra.mxu0 0
      %2425 = vmatprep.mubr.bf16.mxu0 0
      %2426 = vmatmul.mubr.bf16.gmra.mrb[0].mxu0 %v2346
      %v2427 = vpop.f32.mrb[0].mxu0
      %v2428 = vadd.f32 0.0, %v2427
      %v2429 = vpop.f32.mrb[0].mxu0
      %v2430 = vpop.f32.mrb[0].mxu0
      %v2431 = vadd.f32 0.0, %v2430
      %v2432 = vpop.f32.mrb[0].mxu0
      %2433 = vmatprep.mubr.bf16.mxu0 0
      %2434 = vmatmul.mubr.bf16.gmra.mrb[0].mxu0 %v2349
      %v2435 = vpop.f32.mrb[0].mxu0
      %v2436 = vadd.f32 0.0, %v2435
      %v2437 = vpop.f32.mrb[0].mxu0
      %v2438 = vpop.f32.mrb[0].mxu0
      %v2439 = vadd.f32 0.0, %v2438
      %v2440 = vpop.f32.mrb[0].mxu0
      %2441 = vmatprep.mubr.bf16.mxu0 0
      %2442 = vmatmul.mubr.bf16.gmra.mrb[0].mxu0 %v2352
      %v2443 = vpop.f32.mrb[0].mxu0
      %v2444 = vadd.f32 0.0, %v2443
      %v2445 = vpop.f32.mrb[0].mxu0
      %v2446 = vpop.f32.mrb[0].mxu0
      %v2447 = vadd.f32 0.0, %v2446
      %v2448 = vpop.f32.mrb[0].mxu0
      %2449 = vmatprep.mubr.bf16.mxu0 0
      %2450 = vmatmul.mubr.bf16.gmra.mrb[0].mxu0 %v2355
      %v2451 = vpop.f32.mrb[0].mxu0
      %v2452 = vadd.f32 0.0, %v2451
      %v2453 = vpop.f32.mrb[0].mxu0
      %v2454 = vpop.f32.mrb[0].mxu0
      %v2455 = vadd.f32 0.0, %v2454
      %v2456 = vpop.f32.mrb[0].mxu0
      %2457 = vmatprep.mubr.bf16.mxu0 0
      %2458 = vmatmul.mubr.bf16.gmra.mrb[0].mxu0 %v2358
      %v2459 = vpop.f32.mrb[0].mxu0
      %v2460 = vadd.f32 0.0, %v2459
      %v2461 = vpop.f32.mrb[0].mxu0
      %v2462 = vpop.f32.mrb[0].mxu0
      %v2463 = vadd.f32 0.0, %v2462
      %v2464 = vpop.f32.mrb[0].mxu0
      %2465 = vmatprep.mubr.bf16.mxu0 0
      %2466 = vmatmul.mubr.bf16.gmra.mrb[0].mxu0 %v2361
      %v2467 = vpop.f32.mrb[0].mxu0
      %v2468 = vadd.f32 0.0, %v2467
      %v2469 = vpop.f32.mrb[0].mxu0
      %v2470 = vpop.f32.mrb[0].mxu0
      %v2471 = vadd.f32 0.0, %v2470
      %v2472 = vpop.f32.mrb[0].mxu0
      %2473 = vmatprep.mubr.bf16.mxu0 0
      %2474 = vmatmul.mubr.bf16.gmra.mrb[0].mxu0 %v2364
      %v2475 = vpop.f32.mrb[0].mxu0
      %v2476 = vadd.f32 0.0, %v2475
      %v2477 = vpop.f32.mrb[0].mxu0
      %v2478 = vpop.f32.mrb[0].mxu0
      %v2479 = vadd.f32 0.0, %v2478
      %v2480 = vpop.f32.mrb[0].mxu0
      %2481 = vmatprep.mubr.bf16.mxu0 0
      %2482 = vmatmul.mubr.bf16.gmra.mrb[0].mxu0 %v2367
      %v2483 = vpop.f32.mrb[0].mxu0
      %v2484 = vadd.f32 0.0, %v2483
      %v2485 = vpop.f32.mrb[0].mxu0
      %v2486 = vpop.f32.mrb[0].mxu0
      %v2487 = vadd.f32 0.0, %v2486
      %v2488 = vpop.f32.mrb[0].mxu0
      %2489 = vmatprep.mubr.bf16.mxu0 0
      %2490 = vmatmul.mubr.bf16.gmra.mrb[0].mxu0 %v2370
      %v2491 = vpop.f32.mrb[0].mxu0
      %v2492 = vadd.f32 0.0, %v2491
      %v2493 = vpop.f32.mrb[0].mxu0
      %v2494 = vpop.f32.mrb[0].mxu0
      %v2495 = vadd.f32 0.0, %v2494
      %v2496 = vpop.f32.mrb[0].mxu0
      %2497 = vmatprep.mubr.bf16.mxu0 0
      %2498 = vmatmul.mubr.bf16.gmra.mrb[0].mxu0 %v2373
      %v2499 = vpop.f32.mrb[0].mxu0
      %v2500 = vadd.f32 0.0, %v2499
      %v2501 = vpop.f32.mrb[0].mxu0
      %v2502 = vpop.f32.mrb[0].mxu0
      %v2503 = vadd.f32 0.0, %v2502
      %v2504 = vpop.f32.mrb[0].mxu0
      %2505 = vmatprep.mubr.bf16.mxu0 0
      %2506 = vmatmul.mubr.bf16.gmra.mrb[0].mxu0 %v2376
      %v2507 = vpop.f32.mrb[0].mxu0
      %v2508 = vadd.f32 0.0, %v2507
      %v2509 = vpop.f32.mrb[0].mxu0
      %v2510 = vpop.f32.mrb[0].mxu0
      %v2511 = vadd.f32 0.0, %v2510
      %v2512 = vpop.f32.mrb[0].mxu0
      %2513 = vmatprep.mubr.bf16.mxu0 0
      %2514 = vmatmul.mubr.bf16.gmra.mrb[0].mxu0 %v2379
      %v2515 = vpop.f32.mrb[0].mxu0
      %v2516 = vadd.f32 0.0, %v2515
      %v2517 = vpop.f32.mrb[0].mxu0
      %v2518 = vpop.f32.mrb[0].mxu0
      %v2519 = vadd.f32 0.0, %v2518
      %v2520 = vpop.f32.mrb[0].mxu0
      %2521 = vmatprep.mubr.bf16.mxu0 0
      %2522 = vmatmul.mubr.bf16.gmra.mrb[0].mxu0 %v2382
      %v2523 = vpop.f32.mrb[0].mxu0
      %v2524 = vadd.f32 0.0, %v2523
      %v2525 = vpop.f32.mrb[0].mxu0
      %v2526 = vpop.f32.mrb[0].mxu0
      %v2527 = vadd.f32 0.0, %v2526
      %v2528 = vpop.f32.mrb[0].mxu0
      %2529 = vmatprep.mubr.bf16.mxu0 0
      %2530 = vmatmul.mubr.bf16.gmra.mrb[0].mxu0 %v2385
      %v2531 = vpop.f32.mrb[0].mxu0
      %v2532 = vadd.f32 0.0, %v2531
      %v2533 = vpop.f32.mrb[0].mxu0
      %v2534 = vpop.f32.mrb[0].mxu0
      %v2535 = vadd.f32 0.0, %v2534
      %v2536 = vpop.f32.mrb[0].mxu0
      %2537 = vmatprep.mubr.bf16.mxu0 0
      %2538 = vmatmul.mubr.bf16.gmra.mrb[0].mxu0 %v2388
      %v2539 = vpop.f32.mrb[0].mxu0
      %v2540 = vadd.f32 0.0, %v2539
      %v2541 = vpop.f32.mrb[0].mxu0
      %v2542 = vpop.f32.mrb[0].mxu0
      %v2543 = vadd.f32 0.0, %v2542
      %v2544 = vpop.f32.mrb[0].mxu0
      %2545 = vmatprep.mubr.bf16.mxu0 0
      %2546 = vmatmul.mubr.bf16.gmra.mrb[0].mxu0 %v2391
      %v2547 = vpop.f32.mrb[0].mxu0
      %v2548 = vadd.f32 0.0, %v2547
      %v2549 = vpop.f32.mrb[0].mxu0
      %v2550 = vpop.f32.mrb[0].mxu0
      %v2551 = vadd.f32 0.0, %v2550
      %v2552 = vpop.f32.mrb[0].mxu0
      %2553 = vdwg.mxu0
      %v2554 = vadd.f32 %v1975, %v2428
      %v2555 = vadd.f32 %v1978, %v2431
      %v2556 = vadd.f32 %v1983, %v2436
      %v2557 = vadd.f32 %v1986, %v2439
      %v2558 = vadd.f32 %v1991, %v2444
      %v2559 = vadd.f32 %v1994, %v2447
      %v2560 = vadd.f32 %v1999, %v2452
      %v2561 = vadd.f32 %v2002, %v2455
      %v2562 = vadd.f32 %v2007, %v2460
      %v2563 = vadd.f32 %v2010, %v2463
      %v2564 = vadd.f32 %v2015, %v2468
      %v2565 = vadd.f32 %v2018, %v2471
      %v2566 = vadd.f32 %v2023, %v2476
      %v2567 = vadd.f32 %v2026, %v2479
      %v2568 = vadd.f32 %v2031, %v2484
      %v2569 = vadd.f32 %v2034, %v2487
      %v2570 = vadd.f32 %v2039, %v2492
      %v2571 = vadd.f32 %v2042, %v2495
      %v2572 = vadd.f32 %v2047, %v2500
      %v2573 = vadd.f32 %v2050, %v2503
      %v2574 = vadd.f32 %v2055, %v2508
      %v2575 = vadd.f32 %v2058, %v2511
      %v2576 = vadd.f32 %v2063, %v2516
      %v2577 = vadd.f32 %v2066, %v2519
      %v2578 = vadd.f32 %v2071, %v2524
      %v2579 = vadd.f32 %v2074, %v2527
      %v2580 = vadd.f32 %v2079, %v2532
      %v2581 = vadd.f32 %v2082, %v2535
      %v2582 = vadd.f32 %v2087, %v2540
      %v2583 = vadd.f32 %v2090, %v2543
      %v2584 = vadd.f32 %v2095, %v2548
      %v2585 = vadd.f32 %v2098, %v2551
      %v2586 = vld [vmem:[%s246] sm:$0xf]
      %v2587 = vld [vmem:[%s246 + $0x4] sm:$0xf]
      %v2588 = vld [vmem:[%s246 + $0xc] sm:$0xf]
      %v2589 = vld [vmem:[%s246 + $0x10] sm:$0xf]
      %v2590 = vld [vmem:[%s246 + $0x18] sm:$0xf]
      %v2591 = vld [vmem:[%s246 + $0x1c] sm:$0xf]
      %v2592 = vld [vmem:[%s246 + $0x24] sm:$0xf]
      %v2593 = vld [vmem:[%s246 + $0x28] sm:$0xf]
      %v2594 = vld [vmem:[%s246 + $0x30] sm:$0xf]
      %v2595 = vld [vmem:[%s246 + $0x34] sm:$0xf]
      %v2596 = vld [vmem:[%s246 + $0x3c] sm:$0xf]
      %v2597 = vld [vmem:[%s246 + $0x40] sm:$0xf]
      %v2598 = vld [vmem:[%s246 + $0x48] sm:$0xf]
      %v2599 = vld [vmem:[%s246 + $0x4c] sm:$0xf]
      %v2600 = vld [vmem:[%s246 + $0x54] sm:$0xf]
      %v2601 = vld [vmem:[%s246 + $0x58] sm:$0xf]
      %v2602 = vld [vmem:[%s246 + $0x60] sm:$0xf]
      %v2603 = vld [vmem:[%s246 + $0x64] sm:$0xf]
      %v2604 = vld [vmem:[%s246 + $0x6c] sm:$0xf]
      %v2605 = vld [vmem:[%s246 + $0x70] sm:$0xf]
      %v2606 = vld [vmem:[%s246 + $0x78] sm:$0xf]
      %v2607 = vld [vmem:[%s246 + $0x7c] sm:$0xf]
      %v2608 = vld [vmem:[%s246 + $0x84] sm:$0xf]
      %v2609 = vld [vmem:[%s246 + $0x88] sm:$0xf]
      %v2610 = vld [vmem:[%s246 + $0x90] sm:$0xf]
      %v2611 = vld [vmem:[%s246 + $0x94] sm:$0xf]
      %v2612 = vld [vmem:[%s246 + $0x9c] sm:$0xf]
      %v2613 = vld [vmem:[%s246 + $0xa0] sm:$0xf]
      %v2614 = vld [vmem:[%s246 + $0xa8] sm:$0xf]
      %v2615 = vld [vmem:[%s246 + $0xac] sm:$0xf]
      %v2616 = vld [vmem:[%s246 + $0xb4] sm:$0xf]
      %v2617 = vld [vmem:[%s246 + $0xb8] sm:$0xf]
      %s2618 = scalar_lea.vmem %s3, 96
      %v2619 = vld [vmem:[%s2618] sm:$0xf]
      %v2620 = vld [vmem:[%s2618 + $0x4] sm:$0xf]
      %v2621 = vld [vmem:[%s2618 + $0x8] sm:$0xf]
      %v2622 = vld [vmem:[%s2618 + $0xc] sm:$0xf]
      %v2623 = vld [vmem:[%s2618 + $0x10] sm:$0xf]
      %v2624 = vld [vmem:[%s2618 + $0x14] sm:$0xf]
      %v2625 = vld [vmem:[%s2618 + $0x18] sm:$0xf]
      %v2626 = vld [vmem:[%s2618 + $0x1c] sm:$0xf]
      %v2659 = vunpack.c.l.b16 %v2586
      %v2660 = vunpack.c.l.b16 %v2587
      %v2661 = vunpack.c.l.b16 %v2588
      %v2662 = vunpack.c.l.b16 %v2589
      %v2663 = vunpack.c.l.b16 %v2590
      %v2664 = vunpack.c.l.b16 %v2591
      %v2665 = vunpack.c.l.b16 %v2592
      %v2666 = vunpack.c.l.b16 %v2593
      %v2667 = vunpack.c.l.b16 %v2594
      %v2668 = vunpack.c.l.b16 %v2595
      %v2669 = vunpack.c.l.b16 %v2596
      %v2670 = vunpack.c.l.b16 %v2597
      %v2671 = vunpack.c.l.b16 %v2598
      %v2672 = vunpack.c.l.b16 %v2599
      %v2673 = vunpack.c.l.b16 %v2600
      %v2674 = vunpack.c.l.b16 %v2601
      %v2675 = vunpack.c.l.b16 %v2602
      %v2676 = vunpack.c.l.b16 %v2603
      %v2677 = vunpack.c.l.b16 %v2604
      %v2678 = vunpack.c.l.b16 %v2605
      %v2679 = vunpack.c.l.b16 %v2606
      %v2680 = vunpack.c.l.b16 %v2607
      %v2681 = vunpack.c.l.b16 %v2608
      %v2682 = vunpack.c.l.b16 %v2609
      %v2683 = vunpack.c.l.b16 %v2610
      %v2684 = vunpack.c.l.b16 %v2611
      %v2685 = vunpack.c.l.b16 %v2612
      %v2686 = vunpack.c.l.b16 %v2613
      %v2687 = vunpack.c.l.b16 %v2614
      %v2688 = vunpack.c.l.b16 %v2615
      %v2689 = vunpack.c.l.b16 %v2616
      %v2690 = vunpack.c.l.b16 %v2617
      %v2691 = vpack.c.b16 %v2660, %v2659
      %v2692 = vpack.c.b16 %v2662, %v2661
      %v2693 = vpack.c.b16 %v2664, %v2663
      %v2694 = vpack.c.b16 %v2666, %v2665
      %v2695 = vpack.c.b16 %v2668, %v2667
      %v2696 = vpack.c.b16 %v2670, %v2669
      %v2697 = vpack.c.b16 %v2672, %v2671
      %v2698 = vpack.c.b16 %v2674, %v2673
      %v2699 = vpack.c.b16 %v2676, %v2675
      %v2700 = vpack.c.b16 %v2678, %v2677
      %v2701 = vpack.c.b16 %v2680, %v2679
      %v2702 = vpack.c.b16 %v2682, %v2681
      %v2703 = vpack.c.b16 %v2684, %v2683
      %v2704 = vpack.c.b16 %v2686, %v2685
      %v2705 = vpack.c.b16 %v2688, %v2687
      %v2706 = vpack.c.b16 %v2690, %v2689
      %v2715 = vunpack.c.l.b16 %v2619
      %v2716 = vunpack.c.l.b16 %v2620
      %v2717 = vunpack.c.l.b16 %v2621
      %v2718 = vunpack.c.l.b16 %v2622
      %v2719 = vunpack.c.l.b16 %v2623
      %v2720 = vunpack.c.l.b16 %v2624
      %v2721 = vunpack.c.l.b16 %v2625
      %v2722 = vunpack.c.l.b16 %v2626
      %v2723 = vpack.c.b16 %v2716, %v2715
      %v2724 = vpack.c.b16 %v2718, %v2717
      %v2725 = vpack.c.b16 %v2720, %v2719
      %v2726 = vpack.c.b16 %v2722, %v2721
      %v2732 = vsel %vm1578, %v2691, 0
      %v2735 = vsel %vm1578, %v2692, 0
      %v2738 = vsel %vm1578, %v2693, 0
      %v2741 = vsel %vm1578, %v2694, 0
      %v2744 = vsel %vm1578, %v2695, 0
      %v2747 = vsel %vm1578, %v2696, 0
      %v2750 = vsel %vm1578, %v2697, 0
      %v2753 = vsel %vm1578, %v2698, 0
      %v2756 = vsel %vm1578, %v2699, 0
      %v2759 = vsel %vm1578, %v2700, 0
      %v2762 = vsel %vm1578, %v2701, 0
      %v2765 = vsel %vm1578, %v2702, 0
      %v2768 = vsel %vm1578, %v2703, 0
      %v2771 = vsel %vm1578, %v2704, 0
      %v2774 = vsel %vm1578, %v2705, 0
      %v2777 = vsel %vm1578, %v2706, 0
      %2779 = vmatprep.subr.bf16.mxu0 0
      %2780 = vmatpush1.bf16.msra.mxu0 %v2723
      %2781 = vmatprep.subr.bf16.mxu0 0
      %2782 = vmatpush1.bf16.msra.mxu0 %v2724
      %2783 = vmatprep.subr.bf16.mxu0 0
      %2784 = vmatpush1.bf16.msra.mxu0 %v2725
      %2785 = vmatprep.subr.bf16.mxu0 0
      %2786 = vmatpush1.bf16.msra.mxu0 %v2726
      %2787 = vmatprep.subr.bf16.mxu0 0
      %2788 = vmatpush1.bf16.msra.mxu0 0
      %2789 = vmatprep.subr.bf16.mxu0 0
      %2790 = vmatpush1.bf16.msra.mxu0 0
      %2791 = vmatprep.subr.bf16.mxu0 0
      %2792 = vmatpush1.bf16.msra.mxu0 0
      %2793 = vmatprep.subr.bf16.mxu0 0
      %2794 = vmatpush1.bf16.msra.mxu0 0
      %2795 = vmatprep.subr.bf16.mxu0 0
      %2796 = vmatpush1.bf16.msra.mxu0 0
      %2797 = vmatprep.subr.bf16.mxu0 0
      %2798 = vmatpush1.bf16.msra.mxu0 0
      %2799 = vmatprep.subr.bf16.mxu0 0
      %2800 = vmatpush1.bf16.msra.mxu0 0
      %2801 = vmatprep.subr.bf16.mxu0 0
      %2802 = vmatpush1.bf16.msra.mxu0 0
      %2803 = vmatprep.subr.bf16.mxu0 0
      %2804 = vmatpush1.bf16.msra.mxu0 0
      %2805 = vmatprep.subr.bf16.mxu0 0
      %2806 = vmatpush1.bf16.msra.mxu0 0
      %2807 = vmatprep.subr.bf16.mxu0 0
      %2808 = vmatpush1.bf16.msra.mxu0 0
      %2809 = vmatprep.subr.bf16.mxu0 0
      %2810 = vmatpush1.bf16.msra.mxu0 0
      %2811 = vmatprep.mubr.bf16.mxu0 0
      %2812 = vmatmul.mubr.bf16.gmra.mrb[0].mxu0 %v2732
      %v2813 = vpop.f32.mrb[0].mxu0
      %v2814 = vadd.f32 0.0, %v2813
      %v2815 = vpop.f32.mrb[0].mxu0
      %v2816 = vpop.f32.mrb[0].mxu0
      %v2817 = vadd.f32 0.0, %v2816
      %v2818 = vpop.f32.mrb[0].mxu0
      %2819 = vmatprep.mubr.bf16.mxu0 0
      %2820 = vmatmul.mubr.bf16.gmra.mrb[0].mxu0 %v2735
      %v2821 = vpop.f32.mrb[0].mxu0
      %v2822 = vadd.f32 0.0, %v2821
      %v2823 = vpop.f32.mrb[0].mxu0
      %v2824 = vpop.f32.mrb[0].mxu0
      %v2825 = vadd.f32 0.0, %v2824
      %v2826 = vpop.f32.mrb[0].mxu0
      %2827 = vmatprep.mubr.bf16.mxu0 0
      %2828 = vmatmul.mubr.bf16.gmra.mrb[0].mxu0 %v2738
      %v2829 = vpop.f32.mrb[0].mxu0
      %v2830 = vadd.f32 0.0, %v2829
      %v2831 = vpop.f32.mrb[0].mxu0
      %v2832 = vpop.f32.mrb[0].mxu0
      %v2833 = vadd.f32 0.0, %v2832
      %v2834 = vpop.f32.mrb[0].mxu0
      %2835 = vmatprep.mubr.bf16.mxu0 0
      %2836 = vmatmul.mubr.bf16.gmra.mrb[0].mxu0 %v2741
      %v2837 = vpop.f32.mrb[0].mxu0
      %v2838 = vadd.f32 0.0, %v2837
      %v2839 = vpop.f32.mrb[0].mxu0
      %v2840 = vpop.f32.mrb[0].mxu0
      %v2841 = vadd.f32 0.0, %v2840
      %v2842 = vpop.f32.mrb[0].mxu0
      %2843 = vmatprep.mubr.bf16.mxu0 0
      %2844 = vmatmul.mubr.bf16.gmra.mrb[0].mxu0 %v2744
      %v2845 = vpop.f32.mrb[0].mxu0
      %v2846 = vadd.f32 0.0, %v2845
      %v2847 = vpop.f32.mrb[0].mxu0
      %v2848 = vpop.f32.mrb[0].mxu0
      %v2849 = vadd.f32 0.0, %v2848
      %v2850 = vpop.f32.mrb[0].mxu0
      %2851 = vmatprep.mubr.bf16.mxu0 0
      %2852 = vmatmul.mubr.bf16.gmra.mrb[0].mxu0 %v2747
      %v2853 = vpop.f32.mrb[0].mxu0
      %v2854 = vadd.f32 0.0, %v2853
      %v2855 = vpop.f32.mrb[0].mxu0
      %v2856 = vpop.f32.mrb[0].mxu0
      %v2857 = vadd.f32 0.0, %v2856
      %v2858 = vpop.f32.mrb[0].mxu0
      %2859 = vmatprep.mubr.bf16.mxu0 0
      %2860 = vmatmul.mubr.bf16.gmra.mrb[0].mxu0 %v2750
      %v2861 = vpop.f32.mrb[0].mxu0
      %v2862 = vadd.f32 0.0, %v2861
      %v2863 = vpop.f32.mrb[0].mxu0
      %v2864 = vpop.f32.mrb[0].mxu0
      %v2865 = vadd.f32 0.0, %v2864
      %v2866 = vpop.f32.mrb[0].mxu0
      %2867 = vmatprep.mubr.bf16.mxu0 0
      %2868 = vmatmul.mubr.bf16.gmra.mrb[0].mxu0 %v2753
      %v2869 = vpop.f32.mrb[0].mxu0
      %v2870 = vadd.f32 0.0, %v2869
      %v2871 = vpop.f32.mrb[0].mxu0
      %v2872 = vpop.f32.mrb[0].mxu0
      %v2873 = vadd.f32 0.0, %v2872
      %v2874 = vpop.f32.mrb[0].mxu0
      %2875 = vmatprep.mubr.bf16.mxu0 0
      %2876 = vmatmul.mubr.bf16.gmra.mrb[0].mxu0 %v2756
      %v2877 = vpop.f32.mrb[0].mxu0
      %v2878 = vadd.f32 0.0, %v2877
      %v2879 = vpop.f32.mrb[0].mxu0
      %v2880 = vpop.f32.mrb[0].mxu0
      %v2881 = vadd.f32 0.0, %v2880
      %v2882 = vpop.f32.mrb[0].mxu0
      %2883 = vmatprep.mubr.bf16.mxu0 0
      %2884 = vmatmul.mubr.bf16.gmra.mrb[0].mxu0 %v2759
      %v2885 = vpop.f32.mrb[0].mxu0
      %v2886 = vadd.f32 0.0, %v2885
      %v2887 = vpop.f32.mrb[0].mxu0
      %v2888 = vpop.f32.mrb[0].mxu0
      %v2889 = vadd.f32 0.0, %v2888
      %v2890 = vpop.f32.mrb[0].mxu0
      %2891 = vmatprep.mubr.bf16.mxu0 0
      %2892 = vmatmul.mubr.bf16.gmra.mrb[0].mxu0 %v2762
      %v2893 = vpop.f32.mrb[0].mxu0
      %v2894 = vadd.f32 0.0, %v2893
      %v2895 = vpop.f32.mrb[0].mxu0
      %v2896 = vpop.f32.mrb[0].mxu0
      %v2897 = vadd.f32 0.0, %v2896
      %v2898 = vpop.f32.mrb[0].mxu0
      %2899 = vmatprep.mubr.bf16.mxu0 0
      %2900 = vmatmul.mubr.bf16.gmra.mrb[0].mxu0 %v2765
      %v2901 = vpop.f32.mrb[0].mxu0
      %v2902 = vadd.f32 0.0, %v2901
      %v2903 = vpop.f32.mrb[0].mxu0
      %v2904 = vpop.f32.mrb[0].mxu0
      %v2905 = vadd.f32 0.0, %v2904
      %v2906 = vpop.f32.mrb[0].mxu0
      %2907 = vmatprep.mubr.bf16.mxu0 0
      %2908 = vmatmul.mubr.bf16.gmra.mrb[0].mxu0 %v2768
      %v2909 = vpop.f32.mrb[0].mxu0
      %v2910 = vadd.f32 0.0, %v2909
      %v2911 = vpop.f32.mrb[0].mxu0
      %v2912 = vpop.f32.mrb[0].mxu0
      %v2913 = vadd.f32 0.0, %v2912
      %v2914 = vpop.f32.mrb[0].mxu0
      %2915 = vmatprep.mubr.bf16.mxu0 0
      %2916 = vmatmul.mubr.bf16.gmra.mrb[0].mxu0 %v2771
      %v2917 = vpop.f32.mrb[0].mxu0
      %v2918 = vadd.f32 0.0, %v2917
      %v2919 = vpop.f32.mrb[0].mxu0
      %v2920 = vpop.f32.mrb[0].mxu0
      %v2921 = vadd.f32 0.0, %v2920
      %v2922 = vpop.f32.mrb[0].mxu0
      %2923 = vmatprep.mubr.bf16.mxu0 0
      %2924 = vmatmul.mubr.bf16.gmra.mrb[0].mxu0 %v2774
      %v2925 = vpop.f32.mrb[0].mxu0
      %v2926 = vadd.f32 0.0, %v2925
      %v2927 = vpop.f32.mrb[0].mxu0
      %v2928 = vpop.f32.mrb[0].mxu0
      %v2929 = vadd.f32 0.0, %v2928
      %v2930 = vpop.f32.mrb[0].mxu0
      %2931 = vmatprep.mubr.bf16.mxu0 0
      %2932 = vmatmul.mubr.bf16.gmra.mrb[0].mxu0 %v2777
      %v2933 = vpop.f32.mrb[0].mxu0
      %v2934 = vadd.f32 0.0, %v2933
      %v2935 = vpop.f32.mrb[0].mxu0
      %v2936 = vpop.f32.mrb[0].mxu0
      %v2937 = vadd.f32 0.0, %v2936
      %v2938 = vpop.f32.mrb[0].mxu0
      %2939 = vdwg.mxu0
      %v2940 = vadd.f32 %v2554, %v2814
      %v2941 = vadd.f32 %v2555, %v2817
      %v2942 = vadd.f32 %v2556, %v2822
      %v2943 = vadd.f32 %v2557, %v2825
      %v2944 = vadd.f32 %v2558, %v2830
      %v2945 = vadd.f32 %v2559, %v2833
      %v2946 = vadd.f32 %v2560, %v2838
      %v2947 = vadd.f32 %v2561, %v2841
      %v2948 = vadd.f32 %v2562, %v2846
      %v2949 = vadd.f32 %v2563, %v2849
      %v2950 = vadd.f32 %v2564, %v2854
      %v2951 = vadd.f32 %v2565, %v2857
      %v2952 = vadd.f32 %v2566, %v2862
      %v2953 = vadd.f32 %v2567, %v2865
      %v2954 = vadd.f32 %v2568, %v2870
      %v2955 = vadd.f32 %v2569, %v2873
      %v2956 = vadd.f32 %v2570, %v2878
      %v2957 = vadd.f32 %v2571, %v2881
      %v2958 = vadd.f32 %v2572, %v2886
      %v2959 = vadd.f32 %v2573, %v2889
      %v2960 = vadd.f32 %v2574, %v2894
      %v2961 = vadd.f32 %v2575, %v2897
      %v2962 = vadd.f32 %v2576, %v2902
      %v2963 = vadd.f32 %v2577, %v2905
      %v2964 = vadd.f32 %v2578, %v2910
      %v2965 = vadd.f32 %v2579, %v2913
      %v2966 = vadd.f32 %v2580, %v2918
      %v2967 = vadd.f32 %v2581, %v2921
      %v2968 = vadd.f32 %v2582, %v2926
      %v2969 = vadd.f32 %v2583, %v2929
      %v2970 = vadd.f32 %v2584, %v2934
      %v2971 = vadd.f32 %v2585, %v2937
      %v2972 = vld [vmem:[%s246] sm:$0xf]
      %v2973 = vld [vmem:[%s246 + $0x4] sm:$0xf]
      %v2974 = vld [vmem:[%s246 + $0x8] sm:$0x1]
      %v2975 = vld [vmem:[%s246 + $0xc] sm:$0xf]
      %v2976 = vld [vmem:[%s246 + $0x10] sm:$0xf]
      %v2977 = vld [vmem:[%s246 + $0x14] sm:$0x1]
      %v2978 = vld [vmem:[%s246 + $0x18] sm:$0xf]
      %v2979 = vld [vmem:[%s246 + $0x1c] sm:$0xf]
      %v2980 = vld [vmem:[%s246 + $0x20] sm:$0x1]
      %v2981 = vld [vmem:[%s246 + $0x24] sm:$0xf]
      %v2982 = vld [vmem:[%s246 + $0x28] sm:$0xf]
      %v2983 = vld [vmem:[%s246 + $0x2c] sm:$0x1]
      %v2984 = vld [vmem:[%s246 + $0x30] sm:$0xf]
      %v2985 = vld [vmem:[%s246 + $0x34] sm:$0xf]
      %v2986 = vld [vmem:[%s246 + $0x38] sm:$0x1]
      %v2987 = vld [vmem:[%s246 + $0x3c] sm:$0xf]
      %v2988 = vld [vmem:[%s246 + $0x40] sm:$0xf]
      %v2989 = vld [vmem:[%s246 + $0x44] sm:$0x1]
      %v2990 = vld [vmem:[%s246 + $0x48] sm:$0xf]
      %v2991 = vld [vmem:[%s246 + $0x4c] sm:$0xf]
      %v2992 = vld [vmem:[%s246 + $0x50] sm:$0x1]
      %v2993 = vld [vmem:[%s246 + $0x54] sm:$0xf]
      %v2994 = vld [vmem:[%s246 + $0x58] sm:$0xf]
      %v2995 = vld [vmem:[%s246 + $0x5c] sm:$0x1]
      %v2996 = vld [vmem:[%s246 + $0x60] sm:$0xf]
      %v2997 = vld [vmem:[%s246 + $0x64] sm:$0xf]
      %v2998 = vld [vmem:[%s246 + $0x68] sm:$0x1]
      %v2999 = vld [vmem:[%s246 + $0x6c] sm:$0xf]
      %v3000 = vld [vmem:[%s246 + $0x70] sm:$0xf]
      %v3001 = vld [vmem:[%s246 + $0x74] sm:$0x1]
      %v3002 = vld [vmem:[%s246 + $0x78] sm:$0xf]
      %v3003 = vld [vmem:[%s246 + $0x7c] sm:$0xf]
      %v3004 = vld [vmem:[%s246 + $0x80] sm:$0x1]
      %v3005 = vld [vmem:[%s246 + $0x84] sm:$0xf]
      %v3006 = vld [vmem:[%s246 + $0x88] sm:$0xf]
      %v3007 = vld [vmem:[%s246 + $0x8c] sm:$0x1]
      %v3008 = vld [vmem:[%s246 + $0x90] sm:$0xf]
      %v3009 = vld [vmem:[%s246 + $0x94] sm:$0xf]
      %v3010 = vld [vmem:[%s246 + $0x98] sm:$0x1]
      %v3011 = vld [vmem:[%s246 + $0x9c] sm:$0xf]
      %v3012 = vld [vmem:[%s246 + $0xa0] sm:$0xf]
      %v3013 = vld [vmem:[%s246 + $0xa4] sm:$0x1]
      %v3014 = vld [vmem:[%s246 + $0xa8] sm:$0xf]
      %v3015 = vld [vmem:[%s246 + $0xac] sm:$0xf]
      %v3016 = vld [vmem:[%s246 + $0xb0] sm:$0x1]
      %v3017 = vld [vmem:[%s246 + $0xb4] sm:$0xf]
      %v3018 = vld [vmem:[%s246 + $0xb8] sm:$0xf]
      %v3019 = vld [vmem:[%s246 + $0xbc] sm:$0x1]
      %v3021 = vshrl.u32 %v2972, 16
      %v3023 = vrot.slane %v3021, 4
      %v3024 = vshll.u32 %v2972, 16
      %v3026 = vrot.slane %v3024, 5
      %v3027 = vor.u32 %v3023, %v3026
      %v3028 = vrot.slane %v3027, 4
      %v3030 = vshll.u32 %v2973, 16
      %v3032 = vrot.slane %v3030, 5
      %v3033 = vsel %vm1112, %v3028, %v3032
      %v3034 = vshrl.u32 %v2973, 16
      %v3036 = vrot.slane %v3034, 4
      %v3037 = vor.u32 %v3036, %v3032
      %v3038 = vrot.slane %v3037, 4
      %v3040 = vshll.u32 %v2974, 16
      %v3042 = vrot.slane %v3040, 5
      %v3043 = vsel %vm1112, %v3038, %v3042
      %v3045 = vshrl.u32 %v2975, 16
      %v3047 = vrot.slane %v3045, 4
      %v3048 = vshll.u32 %v2975, 16
      %v3050 = vrot.slane %v3048, 5
      %v3051 = vor.u32 %v3047, %v3050
      %v3052 = vrot.slane %v3051, 4
      %v3054 = vshll.u32 %v2976, 16
      %v3056 = vrot.slane %v3054, 5
      %v3057 = vsel %vm1112, %v3052, %v3056
      %v3058 = vshrl.u32 %v2976, 16
      %v3060 = vrot.slane %v3058, 4
      %v3061 = vor.u32 %v3060, %v3056
      %v3062 = vrot.slane %v3061, 4
      %v3064 = vshll.u32 %v2977, 16
      %v3066 = vrot.slane %v3064, 5
      %v3067 = vsel %vm1112, %v3062, %v3066
      %v3069 = vshrl.u32 %v2978, 16
      %v3071 = vrot.slane %v3069, 4
      %v3072 = vshll.u32 %v2978, 16
      %v3074 = vrot.slane %v3072, 5
      %v3075 = vor.u32 %v3071, %v3074
      %v3076 = vrot.slane %v3075, 4
      %v3078 = vshll.u32 %v2979, 16
      %v3080 = vrot.slane %v3078, 5
      %v3081 = vsel %vm1112, %v3076, %v3080
      %v3082 = vshrl.u32 %v2979, 16
      %v3084 = vrot.slane %v3082, 4
      %v3085 = vor.u32 %v3084, %v3080
      %v3086 = vrot.slane %v3085, 4
      %v3088 = vshll.u32 %v2980, 16
      %v3090 = vrot.slane %v3088, 5
      %v3091 = vsel %vm1112, %v3086, %v3090
      %v3093 = vshrl.u32 %v2981, 16
      %v3095 = vrot.slane %v3093, 4
      %v3096 = vshll.u32 %v2981, 16
      %v3098 = vrot.slane %v3096, 5
      %v3099 = vor.u32 %v3095, %v3098
      %v3100 = vrot.slane %v3099, 4
      %v3102 = vshll.u32 %v2982, 16
      %v3104 = vrot.slane %v3102, 5
      %v3105 = vsel %vm1112, %v3100, %v3104
      %v3106 = vshrl.u32 %v2982, 16
      %v3108 = vrot.slane %v3106, 4
      %v3109 = vor.u32 %v3108, %v3104
      %v3110 = vrot.slane %v3109, 4
      %v3112 = vshll.u32 %v2983, 16
      %v3114 = vrot.slane %v3112, 5
      %v3115 = vsel %vm1112, %v3110, %v3114
      %v3117 = vshrl.u32 %v2984, 16
      %v3119 = vrot.slane %v3117, 4
      %v3120 = vshll.u32 %v2984, 16
      %v3122 = vrot.slane %v3120, 5
      %v3123 = vor.u32 %v3119, %v3122
      %v3124 = vrot.slane %v3123, 4
      %v3126 = vshll.u32 %v2985, 16
      %v3128 = vrot.slane %v3126, 5
      %v3129 = vsel %vm1112, %v3124, %v3128
      %v3130 = vshrl.u32 %v2985, 16
      %v3132 = vrot.slane %v3130, 4
      %v3133 = vor.u32 %v3132, %v3128
      %v3134 = vrot.slane %v3133, 4
      %v3136 = vshll.u32 %v2986, 16
      %v3138 = vrot.slane %v3136, 5
      %v3139 = vsel %vm1112, %v3134, %v3138
      %v3141 = vshrl.u32 %v2987, 16
      %v3143 = vrot.slane %v3141, 4
      %v3144 = vshll.u32 %v2987, 16
      %v3146 = vrot.slane %v3144, 5
      %v3147 = vor.u32 %v3143, %v3146
      %v3148 = vrot.slane %v3147, 4
      %v3150 = vshll.u32 %v2988, 16
      %v3152 = vrot.slane %v3150, 5
      %v3153 = vsel %vm1112, %v3148, %v3152
      %v3154 = vshrl.u32 %v2988, 16
      %v3156 = vrot.slane %v3154, 4
      %v3157 = vor.u32 %v3156, %v3152
      %v3158 = vrot.slane %v3157, 4
      %v3160 = vshll.u32 %v2989, 16
      %v3162 = vrot.slane %v3160, 5
      %v3163 = vsel %vm1112, %v3158, %v3162
      %v3165 = vshrl.u32 %v2990, 16
      %v3167 = vrot.slane %v3165, 4
      %v3168 = vshll.u32 %v2990, 16
      %v3170 = vrot.slane %v3168, 5
      %v3171 = vor.u32 %v3167, %v3170
      %v3172 = vrot.slane %v3171, 4
      %v3174 = vshll.u32 %v2991, 16
      %v3176 = vrot.slane %v3174, 5
      %v3177 = vsel %vm1112, %v3172, %v3176
      %v3178 = vshrl.u32 %v2991, 16
      %v3180 = vrot.slane %v3178, 4
      %v3181 = vor.u32 %v3180, %v3176
      %v3182 = vrot.slane %v3181, 4
      %v3184 = vshll.u32 %v2992, 16
      %v3186 = vrot.slane %v3184, 5
      %v3187 = vsel %vm1112, %v3182, %v3186
      %v3189 = vshrl.u32 %v2993, 16
      %v3191 = vrot.slane %v3189, 4
      %v3192 = vshll.u32 %v2993, 16
      %v3194 = vrot.slane %v3192, 5
      %v3195 = vor.u32 %v3191, %v3194
      %v3196 = vrot.slane %v3195, 4
      %v3198 = vshll.u32 %v2994, 16
      %v3200 = vrot.slane %v3198, 5
      %v3201 = vsel %vm1112, %v3196, %v3200
      %v3202 = vshrl.u32 %v2994, 16
      %v3204 = vrot.slane %v3202, 4
      %v3205 = vor.u32 %v3204, %v3200
      %v3206 = vrot.slane %v3205, 4
      %v3208 = vshll.u32 %v2995, 16
      %v3210 = vrot.slane %v3208, 5
      %v3211 = vsel %vm1112, %v3206, %v3210
      %v3213 = vshrl.u32 %v2996, 16
      %v3215 = vrot.slane %v3213, 4
      %v3216 = vshll.u32 %v2996, 16
      %v3218 = vrot.slane %v3216, 5
      %v3219 = vor.u32 %v3215, %v3218
      %v3220 = vrot.slane %v3219, 4
      %v3222 = vshll.u32 %v2997, 16
      %v3224 = vrot.slane %v3222, 5
      %v3225 = vsel %vm1112, %v3220, %v3224
      %v3226 = vshrl.u32 %v2997, 16
      %v3228 = vrot.slane %v3226, 4
      %v3229 = vor.u32 %v3228, %v3224
      %v3230 = vrot.slane %v3229, 4
      %v3232 = vshll.u32 %v2998, 16
      %v3234 = vrot.slane %v3232, 5
      %v3235 = vsel %vm1112, %v3230, %v3234
      %v3237 = vshrl.u32 %v2999, 16
      %v3239 = vrot.slane %v3237, 4
      %v3240 = vshll.u32 %v2999, 16
      %v3242 = vrot.slane %v3240, 5
      %v3243 = vor.u32 %v3239, %v3242
      %v3244 = vrot.slane %v3243, 4
      %v3246 = vshll.u32 %v3000, 16
      %v3248 = vrot.slane %v3246, 5
      %v3249 = vsel %vm1112, %v3244, %v3248
      %v3250 = vshrl.u32 %v3000, 16
      %v3252 = vrot.slane %v3250, 4
      %v3253 = vor.u32 %v3252, %v3248
      %v3254 = vrot.slane %v3253, 4
      %v3256 = vshll.u32 %v3001, 16
      %v3258 = vrot.slane %v3256, 5
      %v3259 = vsel %vm1112, %v3254, %v3258
      %v3261 = vshrl.u32 %v3002, 16
      %v3263 = vrot.slane %v3261, 4
      %v3264 = vshll.u32 %v3002, 16
      %v3266 = vrot.slane %v3264, 5
      %v3267 = vor.u32 %v3263, %v3266
      %v3268 = vrot.slane %v3267, 4
      %v3270 = vshll.u32 %v3003, 16
      %v3272 = vrot.slane %v3270, 5
      %v3273 = vsel %vm1112, %v3268, %v3272
      %v3274 = vshrl.u32 %v3003, 16
      %v3276 = vrot.slane %v3274, 4
      %v3277 = vor.u32 %v3276, %v3272
      %v3278 = vrot.slane %v3277, 4
      %v3280 = vshll.u32 %v3004, 16
      %v3282 = vrot.slane %v3280, 5
      %v3283 = vsel %vm1112, %v3278, %v3282
      %v3285 = vshrl.u32 %v3005, 16
      %v3287 = vrot.slane %v3285, 4
      %v3288 = vshll.u32 %v3005, 16
      %v3290 = vrot.slane %v3288, 5
      %v3291 = vor.u32 %v3287, %v3290
      %v3292 = vrot.slane %v3291, 4
      %v3294 = vshll.u32 %v3006, 16
      %v3296 = vrot.slane %v3294, 5
      %v3297 = vsel %vm1112, %v3292, %v3296
      %v3298 = vshrl.u32 %v3006, 16
      %v3300 = vrot.slane %v3298, 4
      %v3301 = vor.u32 %v3300, %v3296
      %v3302 = vrot.slane %v3301, 4
      %v3304 = vshll.u32 %v3007, 16
      %v3306 = vrot.slane %v3304, 5
      %v3307 = vsel %vm1112, %v3302, %v3306
      %v3309 = vshrl.u32 %v3008, 16
      %v3311 = vrot.slane %v3309, 4
      %v3312 = vshll.u32 %v3008, 16
      %v3314 = vrot.slane %v3312, 5
      %v3315 = vor.u32 %v3311, %v3314
      %v3316 = vrot.slane %v3315, 4
      %v3318 = vshll.u32 %v3009, 16
      %v3320 = vrot.slane %v3318, 5
      %v3321 = vsel %vm1112, %v3316, %v3320
      %v3322 = vshrl.u32 %v3009, 16
      %v3324 = vrot.slane %v3322, 4
      %v3325 = vor.u32 %v3324, %v3320
      %v3326 = vrot.slane %v3325, 4
      %v3328 = vshll.u32 %v3010, 16
      %v3330 = vrot.slane %v3328, 5
      %v3331 = vsel %vm1112, %v3326, %v3330
      %v3333 = vshrl.u32 %v3011, 16
      %v3335 = vrot.slane %v3333, 4
      %v3336 = vshll.u32 %v3011, 16
      %v3338 = vrot.slane %v3336, 5
      %v3339 = vor.u32 %v3335, %v3338
      %v3340 = vrot.slane %v3339, 4
      %v3342 = vshll.u32 %v3012, 16
      %v3344 = vrot.slane %v3342, 5
      %v3345 = vsel %vm1112, %v3340, %v3344
      %v3346 = vshrl.u32 %v3012, 16
      %v3348 = vrot.slane %v3346, 4
      %v3349 = vor.u32 %v3348, %v3344
      %v3350 = vrot.slane %v3349, 4
      %v3352 = vshll.u32 %v3013, 16
      %v3354 = vrot.slane %v3352, 5
      %v3355 = vsel %vm1112, %v3350, %v3354
      %v3357 = vshrl.u32 %v3014, 16
      %v3359 = vrot.slane %v3357, 4
      %v3360 = vshll.u32 %v3014, 16
      %v3362 = vrot.slane %v3360, 5
      %v3363 = vor.u32 %v3359, %v3362
      %v3364 = vrot.slane %v3363, 4
      %v3366 = vshll.u32 %v3015, 16
      %v3368 = vrot.slane %v3366, 5
      %v3369 = vsel %vm1112, %v3364, %v3368
      %v3370 = vshrl.u32 %v3015, 16
      %v3372 = vrot.slane %v3370, 4
      %v3373 = vor.u32 %v3372, %v3368
      %v3374 = vrot.slane %v3373, 4
      %v3376 = vshll.u32 %v3016, 16
      %v3378 = vrot.slane %v3376, 5
      %v3379 = vsel %vm1112, %v3374, %v3378
      %v3381 = vshrl.u32 %v3017, 16
      %v3383 = vrot.slane %v3381, 4
      %v3384 = vshll.u32 %v3017, 16
      %v3386 = vrot.slane %v3384, 5
      %v3387 = vor.u32 %v3383, %v3386
      %v3388 = vrot.slane %v3387, 4
      %v3390 = vshll.u32 %v3018, 16
      %v3392 = vrot.slane %v3390, 5
      %v3393 = vsel %vm1112, %v3388, %v3392
      %v3394 = vshrl.u32 %v3018, 16
      %v3396 = vrot.slane %v3394, 4
      %v3397 = vor.u32 %v3396, %v3392
      %v3398 = vrot.slane %v3397, 4
      %v3400 = vshll.u32 %v3019, 16
      %v3402 = vrot.slane %v3400, 5
      %v3403 = vsel %vm1112, %v3398, %v3402
      %s3404 = scalar_lea.vmem %s3, 128
      %v3405 = vld [vmem:[%s3404] sm:$0xf]
      %v3406 = vld [vmem:[%s3404 + $0x4] sm:$0xf]
      %v3407 = vld [vmem:[%s3404 + $0x8] sm:$0xf]
      %v3408 = vld [vmem:[%s3404 + $0xc] sm:$0xf]
      %v3409 = vld [vmem:[%s3404 + $0x10] sm:$0xf]
      %v3410 = vld [vmem:[%s3404 + $0x14] sm:$0xf]
      %v3411 = vld [vmem:[%s3404 + $0x18] sm:$0xf]
      %v3412 = vld [vmem:[%s3404 + $0x1c] sm:$0xf]
      %v3413 = vunpack.c.l.b16 %v3033
      %v3414 = vunpack.c.l.b16 %v3043
      %v3415 = vunpack.c.l.b16 %v3057
      %v3416 = vunpack.c.l.b16 %v3067
      %v3417 = vunpack.c.l.b16 %v3081
      %v3418 = vunpack.c.l.b16 %v3091
      %v3419 = vunpack.c.l.b16 %v3105
      %v3420 = vunpack.c.l.b16 %v3115
      %v3421 = vunpack.c.l.b16 %v3129
      %v3422 = vunpack.c.l.b16 %v3139
      %v3423 = vunpack.c.l.b16 %v3153
      %v3424 = vunpack.c.l.b16 %v3163
      %v3425 = vunpack.c.l.b16 %v3177
      %v3426 = vunpack.c.l.b16 %v3187
      %v3427 = vunpack.c.l.b16 %v3201
      %v3428 = vunpack.c.l.b16 %v3211
      %v3429 = vunpack.c.l.b16 %v3225
      %v3430 = vunpack.c.l.b16 %v3235
      %v3431 = vunpack.c.l.b16 %v3249
      %v3432 = vunpack.c.l.b16 %v3259
      %v3433 = vunpack.c.l.b16 %v3273
      %v3434 = vunpack.c.l.b16 %v3283
      %v3435 = vunpack.c.l.b16 %v3297
      %v3436 = vunpack.c.l.b16 %v3307
      %v3437 = vunpack.c.l.b16 %v3321
      %v3438 = vunpack.c.l.b16 %v3331
      %v3439 = vunpack.c.l.b16 %v3345
      %v3440 = vunpack.c.l.b16 %v3355
      %v3441 = vunpack.c.l.b16 %v3369
      %v3442 = vunpack.c.l.b16 %v3379
      %v3443 = vunpack.c.l.b16 %v3393
      %v3444 = vunpack.c.l.b16 %v3403
      %v3445 = vpack.c.b16 %v3414, %v3413
      %v3446 = vpack.c.b16 %v3416, %v3415
      %v3447 = vpack.c.b16 %v3418, %v3417
      %v3448 = vpack.c.b16 %v3420, %v3419
      %v3449 = vpack.c.b16 %v3422, %v3421
      %v3450 = vpack.c.b16 %v3424, %v3423
      %v3451 = vpack.c.b16 %v3426, %v3425
      %v3452 = vpack.c.b16 %v3428, %v3427
      %v3453 = vpack.c.b16 %v3430, %v3429
      %v3454 = vpack.c.b16 %v3432, %v3431
      %v3455 = vpack.c.b16 %v3434, %v3433
      %v3456 = vpack.c.b16 %v3436, %v3435
      %v3457 = vpack.c.b16 %v3438, %v3437
      %v3458 = vpack.c.b16 %v3440, %v3439
      %v3459 = vpack.c.b16 %v3442, %v3441
      %v3460 = vpack.c.b16 %v3444, %v3443
      %v3469 = vunpack.c.l.b16 %v3405
      %v3470 = vunpack.c.l.b16 %v3406
      %v3471 = vunpack.c.l.b16 %v3407
      %v3472 = vunpack.c.l.b16 %v3408
      %v3473 = vunpack.c.l.b16 %v3409
      %v3474 = vunpack.c.l.b16 %v3410
      %v3475 = vunpack.c.l.b16 %v3411
      %v3476 = vunpack.c.l.b16 %v3412
      %v3477 = vpack.c.b16 %v3470, %v3469
      %v3478 = vpack.c.b16 %v3472, %v3471
      %v3479 = vpack.c.b16 %v3474, %v3473
      %v3480 = vpack.c.b16 %v3476, %v3475
      %v3486 = vsel %vm1578, %v3445, 0
      %v3489 = vsel %vm1578, %v3446, 0
      %v3492 = vsel %vm1578, %v3447, 0
      %v3495 = vsel %vm1578, %v3448, 0
      %v3498 = vsel %vm1578, %v3449, 0
      %v3501 = vsel %vm1578, %v3450, 0
      %v3504 = vsel %vm1578, %v3451, 0
      %v3507 = vsel %vm1578, %v3452, 0
      %v3510 = vsel %vm1578, %v3453, 0
      %v3513 = vsel %vm1578, %v3454, 0
      %v3516 = vsel %vm1578, %v3455, 0
      %v3519 = vsel %vm1578, %v3456, 0
      %v3522 = vsel %vm1578, %v3457, 0
      %v3525 = vsel %vm1578, %v3458, 0
      %v3528 = vsel %vm1578, %v3459, 0
      %v3531 = vsel %vm1578, %v3460, 0
      %3533 = vmatprep.subr.bf16.mxu0 0
      %3534 = vmatpush1.bf16.msra.mxu0 %v3477
      %3535 = vmatprep.subr.bf16.mxu0 0
      %3536 = vmatpush1.bf16.msra.mxu0 %v3478
      %3537 = vmatprep.subr.bf16.mxu0 0
      %3538 = vmatpush1.bf16.msra.mxu0 %v3479
      %3539 = vmatprep.subr.bf16.mxu0 0
      %3540 = vmatpush1.bf16.msra.mxu0 %v3480
      %3541 = vmatprep.subr.bf16.mxu0 0
      %3542 = vmatpush1.bf16.msra.mxu0 0
      %3543 = vmatprep.subr.bf16.mxu0 0
      %3544 = vmatpush1.bf16.msra.mxu0 0
      %3545 = vmatprep.subr.bf16.mxu0 0
      %3546 = vmatpush1.bf16.msra.mxu0 0
      %3547 = vmatprep.subr.bf16.mxu0 0
      %3548 = vmatpush1.bf16.msra.mxu0 0
      %3549 = vmatprep.subr.bf16.mxu0 0
      %3550 = vmatpush1.bf16.msra.mxu0 0
      %3551 = vmatprep.subr.bf16.mxu0 0
      %3552 = vmatpush1.bf16.msra.mxu0 0
      %3553 = vmatprep.subr.bf16.mxu0 0
      %3554 = vmatpush1.bf16.msra.mxu0 0
      %3555 = vmatprep.subr.bf16.mxu0 0
      %3556 = vmatpush1.bf16.msra.mxu0 0
      %3557 = vmatprep.subr.bf16.mxu0 0
      %3558 = vmatpush1.bf16.msra.mxu0 0
      %3559 = vmatprep.subr.bf16.mxu0 0
      %3560 = vmatpush1.bf16.msra.mxu0 0
      %3561 = vmatprep.subr.bf16.mxu0 0
      %3562 = vmatpush1.bf16.msra.mxu0 0
      %3563 = vmatprep.subr.bf16.mxu0 0
      %3564 = vmatpush1.bf16.msra.mxu0 0
      %3565 = vmatprep.mubr.bf16.mxu0 0
      %3566 = vmatmul.mubr.bf16.gmra.mrb[0].mxu0 %v3486
      %v3567 = vpop.f32.mrb[0].mxu0
      %v3568 = vadd.f32 0.0, %v3567
      %v3569 = vpop.f32.mrb[0].mxu0
      %v3570 = vpop.f32.mrb[0].mxu0
      %v3571 = vadd.f32 0.0, %v3570
      %v3572 = vpop.f32.mrb[0].mxu0
      %3573 = vmatprep.mubr.bf16.mxu0 0
      %3574 = vmatmul.mubr.bf16.gmra.mrb[0].mxu0 %v3489
      %v3575 = vpop.f32.mrb[0].mxu0
      %v3576 = vadd.f32 0.0, %v3575
      %v3577 = vpop.f32.mrb[0].mxu0
      %v3578 = vpop.f32.mrb[0].mxu0
      %v3579 = vadd.f32 0.0, %v3578
      %v3580 = vpop.f32.mrb[0].mxu0
      %3581 = vmatprep.mubr.bf16.mxu0 0
      %3582 = vmatmul.mubr.bf16.gmra.mrb[0].mxu0 %v3492
      %v3583 = vpop.f32.mrb[0].mxu0
      %v3584 = vadd.f32 0.0, %v3583
      %v3585 = vpop.f32.mrb[0].mxu0
      %v3586 = vpop.f32.mrb[0].mxu0
      %v3587 = vadd.f32 0.0, %v3586
      %v3588 = vpop.f32.mrb[0].mxu0
      %3589 = vmatprep.mubr.bf16.mxu0 0
      %3590 = vmatmul.mubr.bf16.gmra.mrb[0].mxu0 %v3495
      %v3591 = vpop.f32.mrb[0].mxu0
      %v3592 = vadd.f32 0.0, %v3591
      %v3593 = vpop.f32.mrb[0].mxu0
      %v3594 = vpop.f32.mrb[0].mxu0
      %v3595 = vadd.f32 0.0, %v3594
      %v3596 = vpop.f32.mrb[0].mxu0
      %3597 = vmatprep.mubr.bf16.mxu0 0
      %3598 = vmatmul.mubr.bf16.gmra.mrb[0].mxu0 %v3498
      %v3599 = vpop.f32.mrb[0].mxu0
      %v3600 = vadd.f32 0.0, %v3599
      %v3601 = vpop.f32.mrb[0].mxu0
      %v3602 = vpop.f32.mrb[0].mxu0
      %v3603 = vadd.f32 0.0, %v3602
      %v3604 = vpop.f32.mrb[0].mxu0
      %3605 = vmatprep.mubr.bf16.mxu0 0
      %3606 = vmatmul.mubr.bf16.gmra.mrb[0].mxu0 %v3501
      %v3607 = vpop.f32.mrb[0].mxu0
      %v3608 = vadd.f32 0.0, %v3607
      %v3609 = vpop.f32.mrb[0].mxu0
      %v3610 = vpop.f32.mrb[0].mxu0
      %v3611 = vadd.f32 0.0, %v3610
      %v3612 = vpop.f32.mrb[0].mxu0
      %3613 = vmatprep.mubr.bf16.mxu0 0
      %3614 = vmatmul.mubr.bf16.gmra.mrb[0].mxu0 %v3504
      %v3615 = vpop.f32.mrb[0].mxu0
      %v3616 = vadd.f32 0.0, %v3615
      %v3617 = vpop.f32.mrb[0].mxu0
      %v3618 = vpop.f32.mrb[0].mxu0
      %v3619 = vadd.f32 0.0, %v3618
      %v3620 = vpop.f32.mrb[0].mxu0
      %3621 = vmatprep.mubr.bf16.mxu0 0
      %3622 = vmatmul.mubr.bf16.gmra.mrb[0].mxu0 %v3507
      %v3623 = vpop.f32.mrb[0].mxu0
      %v3624 = vadd.f32 0.0, %v3623
      %v3625 = vpop.f32.mrb[0].mxu0
      %v3626 = vpop.f32.mrb[0].mxu0
      %v3627 = vadd.f32 0.0, %v3626
      %v3628 = vpop.f32.mrb[0].mxu0
      %3629 = vmatprep.mubr.bf16.mxu0 0
      %3630 = vmatmul.mubr.bf16.gmra.mrb[0].mxu0 %v3510
      %v3631 = vpop.f32.mrb[0].mxu0
      %v3632 = vadd.f32 0.0, %v3631
      %v3633 = vpop.f32.mrb[0].mxu0
      %v3634 = vpop.f32.mrb[0].mxu0
      %v3635 = vadd.f32 0.0, %v3634
      %v3636 = vpop.f32.mrb[0].mxu0
      %3637 = vmatprep.mubr.bf16.mxu0 0
      %3638 = vmatmul.mubr.bf16.gmra.mrb[0].mxu0 %v3513
      %v3639 = vpop.f32.mrb[0].mxu0
      %v3640 = vadd.f32 0.0, %v3639
      %v3641 = vpop.f32.mrb[0].mxu0
      %v3642 = vpop.f32.mrb[0].mxu0
      %v3643 = vadd.f32 0.0, %v3642
      %v3644 = vpop.f32.mrb[0].mxu0
      %3645 = vmatprep.mubr.bf16.mxu0 0
      %3646 = vmatmul.mubr.bf16.gmra.mrb[0].mxu0 %v3516
      %v3647 = vpop.f32.mrb[0].mxu0
      %v3648 = vadd.f32 0.0, %v3647
      %v3649 = vpop.f32.mrb[0].mxu0
      %v3650 = vpop.f32.mrb[0].mxu0
      %v3651 = vadd.f32 0.0, %v3650
      %v3652 = vpop.f32.mrb[0].mxu0
      %3653 = vmatprep.mubr.bf16.mxu0 0
      %3654 = vmatmul.mubr.bf16.gmra.mrb[0].mxu0 %v3519
      %v3655 = vpop.f32.mrb[0].mxu0
      %v3656 = vadd.f32 0.0, %v3655
      %v3657 = vpop.f32.mrb[0].mxu0
      %v3658 = vpop.f32.mrb[0].mxu0
      %v3659 = vadd.f32 0.0, %v3658
      %v3660 = vpop.f32.mrb[0].mxu0
      %3661 = vmatprep.mubr.bf16.mxu0 0
      %3662 = vmatmul.mubr.bf16.gmra.mrb[0].mxu0 %v3522
      %v3663 = vpop.f32.mrb[0].mxu0
      %v3664 = vadd.f32 0.0, %v3663
      %v3665 = vpop.f32.mrb[0].mxu0
      %v3666 = vpop.f32.mrb[0].mxu0
      %v3667 = vadd.f32 0.0, %v3666
      %v3668 = vpop.f32.mrb[0].mxu0
      %3669 = vmatprep.mubr.bf16.mxu0 0
      %3670 = vmatmul.mubr.bf16.gmra.mrb[0].mxu0 %v3525
      %v3671 = vpop.f32.mrb[0].mxu0
      %v3672 = vadd.f32 0.0, %v3671
      %v3673 = vpop.f32.mrb[0].mxu0
      %v3674 = vpop.f32.mrb[0].mxu0
      %v3675 = vadd.f32 0.0, %v3674
      %v3676 = vpop.f32.mrb[0].mxu0
      %3677 = vmatprep.mubr.bf16.mxu0 0
      %3678 = vmatmul.mubr.bf16.gmra.mrb[0].mxu0 %v3528
      %v3679 = vpop.f32.mrb[0].mxu0
      %v3680 = vadd.f32 0.0, %v3679
      %v3681 = vpop.f32.mrb[0].mxu0
      %v3682 = vpop.f32.mrb[0].mxu0
      %v3683 = vadd.f32 0.0, %v3682
      %v3684 = vpop.f32.mrb[0].mxu0
      %3685 = vmatprep.mubr.bf16.mxu0 0
      %3686 = vmatmul.mubr.bf16.gmra.mrb[0].mxu0 %v3531
      %v3687 = vpop.f32.mrb[0].mxu0
      %v3688 = vadd.f32 0.0, %v3687
      %v3689 = vpop.f32.mrb[0].mxu0
      %v3690 = vpop.f32.mrb[0].mxu0
      %v3691 = vadd.f32 0.0, %v3690
      %v3692 = vpop.f32.mrb[0].mxu0
      %3693 = vdwg.mxu0
      %v3694 = vadd.f32 %v2940, %v3568
      %v3695 = vadd.f32 %v2941, %v3571
      %v3696 = vadd.f32 %v2942, %v3576
      %v3697 = vadd.f32 %v2943, %v3579
      %v3698 = vadd.f32 %v2944, %v3584
      %v3699 = vadd.f32 %v2945, %v3587
      %v3700 = vadd.f32 %v2946, %v3592
      %v3701 = vadd.f32 %v2947, %v3595
      %v3702 = vadd.f32 %v2948, %v3600
      %v3703 = vadd.f32 %v2949, %v3603
      %v3704 = vadd.f32 %v2950, %v3608
      %v3705 = vadd.f32 %v2951, %v3611
      %v3706 = vadd.f32 %v2952, %v3616
      %v3707 = vadd.f32 %v2953, %v3619
      %v3708 = vadd.f32 %v2954, %v3624
      %v3709 = vadd.f32 %v2955, %v3627
      %v3710 = vadd.f32 %v2956, %v3632
      %v3711 = vadd.f32 %v2957, %v3635
      %v3712 = vadd.f32 %v2958, %v3640
      %v3713 = vadd.f32 %v2959, %v3643
      %v3714 = vadd.f32 %v2960, %v3648
      %v3715 = vadd.f32 %v2961, %v3651
      %v3716 = vadd.f32 %v2962, %v3656
      %v3717 = vadd.f32 %v2963, %v3659
      %v3718 = vadd.f32 %v2964, %v3664
      %v3719 = vadd.f32 %v2965, %v3667
      %v3720 = vadd.f32 %v2966, %v3672
      %v3721 = vadd.f32 %v2967, %v3675
      %v3722 = vadd.f32 %v2968, %v3680
      %v3723 = vadd.f32 %v2969, %v3683
      %v3724 = vadd.f32 %v2970, %v3688
      %v3725 = vadd.f32 %v2971, %v3691
      %v3726 = vld [vmem:[%s246] sm:$0xe]
      %v3727 = vld [vmem:[%s246 + $0xc] sm:$0xe]
      %v3728 = vld [vmem:[%s246 + $0x18] sm:$0xe]
      %v3729 = vld [vmem:[%s246 + $0x24] sm:$0xe]
      %v3730 = vld [vmem:[%s246 + $0x30] sm:$0xe]
      %v3731 = vld [vmem:[%s246 + $0x3c] sm:$0xe]
      %v3732 = vld [vmem:[%s246 + $0x48] sm:$0xe]
      %v3733 = vld [vmem:[%s246 + $0x54] sm:$0xe]
      %v3734 = vld [vmem:[%s246 + $0x60] sm:$0xe]
      %v3735 = vld [vmem:[%s246 + $0x6c] sm:$0xe]
      %v3736 = vld [vmem:[%s246 + $0x78] sm:$0xe]
      %v3737 = vld [vmem:[%s246 + $0x84] sm:$0xe]
      %v3738 = vld [vmem:[%s246 + $0x90] sm:$0xe]
      %v3739 = vld [vmem:[%s246 + $0x9c] sm:$0xe]
      %v3740 = vld [vmem:[%s246 + $0xa8] sm:$0xe]
      %v3741 = vld [vmem:[%s246 + $0xb4] sm:$0xe]
      %v3790 = vrot.slane %v3726, 5
      %v3791 = vrot.slane %v3790, 4
      %v3792 = vrot.slane %v2973, 5
      %v3793 = vsel %vm2151, %v3791, %v3792
      %v3794 = vrot.slane %v3792, 4
      %v3795 = vrot.slane %v2974, 5
      %v3796 = vsel %vm2151, %v3794, %v3795
      %v3797 = vrot.slane %v3727, 5
      %v3798 = vrot.slane %v3797, 4
      %v3799 = vrot.slane %v2976, 5
      %v3800 = vsel %vm2151, %v3798, %v3799
      %v3801 = vrot.slane %v3799, 4
      %v3802 = vrot.slane %v2977, 5
      %v3803 = vsel %vm2151, %v3801, %v3802
      %v3804 = vrot.slane %v3728, 5
      %v3805 = vrot.slane %v3804, 4
      %v3806 = vrot.slane %v2979, 5
      %v3807 = vsel %vm2151, %v3805, %v3806
      %v3808 = vrot.slane %v3806, 4
      %v3809 = vrot.slane %v2980, 5
      %v3810 = vsel %vm2151, %v3808, %v3809
      %v3811 = vrot.slane %v3729, 5
      %v3812 = vrot.slane %v3811, 4
      %v3813 = vrot.slane %v2982, 5
      %v3814 = vsel %vm2151, %v3812, %v3813
      %v3815 = vrot.slane %v3813, 4
      %v3816 = vrot.slane %v2983, 5
      %v3817 = vsel %vm2151, %v3815, %v3816
      %v3818 = vrot.slane %v3730, 5
      %v3819 = vrot.slane %v3818, 4
      %v3820 = vrot.slane %v2985, 5
      %v3821 = vsel %vm2151, %v3819, %v3820
      %v3822 = vrot.slane %v3820, 4
      %v3823 = vrot.slane %v2986, 5
      %v3824 = vsel %vm2151, %v3822, %v3823
      %v3825 = vrot.slane %v3731, 5
      %v3826 = vrot.slane %v3825, 4
      %v3827 = vrot.slane %v2988, 5
      %v3828 = vsel %vm2151, %v3826, %v3827
      %v3829 = vrot.slane %v3827, 4
      %v3830 = vrot.slane %v2989, 5
      %v3831 = vsel %vm2151, %v3829, %v3830
      %v3832 = vrot.slane %v3732, 5
      %v3833 = vrot.slane %v3832, 4
      %v3834 = vrot.slane %v2991, 5
      %v3835 = vsel %vm2151, %v3833, %v3834
      %v3836 = vrot.slane %v3834, 4
      %v3837 = vrot.slane %v2992, 5
      %v3838 = vsel %vm2151, %v3836, %v3837
      %v3839 = vrot.slane %v3733, 5
      %v3840 = vrot.slane %v3839, 4
      %v3841 = vrot.slane %v2994, 5
      %v3842 = vsel %vm2151, %v3840, %v3841
      %v3843 = vrot.slane %v3841, 4
      %v3844 = vrot.slane %v2995, 5
      %v3845 = vsel %vm2151, %v3843, %v3844
      %v3846 = vrot.slane %v3734, 5
      %v3847 = vrot.slane %v3846, 4
      %v3848 = vrot.slane %v2997, 5
      %v3849 = vsel %vm2151, %v3847, %v3848
      %v3850 = vrot.slane %v3848, 4
      %v3851 = vrot.slane %v2998, 5
      %v3852 = vsel %vm2151, %v3850, %v3851
      %v3853 = vrot.slane %v3735, 5
      %v3854 = vrot.slane %v3853, 4
      %v3855 = vrot.slane %v3000, 5
      %v3856 = vsel %vm2151, %v3854, %v3855
      %v3857 = vrot.slane %v3855, 4
      %v3858 = vrot.slane %v3001, 5
      %v3859 = vsel %vm2151, %v3857, %v3858
      %v3860 = vrot.slane %v3736, 5
      %v3861 = vrot.slane %v3860, 4
      %v3862 = vrot.slane %v3003, 5
      %v3863 = vsel %vm2151, %v3861, %v3862
      %v3864 = vrot.slane %v3862, 4
      %v3865 = vrot.slane %v3004, 5
      %v3866 = vsel %vm2151, %v3864, %v3865
      %v3867 = vrot.slane %v3737, 5
      %v3868 = vrot.slane %v3867, 4
      %v3869 = vrot.slane %v3006, 5
      %v3870 = vsel %vm2151, %v3868, %v3869
      %v3871 = vrot.slane %v3869, 4
      %v3872 = vrot.slane %v3007, 5
      %v3873 = vsel %vm2151, %v3871, %v3872
      %v3874 = vrot.slane %v3738, 5
      %v3875 = vrot.slane %v3874, 4
      %v3876 = vrot.slane %v3009, 5
      %v3877 = vsel %vm2151, %v3875, %v3876
      %v3878 = vrot.slane %v3876, 4
      %v3879 = vrot.slane %v3010, 5
      %v3880 = vsel %vm2151, %v3878, %v3879
      %v3881 = vrot.slane %v3739, 5
      %v3882 = vrot.slane %v3881, 4
      %v3883 = vrot.slane %v3012, 5
      %v3884 = vsel %vm2151, %v3882, %v3883
      %v3885 = vrot.slane %v3883, 4
      %v3886 = vrot.slane %v3013, 5
      %v3887 = vsel %vm2151, %v3885, %v3886
      %v3888 = vrot.slane %v3740, 5
      %v3889 = vrot.slane %v3888, 4
      %v3890 = vrot.slane %v3015, 5
      %v3891 = vsel %vm2151, %v3889, %v3890
      %v3892 = vrot.slane %v3890, 4
      %v3893 = vrot.slane %v3016, 5
      %v3894 = vsel %vm2151, %v3892, %v3893
      %v3895 = vrot.slane %v3741, 5
      %v3896 = vrot.slane %v3895, 4
      %v3897 = vrot.slane %v3018, 5
      %v3898 = vsel %vm2151, %v3896, %v3897
      %v3899 = vrot.slane %v3897, 4
      %v3900 = vrot.slane %v3019, 5
      %v3901 = vsel %vm2151, %v3899, %v3900
      %s3902 = scalar_lea.vmem %s3, 160
      %v3903 = vld [vmem:[%s3902] sm:$0xf]
      %v3904 = vld [vmem:[%s3902 + $0x4] sm:$0xf]
      %v3905 = vld [vmem:[%s3902 + $0x8] sm:$0xf]
      %v3906 = vld [vmem:[%s3902 + $0xc] sm:$0xf]
      %v3907 = vld [vmem:[%s3902 + $0x10] sm:$0xf]
      %v3908 = vld [vmem:[%s3902 + $0x14] sm:$0xf]
      %v3909 = vld [vmem:[%s3902 + $0x18] sm:$0xf]
      %v3910 = vld [vmem:[%s3902 + $0x1c] sm:$0xf]
      %v3911 = vunpack.c.l.b16 %v3793
      %v3912 = vunpack.c.l.b16 %v3796
      %v3913 = vunpack.c.l.b16 %v3800
      %v3914 = vunpack.c.l.b16 %v3803
      %v3915 = vunpack.c.l.b16 %v3807
      %v3916 = vunpack.c.l.b16 %v3810
      %v3917 = vunpack.c.l.b16 %v3814
      %v3918 = vunpack.c.l.b16 %v3817
      %v3919 = vunpack.c.l.b16 %v3821
      %v3920 = vunpack.c.l.b16 %v3824
      %v3921 = vunpack.c.l.b16 %v3828
      %v3922 = vunpack.c.l.b16 %v3831
      %v3923 = vunpack.c.l.b16 %v3835
      %v3924 = vunpack.c.l.b16 %v3838
      %v3925 = vunpack.c.l.b16 %v3842
      %v3926 = vunpack.c.l.b16 %v3845
      %v3927 = vunpack.c.l.b16 %v3849
      %v3928 = vunpack.c.l.b16 %v3852
      %v3929 = vunpack.c.l.b16 %v3856
      %v3930 = vunpack.c.l.b16 %v3859
      %v3931 = vunpack.c.l.b16 %v3863
      %v3932 = vunpack.c.l.b16 %v3866
      %v3933 = vunpack.c.l.b16 %v3870
      %v3934 = vunpack.c.l.b16 %v3873
      %v3935 = vunpack.c.l.b16 %v3877
      %v3936 = vunpack.c.l.b16 %v3880
      %v3937 = vunpack.c.l.b16 %v3884
      %v3938 = vunpack.c.l.b16 %v3887
      %v3939 = vunpack.c.l.b16 %v3891
      %v3940 = vunpack.c.l.b16 %v3894
      %v3941 = vunpack.c.l.b16 %v3898
      %v3942 = vunpack.c.l.b16 %v3901
      %v3943 = vpack.c.b16 %v3912, %v3911
      %v3944 = vpack.c.b16 %v3914, %v3913
      %v3945 = vpack.c.b16 %v3916, %v3915
      %v3946 = vpack.c.b16 %v3918, %v3917
      %v3947 = vpack.c.b16 %v3920, %v3919
      %v3948 = vpack.c.b16 %v3922, %v3921
      %v3949 = vpack.c.b16 %v3924, %v3923
      %v3950 = vpack.c.b16 %v3926, %v3925
      %v3951 = vpack.c.b16 %v3928, %v3927
      %v3952 = vpack.c.b16 %v3930, %v3929
      %v3953 = vpack.c.b16 %v3932, %v3931
      %v3954 = vpack.c.b16 %v3934, %v3933
      %v3955 = vpack.c.b16 %v3936, %v3935
      %v3956 = vpack.c.b16 %v3938, %v3937
      %v3957 = vpack.c.b16 %v3940, %v3939
      %v3958 = vpack.c.b16 %v3942, %v3941
      %v3967 = vunpack.c.l.b16 %v3903
      %v3968 = vunpack.c.l.b16 %v3904
      %v3969 = vunpack.c.l.b16 %v3905
      %v3970 = vunpack.c.l.b16 %v3906
      %v3971 = vunpack.c.l.b16 %v3907
      %v3972 = vunpack.c.l.b16 %v3908
      %v3973 = vunpack.c.l.b16 %v3909
      %v3974 = vunpack.c.l.b16 %v3910
      %v3975 = vpack.c.b16 %v3968, %v3967
      %v3976 = vpack.c.b16 %v3970, %v3969
      %v3977 = vpack.c.b16 %v3972, %v3971
      %v3978 = vpack.c.b16 %v3974, %v3973
      %v3984 = vsel %vm1578, %v3943, 0
      %v3987 = vsel %vm1578, %v3944, 0
      %v3990 = vsel %vm1578, %v3945, 0
      %v3993 = vsel %vm1578, %v3946, 0
      %v3996 = vsel %vm1578, %v3947, 0
      %v3999 = vsel %vm1578, %v3948, 0
      %v4002 = vsel %vm1578, %v3949, 0
      %v4005 = vsel %vm1578, %v3950, 0
      %v4008 = vsel %vm1578, %v3951, 0
      %v4011 = vsel %vm1578, %v3952, 0
      %v4014 = vsel %vm1578, %v3953, 0
      %v4017 = vsel %vm1578, %v3954, 0
      %v4020 = vsel %vm1578, %v3955, 0
      %v4023 = vsel %vm1578, %v3956, 0
      %v4026 = vsel %vm1578, %v3957, 0
      %v4029 = vsel %vm1578, %v3958, 0
      %4031 = vmatprep.subr.bf16.mxu0 0
      %4032 = vmatpush1.bf16.msra.mxu0 %v3975
      %4033 = vmatprep.subr.bf16.mxu0 0
      %4034 = vmatpush1.bf16.msra.mxu0 %v3976
      %4035 = vmatprep.subr.bf16.mxu0 0
      %4036 = vmatpush1.bf16.msra.mxu0 %v3977
      %4037 = vmatprep.subr.bf16.mxu0 0
      %4038 = vmatpush1.bf16.msra.mxu0 %v3978
      %4039 = vmatprep.subr.bf16.mxu0 0
      %4040 = vmatpush1.bf16.msra.mxu0 0
      %4041 = vmatprep.subr.bf16.mxu0 0
      %4042 = vmatpush1.bf16.msra.mxu0 0
      %4043 = vmatprep.subr.bf16.mxu0 0
      %4044 = vmatpush1.bf16.msra.mxu0 0
      %4045 = vmatprep.subr.bf16.mxu0 0
      %4046 = vmatpush1.bf16.msra.mxu0 0
      %4047 = vmatprep.subr.bf16.mxu0 0
      %4048 = vmatpush1.bf16.msra.mxu0 0
      %4049 = vmatprep.subr.bf16.mxu0 0
      %4050 = vmatpush1.bf16.msra.mxu0 0
      %4051 = vmatprep.subr.bf16.mxu0 0
      %4052 = vmatpush1.bf16.msra.mxu0 0
      %4053 = vmatprep.subr.bf16.mxu0 0
      %4054 = vmatpush1.bf16.msra.mxu0 0
      %4055 = vmatprep.subr.bf16.mxu0 0
      %4056 = vmatpush1.bf16.msra.mxu0 0
      %4057 = vmatprep.subr.bf16.mxu0 0
      %4058 = vmatpush1.bf16.msra.mxu0 0
      %4059 = vmatprep.subr.bf16.mxu0 0
      %4060 = vmatpush1.bf16.msra.mxu0 0
      %4061 = vmatprep.subr.bf16.mxu0 0
      %4062 = vmatpush1.bf16.msra.mxu0 0
      %4063 = vmatprep.mubr.bf16.mxu0 0
      %4064 = vmatmul.mubr.bf16.gmra.mrb[0].mxu0 %v3984
      %v4065 = vpop.f32.mrb[0].mxu0
      %v4066 = vadd.f32 0.0, %v4065
      %v4067 = vpop.f32.mrb[0].mxu0
      %v4068 = vpop.f32.mrb[0].mxu0
      %v4069 = vadd.f32 0.0, %v4068
      %v4070 = vpop.f32.mrb[0].mxu0
      %4071 = vmatprep.mubr.bf16.mxu0 0
      %4072 = vmatmul.mubr.bf16.gmra.mrb[0].mxu0 %v3987
      %v4073 = vpop.f32.mrb[0].mxu0
      %v4074 = vadd.f32 0.0, %v4073
      %v4075 = vpop.f32.mrb[0].mxu0
      %v4076 = vpop.f32.mrb[0].mxu0
      %v4077 = vadd.f32 0.0, %v4076
      %v4078 = vpop.f32.mrb[0].mxu0
      %4079 = vmatprep.mubr.bf16.mxu0 0
      %4080 = vmatmul.mubr.bf16.gmra.mrb[0].mxu0 %v3990
      %v4081 = vpop.f32.mrb[0].mxu0
      %v4082 = vadd.f32 0.0, %v4081
      %v4083 = vpop.f32.mrb[0].mxu0
      %v4084 = vpop.f32.mrb[0].mxu0
      %v4085 = vadd.f32 0.0, %v4084
      %v4086 = vpop.f32.mrb[0].mxu0
      %4087 = vmatprep.mubr.bf16.mxu0 0
      %4088 = vmatmul.mubr.bf16.gmra.mrb[0].mxu0 %v3993
      %v4089 = vpop.f32.mrb[0].mxu0
      %v4090 = vadd.f32 0.0, %v4089
      %v4091 = vpop.f32.mrb[0].mxu0
      %v4092 = vpop.f32.mrb[0].mxu0
      %v4093 = vadd.f32 0.0, %v4092
      %v4094 = vpop.f32.mrb[0].mxu0
      %4095 = vmatprep.mubr.bf16.mxu0 0
      %4096 = vmatmul.mubr.bf16.gmra.mrb[0].mxu0 %v3996
      %v4097 = vpop.f32.mrb[0].mxu0
      %v4098 = vadd.f32 0.0, %v4097
      %v4099 = vpop.f32.mrb[0].mxu0
      %v4100 = vpop.f32.mrb[0].mxu0
      %v4101 = vadd.f32 0.0, %v4100
      %v4102 = vpop.f32.mrb[0].mxu0
      %4103 = vmatprep.mubr.bf16.mxu0 0
      %4104 = vmatmul.mubr.bf16.gmra.mrb[0].mxu0 %v3999
      %v4105 = vpop.f32.mrb[0].mxu0
      %v4106 = vadd.f32 0.0, %v4105
      %v4107 = vpop.f32.mrb[0].mxu0
      %v4108 = vpop.f32.mrb[0].mxu0
      %v4109 = vadd.f32 0.0, %v4108
      %v4110 = vpop.f32.mrb[0].mxu0
      %4111 = vmatprep.mubr.bf16.mxu0 0
      %4112 = vmatmul.mubr.bf16.gmra.mrb[0].mxu0 %v4002
      %v4113 = vpop.f32.mrb[0].mxu0
      %v4114 = vadd.f32 0.0, %v4113
      %v4115 = vpop.f32.mrb[0].mxu0
      %v4116 = vpop.f32.mrb[0].mxu0
      %v4117 = vadd.f32 0.0, %v4116
      %v4118 = vpop.f32.mrb[0].mxu0
      %4119 = vmatprep.mubr.bf16.mxu0 0
      %4120 = vmatmul.mubr.bf16.gmra.mrb[0].mxu0 %v4005
      %v4121 = vpop.f32.mrb[0].mxu0
      %v4122 = vadd.f32 0.0, %v4121
      %v4123 = vpop.f32.mrb[0].mxu0
      %v4124 = vpop.f32.mrb[0].mxu0
      %v4125 = vadd.f32 0.0, %v4124
      %v4126 = vpop.f32.mrb[0].mxu0
      %4127 = vmatprep.mubr.bf16.mxu0 0
      %4128 = vmatmul.mubr.bf16.gmra.mrb[0].mxu0 %v4008
      %v4129 = vpop.f32.mrb[0].mxu0
      %v4130 = vadd.f32 0.0, %v4129
      %v4131 = vpop.f32.mrb[0].mxu0
      %v4132 = vpop.f32.mrb[0].mxu0
      %v4133 = vadd.f32 0.0, %v4132
      %v4134 = vpop.f32.mrb[0].mxu0
      %4135 = vmatprep.mubr.bf16.mxu0 0
      %4136 = vmatmul.mubr.bf16.gmra.mrb[0].mxu0 %v4011
      %v4137 = vpop.f32.mrb[0].mxu0
      %v4138 = vadd.f32 0.0, %v4137
      %v4139 = vpop.f32.mrb[0].mxu0
      %v4140 = vpop.f32.mrb[0].mxu0
      %v4141 = vadd.f32 0.0, %v4140
      %v4142 = vpop.f32.mrb[0].mxu0
      %4143 = vmatprep.mubr.bf16.mxu0 0
      %4144 = vmatmul.mubr.bf16.gmra.mrb[0].mxu0 %v4014
      %v4145 = vpop.f32.mrb[0].mxu0
      %v4146 = vadd.f32 0.0, %v4145
      %v4147 = vpop.f32.mrb[0].mxu0
      %v4148 = vpop.f32.mrb[0].mxu0
      %v4149 = vadd.f32 0.0, %v4148
      %v4150 = vpop.f32.mrb[0].mxu0
      %4151 = vmatprep.mubr.bf16.mxu0 0
      %4152 = vmatmul.mubr.bf16.gmra.mrb[0].mxu0 %v4017
      %v4153 = vpop.f32.mrb[0].mxu0
      %v4154 = vadd.f32 0.0, %v4153
      %v4155 = vpop.f32.mrb[0].mxu0
      %v4156 = vpop.f32.mrb[0].mxu0
      %v4157 = vadd.f32 0.0, %v4156
      %v4158 = vpop.f32.mrb[0].mxu0
      %4159 = vmatprep.mubr.bf16.mxu0 0
      %4160 = vmatmul.mubr.bf16.gmra.mrb[0].mxu0 %v4020
      %v4161 = vpop.f32.mrb[0].mxu0
      %v4162 = vadd.f32 0.0, %v4161
      %v4163 = vpop.f32.mrb[0].mxu0
      %v4164 = vpop.f32.mrb[0].mxu0
      %v4165 = vadd.f32 0.0, %v4164
      %v4166 = vpop.f32.mrb[0].mxu0
      %4167 = vmatprep.mubr.bf16.mxu0 0
      %4168 = vmatmul.mubr.bf16.gmra.mrb[0].mxu0 %v4023
      %v4169 = vpop.f32.mrb[0].mxu0
      %v4170 = vadd.f32 0.0, %v4169
      %v4171 = vpop.f32.mrb[0].mxu0
      %v4172 = vpop.f32.mrb[0].mxu0
      %v4173 = vadd.f32 0.0, %v4172
      %v4174 = vpop.f32.mrb[0].mxu0
      %4175 = vmatprep.mubr.bf16.mxu0 0
      %4176 = vmatmul.mubr.bf16.gmra.mrb[0].mxu0 %v4026
      %v4177 = vpop.f32.mrb[0].mxu0
      %v4178 = vadd.f32 0.0, %v4177
      %v4179 = vpop.f32.mrb[0].mxu0
      %v4180 = vpop.f32.mrb[0].mxu0
      %v4181 = vadd.f32 0.0, %v4180
      %v4182 = vpop.f32.mrb[0].mxu0
      %4183 = vmatprep.mubr.bf16.mxu0 0
      %4184 = vmatmul.mubr.bf16.gmra.mrb[0].mxu0 %v4029
      %v4185 = vpop.f32.mrb[0].mxu0
      %v4186 = vadd.f32 0.0, %v4185
      %v4187 = vpop.f32.mrb[0].mxu0
      %v4188 = vpop.f32.mrb[0].mxu0
      %v4189 = vadd.f32 0.0, %v4188
      %v4190 = vpop.f32.mrb[0].mxu0
      %4191 = vdwg.mxu0
      %v4192 = vadd.f32 %v3694, %v4066
      %v4193 = vadd.f32 %v3695, %v4069
      %v4194 = vadd.f32 %v3696, %v4074
      %v4195 = vadd.f32 %v3697, %v4077
      %v4196 = vadd.f32 %v3698, %v4082
      %v4197 = vadd.f32 %v3699, %v4085
      %v4198 = vadd.f32 %v3700, %v4090
      %v4199 = vadd.f32 %v3701, %v4093
      %v4200 = vadd.f32 %v3702, %v4098
      %v4201 = vadd.f32 %v3703, %v4101
      %v4202 = vadd.f32 %v3704, %v4106
      %v4203 = vadd.f32 %v3705, %v4109
      %v4204 = vadd.f32 %v3706, %v4114
      %v4205 = vadd.f32 %v3707, %v4117
      %v4206 = vadd.f32 %v3708, %v4122
      %v4207 = vadd.f32 %v3709, %v4125
      %v4208 = vadd.f32 %v3710, %v4130
      %v4209 = vadd.f32 %v3711, %v4133
      %v4210 = vadd.f32 %v3712, %v4138
      %v4211 = vadd.f32 %v3713, %v4141
      %v4212 = vadd.f32 %v3714, %v4146
      %v4213 = vadd.f32 %v3715, %v4149
      %v4214 = vadd.f32 %v3716, %v4154
      %v4215 = vadd.f32 %v3717, %v4157
      %v4216 = vadd.f32 %v3718, %v4162
      %v4217 = vadd.f32 %v3719, %v4165
      %v4218 = vadd.f32 %v3720, %v4170
      %v4219 = vadd.f32 %v3721, %v4173
      %v4220 = vadd.f32 %v3722, %v4178
      %v4221 = vadd.f32 %v3723, %v4181
      %v4222 = vadd.f32 %v3724, %v4186
      %v4223 = vadd.f32 %v3725, %v4189
      %s4224 = scalar_lea.vmem [#allocation2], 24
      %v4225 = vld [vmem:[%s4224] sm:$0xf]
      %v4226 = vld [vmem:[%s4224 + $0x4] sm:$0xf]
      %v4227 = vld [vmem:[%s4224 + $0xc] sm:$0xf]
      %v4228 = vld [vmem:[%s4224 + $0x10] sm:$0xf]
      %v4229 = vld [vmem:[%s4224 + $0x18] sm:$0xf]
      %v4230 = vld [vmem:[%s4224 + $0x1c] sm:$0xf]
      %v4231 = vld [vmem:[%s4224 + $0x24] sm:$0xf]
      %v4232 = vld [vmem:[%s4224 + $0x28] sm:$0xf]
      %v4233 = vld [vmem:[%s4224 + $0x30] sm:$0xf]
      %v4234 = vld [vmem:[%s4224 + $0x34] sm:$0xf]
      %v4235 = vld [vmem:[%s4224 + $0x3c] sm:$0xf]
      %v4236 = vld [vmem:[%s4224 + $0x40] sm:$0xf]
      %v4237 = vld [vmem:[%s4224 + $0x48] sm:$0xf]
      %v4238 = vld [vmem:[%s4224 + $0x4c] sm:$0xf]
      %v4239 = vld [vmem:[%s4224 + $0x54] sm:$0xf]
      %v4240 = vld [vmem:[%s4224 + $0x58] sm:$0xf]
      %v4241 = vld [vmem:[%s4224 + $0x60] sm:$0xf]
      %v4242 = vld [vmem:[%s4224 + $0x64] sm:$0xf]
      %v4243 = vld [vmem:[%s4224 + $0x6c] sm:$0xf]
      %v4244 = vld [vmem:[%s4224 + $0x70] sm:$0xf]
      %v4245 = vld [vmem:[%s4224 + $0x78] sm:$0xf]
      %v4246 = vld [vmem:[%s4224 + $0x7c] sm:$0xf]
      %v4247 = vld [vmem:[%s4224 + $0x84] sm:$0xf]
      %v4248 = vld [vmem:[%s4224 + $0x88] sm:$0xf]
      %v4249 = vld [vmem:[%s4224 + $0x90] sm:$0xf]
      %v4250 = vld [vmem:[%s4224 + $0x94] sm:$0xf]
      %v4251 = vld [vmem:[%s4224 + $0x9c] sm:$0xf]
      %v4252 = vld [vmem:[%s4224 + $0xa0] sm:$0xf]
      %v4253 = vld [vmem:[%s4224 + $0xa8] sm:$0xf]
      %v4254 = vld [vmem:[%s4224 + $0xac] sm:$0xf]
      %v4255 = vld [vmem:[%s4224 + $0xb4] sm:$0xf]
      %v4256 = vld [vmem:[%s4224 + $0xb8] sm:$0xf]
      %s4257 = scalar_lea.vmem %s3, 192
      %v4258 = vld [vmem:[%s4257] sm:$0xf]
      %v4259 = vld [vmem:[%s4257 + $0x4] sm:$0xf]
      %v4260 = vld [vmem:[%s4257 + $0x8] sm:$0xf]
      %v4261 = vld [vmem:[%s4257 + $0xc] sm:$0xf]
      %v4262 = vld [vmem:[%s4257 + $0x10] sm:$0xf]
      %v4263 = vld [vmem:[%s4257 + $0x14] sm:$0xf]
      %v4264 = vld [vmem:[%s4257 + $0x18] sm:$0xf]
      %v4265 = vld [vmem:[%s4257 + $0x1c] sm:$0xf]
      %v4298 = vunpack.c.l.b16 %v4225
      %v4299 = vunpack.c.l.b16 %v4226
      %v4300 = vunpack.c.l.b16 %v4227
      %v4301 = vunpack.c.l.b16 %v4228
      %v4302 = vunpack.c.l.b16 %v4229
      %v4303 = vunpack.c.l.b16 %v4230
      %v4304 = vunpack.c.l.b16 %v4231
      %v4305 = vunpack.c.l.b16 %v4232
      %v4306 = vunpack.c.l.b16 %v4233
      %v4307 = vunpack.c.l.b16 %v4234
      %v4308 = vunpack.c.l.b16 %v4235
      %v4309 = vunpack.c.l.b16 %v4236
      %v4310 = vunpack.c.l.b16 %v4237
      %v4311 = vunpack.c.l.b16 %v4238
      %v4312 = vunpack.c.l.b16 %v4239
      %v4313 = vunpack.c.l.b16 %v4240
      %v4314 = vunpack.c.l.b16 %v4241
      %v4315 = vunpack.c.l.b16 %v4242
      %v4316 = vunpack.c.l.b16 %v4243
      %v4317 = vunpack.c.l.b16 %v4244
      %v4318 = vunpack.c.l.b16 %v4245
      %v4319 = vunpack.c.l.b16 %v4246
      %v4320 = vunpack.c.l.b16 %v4247
      %v4321 = vunpack.c.l.b16 %v4248
      %v4322 = vunpack.c.l.b16 %v4249
      %v4323 = vunpack.c.l.b16 %v4250
      %v4324 = vunpack.c.l.b16 %v4251
      %v4325 = vunpack.c.l.b16 %v4252
      %v4326 = vunpack.c.l.b16 %v4253
      %v4327 = vunpack.c.l.b16 %v4254
      %v4328 = vunpack.c.l.b16 %v4255
      %v4329 = vunpack.c.l.b16 %v4256
      %v4330 = vpack.c.b16 %v4299, %v4298
      %v4331 = vpack.c.b16 %v4301, %v4300
      %v4332 = vpack.c.b16 %v4303, %v4302
      %v4333 = vpack.c.b16 %v4305, %v4304
      %v4334 = vpack.c.b16 %v4307, %v4306
      %v4335 = vpack.c.b16 %v4309, %v4308
      %v4336 = vpack.c.b16 %v4311, %v4310
      %v4337 = vpack.c.b16 %v4313, %v4312
      %v4338 = vpack.c.b16 %v4315, %v4314
      %v4339 = vpack.c.b16 %v4317, %v4316
      %v4340 = vpack.c.b16 %v4319, %v4318
      %v4341 = vpack.c.b16 %v4321, %v4320
      %v4342 = vpack.c.b16 %v4323, %v4322
      %v4343 = vpack.c.b16 %v4325, %v4324
      %v4344 = vpack.c.b16 %v4327, %v4326
      %v4345 = vpack.c.b16 %v4329, %v4328
      %v4354 = vunpack.c.l.b16 %v4258
      %v4355 = vunpack.c.l.b16 %v4259
      %v4356 = vunpack.c.l.b16 %v4260
      %v4357 = vunpack.c.l.b16 %v4261
      %v4358 = vunpack.c.l.b16 %v4262
      %v4359 = vunpack.c.l.b16 %v4263
      %v4360 = vunpack.c.l.b16 %v4264
      %v4361 = vunpack.c.l.b16 %v4265
      %v4362 = vpack.c.b16 %v4355, %v4354
      %v4363 = vpack.c.b16 %v4357, %v4356
      %v4364 = vpack.c.b16 %v4359, %v4358
      %v4365 = vpack.c.b16 %v4361, %v4360
      %v4371 = vsel %vm1578, %v4330, 0
      %v4374 = vsel %vm1578, %v4331, 0
      %v4377 = vsel %vm1578, %v4332, 0
      %v4380 = vsel %vm1578, %v4333, 0
      %v4383 = vsel %vm1578, %v4334, 0
      %v4386 = vsel %vm1578, %v4335, 0
      %v4389 = vsel %vm1578, %v4336, 0
      %v4392 = vsel %vm1578, %v4337, 0
      %v4395 = vsel %vm1578, %v4338, 0
      %v4398 = vsel %vm1578, %v4339, 0
      %v4401 = vsel %vm1578, %v4340, 0
      %v4404 = vsel %vm1578, %v4341, 0
      %v4407 = vsel %vm1578, %v4342, 0
      %v4410 = vsel %vm1578, %v4343, 0
      %v4413 = vsel %vm1578, %v4344, 0
      %v4416 = vsel %vm1578, %v4345, 0
      %4418 = vmatprep.subr.bf16.mxu0 0
      %4419 = vmatpush1.bf16.msra.mxu0 %v4362
      %4420 = vmatprep.subr.bf16.mxu0 0
      %4421 = vmatpush1.bf16.msra.mxu0 %v4363
      %4422 = vmatprep.subr.bf16.mxu0 0
      %4423 = vmatpush1.bf16.msra.mxu0 %v4364
      %4424 = vmatprep.subr.bf16.mxu0 0
      %4425 = vmatpush1.bf16.msra.mxu0 %v4365
      %4426 = vmatprep.subr.bf16.mxu0 0
      %4427 = vmatpush1.bf16.msra.mxu0 0
      %4428 = vmatprep.subr.bf16.mxu0 0
      %4429 = vmatpush1.bf16.msra.mxu0 0
      %4430 = vmatprep.subr.bf16.mxu0 0
      %4431 = vmatpush1.bf16.msra.mxu0 0
      %4432 = vmatprep.subr.bf16.mxu0 0
      %4433 = vmatpush1.bf16.msra.mxu0 0
      %4434 = vmatprep.subr.bf16.mxu0 0
      %4435 = vmatpush1.bf16.msra.mxu0 0
      %4436 = vmatprep.subr.bf16.mxu0 0
      %4437 = vmatpush1.bf16.msra.mxu0 0
      %4438 = vmatprep.subr.bf16.mxu0 0
      %4439 = vmatpush1.bf16.msra.mxu0 0
      %4440 = vmatprep.subr.bf16.mxu0 0
      %4441 = vmatpush1.bf16.msra.mxu0 0
      %4442 = vmatprep.subr.bf16.mxu0 0
      %4443 = vmatpush1.bf16.msra.mxu0 0
      %4444 = vmatprep.subr.bf16.mxu0 0
      %4445 = vmatpush1.bf16.msra.mxu0 0
      %4446 = vmatprep.subr.bf16.mxu0 0
      %4447 = vmatpush1.bf16.msra.mxu0 0
      %4448 = vmatprep.subr.bf16.mxu0 0
      %4449 = vmatpush1.bf16.msra.mxu0 0
      %4450 = vmatprep.mubr.bf16.mxu0 0
      %4451 = vmatmul.mubr.bf16.gmra.mrb[0].mxu0 %v4371
      %v4452 = vpop.f32.mrb[0].mxu0
      %v4453 = vadd.f32 0.0, %v4452
      %v4454 = vpop.f32.mrb[0].mxu0
      %v4455 = vpop.f32.mrb[0].mxu0
      %v4456 = vadd.f32 0.0, %v4455
      %v4457 = vpop.f32.mrb[0].mxu0
      %4458 = vmatprep.mubr.bf16.mxu0 0
      %4459 = vmatmul.mubr.bf16.gmra.mrb[0].mxu0 %v4374
      %v4460 = vpop.f32.mrb[0].mxu0
      %v4461 = vadd.f32 0.0, %v4460
      %v4462 = vpop.f32.mrb[0].mxu0
      %v4463 = vpop.f32.mrb[0].mxu0
      %v4464 = vadd.f32 0.0, %v4463
      %v4465 = vpop.f32.mrb[0].mxu0
      %4466 = vmatprep.mubr.bf16.mxu0 0
      %4467 = vmatmul.mubr.bf16.gmra.mrb[0].mxu0 %v4377
      %v4468 = vpop.f32.mrb[0].mxu0
      %v4469 = vadd.f32 0.0, %v4468
      %v4470 = vpop.f32.mrb[0].mxu0
      %v4471 = vpop.f32.mrb[0].mxu0
      %v4472 = vadd.f32 0.0, %v4471
      %v4473 = vpop.f32.mrb[0].mxu0
      %4474 = vmatprep.mubr.bf16.mxu0 0
      %4475 = vmatmul.mubr.bf16.gmra.mrb[0].mxu0 %v4380
      %v4476 = vpop.f32.mrb[0].mxu0
      %v4477 = vadd.f32 0.0, %v4476
      %v4478 = vpop.f32.mrb[0].mxu0
      %v4479 = vpop.f32.mrb[0].mxu0
      %v4480 = vadd.f32 0.0, %v4479
      %v4481 = vpop.f32.mrb[0].mxu0
      %4482 = vmatprep.mubr.bf16.mxu0 0
      %4483 = vmatmul.mubr.bf16.gmra.mrb[0].mxu0 %v4383
      %v4484 = vpop.f32.mrb[0].mxu0
      %v4485 = vadd.f32 0.0, %v4484
      %v4486 = vpop.f32.mrb[0].mxu0
      %v4487 = vpop.f32.mrb[0].mxu0
      %v4488 = vadd.f32 0.0, %v4487
      %v4489 = vpop.f32.mrb[0].mxu0
      %4490 = vmatprep.mubr.bf16.mxu0 0
      %4491 = vmatmul.mubr.bf16.gmra.mrb[0].mxu0 %v4386
      %v4492 = vpop.f32.mrb[0].mxu0
      %v4493 = vadd.f32 0.0, %v4492
      %v4494 = vpop.f32.mrb[0].mxu0
      %v4495 = vpop.f32.mrb[0].mxu0
      %v4496 = vadd.f32 0.0, %v4495
      %v4497 = vpop.f32.mrb[0].mxu0
      %4498 = vmatprep.mubr.bf16.mxu0 0
      %4499 = vmatmul.mubr.bf16.gmra.mrb[0].mxu0 %v4389
      %v4500 = vpop.f32.mrb[0].mxu0
      %v4501 = vadd.f32 0.0, %v4500
      %v4502 = vpop.f32.mrb[0].mxu0
      %v4503 = vpop.f32.mrb[0].mxu0
      %v4504 = vadd.f32 0.0, %v4503
      %v4505 = vpop.f32.mrb[0].mxu0
      %4506 = vmatprep.mubr.bf16.mxu0 0
      %4507 = vmatmul.mubr.bf16.gmra.mrb[0].mxu0 %v4392
      %v4508 = vpop.f32.mrb[0].mxu0
      %v4509 = vadd.f32 0.0, %v4508
      %v4510 = vpop.f32.mrb[0].mxu0
      %v4511 = vpop.f32.mrb[0].mxu0
      %v4512 = vadd.f32 0.0, %v4511
      %v4513 = vpop.f32.mrb[0].mxu0
      %4514 = vmatprep.mubr.bf16.mxu0 0
      %4515 = vmatmul.mubr.bf16.gmra.mrb[0].mxu0 %v4395
      %v4516 = vpop.f32.mrb[0].mxu0
      %v4517 = vadd.f32 0.0, %v4516
      %v4518 = vpop.f32.mrb[0].mxu0
      %v4519 = vpop.f32.mrb[0].mxu0
      %v4520 = vadd.f32 0.0, %v4519
      %v4521 = vpop.f32.mrb[0].mxu0
      %4522 = vmatprep.mubr.bf16.mxu0 0
      %4523 = vmatmul.mubr.bf16.gmra.mrb[0].mxu0 %v4398
      %v4524 = vpop.f32.mrb[0].mxu0
      %v4525 = vadd.f32 0.0, %v4524
      %v4526 = vpop.f32.mrb[0].mxu0
      %v4527 = vpop.f32.mrb[0].mxu0
      %v4528 = vadd.f32 0.0, %v4527
      %v4529 = vpop.f32.mrb[0].mxu0
      %4530 = vmatprep.mubr.bf16.mxu0 0
      %4531 = vmatmul.mubr.bf16.gmra.mrb[0].mxu0 %v4401
      %v4532 = vpop.f32.mrb[0].mxu0
      %v4533 = vadd.f32 0.0, %v4532
      %v4534 = vpop.f32.mrb[0].mxu0
      %v4535 = vpop.f32.mrb[0].mxu0
      %v4536 = vadd.f32 0.0, %v4535
      %v4537 = vpop.f32.mrb[0].mxu0
      %4538 = vmatprep.mubr.bf16.mxu0 0
      %4539 = vmatmul.mubr.bf16.gmra.mrb[0].mxu0 %v4404
      %v4540 = vpop.f32.mrb[0].mxu0
      %v4541 = vadd.f32 0.0, %v4540
      %v4542 = vpop.f32.mrb[0].mxu0
      %v4543 = vpop.f32.mrb[0].mxu0
      %v4544 = vadd.f32 0.0, %v4543
      %v4545 = vpop.f32.mrb[0].mxu0
      %4546 = vmatprep.mubr.bf16.mxu0 0
      %4547 = vmatmul.mubr.bf16.gmra.mrb[0].mxu0 %v4407
      %v4548 = vpop.f32.mrb[0].mxu0
      %v4549 = vadd.f32 0.0, %v4548
      %v4550 = vpop.f32.mrb[0].mxu0
      %v4551 = vpop.f32.mrb[0].mxu0
      %v4552 = vadd.f32 0.0, %v4551
      %v4553 = vpop.f32.mrb[0].mxu0
      %4554 = vmatprep.mubr.bf16.mxu0 0
      %4555 = vmatmul.mubr.bf16.gmra.mrb[0].mxu0 %v4410
      %v4556 = vpop.f32.mrb[0].mxu0
      %v4557 = vadd.f32 0.0, %v4556
      %v4558 = vpop.f32.mrb[0].mxu0
      %v4559 = vpop.f32.mrb[0].mxu0
      %v4560 = vadd.f32 0.0, %v4559
      %v4561 = vpop.f32.mrb[0].mxu0
      %4562 = vmatprep.mubr.bf16.mxu0 0
      %4563 = vmatmul.mubr.bf16.gmra.mrb[0].mxu0 %v4413
      %v4564 = vpop.f32.mrb[0].mxu0
      %v4565 = vadd.f32 0.0, %v4564
      %v4566 = vpop.f32.mrb[0].mxu0
      %v4567 = vpop.f32.mrb[0].mxu0
      %v4568 = vadd.f32 0.0, %v4567
      %v4569 = vpop.f32.mrb[0].mxu0
      %4570 = vmatprep.mubr.bf16.mxu0 0
      %4571 = vmatmul.mubr.bf16.gmra.mrb[0].mxu0 %v4416
      %v4572 = vpop.f32.mrb[0].mxu0
      %v4573 = vadd.f32 0.0, %v4572
      %v4574 = vpop.f32.mrb[0].mxu0
      %v4575 = vpop.f32.mrb[0].mxu0
      %v4576 = vadd.f32 0.0, %v4575
      %v4577 = vpop.f32.mrb[0].mxu0
      %4578 = vdwg.mxu0
      %v4579 = vadd.f32 %v4192, %v4453
      %v4580 = vadd.f32 %v4193, %v4456
      %v4581 = vadd.f32 %v4194, %v4461
      %v4582 = vadd.f32 %v4195, %v4464
      %v4583 = vadd.f32 %v4196, %v4469
      %v4584 = vadd.f32 %v4197, %v4472
      %v4585 = vadd.f32 %v4198, %v4477
      %v4586 = vadd.f32 %v4199, %v4480
      %v4587 = vadd.f32 %v4200, %v4485
      %v4588 = vadd.f32 %v4201, %v4488
      %v4589 = vadd.f32 %v4202, %v4493
      %v4590 = vadd.f32 %v4203, %v4496
      %v4591 = vadd.f32 %v4204, %v4501
      %v4592 = vadd.f32 %v4205, %v4504
      %v4593 = vadd.f32 %v4206, %v4509
      %v4594 = vadd.f32 %v4207, %v4512
      %v4595 = vadd.f32 %v4208, %v4517
      %v4596 = vadd.f32 %v4209, %v4520
      %v4597 = vadd.f32 %v4210, %v4525
      %v4598 = vadd.f32 %v4211, %v4528
      %v4599 = vadd.f32 %v4212, %v4533
      %v4600 = vadd.f32 %v4213, %v4536
      %v4601 = vadd.f32 %v4214, %v4541
      %v4602 = vadd.f32 %v4215, %v4544
      %v4603 = vadd.f32 %v4216, %v4549
      %v4604 = vadd.f32 %v4217, %v4552
      %v4605 = vadd.f32 %v4218, %v4557
      %v4606 = vadd.f32 %v4219, %v4560
      %v4607 = vadd.f32 %v4220, %v4565
      %v4608 = vadd.f32 %v4221, %v4568
      %v4609 = vadd.f32 %v4222, %v4573
      %v4610 = vadd.f32 %v4223, %v4576
      %v4611 = vld [vmem:[%s4224] sm:$0xf]
      %v4612 = vld [vmem:[%s4224 + $0x4] sm:$0xf]
      %v4613 = vld [vmem:[%s4224 + $0x8] sm:$0x1]
      %v4614 = vld [vmem:[%s4224 + $0xc] sm:$0xf]
      %v4615 = vld [vmem:[%s4224 + $0x10] sm:$0xf]
      %v4616 = vld [vmem:[%s4224 + $0x14] sm:$0x1]
      %v4617 = vld [vmem:[%s4224 + $0x18] sm:$0xf]
      %v4618 = vld [vmem:[%s4224 + $0x1c] sm:$0xf]
      %v4619 = vld [vmem:[%s4224 + $0x20] sm:$0x1]
      %v4620 = vld [vmem:[%s4224 + $0x24] sm:$0xf]
      %v4621 = vld [vmem:[%s4224 + $0x28] sm:$0xf]
      %v4622 = vld [vmem:[%s4224 + $0x2c] sm:$0x1]
      %v4623 = vld [vmem:[%s4224 + $0x30] sm:$0xf]
      %v4624 = vld [vmem:[%s4224 + $0x34] sm:$0xf]
      %v4625 = vld [vmem:[%s4224 + $0x38] sm:$0x1]
      %v4626 = vld [vmem:[%s4224 + $0x3c] sm:$0xf]
      %v4627 = vld [vmem:[%s4224 + $0x40] sm:$0xf]
      %v4628 = vld [vmem:[%s4224 + $0x44] sm:$0x1]
      %v4629 = vld [vmem:[%s4224 + $0x48] sm:$0xf]
      %v4630 = vld [vmem:[%s4224 + $0x4c] sm:$0xf]
      %v4631 = vld [vmem:[%s4224 + $0x50] sm:$0x1]
      %v4632 = vld [vmem:[%s4224 + $0x54] sm:$0xf]
      %v4633 = vld [vmem:[%s4224 + $0x58] sm:$0xf]
      %v4634 = vld [vmem:[%s4224 + $0x5c] sm:$0x1]
      %v4635 = vld [vmem:[%s4224 + $0x60] sm:$0xf]
      %v4636 = vld [vmem:[%s4224 + $0x64] sm:$0xf]
      %v4637 = vld [vmem:[%s4224 + $0x68] sm:$0x1]
      %v4638 = vld [vmem:[%s4224 + $0x6c] sm:$0xf]
      %v4639 = vld [vmem:[%s4224 + $0x70] sm:$0xf]
      %v4640 = vld [vmem:[%s4224 + $0x74] sm:$0x1]
      %v4641 = vld [vmem:[%s4224 + $0x78] sm:$0xf]
      %v4642 = vld [vmem:[%s4224 + $0x7c] sm:$0xf]
      %v4643 = vld [vmem:[%s4224 + $0x80] sm:$0x1]
      %v4644 = vld [vmem:[%s4224 + $0x84] sm:$0xf]
      %v4645 = vld [vmem:[%s4224 + $0x88] sm:$0xf]
      %v4646 = vld [vmem:[%s4224 + $0x8c] sm:$0x1]
      %v4647 = vld [vmem:[%s4224 + $0x90] sm:$0xf]
      %v4648 = vld [vmem:[%s4224 + $0x94] sm:$0xf]
      %v4649 = vld [vmem:[%s4224 + $0x98] sm:$0x1]
      %v4650 = vld [vmem:[%s4224 + $0x9c] sm:$0xf]
      %v4651 = vld [vmem:[%s4224 + $0xa0] sm:$0xf]
      %v4652 = vld [vmem:[%s4224 + $0xa4] sm:$0x1]
      %v4653 = vld [vmem:[%s4224 + $0xa8] sm:$0xf]
      %v4654 = vld [vmem:[%s4224 + $0xac] sm:$0xf]
      %v4655 = vld [vmem:[%s4224 + $0xb0] sm:$0x1]
      %v4656 = vld [vmem:[%s4224 + $0xb4] sm:$0xf]
      %v4657 = vld [vmem:[%s4224 + $0xb8] sm:$0xf]
      %v4658 = vld [vmem:[%s4224 + $0xbc] sm:$0x1]
      %v4660 = vshrl.u32 %v4611, 16
      %v4662 = vrot.slane %v4660, 4
      %v4663 = vshll.u32 %v4611, 16
      %v4665 = vrot.slane %v4663, 5
      %v4666 = vor.u32 %v4662, %v4665
      %v4667 = vrot.slane %v4666, 4
      %v4669 = vshll.u32 %v4612, 16
      %v4671 = vrot.slane %v4669, 5
      %v4672 = vsel %vm1112, %v4667, %v4671
      %v4673 = vshrl.u32 %v4612, 16
      %v4675 = vrot.slane %v4673, 4
      %v4676 = vor.u32 %v4675, %v4671
      %v4677 = vrot.slane %v4676, 4
      %v4679 = vshll.u32 %v4613, 16
      %v4681 = vrot.slane %v4679, 5
      %v4682 = vsel %vm1112, %v4677, %v4681
      %v4684 = vshrl.u32 %v4614, 16
      %v4686 = vrot.slane %v4684, 4
      %v4687 = vshll.u32 %v4614, 16
      %v4689 = vrot.slane %v4687, 5
      %v4690 = vor.u32 %v4686, %v4689
      %v4691 = vrot.slane %v4690, 4
      %v4693 = vshll.u32 %v4615, 16
      %v4695 = vrot.slane %v4693, 5
      %v4696 = vsel %vm1112, %v4691, %v4695
      %v4697 = vshrl.u32 %v4615, 16
      %v4699 = vrot.slane %v4697, 4
      %v4700 = vor.u32 %v4699, %v4695
      %v4701 = vrot.slane %v4700, 4
      %v4703 = vshll.u32 %v4616, 16
      %v4705 = vrot.slane %v4703, 5
      %v4706 = vsel %vm1112, %v4701, %v4705
      %v4708 = vshrl.u32 %v4617, 16
      %v4710 = vrot.slane %v4708, 4
      %v4711 = vshll.u32 %v4617, 16
      %v4713 = vrot.slane %v4711, 5
      %v4714 = vor.u32 %v4710, %v4713
      %v4715 = vrot.slane %v4714, 4
      %v4717 = vshll.u32 %v4618, 16
      %v4719 = vrot.slane %v4717, 5
      %v4720 = vsel %vm1112, %v4715, %v4719
      %v4721 = vshrl.u32 %v4618, 16
      %v4723 = vrot.slane %v4721, 4
      %v4724 = vor.u32 %v4723, %v4719
      %v4725 = vrot.slane %v4724, 4
      %v4727 = vshll.u32 %v4619, 16
      %v4729 = vrot.slane %v4727, 5
      %v4730 = vsel %vm1112, %v4725, %v4729
      %v4732 = vshrl.u32 %v4620, 16
      %v4734 = vrot.slane %v4732, 4
      %v4735 = vshll.u32 %v4620, 16
      %v4737 = vrot.slane %v4735, 5
      %v4738 = vor.u32 %v4734, %v4737
      %v4739 = vrot.slane %v4738, 4
      %v4741 = vshll.u32 %v4621, 16
      %v4743 = vrot.slane %v4741, 5
      %v4744 = vsel %vm1112, %v4739, %v4743
      %v4745 = vshrl.u32 %v4621, 16
      %v4747 = vrot.slane %v4745, 4
      %v4748 = vor.u32 %v4747, %v4743
      %v4749 = vrot.slane %v4748, 4
      %v4751 = vshll.u32 %v4622, 16
      %v4753 = vrot.slane %v4751, 5
      %v4754 = vsel %vm1112, %v4749, %v4753
      %v4756 = vshrl.u32 %v4623, 16
      %v4758 = vrot.slane %v4756, 4
      %v4759 = vshll.u32 %v4623, 16
      %v4761 = vrot.slane %v4759, 5
      %v4762 = vor.u32 %v4758, %v4761
      %v4763 = vrot.slane %v4762, 4
      %v4765 = vshll.u32 %v4624, 16
      %v4767 = vrot.slane %v4765, 5
      %v4768 = vsel %vm1112, %v4763, %v4767
      %v4769 = vshrl.u32 %v4624, 16
      %v4771 = vrot.slane %v4769, 4
      %v4772 = vor.u32 %v4771, %v4767
      %v4773 = vrot.slane %v4772, 4
      %v4775 = vshll.u32 %v4625, 16
      %v4777 = vrot.slane %v4775, 5
      %v4778 = vsel %vm1112, %v4773, %v4777
      %v4780 = vshrl.u32 %v4626, 16
      %v4782 = vrot.slane %v4780, 4
      %v4783 = vshll.u32 %v4626, 16
      %v4785 = vrot.slane %v4783, 5
      %v4786 = vor.u32 %v4782, %v4785
      %v4787 = vrot.slane %v4786, 4
      %v4789 = vshll.u32 %v4627, 16
      %v4791 = vrot.slane %v4789, 5
      %v4792 = vsel %vm1112, %v4787, %v4791
      %v4793 = vshrl.u32 %v4627, 16
      %v4795 = vrot.slane %v4793, 4
      %v4796 = vor.u32 %v4795, %v4791
      %v4797 = vrot.slane %v4796, 4
      %v4799 = vshll.u32 %v4628, 16
      %v4801 = vrot.slane %v4799, 5
      %v4802 = vsel %vm1112, %v4797, %v4801
      %v4804 = vshrl.u32 %v4629, 16
      %v4806 = vrot.slane %v4804, 4
      %v4807 = vshll.u32 %v4629, 16
      %v4809 = vrot.slane %v4807, 5
      %v4810 = vor.u32 %v4806, %v4809
      %v4811 = vrot.slane %v4810, 4
      %v4813 = vshll.u32 %v4630, 16
      %v4815 = vrot.slane %v4813, 5
      %v4816 = vsel %vm1112, %v4811, %v4815
      %v4817 = vshrl.u32 %v4630, 16
      %v4819 = vrot.slane %v4817, 4
      %v4820 = vor.u32 %v4819, %v4815
      %v4821 = vrot.slane %v4820, 4
      %v4823 = vshll.u32 %v4631, 16
      %v4825 = vrot.slane %v4823, 5
      %v4826 = vsel %vm1112, %v4821, %v4825
      %v4828 = vshrl.u32 %v4632, 16
      %v4830 = vrot.slane %v4828, 4
      %v4831 = vshll.u32 %v4632, 16
      %v4833 = vrot.slane %v4831, 5
      %v4834 = vor.u32 %v4830, %v4833
      %v4835 = vrot.slane %v4834, 4
      %v4837 = vshll.u32 %v4633, 16
      %v4839 = vrot.slane %v4837, 5
      %v4840 = vsel %vm1112, %v4835, %v4839
      %v4841 = vshrl.u32 %v4633, 16
      %v4843 = vrot.slane %v4841, 4
      %v4844 = vor.u32 %v4843, %v4839
      %v4845 = vrot.slane %v4844, 4
      %v4847 = vshll.u32 %v4634, 16
      %v4849 = vrot.slane %v4847, 5
      %v4850 = vsel %vm1112, %v4845, %v4849
      %v4852 = vshrl.u32 %v4635, 16
      %v4854 = vrot.slane %v4852, 4
      %v4855 = vshll.u32 %v4635, 16
      %v4857 = vrot.slane %v4855, 5
      %v4858 = vor.u32 %v4854, %v4857
      %v4859 = vrot.slane %v4858, 4
      %v4861 = vshll.u32 %v4636, 16
      %v4863 = vrot.slane %v4861, 5
      %v4864 = vsel %vm1112, %v4859, %v4863
      %v4865 = vshrl.u32 %v4636, 16
      %v4867 = vrot.slane %v4865, 4
      %v4868 = vor.u32 %v4867, %v4863
      %v4869 = vrot.slane %v4868, 4
      %v4871 = vshll.u32 %v4637, 16
      %v4873 = vrot.slane %v4871, 5
      %v4874 = vsel %vm1112, %v4869, %v4873
      %v4876 = vshrl.u32 %v4638, 16
      %v4878 = vrot.slane %v4876, 4
      %v4879 = vshll.u32 %v4638, 16
      %v4881 = vrot.slane %v4879, 5
      %v4882 = vor.u32 %v4878, %v4881
      %v4883 = vrot.slane %v4882, 4
      %v4885 = vshll.u32 %v4639, 16
      %v4887 = vrot.slane %v4885, 5
      %v4888 = vsel %vm1112, %v4883, %v4887
      %v4889 = vshrl.u32 %v4639, 16
      %v4891 = vrot.slane %v4889, 4
      %v4892 = vor.u32 %v4891, %v4887
      %v4893 = vrot.slane %v4892, 4
      %v4895 = vshll.u32 %v4640, 16
      %v4897 = vrot.slane %v4895, 5
      %v4898 = vsel %vm1112, %v4893, %v4897
      %v4900 = vshrl.u32 %v4641, 16
      %v4902 = vrot.slane %v4900, 4
      %v4903 = vshll.u32 %v4641, 16
      %v4905 = vrot.slane %v4903, 5
      %v4906 = vor.u32 %v4902, %v4905
      %v4907 = vrot.slane %v4906, 4
      %v4909 = vshll.u32 %v4642, 16
      %v4911 = vrot.slane %v4909, 5
      %v4912 = vsel %vm1112, %v4907, %v4911
      %v4913 = vshrl.u32 %v4642, 16
      %v4915 = vrot.slane %v4913, 4
      %v4916 = vor.u32 %v4915, %v4911
      %v4917 = vrot.slane %v4916, 4
      %v4919 = vshll.u32 %v4643, 16
      %v4921 = vrot.slane %v4919, 5
      %v4922 = vsel %vm1112, %v4917, %v4921
      %v4924 = vshrl.u32 %v4644, 16
      %v4926 = vrot.slane %v4924, 4
      %v4927 = vshll.u32 %v4644, 16
      %v4929 = vrot.slane %v4927, 5
      %v4930 = vor.u32 %v4926, %v4929
      %v4931 = vrot.slane %v4930, 4
      %v4933 = vshll.u32 %v4645, 16
      %v4935 = vrot.slane %v4933, 5
      %v4936 = vsel %vm1112, %v4931, %v4935
      %v4937 = vshrl.u32 %v4645, 16
      %v4939 = vrot.slane %v4937, 4
      %v4940 = vor.u32 %v4939, %v4935
      %v4941 = vrot.slane %v4940, 4
      %v4943 = vshll.u32 %v4646, 16
      %v4945 = vrot.slane %v4943, 5
      %v4946 = vsel %vm1112, %v4941, %v4945
      %v4948 = vshrl.u32 %v4647, 16
      %v4950 = vrot.slane %v4948, 4
      %v4951 = vshll.u32 %v4647, 16
      %v4953 = vrot.slane %v4951, 5
      %v4954 = vor.u32 %v4950, %v4953
      %v4955 = vrot.slane %v4954, 4
      %v4957 = vshll.u32 %v4648, 16
      %v4959 = vrot.slane %v4957, 5
      %v4960 = vsel %vm1112, %v4955, %v4959
      %v4961 = vshrl.u32 %v4648, 16
      %v4963 = vrot.slane %v4961, 4
      %v4964 = vor.u32 %v4963, %v4959
      %v4965 = vrot.slane %v4964, 4
      %v4967 = vshll.u32 %v4649, 16
      %v4969 = vrot.slane %v4967, 5
      %v4970 = vsel %vm1112, %v4965, %v4969
      %v4972 = vshrl.u32 %v4650, 16
      %v4974 = vrot.slane %v4972, 4
      %v4975 = vshll.u32 %v4650, 16
      %v4977 = vrot.slane %v4975, 5
      %v4978 = vor.u32 %v4974, %v4977
      %v4979 = vrot.slane %v4978, 4
      %v4981 = vshll.u32 %v4651, 16
      %v4983 = vrot.slane %v4981, 5
      %v4984 = vsel %vm1112, %v4979, %v4983
      %v4985 = vshrl.u32 %v4651, 16
      %v4987 = vrot.slane %v4985, 4
      %v4988 = vor.u32 %v4987, %v4983
      %v4989 = vrot.slane %v4988, 4
      %v4991 = vshll.u32 %v4652, 16
      %v4993 = vrot.slane %v4991, 5
      %v4994 = vsel %vm1112, %v4989, %v4993
      %v4996 = vshrl.u32 %v4653, 16
      %v4998 = vrot.slane %v4996, 4
      %v4999 = vshll.u32 %v4653, 16
      %v5001 = vrot.slane %v4999, 5
      %v5002 = vor.u32 %v4998, %v5001
      %v5003 = vrot.slane %v5002, 4
      %v5005 = vshll.u32 %v4654, 16
      %v5007 = vrot.slane %v5005, 5
      %v5008 = vsel %vm1112, %v5003, %v5007
      %v5009 = vshrl.u32 %v4654, 16
      %v5011 = vrot.slane %v5009, 4
      %v5012 = vor.u32 %v5011, %v5007
      %v5013 = vrot.slane %v5012, 4
      %v5015 = vshll.u32 %v4655, 16
      %v5017 = vrot.slane %v5015, 5
      %v5018 = vsel %vm1112, %v5013, %v5017
      %v5020 = vshrl.u32 %v4656, 16
      %v5022 = vrot.slane %v5020, 4
      %v5023 = vshll.u32 %v4656, 16
      %v5025 = vrot.slane %v5023, 5
      %v5026 = vor.u32 %v5022, %v5025
      %v5027 = vrot.slane %v5026, 4
      %v5029 = vshll.u32 %v4657, 16
      %v5031 = vrot.slane %v5029, 5
      %v5032 = vsel %vm1112, %v5027, %v5031
      %v5033 = vshrl.u32 %v4657, 16
      %v5035 = vrot.slane %v5033, 4
      %v5036 = vor.u32 %v5035, %v5031
      %v5037 = vrot.slane %v5036, 4
      %v5039 = vshll.u32 %v4658, 16
      %v5041 = vrot.slane %v5039, 5
      %v5042 = vsel %vm1112, %v5037, %v5041
      %s5043 = scalar_lea.vmem %s3, 224
      %v5044 = vld [vmem:[%s5043] sm:$0xf]
      %v5045 = vld [vmem:[%s5043 + $0x4] sm:$0xf]
      %v5046 = vld [vmem:[%s5043 + $0x8] sm:$0xf]
      %v5047 = vld [vmem:[%s5043 + $0xc] sm:$0xf]
      %v5048 = vld [vmem:[%s5043 + $0x10] sm:$0xf]
      %v5049 = vld [vmem:[%s5043 + $0x14] sm:$0xf]
      %v5050 = vld [vmem:[%s5043 + $0x18] sm:$0xf]
      %v5051 = vld [vmem:[%s5043 + $0x1c] sm:$0xf]
      %v5052 = vunpack.c.l.b16 %v4672
      %v5053 = vunpack.c.l.b16 %v4682
      %v5054 = vunpack.c.l.b16 %v4696
      %v5055 = vunpack.c.l.b16 %v4706
      %v5056 = vunpack.c.l.b16 %v4720
      %v5057 = vunpack.c.l.b16 %v4730
      %v5058 = vunpack.c.l.b16 %v4744
      %v5059 = vunpack.c.l.b16 %v4754
      %v5060 = vunpack.c.l.b16 %v4768
      %v5061 = vunpack.c.l.b16 %v4778
      %v5062 = vunpack.c.l.b16 %v4792
      %v5063 = vunpack.c.l.b16 %v4802
      %v5064 = vunpack.c.l.b16 %v4816
      %v5065 = vunpack.c.l.b16 %v4826
      %v5066 = vunpack.c.l.b16 %v4840
      %v5067 = vunpack.c.l.b16 %v4850
      %v5068 = vunpack.c.l.b16 %v4864
      %v5069 = vunpack.c.l.b16 %v4874
      %v5070 = vunpack.c.l.b16 %v4888
      %v5071 = vunpack.c.l.b16 %v4898
      %v5072 = vunpack.c.l.b16 %v4912
      %v5073 = vunpack.c.l.b16 %v4922
      %v5074 = vunpack.c.l.b16 %v4936
      %v5075 = vunpack.c.l.b16 %v4946
      %v5076 = vunpack.c.l.b16 %v4960
      %v5077 = vunpack.c.l.b16 %v4970
      %v5078 = vunpack.c.l.b16 %v4984
      %v5079 = vunpack.c.l.b16 %v4994
      %v5080 = vunpack.c.l.b16 %v5008
      %v5081 = vunpack.c.l.b16 %v5018
      %v5082 = vunpack.c.l.b16 %v5032
      %v5083 = vunpack.c.l.b16 %v5042
      %v5084 = vpack.c.b16 %v5053, %v5052
      %v5085 = vpack.c.b16 %v5055, %v5054
      %v5086 = vpack.c.b16 %v5057, %v5056
      %v5087 = vpack.c.b16 %v5059, %v5058
      %v5088 = vpack.c.b16 %v5061, %v5060
      %v5089 = vpack.c.b16 %v5063, %v5062
      %v5090 = vpack.c.b16 %v5065, %v5064
      %v5091 = vpack.c.b16 %v5067, %v5066
      %v5092 = vpack.c.b16 %v5069, %v5068
      %v5093 = vpack.c.b16 %v5071, %v5070
      %v5094 = vpack.c.b16 %v5073, %v5072
      %v5095 = vpack.c.b16 %v5075, %v5074
      %v5096 = vpack.c.b16 %v5077, %v5076
      %v5097 = vpack.c.b16 %v5079, %v5078
      %v5098 = vpack.c.b16 %v5081, %v5080
      %v5099 = vpack.c.b16 %v5083, %v5082
      %v5108 = vunpack.c.l.b16 %v5044
      %v5109 = vunpack.c.l.b16 %v5045
      %v5110 = vunpack.c.l.b16 %v5046
      %v5111 = vunpack.c.l.b16 %v5047
      %v5112 = vunpack.c.l.b16 %v5048
      %v5113 = vunpack.c.l.b16 %v5049
      %v5114 = vunpack.c.l.b16 %v5050
      %v5115 = vunpack.c.l.b16 %v5051
      %v5116 = vpack.c.b16 %v5109, %v5108
      %v5117 = vpack.c.b16 %v5111, %v5110
      %v5118 = vpack.c.b16 %v5113, %v5112
      %v5119 = vpack.c.b16 %v5115, %v5114
      %v5125 = vsel %vm1578, %v5084, 0
      %v5128 = vsel %vm1578, %v5085, 0
      %v5131 = vsel %vm1578, %v5086, 0
      %v5134 = vsel %vm1578, %v5087, 0
      %v5137 = vsel %vm1578, %v5088, 0
      %v5140 = vsel %vm1578, %v5089, 0
      %v5143 = vsel %vm1578, %v5090, 0
      %v5146 = vsel %vm1578, %v5091, 0
      %v5149 = vsel %vm1578, %v5092, 0
      %v5152 = vsel %vm1578, %v5093, 0
      %v5155 = vsel %vm1578, %v5094, 0
      %v5158 = vsel %vm1578, %v5095, 0
      %v5161 = vsel %vm1578, %v5096, 0
      %v5164 = vsel %vm1578, %v5097, 0
      %v5167 = vsel %vm1578, %v5098, 0
      %v5170 = vsel %vm1578, %v5099, 0
      %5172 = vmatprep.subr.bf16.mxu0 0
      %5173 = vmatpush1.bf16.msra.mxu0 %v5116
      %5174 = vmatprep.subr.bf16.mxu0 0
      %5175 = vmatpush1.bf16.msra.mxu0 %v5117
      %5176 = vmatprep.subr.bf16.mxu0 0
      %5177 = vmatpush1.bf16.msra.mxu0 %v5118
      %5178 = vmatprep.subr.bf16.mxu0 0
      %5179 = vmatpush1.bf16.msra.mxu0 %v5119
      %5180 = vmatprep.subr.bf16.mxu0 0
      %5181 = vmatpush1.bf16.msra.mxu0 0
      %5182 = vmatprep.subr.bf16.mxu0 0
      %5183 = vmatpush1.bf16.msra.mxu0 0
      %5184 = vmatprep.subr.bf16.mxu0 0
      %5185 = vmatpush1.bf16.msra.mxu0 0
      %5186 = vmatprep.subr.bf16.mxu0 0
      %5187 = vmatpush1.bf16.msra.mxu0 0
      %5188 = vmatprep.subr.bf16.mxu0 0
      %5189 = vmatpush1.bf16.msra.mxu0 0
      %5190 = vmatprep.subr.bf16.mxu0 0
      %5191 = vmatpush1.bf16.msra.mxu0 0
      %5192 = vmatprep.subr.bf16.mxu0 0
      %5193 = vmatpush1.bf16.msra.mxu0 0
      %5194 = vmatprep.subr.bf16.mxu0 0
      %5195 = vmatpush1.bf16.msra.mxu0 0
      %5196 = vmatprep.subr.bf16.mxu0 0
      %5197 = vmatpush1.bf16.msra.mxu0 0
      %5198 = vmatprep.subr.bf16.mxu0 0
      %5199 = vmatpush1.bf16.msra.mxu0 0
      %5200 = vmatprep.subr.bf16.mxu0 0
      %5201 = vmatpush1.bf16.msra.mxu0 0
      %5202 = vmatprep.subr.bf16.mxu0 0
      %5203 = vmatpush1.bf16.msra.mxu0 0
      %5204 = vmatprep.mubr.bf16.mxu0 0
      %5205 = vmatmul.mubr.bf16.gmra.mrb[0].mxu0 %v5125
      %v5206 = vpop.f32.mrb[0].mxu0
      %v5207 = vadd.f32 0.0, %v5206
      %v5208 = vpop.f32.mrb[0].mxu0
      %v5209 = vpop.f32.mrb[0].mxu0
      %v5210 = vadd.f32 0.0, %v5209
      %v5211 = vpop.f32.mrb[0].mxu0
      %5212 = vmatprep.mubr.bf16.mxu0 0
      %5213 = vmatmul.mubr.bf16.gmra.mrb[0].mxu0 %v5128
      %v5214 = vpop.f32.mrb[0].mxu0
      %v5215 = vadd.f32 0.0, %v5214
      %v5216 = vpop.f32.mrb[0].mxu0
      %v5217 = vpop.f32.mrb[0].mxu0
      %v5218 = vadd.f32 0.0, %v5217
      %v5219 = vpop.f32.mrb[0].mxu0
      %5220 = vmatprep.mubr.bf16.mxu0 0
      %5221 = vmatmul.mubr.bf16.gmra.mrb[0].mxu0 %v5131
      %v5222 = vpop.f32.mrb[0].mxu0
      %v5223 = vadd.f32 0.0, %v5222
      %v5224 = vpop.f32.mrb[0].mxu0
      %v5225 = vpop.f32.mrb[0].mxu0
      %v5226 = vadd.f32 0.0, %v5225
      %v5227 = vpop.f32.mrb[0].mxu0
      %5228 = vmatprep.mubr.bf16.mxu0 0
      %5229 = vmatmul.mubr.bf16.gmra.mrb[0].mxu0 %v5134
      %v5230 = vpop.f32.mrb[0].mxu0
      %v5231 = vadd.f32 0.0, %v5230
      %v5232 = vpop.f32.mrb[0].mxu0
      %v5233 = vpop.f32.mrb[0].mxu0
      %v5234 = vadd.f32 0.0, %v5233
      %v5235 = vpop.f32.mrb[0].mxu0
      %5236 = vmatprep.mubr.bf16.mxu0 0
      %5237 = vmatmul.mubr.bf16.gmra.mrb[0].mxu0 %v5137
      %v5238 = vpop.f32.mrb[0].mxu0
      %v5239 = vadd.f32 0.0, %v5238
      %v5240 = vpop.f32.mrb[0].mxu0
      %v5241 = vpop.f32.mrb[0].mxu0
      %v5242 = vadd.f32 0.0, %v5241
      %v5243 = vpop.f32.mrb[0].mxu0
      %5244 = vmatprep.mubr.bf16.mxu0 0
      %5245 = vmatmul.mubr.bf16.gmra.mrb[0].mxu0 %v5140
      %v5246 = vpop.f32.mrb[0].mxu0
      %v5247 = vadd.f32 0.0, %v5246
      %v5248 = vpop.f32.mrb[0].mxu0
      %v5249 = vpop.f32.mrb[0].mxu0
      %v5250 = vadd.f32 0.0, %v5249
      %v5251 = vpop.f32.mrb[0].mxu0
      %5252 = vmatprep.mubr.bf16.mxu0 0
      %5253 = vmatmul.mubr.bf16.gmra.mrb[0].mxu0 %v5143
      %v5254 = vpop.f32.mrb[0].mxu0
      %v5255 = vadd.f32 0.0, %v5254
      %v5256 = vpop.f32.mrb[0].mxu0
      %v5257 = vpop.f32.mrb[0].mxu0
      %v5258 = vadd.f32 0.0, %v5257
      %v5259 = vpop.f32.mrb[0].mxu0
      %5260 = vmatprep.mubr.bf16.mxu0 0
      %5261 = vmatmul.mubr.bf16.gmra.mrb[0].mxu0 %v5146
      %v5262 = vpop.f32.mrb[0].mxu0
      %v5263 = vadd.f32 0.0, %v5262
      %v5264 = vpop.f32.mrb[0].mxu0
      %v5265 = vpop.f32.mrb[0].mxu0
      %v5266 = vadd.f32 0.0, %v5265
      %v5267 = vpop.f32.mrb[0].mxu0
      %5268 = vmatprep.mubr.bf16.mxu0 0
      %5269 = vmatmul.mubr.bf16.gmra.mrb[0].mxu0 %v5149
      %v5270 = vpop.f32.mrb[0].mxu0
      %v5271 = vadd.f32 0.0, %v5270
      %v5272 = vpop.f32.mrb[0].mxu0
      %v5273 = vpop.f32.mrb[0].mxu0
      %v5274 = vadd.f32 0.0, %v5273
      %v5275 = vpop.f32.mrb[0].mxu0
      %5276 = vmatprep.mubr.bf16.mxu0 0
      %5277 = vmatmul.mubr.bf16.gmra.mrb[0].mxu0 %v5152
      %v5278 = vpop.f32.mrb[0].mxu0
      %v5279 = vadd.f32 0.0, %v5278
      %v5280 = vpop.f32.mrb[0].mxu0
      %v5281 = vpop.f32.mrb[0].mxu0
      %v5282 = vadd.f32 0.0, %v5281
      %v5283 = vpop.f32.mrb[0].mxu0
      %5284 = vmatprep.mubr.bf16.mxu0 0
      %5285 = vmatmul.mubr.bf16.gmra.mrb[0].mxu0 %v5155
      %v5286 = vpop.f32.mrb[0].mxu0
      %v5287 = vadd.f32 0.0, %v5286
      %v5288 = vpop.f32.mrb[0].mxu0
      %v5289 = vpop.f32.mrb[0].mxu0
      %v5290 = vadd.f32 0.0, %v5289
      %v5291 = vpop.f32.mrb[0].mxu0
      %5292 = vmatprep.mubr.bf16.mxu0 0
      %5293 = vmatmul.mubr.bf16.gmra.mrb[0].mxu0 %v5158
      %v5294 = vpop.f32.mrb[0].mxu0
      %v5295 = vadd.f32 0.0, %v5294
      %v5296 = vpop.f32.mrb[0].mxu0
      %v5297 = vpop.f32.mrb[0].mxu0
      %v5298 = vadd.f32 0.0, %v5297
      %v5299 = vpop.f32.mrb[0].mxu0
      %5300 = vmatprep.mubr.bf16.mxu0 0
      %5301 = vmatmul.mubr.bf16.gmra.mrb[0].mxu0 %v5161
      %v5302 = vpop.f32.mrb[0].mxu0
      %v5303 = vadd.f32 0.0, %v5302
      %v5304 = vpop.f32.mrb[0].mxu0
      %v5305 = vpop.f32.mrb[0].mxu0
      %v5306 = vadd.f32 0.0, %v5305
      %v5307 = vpop.f32.mrb[0].mxu0
      %5308 = vmatprep.mubr.bf16.mxu0 0
      %5309 = vmatmul.mubr.bf16.gmra.mrb[0].mxu0 %v5164
      %v5310 = vpop.f32.mrb[0].mxu0
      %v5311 = vadd.f32 0.0, %v5310
      %v5312 = vpop.f32.mrb[0].mxu0
      %v5313 = vpop.f32.mrb[0].mxu0
      %v5314 = vadd.f32 0.0, %v5313
      %v5315 = vpop.f32.mrb[0].mxu0
      %5316 = vmatprep.mubr.bf16.mxu0 0
      %5317 = vmatmul.mubr.bf16.gmra.mrb[0].mxu0 %v5167
      %v5318 = vpop.f32.mrb[0].mxu0
      %v5319 = vadd.f32 0.0, %v5318
      %v5320 = vpop.f32.mrb[0].mxu0
      %v5321 = vpop.f32.mrb[0].mxu0
      %v5322 = vadd.f32 0.0, %v5321
      %v5323 = vpop.f32.mrb[0].mxu0
      %5324 = vmatprep.mubr.bf16.mxu0 0
      %5325 = vmatmul.mubr.bf16.gmra.mrb[0].mxu0 %v5170
      %v5326 = vpop.f32.mrb[0].mxu0
      %v5327 = vadd.f32 0.0, %v5326
      %v5328 = vpop.f32.mrb[0].mxu0
      %v5329 = vpop.f32.mrb[0].mxu0
      %v5330 = vadd.f32 0.0, %v5329
      %v5331 = vpop.f32.mrb[0].mxu0
      %5332 = vdwg.mxu0
      %v5333 = vadd.f32 %v4579, %v5207
      %v5334 = vadd.f32 %v4580, %v5210
      %v5335 = vadd.f32 %v4581, %v5215
      %v5336 = vadd.f32 %v4582, %v5218
      %v5337 = vadd.f32 %v4583, %v5223
      %v5338 = vadd.f32 %v4584, %v5226
      %v5339 = vadd.f32 %v4585, %v5231
      %v5340 = vadd.f32 %v4586, %v5234
      %v5341 = vadd.f32 %v4587, %v5239
      %v5342 = vadd.f32 %v4588, %v5242
      %v5343 = vadd.f32 %v4589, %v5247
      %v5344 = vadd.f32 %v4590, %v5250
      %v5345 = vadd.f32 %v4591, %v5255
      %v5346 = vadd.f32 %v4592, %v5258
      %v5347 = vadd.f32 %v4593, %v5263
      %v5348 = vadd.f32 %v4594, %v5266
      %v5349 = vadd.f32 %v4595, %v5271
      %v5350 = vadd.f32 %v4596, %v5274
      %v5351 = vadd.f32 %v4597, %v5279
      %v5352 = vadd.f32 %v4598, %v5282
      %v5353 = vadd.f32 %v4599, %v5287
      %v5354 = vadd.f32 %v4600, %v5290
      %v5355 = vadd.f32 %v4601, %v5295
      %v5356 = vadd.f32 %v4602, %v5298
      %v5357 = vadd.f32 %v4603, %v5303
      %v5358 = vadd.f32 %v4604, %v5306
      %v5359 = vadd.f32 %v4605, %v5311
      %v5360 = vadd.f32 %v4606, %v5314
      %v5361 = vadd.f32 %v4607, %v5319
      %v5362 = vadd.f32 %v4608, %v5322
      %v5363 = vadd.f32 %v4609, %v5327
      %v5364 = vadd.f32 %v4610, %v5330
      %v5365 = vld [vmem:[%s4224] sm:$0xe]
      %v5366 = vld [vmem:[%s4224 + $0xc] sm:$0xe]
      %v5367 = vld [vmem:[%s4224 + $0x18] sm:$0xe]
      %v5368 = vld [vmem:[%s4224 + $0x24] sm:$0xe]
      %v5369 = vld [vmem:[%s4224 + $0x30] sm:$0xe]
      %v5370 = vld [vmem:[%s4224 + $0x3c] sm:$0xe]
      %v5371 = vld [vmem:[%s4224 + $0x48] sm:$0xe]
      %v5372 = vld [vmem:[%s4224 + $0x54] sm:$0xe]
      %v5373 = vld [vmem:[%s4224 + $0x60] sm:$0xe]
      %v5374 = vld [vmem:[%s4224 + $0x6c] sm:$0xe]
      %v5375 = vld [vmem:[%s4224 + $0x78] sm:$0xe]
      %v5376 = vld [vmem:[%s4224 + $0x84] sm:$0xe]
      %v5377 = vld [vmem:[%s4224 + $0x90] sm:$0xe]
      %v5378 = vld [vmem:[%s4224 + $0x9c] sm:$0xe]
      %v5379 = vld [vmem:[%s4224 + $0xa8] sm:$0xe]
      %v5380 = vld [vmem:[%s4224 + $0xb4] sm:$0xe]
      %v5429 = vrot.slane %v5365, 5
      %v5430 = vrot.slane %v5429, 4
      %v5431 = vrot.slane %v4612, 5
      %v5432 = vsel %vm2151, %v5430, %v5431
      %v5433 = vrot.slane %v5431, 4
      %v5434 = vrot.slane %v4613, 5
      %v5435 = vsel %vm2151, %v5433, %v5434
      %v5436 = vrot.slane %v5366, 5
      %v5437 = vrot.slane %v5436, 4
      %v5438 = vrot.slane %v4615, 5
      %v5439 = vsel %vm2151, %v5437, %v5438
      %v5440 = vrot.slane %v5438, 4
      %v5441 = vrot.slane %v4616, 5
      %v5442 = vsel %vm2151, %v5440, %v5441
      %v5443 = vrot.slane %v5367, 5
      %v5444 = vrot.slane %v5443, 4
      %v5445 = vrot.slane %v4618, 5
      %v5446 = vsel %vm2151, %v5444, %v5445
      %v5447 = vrot.slane %v5445, 4
      %v5448 = vrot.slane %v4619, 5
      %v5449 = vsel %vm2151, %v5447, %v5448
      %v5450 = vrot.slane %v5368, 5
      %v5451 = vrot.slane %v5450, 4
      %v5452 = vrot.slane %v4621, 5
      %v5453 = vsel %vm2151, %v5451, %v5452
      %v5454 = vrot.slane %v5452, 4
      %v5455 = vrot.slane %v4622, 5
      %v5456 = vsel %vm2151, %v5454, %v5455
      %v5457 = vrot.slane %v5369, 5
      %v5458 = vrot.slane %v5457, 4
      %v5459 = vrot.slane %v4624, 5
      %v5460 = vsel %vm2151, %v5458, %v5459
      %v5461 = vrot.slane %v5459, 4
      %v5462 = vrot.slane %v4625, 5
      %v5463 = vsel %vm2151, %v5461, %v5462
      %v5464 = vrot.slane %v5370, 5
      %v5465 = vrot.slane %v5464, 4
      %v5466 = vrot.slane %v4627, 5
      %v5467 = vsel %vm2151, %v5465, %v5466
      %v5468 = vrot.slane %v5466, 4
      %v5469 = vrot.slane %v4628, 5
      %v5470 = vsel %vm2151, %v5468, %v5469
      %v5471 = vrot.slane %v5371, 5
      %v5472 = vrot.slane %v5471, 4
      %v5473 = vrot.slane %v4630, 5
      %v5474 = vsel %vm2151, %v5472, %v5473
      %v5475 = vrot.slane %v5473, 4
      %v5476 = vrot.slane %v4631, 5
      %v5477 = vsel %vm2151, %v5475, %v5476
      %v5478 = vrot.slane %v5372, 5
      %v5479 = vrot.slane %v5478, 4
      %v5480 = vrot.slane %v4633, 5
      %v5481 = vsel %vm2151, %v5479, %v5480
      %v5482 = vrot.slane %v5480, 4
      %v5483 = vrot.slane %v4634, 5
      %v5484 = vsel %vm2151, %v5482, %v5483
      %v5485 = vrot.slane %v5373, 5
      %v5486 = vrot.slane %v5485, 4
      %v5487 = vrot.slane %v4636, 5
      %v5488 = vsel %vm2151, %v5486, %v5487
      %v5489 = vrot.slane %v5487, 4
      %v5490 = vrot.slane %v4637, 5
      %v5491 = vsel %vm2151, %v5489, %v5490
      %v5492 = vrot.slane %v5374, 5
      %v5493 = vrot.slane %v5492, 4
      %v5494 = vrot.slane %v4639, 5
      %v5495 = vsel %vm2151, %v5493, %v5494
      %v5496 = vrot.slane %v5494, 4
      %v5497 = vrot.slane %v4640, 5
      %v5498 = vsel %vm2151, %v5496, %v5497
      %v5499 = vrot.slane %v5375, 5
      %v5500 = vrot.slane %v5499, 4
      %v5501 = vrot.slane %v4642, 5
      %v5502 = vsel %vm2151, %v5500, %v5501
      %v5503 = vrot.slane %v5501, 4
      %v5504 = vrot.slane %v4643, 5
      %v5505 = vsel %vm2151, %v5503, %v5504
      %v5506 = vrot.slane %v5376, 5
      %v5507 = vrot.slane %v5506, 4
      %v5508 = vrot.slane %v4645, 5
      %v5509 = vsel %vm2151, %v5507, %v5508
      %v5510 = vrot.slane %v5508, 4
      %v5511 = vrot.slane %v4646, 5
      %v5512 = vsel %vm2151, %v5510, %v5511
      %v5513 = vrot.slane %v5377, 5
      %v5514 = vrot.slane %v5513, 4
      %v5515 = vrot.slane %v4648, 5
      %v5516 = vsel %vm2151, %v5514, %v5515
      %v5517 = vrot.slane %v5515, 4
      %v5518 = vrot.slane %v4649, 5
      %v5519 = vsel %vm2151, %v5517, %v5518
      %v5520 = vrot.slane %v5378, 5
      %v5521 = vrot.slane %v5520, 4
      %v5522 = vrot.slane %v4651, 5
      %v5523 = vsel %vm2151, %v5521, %v5522
      %v5524 = vrot.slane %v5522, 4
      %v5525 = vrot.slane %v4652, 5
      %v5526 = vsel %vm2151, %v5524, %v5525
      %v5527 = vrot.slane %v5379, 5
      %v5528 = vrot.slane %v5527, 4
      %v5529 = vrot.slane %v4654, 5
      %v5530 = vsel %vm2151, %v5528, %v5529
      %v5531 = vrot.slane %v5529, 4
      %v5532 = vrot.slane %v4655, 5
      %v5533 = vsel %vm2151, %v5531, %v5532
      %v5534 = vrot.slane %v5380, 5
      %v5535 = vrot.slane %v5534, 4
      %v5536 = vrot.slane %v4657, 5
      %v5537 = vsel %vm2151, %v5535, %v5536
      %v5538 = vrot.slane %v5536, 4
      %v5539 = vrot.slane %v4658, 5
      %v5540 = vsel %vm2151, %v5538, %v5539
      %s5541 = scalar_lea.vmem %s3, 256
      %v5542 = vld [vmem:[%s5541] sm:$0xf]
      %v5543 = vld [vmem:[%s5541 + $0x4] sm:$0xf]
      %v5544 = vld [vmem:[%s5541 + $0x8] sm:$0xf]
      %v5545 = vld [vmem:[%s5541 + $0xc] sm:$0xf]
      %v5546 = vld [vmem:[%s5541 + $0x10] sm:$0xf]
      %v5547 = vld [vmem:[%s5541 + $0x14] sm:$0xf]
      %v5548 = vld [vmem:[%s5541 + $0x18] sm:$0xf]
      %v5549 = vld [vmem:[%s5541 + $0x1c] sm:$0xf]
      %v5550 = vunpack.c.l.b16 %v5432
      %v5551 = vunpack.c.l.b16 %v5435
      %v5552 = vunpack.c.l.b16 %v5439
      %v5553 = vunpack.c.l.b16 %v5442
      %v5554 = vunpack.c.l.b16 %v5446
      %v5555 = vunpack.c.l.b16 %v5449
      %v5556 = vunpack.c.l.b16 %v5453
      %v5557 = vunpack.c.l.b16 %v5456
      %v5558 = vunpack.c.l.b16 %v5460
      %v5559 = vunpack.c.l.b16 %v5463
      %v5560 = vunpack.c.l.b16 %v5467
      %v5561 = vunpack.c.l.b16 %v5470
      %v5562 = vunpack.c.l.b16 %v5474
      %v5563 = vunpack.c.l.b16 %v5477
      %v5564 = vunpack.c.l.b16 %v5481
      %v5565 = vunpack.c.l.b16 %v5484
      %v5566 = vunpack.c.l.b16 %v5488
      %v5567 = vunpack.c.l.b16 %v5491
      %v5568 = vunpack.c.l.b16 %v5495
      %v5569 = vunpack.c.l.b16 %v5498
      %v5570 = vunpack.c.l.b16 %v5502
      %v5571 = vunpack.c.l.b16 %v5505
      %v5572 = vunpack.c.l.b16 %v5509
      %v5573 = vunpack.c.l.b16 %v5512
      %v5574 = vunpack.c.l.b16 %v5516
      %v5575 = vunpack.c.l.b16 %v5519
      %v5576 = vunpack.c.l.b16 %v5523
      %v5577 = vunpack.c.l.b16 %v5526
      %v5578 = vunpack.c.l.b16 %v5530
      %v5579 = vunpack.c.l.b16 %v5533
      %v5580 = vunpack.c.l.b16 %v5537
      %v5581 = vunpack.c.l.b16 %v5540
      %v5582 = vpack.c.b16 %v5551, %v5550
      %v5583 = vpack.c.b16 %v5553, %v5552
      %v5584 = vpack.c.b16 %v5555, %v5554
      %v5585 = vpack.c.b16 %v5557, %v5556
      %v5586 = vpack.c.b16 %v5559, %v5558
      %v5587 = vpack.c.b16 %v5561, %v5560
      %v5588 = vpack.c.b16 %v5563, %v5562
      %v5589 = vpack.c.b16 %v5565, %v5564
      %v5590 = vpack.c.b16 %v5567, %v5566
      %v5591 = vpack.c.b16 %v5569, %v5568
      %v5592 = vpack.c.b16 %v5571, %v5570
      %v5593 = vpack.c.b16 %v5573, %v5572
      %v5594 = vpack.c.b16 %v5575, %v5574
      %v5595 = vpack.c.b16 %v5577, %v5576
      %v5596 = vpack.c.b16 %v5579, %v5578
      %v5597 = vpack.c.b16 %v5581, %v5580
      %v5606 = vunpack.c.l.b16 %v5542
      %v5607 = vunpack.c.l.b16 %v5543
      %v5608 = vunpack.c.l.b16 %v5544
      %v5609 = vunpack.c.l.b16 %v5545
      %v5610 = vunpack.c.l.b16 %v5546
      %v5611 = vunpack.c.l.b16 %v5547
      %v5612 = vunpack.c.l.b16 %v5548
      %v5613 = vunpack.c.l.b16 %v5549
      %v5614 = vpack.c.b16 %v5607, %v5606
      %v5615 = vpack.c.b16 %v5609, %v5608
      %v5616 = vpack.c.b16 %v5611, %v5610
      %v5617 = vpack.c.b16 %v5613, %v5612
      %v5623 = vsel %vm1578, %v5582, 0
      %v5626 = vsel %vm1578, %v5583, 0
      %v5629 = vsel %vm1578, %v5584, 0
      %v5632 = vsel %vm1578, %v5585, 0
      %v5635 = vsel %vm1578, %v5586, 0
      %v5638 = vsel %vm1578, %v5587, 0
      %v5641 = vsel %vm1578, %v5588, 0
      %v5644 = vsel %vm1578, %v5589, 0
      %v5647 = vsel %vm1578, %v5590, 0
      %v5650 = vsel %vm1578, %v5591, 0
      %v5653 = vsel %vm1578, %v5592, 0
      %v5656 = vsel %vm1578, %v5593, 0
      %v5659 = vsel %vm1578, %v5594, 0
      %v5662 = vsel %vm1578, %v5595, 0
      %v5665 = vsel %vm1578, %v5596, 0
      %v5668 = vsel %vm1578, %v5597, 0
      %5670 = vmatprep.subr.bf16.mxu0 0
      %5671 = vmatpush1.bf16.msra.mxu0 %v5614
      %5672 = vmatprep.subr.bf16.mxu0 0
      %5673 = vmatpush1.bf16.msra.mxu0 %v5615
      %5674 = vmatprep.subr.bf16.mxu0 0
      %5675 = vmatpush1.bf16.msra.mxu0 %v5616
      %5676 = vmatprep.subr.bf16.mxu0 0
      %5677 = vmatpush1.bf16.msra.mxu0 %v5617
      %5678 = vmatprep.subr.bf16.mxu0 0
      %5679 = vmatpush1.bf16.msra.mxu0 0
      %5680 = vmatprep.subr.bf16.mxu0 0
      %5681 = vmatpush1.bf16.msra.mxu0 0
      %5682 = vmatprep.subr.bf16.mxu0 0
      %5683 = vmatpush1.bf16.msra.mxu0 0
      %5684 = vmatprep.subr.bf16.mxu0 0
      %5685 = vmatpush1.bf16.msra.mxu0 0
      %5686 = vmatprep.subr.bf16.mxu0 0
      %5687 = vmatpush1.bf16.msra.mxu0 0
      %5688 = vmatprep.subr.bf16.mxu0 0
      %5689 = vmatpush1.bf16.msra.mxu0 0
      %5690 = vmatprep.subr.bf16.mxu0 0
      %5691 = vmatpush1.bf16.msra.mxu0 0
      %5692 = vmatprep.subr.bf16.mxu0 0
      %5693 = vmatpush1.bf16.msra.mxu0 0
      %5694 = vmatprep.subr.bf16.mxu0 0
      %5695 = vmatpush1.bf16.msra.mxu0 0
      %5696 = vmatprep.subr.bf16.mxu0 0
      %5697 = vmatpush1.bf16.msra.mxu0 0
      %5698 = vmatprep.subr.bf16.mxu0 0
      %5699 = vmatpush1.bf16.msra.mxu0 0
      %5700 = vmatprep.subr.bf16.mxu0 0
      %5701 = vmatpush1.bf16.msra.mxu0 0
      %5702 = vmatprep.mubr.bf16.mxu0 0
      %5703 = vmatmul.mubr.bf16.gmra.mrb[0].mxu0 %v5623
      %v5704 = vpop.f32.mrb[0].mxu0
      %v5705 = vadd.f32 0.0, %v5704
      %v5706 = vpop.f32.mrb[0].mxu0
      %v5707 = vpop.f32.mrb[0].mxu0
      %v5708 = vadd.f32 0.0, %v5707
      %v5709 = vpop.f32.mrb[0].mxu0
      %5710 = vmatprep.mubr.bf16.mxu0 0
      %5711 = vmatmul.mubr.bf16.gmra.mrb[0].mxu0 %v5626
      %v5712 = vpop.f32.mrb[0].mxu0
      %v5713 = vadd.f32 0.0, %v5712
      %v5714 = vpop.f32.mrb[0].mxu0
      %v5715 = vpop.f32.mrb[0].mxu0
      %v5716 = vadd.f32 0.0, %v5715
      %v5717 = vpop.f32.mrb[0].mxu0
      %5718 = vmatprep.mubr.bf16.mxu0 0
      %5719 = vmatmul.mubr.bf16.gmra.mrb[0].mxu0 %v5629
      %v5720 = vpop.f32.mrb[0].mxu0
      %v5721 = vadd.f32 0.0, %v5720
      %v5722 = vpop.f32.mrb[0].mxu0
      %v5723 = vpop.f32.mrb[0].mxu0
      %v5724 = vadd.f32 0.0, %v5723
      %v5725 = vpop.f32.mrb[0].mxu0
      %5726 = vmatprep.mubr.bf16.mxu0 0
      %5727 = vmatmul.mubr.bf16.gmra.mrb[0].mxu0 %v5632
      %v5728 = vpop.f32.mrb[0].mxu0
      %v5729 = vadd.f32 0.0, %v5728
      %v5730 = vpop.f32.mrb[0].mxu0
      %v5731 = vpop.f32.mrb[0].mxu0
      %v5732 = vadd.f32 0.0, %v5731
      %v5733 = vpop.f32.mrb[0].mxu0
      %5734 = vmatprep.mubr.bf16.mxu0 0
      %5735 = vmatmul.mubr.bf16.gmra.mrb[0].mxu0 %v5635
      %v5736 = vpop.f32.mrb[0].mxu0
      %v5737 = vadd.f32 0.0, %v5736
      %v5738 = vpop.f32.mrb[0].mxu0
      %v5739 = vpop.f32.mrb[0].mxu0
      %v5740 = vadd.f32 0.0, %v5739
      %v5741 = vpop.f32.mrb[0].mxu0
      %5742 = vmatprep.mubr.bf16.mxu0 0
      %5743 = vmatmul.mubr.bf16.gmra.mrb[0].mxu0 %v5638
      %v5744 = vpop.f32.mrb[0].mxu0
      %v5745 = vadd.f32 0.0, %v5744
      %v5746 = vpop.f32.mrb[0].mxu0
      %v5747 = vpop.f32.mrb[0].mxu0
      %v5748 = vadd.f32 0.0, %v5747
      %v5749 = vpop.f32.mrb[0].mxu0
      %5750 = vmatprep.mubr.bf16.mxu0 0
      %5751 = vmatmul.mubr.bf16.gmra.mrb[0].mxu0 %v5641
      %v5752 = vpop.f32.mrb[0].mxu0
      %v5753 = vadd.f32 0.0, %v5752
      %v5754 = vpop.f32.mrb[0].mxu0
      %v5755 = vpop.f32.mrb[0].mxu0
      %v5756 = vadd.f32 0.0, %v5755
      %v5757 = vpop.f32.mrb[0].mxu0
      %5758 = vmatprep.mubr.bf16.mxu0 0
      %5759 = vmatmul.mubr.bf16.gmra.mrb[0].mxu0 %v5644
      %v5760 = vpop.f32.mrb[0].mxu0
      %v5761 = vadd.f32 0.0, %v5760
      %v5762 = vpop.f32.mrb[0].mxu0
      %v5763 = vpop.f32.mrb[0].mxu0
      %v5764 = vadd.f32 0.0, %v5763
      %v5765 = vpop.f32.mrb[0].mxu0
      %5766 = vmatprep.mubr.bf16.mxu0 0
      %5767 = vmatmul.mubr.bf16.gmra.mrb[0].mxu0 %v5647
      %v5768 = vpop.f32.mrb[0].mxu0
      %v5769 = vadd.f32 0.0, %v5768
      %v5770 = vpop.f32.mrb[0].mxu0
      %v5771 = vpop.f32.mrb[0].mxu0
      %v5772 = vadd.f32 0.0, %v5771
      %v5773 = vpop.f32.mrb[0].mxu0
      %5774 = vmatprep.mubr.bf16.mxu0 0
      %5775 = vmatmul.mubr.bf16.gmra.mrb[0].mxu0 %v5650
      %v5776 = vpop.f32.mrb[0].mxu0
      %v5777 = vadd.f32 0.0, %v5776
      %v5778 = vpop.f32.mrb[0].mxu0
      %v5779 = vpop.f32.mrb[0].mxu0
      %v5780 = vadd.f32 0.0, %v5779
      %v5781 = vpop.f32.mrb[0].mxu0
      %5782 = vmatprep.mubr.bf16.mxu0 0
      %5783 = vmatmul.mubr.bf16.gmra.mrb[0].mxu0 %v5653
      %v5784 = vpop.f32.mrb[0].mxu0
      %v5785 = vadd.f32 0.0, %v5784
      %v5786 = vpop.f32.mrb[0].mxu0
      %v5787 = vpop.f32.mrb[0].mxu0
      %v5788 = vadd.f32 0.0, %v5787
      %v5789 = vpop.f32.mrb[0].mxu0
      %5790 = vmatprep.mubr.bf16.mxu0 0
      %5791 = vmatmul.mubr.bf16.gmra.mrb[0].mxu0 %v5656
      %v5792 = vpop.f32.mrb[0].mxu0
      %v5793 = vadd.f32 0.0, %v5792
      %v5794 = vpop.f32.mrb[0].mxu0
      %v5795 = vpop.f32.mrb[0].mxu0
      %v5796 = vadd.f32 0.0, %v5795
      %v5797 = vpop.f32.mrb[0].mxu0
      %5798 = vmatprep.mubr.bf16.mxu0 0
      %5799 = vmatmul.mubr.bf16.gmra.mrb[0].mxu0 %v5659
      %v5800 = vpop.f32.mrb[0].mxu0
      %v5801 = vadd.f32 0.0, %v5800
      %v5802 = vpop.f32.mrb[0].mxu0
      %v5803 = vpop.f32.mrb[0].mxu0
      %v5804 = vadd.f32 0.0, %v5803
      %v5805 = vpop.f32.mrb[0].mxu0
      %5806 = vmatprep.mubr.bf16.mxu0 0
      %5807 = vmatmul.mubr.bf16.gmra.mrb[0].mxu0 %v5662
      %v5808 = vpop.f32.mrb[0].mxu0
      %v5809 = vadd.f32 0.0, %v5808
      %v5810 = vpop.f32.mrb[0].mxu0
      %v5811 = vpop.f32.mrb[0].mxu0
      %v5812 = vadd.f32 0.0, %v5811
      %v5813 = vpop.f32.mrb[0].mxu0
      %5814 = vmatprep.mubr.bf16.mxu0 0
      %5815 = vmatmul.mubr.bf16.gmra.mrb[0].mxu0 %v5665
      %v5816 = vpop.f32.mrb[0].mxu0
      %v5817 = vadd.f32 0.0, %v5816
      %v5818 = vpop.f32.mrb[0].mxu0
      %v5819 = vpop.f32.mrb[0].mxu0
      %v5820 = vadd.f32 0.0, %v5819
      %v5821 = vpop.f32.mrb[0].mxu0
      %5822 = vmatprep.mubr.bf16.mxu0 0
      %5823 = vmatmul.mubr.bf16.gmra.mrb[0].mxu0 %v5668
      %v5824 = vpop.f32.mrb[0].mxu0
      %v5825 = vadd.f32 0.0, %v5824
      %v5826 = vpop.f32.mrb[0].mxu0
      %v5827 = vpop.f32.mrb[0].mxu0
      %v5828 = vadd.f32 0.0, %v5827
      %v5829 = vpop.f32.mrb[0].mxu0
      %5830 = vdwg.mxu0
      %v5831 = vadd.f32 %v5333, %v5705
      %v5832 = vadd.f32 %v5334, %v5708
      %v5833 = vadd.f32 %v5335, %v5713
      %v5834 = vadd.f32 %v5336, %v5716
      %v5835 = vadd.f32 %v5337, %v5721
      %v5836 = vadd.f32 %v5338, %v5724
      %v5837 = vadd.f32 %v5339, %v5729
      %v5838 = vadd.f32 %v5340, %v5732
      %v5839 = vadd.f32 %v5341, %v5737
      %v5840 = vadd.f32 %v5342, %v5740
      %v5841 = vadd.f32 %v5343, %v5745
      %v5842 = vadd.f32 %v5344, %v5748
      %v5843 = vadd.f32 %v5345, %v5753
      %v5844 = vadd.f32 %v5346, %v5756
      %v5845 = vadd.f32 %v5347, %v5761
      %v5846 = vadd.f32 %v5348, %v5764
      %v5847 = vadd.f32 %v5349, %v5769
      %v5848 = vadd.f32 %v5350, %v5772
      %v5849 = vadd.f32 %v5351, %v5777
      %v5850 = vadd.f32 %v5352, %v5780
      %v5851 = vadd.f32 %v5353, %v5785
      %v5852 = vadd.f32 %v5354, %v5788
      %v5853 = vadd.f32 %v5355, %v5793
      %v5854 = vadd.f32 %v5356, %v5796
      %v5855 = vadd.f32 %v5357, %v5801
      %v5856 = vadd.f32 %v5358, %v5804
      %v5857 = vadd.f32 %v5359, %v5809
      %v5858 = vadd.f32 %v5360, %v5812
      %v5859 = vadd.f32 %v5361, %v5817
      %v5860 = vadd.f32 %v5362, %v5820
      %v5861 = vadd.f32 %v5363, %v5825
      %v5862 = vadd.f32 %v5364, %v5828
      %v5863 = vpack.c.bf16 %v5832, %v5831
      %v5864 = vpack.c.bf16 %v5834, %v5833
      %v5865 = vpack.c.bf16 %v5836, %v5835
      %v5866 = vpack.c.bf16 %v5838, %v5837
      %v5867 = vpack.c.bf16 %v5840, %v5839
      %v5868 = vpack.c.bf16 %v5842, %v5841
      %v5869 = vpack.c.bf16 %v5844, %v5843
      %v5870 = vpack.c.bf16 %v5846, %v5845
      %v5871 = vpack.c.bf16 %v5848, %v5847
      %v5872 = vpack.c.bf16 %v5850, %v5849
      %v5873 = vpack.c.bf16 %v5852, %v5851
      %v5874 = vpack.c.bf16 %v5854, %v5853
      %v5875 = vpack.c.bf16 %v5856, %v5855
      %v5876 = vpack.c.bf16 %v5858, %v5857
      %v5877 = vpack.c.bf16 %v5860, %v5859
      %v5878 = vpack.c.bf16 %v5862, %v5861
      %v5895 = vunpack.c.l.b16 %v5863
      %v5896 = vunpack.c.h.b16 %v5863
      %v5897 = vunpack.c.l.b16 %v5864
      %v5898 = vunpack.c.h.b16 %v5864
      %v5899 = vunpack.c.l.b16 %v5865
      %v5900 = vunpack.c.h.b16 %v5865
      %v5901 = vunpack.c.l.b16 %v5866
      %v5902 = vunpack.c.h.b16 %v5866
      %v5903 = vunpack.c.l.b16 %v5867
      %v5904 = vunpack.c.h.b16 %v5867
      %v5905 = vunpack.c.l.b16 %v5868
      %v5906 = vunpack.c.h.b16 %v5868
      %v5907 = vunpack.c.l.b16 %v5869
      %v5908 = vunpack.c.h.b16 %v5869
      %v5909 = vunpack.c.l.b16 %v5870
      %v5910 = vunpack.c.h.b16 %v5870
      %v5911 = vunpack.c.l.b16 %v5871
      %v5912 = vunpack.c.h.b16 %v5871
      %v5913 = vunpack.c.l.b16 %v5872
      %v5914 = vunpack.c.h.b16 %v5872
      %v5915 = vunpack.c.l.b16 %v5873
      %v5916 = vunpack.c.h.b16 %v5873
      %v5917 = vunpack.c.l.b16 %v5874
      %v5918 = vunpack.c.h.b16 %v5874
      %v5919 = vunpack.c.l.b16 %v5875
      %v5920 = vunpack.c.h.b16 %v5875
      %v5921 = vunpack.c.l.b16 %v5876
      %v5922 = vunpack.c.h.b16 %v5876
      %v5923 = vunpack.c.l.b16 %v5877
      %v5924 = vunpack.c.h.b16 %v5877
      %v5925 = vunpack.c.l.b16 %v5878
      %v5926 = vunpack.c.h.b16 %v5878
      %v5927 = vpack.c.b16 %v5895, %v5895
      %v5928 = vpack.c.b16 %v5896, %v5896
      %v5929 = vpack.c.b16 %v5897, %v5897
      %v5930 = vpack.c.b16 %v5898, %v5898
      %v5931 = vpack.c.b16 %v5899, %v5899
      %v5932 = vpack.c.b16 %v5900, %v5900
      %v5933 = vpack.c.b16 %v5901, %v5901
      %v5934 = vpack.c.b16 %v5902, %v5902
      %v5935 = vpack.c.b16 %v5903, %v5903
      %v5936 = vpack.c.b16 %v5904, %v5904
      %v5937 = vpack.c.b16 %v5905, %v5905
      %v5938 = vpack.c.b16 %v5906, %v5906
      %v5939 = vpack.c.b16 %v5907, %v5907
      %v5940 = vpack.c.b16 %v5908, %v5908
      %v5941 = vpack.c.b16 %v5909, %v5909
      %v5942 = vpack.c.b16 %v5910, %v5910
      %v5943 = vpack.c.b16 %v5911, %v5911
      %v5944 = vpack.c.b16 %v5912, %v5912
      %v5945 = vpack.c.b16 %v5913, %v5913
      %v5946 = vpack.c.b16 %v5914, %v5914
      %v5947 = vpack.c.b16 %v5915, %v5915
      %v5948 = vpack.c.b16 %v5916, %v5916
      %v5949 = vpack.c.b16 %v5917, %v5917
      %v5950 = vpack.c.b16 %v5918, %v5918
      %v5951 = vpack.c.b16 %v5919, %v5919
      %v5952 = vpack.c.b16 %v5920, %v5920
      %v5953 = vpack.c.b16 %v5921, %v5921
      %v5954 = vpack.c.b16 %v5922, %v5922
      %v5955 = vpack.c.b16 %v5923, %v5923
      %v5956 = vpack.c.b16 %v5924, %v5924
      %v5957 = vpack.c.b16 %v5925, %v5925
      %v5958 = vpack.c.b16 %v5926, %v5926
      %5991 = vst.msk [vmem:[%s231] sm:$0xf] %vm237, %v5927
      %5992 = vst.msk [vmem:[%s231 + $0x4] sm:$0xf] %vm237, %v5928
      %5993 = vst.msk [vmem:[%s231 + $0x8] sm:$0xf] %vm237, %v5929
      %5994 = vst.msk [vmem:[%s231 + $0xc] sm:$0xf] %vm237, %v5930
      %5995 = vst.msk [vmem:[%s231 + $0x10] sm:$0xf] %vm237, %v5931
      %5996 = vst.msk [vmem:[%s231 + $0x14] sm:$0xf] %vm237, %v5932
      %5997 = vst.msk [vmem:[%s231 + $0x18] sm:$0xf] %vm237, %v5933
      %5998 = vst.msk [vmem:[%s231 + $0x1c] sm:$0xf] %vm237, %v5934
      %5999 = vst.msk [vmem:[%s231 + $0x20] sm:$0xf] %vm237, %v5935
      %6000 = vst.msk [vmem:[%s231 + $0x24] sm:$0xf] %vm237, %v5936
      %6001 = vst.msk [vmem:[%s231 + $0x28] sm:$0xf] %vm237, %v5937
      %6002 = vst.msk [vmem:[%s231 + $0x2c] sm:$0xf] %vm237, %v5938
      %6003 = vst.msk [vmem:[%s231 + $0x30] sm:$0xf] %vm237, %v5939
      %6004 = vst.msk [vmem:[%s231 + $0x34] sm:$0xf] %vm237, %v5940
      %6005 = vst.msk [vmem:[%s231 + $0x38] sm:$0xf] %vm237, %v5941
      %6006 = vst.msk [vmem:[%s231 + $0x3c] sm:$0xf] %vm237, %v5942
      %6007 = vst.msk [vmem:[%s231 + $0x40] sm:$0xf] %vm237, %v5943
      %6008 = vst.msk [vmem:[%s231 + $0x44] sm:$0xf] %vm237, %v5944
      %6009 = vst.msk [vmem:[%s231 + $0x48] sm:$0xf] %vm237, %v5945
      %6010 = vst.msk [vmem:[%s231 + $0x4c] sm:$0xf] %vm237, %v5946
      %6011 = vst.msk [vmem:[%s231 + $0x50] sm:$0xf] %vm237, %v5947
      %6012 = vst.msk [vmem:[%s231 + $0x54] sm:$0xf] %vm237, %v5948
      %6013 = vst.msk [vmem:[%s231 + $0x58] sm:$0xf] %vm237, %v5949
      %6014 = vst.msk [vmem:[%s231 + $0x5c] sm:$0xf] %vm237, %v5950
      %6015 = vst.msk [vmem:[%s231 + $0x60] sm:$0xf] %vm237, %v5951
      %6016 = vst.msk [vmem:[%s231 + $0x64] sm:$0xf] %vm237, %v5952
      %6017 = vst.msk [vmem:[%s231 + $0x68] sm:$0xf] %vm237, %v5953
      %6018 = vst.msk [vmem:[%s231 + $0x6c] sm:$0xf] %vm237, %v5954
      %6019 = vst.msk [vmem:[%s231 + $0x70] sm:$0xf] %vm237, %v5955
      %6020 = vst.msk [vmem:[%s231 + $0x74] sm:$0xf] %vm237, %v5956
      %6021 = vst.msk [vmem:[%s231 + $0x78] sm:$0xf] %vm237, %v5957
      %6022 = vst.msk [vmem:[%s231 + $0x7c] sm:$0xf] %vm237, %v5958
      %v6023 = vsel %vm1578, %v5831, 0.0
      %v6024 = vsel %vm1578, %v5832, 0.0
      %v6025 = vadd.f32 %v6023, %v6024
      %v6026 = vsel %vm1578, %v5833, 0.0
      %v6027 = vadd.f32 %v6025, %v6026
      %v6028 = vsel %vm1578, %v5834, 0.0
      %v6029 = vadd.f32 %v6027, %v6028
      %v6030 = vsel %vm1578, %v5835, 0.0
      %v6031 = vadd.f32 %v6029, %v6030
      %v6032 = vsel %vm1578, %v5836, 0.0
      %v6033 = vadd.f32 %v6031, %v6032
      %v6034 = vsel %vm1578, %v5837, 0.0
      %v6035 = vadd.f32 %v6033, %v6034
      %v6036 = vsel %vm1578, %v5838, 0.0
      %v6037 = vadd.f32 %v6035, %v6036
      %v6038 = vsel %vm1578, %v5839, 0.0
      %v6039 = vadd.f32 %v6037, %v6038
      %v6040 = vsel %vm1578, %v5840, 0.0
      %v6041 = vadd.f32 %v6039, %v6040
      %v6042 = vsel %vm1578, %v5841, 0.0
      %v6043 = vadd.f32 %v6041, %v6042
      %v6044 = vsel %vm1578, %v5842, 0.0
      %v6045 = vadd.f32 %v6043, %v6044
      %v6046 = vsel %vm1578, %v5843, 0.0
      %v6047 = vadd.f32 %v6045, %v6046
      %v6048 = vsel %vm1578, %v5844, 0.0
      %v6049 = vadd.f32 %v6047, %v6048
      %v6050 = vsel %vm1578, %v5845, 0.0
      %v6051 = vadd.f32 %v6049, %v6050
      %v6052 = vsel %vm1578, %v5846, 0.0
      %v6053 = vadd.f32 %v6051, %v6052
      %v6054 = vsel %vm1578, %v5847, 0.0
      %v6055 = vadd.f32 %v6053, %v6054
      %v6056 = vsel %vm1578, %v5848, 0.0
      %v6057 = vadd.f32 %v6055, %v6056
      %v6058 = vsel %vm1578, %v5849, 0.0
      %v6059 = vadd.f32 %v6057, %v6058
      %v6060 = vsel %vm1578, %v5850, 0.0
      %v6061 = vadd.f32 %v6059, %v6060
      %v6062 = vsel %vm1578, %v5851, 0.0
      %v6063 = vadd.f32 %v6061, %v6062
      %v6064 = vsel %vm1578, %v5852, 0.0
      %v6065 = vadd.f32 %v6063, %v6064
      %v6066 = vsel %vm1578, %v5853, 0.0
      %v6067 = vadd.f32 %v6065, %v6066
      %v6068 = vsel %vm1578, %v5854, 0.0
      %v6069 = vadd.f32 %v6067, %v6068
      %v6070 = vsel %vm1578, %v5855, 0.0
      %v6071 = vadd.f32 %v6069, %v6070
      %v6072 = vsel %vm1578, %v5856, 0.0
      %v6073 = vadd.f32 %v6071, %v6072
      %v6074 = vsel %vm1578, %v5857, 0.0
      %v6075 = vadd.f32 %v6073, %v6074
      %v6076 = vsel %vm1578, %v5858, 0.0
      %v6077 = vadd.f32 %v6075, %v6076
      %v6078 = vsel %vm1578, %v5859, 0.0
      %v6079 = vadd.f32 %v6077, %v6078
      %v6080 = vsel %vm1578, %v5860, 0.0
      %v6081 = vadd.f32 %v6079, %v6080
      %v6082 = vsel %vm1578, %v5861, 0.0
      %v6083 = vadd.f32 %v6081, %v6082
      %v6084 = vsel %vm1578, %v5862, 0.0
      %v6085 = vadd.f32 %v6083, %v6084
      %v6086 = vrot.slane %v6085, 4
      %v6087 = vadd.f32 %v6085, %v6086
      %v6088 = vrot.slane %v6087, 2
      %v6089 = vadd.f32 %v6087, %v6088
      %v6090 = vrot.slane %v6089, 1
      %v6091 = vadd.f32 %v6089, %v6090
      %v6092 = vrcp.pop 256.0
      %v6093 = vmul.f32 %v6091, %v6092
      %v6094 = vsub.f32 %v5831, %v6093
      %v6095 = vsub.f32 %v5832, %v6093
      %v6096 = vsub.f32 %v5833, %v6093
      %v6097 = vsub.f32 %v5834, %v6093
      %v6098 = vsub.f32 %v5835, %v6093
      %v6099 = vsub.f32 %v5836, %v6093
      %v6100 = vsub.f32 %v5837, %v6093
      %v6101 = vsub.f32 %v5838, %v6093
      %v6102 = vsub.f32 %v5839, %v6093
      %v6103 = vsub.f32 %v5840, %v6093
      %v6104 = vsub.f32 %v5841, %v6093
      %v6105 = vsub.f32 %v5842, %v6093
      %v6106 = vsub.f32 %v5843, %v6093
      %v6107 = vsub.f32 %v5844, %v6093
      %v6108 = vsub.f32 %v5845, %v6093
      %v6109 = vsub.f32 %v5846, %v6093
      %v6110 = vsub.f32 %v5847, %v6093
      %v6111 = vsub.f32 %v5848, %v6093
      %v6112 = vsub.f32 %v5849, %v6093
      %v6113 = vsub.f32 %v5850, %v6093
      %v6114 = vsub.f32 %v5851, %v6093
      %v6115 = vsub.f32 %v5852, %v6093
      %v6116 = vsub.f32 %v5853, %v6093
      %v6117 = vsub.f32 %v5854, %v6093
      %v6118 = vsub.f32 %v5855, %v6093
      %v6119 = vsub.f32 %v5856, %v6093
      %v6120 = vsub.f32 %v5857, %v6093
      %v6121 = vsub.f32 %v5858, %v6093
      %v6122 = vsub.f32 %v5859, %v6093
      %v6123 = vsub.f32 %v5860, %v6093
      %v6124 = vsub.f32 %v5861, %v6093
      %v6125 = vsub.f32 %v5862, %v6093
      %v6126 = vmul.f32 %v6094, %v6094
      %v6127 = vmul.f32 %v6095, %v6095
      %v6128 = vmul.f32 %v6096, %v6096
      %v6129 = vmul.f32 %v6097, %v6097
      %v6130 = vmul.f32 %v6098, %v6098
      %v6131 = vmul.f32 %v6099, %v6099
      %v6132 = vmul.f32 %v6100, %v6100
      %v6133 = vmul.f32 %v6101, %v6101
      %v6134 = vmul.f32 %v6102, %v6102
      %v6135 = vmul.f32 %v6103, %v6103
      %v6136 = vmul.f32 %v6104, %v6104
      %v6137 = vmul.f32 %v6105, %v6105
      %v6138 = vmul.f32 %v6106, %v6106
      %v6139 = vmul.f32 %v6107, %v6107
      %v6140 = vmul.f32 %v6108, %v6108
      %v6141 = vmul.f32 %v6109, %v6109
      %v6142 = vmul.f32 %v6110, %v6110
      %v6143 = vmul.f32 %v6111, %v6111
      %v6144 = vmul.f32 %v6112, %v6112
      %v6145 = vmul.f32 %v6113, %v6113
      %v6146 = vmul.f32 %v6114, %v6114
      %v6147 = vmul.f32 %v6115, %v6115
      %v6148 = vmul.f32 %v6116, %v6116
      %v6149 = vmul.f32 %v6117, %v6117
      %v6150 = vmul.f32 %v6118, %v6118
      %v6151 = vmul.f32 %v6119, %v6119
      %v6152 = vmul.f32 %v6120, %v6120
      %v6153 = vmul.f32 %v6121, %v6121
      %v6154 = vmul.f32 %v6122, %v6122
      %v6155 = vmul.f32 %v6123, %v6123
      %v6156 = vmul.f32 %v6124, %v6124
      %v6157 = vmul.f32 %v6125, %v6125
      %v6158 = vsel %vm1578, %v6126, 0.0
      %v6159 = vsel %vm1578, %v6127, 0.0
      %v6160 = vadd.f32 %v6158, %v6159
      %v6161 = vsel %vm1578, %v6128, 0.0
      %v6162 = vadd.f32 %v6160, %v6161
      %v6163 = vsel %vm1578, %v6129, 0.0
      %v6164 = vadd.f32 %v6162, %v6163
      %v6165 = vsel %vm1578, %v6130, 0.0
      %v6166 = vadd.f32 %v6164, %v6165
      %v6167 = vsel %vm1578, %v6131, 0.0
      %v6168 = vadd.f32 %v6166, %v6167
      %v6169 = vsel %vm1578, %v6132, 0.0
      %v6170 = vadd.f32 %v6168, %v6169
      %v6171 = vsel %vm1578, %v6133, 0.0
      %v6172 = vadd.f32 %v6170, %v6171
      %v6173 = vsel %vm1578, %v6134, 0.0
      %v6174 = vadd.f32 %v6172, %v6173
      %v6175 = vsel %vm1578, %v6135, 0.0
      %v6176 = vadd.f32 %v6174, %v6175
      %v6177 = vsel %vm1578, %v6136, 0.0
      %v6178 = vadd.f32 %v6176, %v6177
      %v6179 = vsel %vm1578, %v6137, 0.0
      %v6180 = vadd.f32 %v6178, %v6179
      %v6181 = vsel %vm1578, %v6138, 0.0
      %v6182 = vadd.f32 %v6180, %v6181
      %v6183 = vsel %vm1578, %v6139, 0.0
      %v6184 = vadd.f32 %v6182, %v6183
      %v6185 = vsel %vm1578, %v6140, 0.0
      %v6186 = vadd.f32 %v6184, %v6185
      %v6187 = vsel %vm1578, %v6141, 0.0
      %v6188 = vadd.f32 %v6186, %v6187
      %v6189 = vsel %vm1578, %v6142, 0.0
      %v6190 = vadd.f32 %v6188, %v6189
      %v6191 = vsel %vm1578, %v6143, 0.0
      %v6192 = vadd.f32 %v6190, %v6191
      %v6193 = vsel %vm1578, %v6144, 0.0
      %v6194 = vadd.f32 %v6192, %v6193
      %v6195 = vsel %vm1578, %v6145, 0.0
      %v6196 = vadd.f32 %v6194, %v6195
      %v6197 = vsel %vm1578, %v6146, 0.0
      %v6198 = vadd.f32 %v6196, %v6197
      %v6199 = vsel %vm1578, %v6147, 0.0
      %v6200 = vadd.f32 %v6198, %v6199
      %v6201 = vsel %vm1578, %v6148, 0.0
      %v6202 = vadd.f32 %v6200, %v6201
      %v6203 = vsel %vm1578, %v6149, 0.0
      %v6204 = vadd.f32 %v6202, %v6203
      %v6205 = vsel %vm1578, %v6150, 0.0
      %v6206 = vadd.f32 %v6204, %v6205
      %v6207 = vsel %vm1578, %v6151, 0.0
      %v6208 = vadd.f32 %v6206, %v6207
      %v6209 = vsel %vm1578, %v6152, 0.0
      %v6210 = vadd.f32 %v6208, %v6209
      %v6211 = vsel %vm1578, %v6153, 0.0
      %v6212 = vadd.f32 %v6210, %v6211
      %v6213 = vsel %vm1578, %v6154, 0.0
      %v6214 = vadd.f32 %v6212, %v6213
      %v6215 = vsel %vm1578, %v6155, 0.0
      %v6216 = vadd.f32 %v6214, %v6215
      %v6217 = vsel %vm1578, %v6156, 0.0
      %v6218 = vadd.f32 %v6216, %v6217
      %v6219 = vsel %vm1578, %v6157, 0.0
      %v6220 = vadd.f32 %v6218, %v6219
      %v6221 = vrot.slane %v6220, 4
      %v6222 = vadd.f32 %v6220, %v6221
      %v6223 = vrot.slane %v6222, 2
      %v6224 = vadd.f32 %v6222, %v6223
      %v6225 = vrot.slane %v6224, 1
      %v6226 = vadd.f32 %v6224, %v6225
      %vm6227 = vcmask 1040384
      %v6228 = vsel %vm6227, %v6091, %v6226
      %vm6229 = vcmask 1041408
      %v6230 = vsel %vm6229, %v6228, 256.0
      %vm6231 = vcmask 518144
      %6232 = vst.msk [vmem:[%s235] sm:$0x7] %vm6231, %v6230
      %p6233 = scmp.lt.s32.totalorder %s17, 1
      %s6234 = scalar_select %p6233, %s17, 1
      %s6235 = smul.addr %s6234, 32
      %s6236 = smul.addr %s6235, 4
      %s6237 = scalar_lea.vmem %s4, %s6236
      %p6238 = scmp.lt.s32.totalorder %s17, 1
      %s6239 = scalar_select %p6238, %s17, 1
      %s6240 = smul.addr %s6239, 4
      %s6241 = scalar_lea.vmem %s5, %s6240
      // Predicated region
      $region37: #{_bottleneck_forward.4} parent=35 // pred_check
        %p6242 = pneg %p124
      $region38: #{_bottleneck_forward.4} parent=35 // pred_check_branch
        %6244 = sbr.rel (%p6242) target = $region40
      $region39: #{_bottleneck_forward.4} parent=35 // pred_region
        _
      $region40: #{_bottleneck_forward.4} parent=35 // pred_fallthru
        _
      // Predicated region
      $region41: #{_bottleneck_forward.4} parent=35 // pred_check
        %p6245 = pneg %p150
      $region42: #{_bottleneck_forward.4} parent=35 // pred_check_branch
        %6247 = sbr.rel (%p6245) target = $region44
      $region43: #{_bottleneck_forward.4} parent=35 // pred_region
        _
      $region44: #{_bottleneck_forward.4} parent=35 // pred_fallthru
        _
    $region36: #{_bottleneck_forward.4} parent=5 // pred_fallthru
      _
    %p6248 = scmp.le.s32.totalorder 2, %s12
    // Predicated region
    $region45: #{_bottleneck_forward.4} parent=5 // pred_check
      %p6249 = pneg %p6248
    $region46: #{_bottleneck_forward.4} parent=5 // pred_check_branch
      %6251 = sbr.rel (%p6249) target = $region48
    $region47: #{_bottleneck_forward.4} parent=5 // pred_region
      %s6252 = ssub.s32 %s12, 2
      // Predicated region
      $region49: #{_bottleneck_forward.4} parent=47 // pred_check
        %p6253 = pneg %p130
      $region50: #{_bottleneck_forward.4} parent=47 // pred_check_branch
        %6255 = sbr.rel (%p6253) target = $region52
      $region51: #{_bottleneck_forward.4} parent=47 // pred_region
        %p6256 = scmp.lt.s32.totalorder %s18, 1
        %s6257 = scalar_select %p6256, %s18, 1
        %s6258 = smul.addr %s6257, 32
        %s6259 = smul.addr %s6258, 4
        %s6260 = scalar_lea.vmem %s4, %s6259
      $region52: #{_bottleneck_forward.4} parent=47 // pred_fallthru
        _
      // Predicated region
      $region53: #{_bottleneck_forward.4} parent=47 // pred_check
        %p6261 = pneg %p156
      $region54: #{_bottleneck_forward.4} parent=47 // pred_check_branch
        %6263 = sbr.rel (%p6261) target = $region56
      $region55: #{_bottleneck_forward.4} parent=47 // pred_region
        %p6264 = scmp.lt.s32.totalorder %s18, 1
        %s6265 = scalar_select %p6264, %s18, 1
        %s6266 = smul.addr %s6265, 4
        %s6267 = scalar_lea.vmem %s5, %s6266
      $region56: #{_bottleneck_forward.4} parent=47 // pred_fallthru
        _
    $region48: #{_bottleneck_forward.4} parent=5 // pred_fallthru
      _
  $region6: #{_bottleneck_forward.4} parent=0 // loop_footer
    %s16 = sadd.s32 1, %s12
  $region7: #{_bottleneck_forward.4} parent=0 // loop_footer_branch
    %11 = sbr.rel target = $region3
  $region8: #{_bottleneck_forward.4} parent=0 // loop_exit
    _

</llo_original>
